<compile_context>
chip_gen: v6e
topology: v6e:2x2x1
jax: 0.10.0
libtpu: 0.0.40
codegen_flags: <defaults>
</compile_context>

<pallas_src>
import math
from functools import partial

import jax
import jax.numpy as jnp
from jax.experimental import pallas as pl
from jax.experimental.pallas import tpu as pltpu

# f32-appropriate epsilons (the fp64 values 1e-15 / 1-1e-7 give no margin in f32).
EPS = 1e-7
ARTANH_CLIP = 1.0 - 1e-6
PROJ_EPS = 1e-5          # geoopt ball-projection epsilon
LN_EPS = 1e-6

# Matmul operand dtype for weight matmuls / midpoint einsum; accumulation is always f32.
# Set to jnp.float32 for exact-f32 matmul fidelity (distance chain is always f32).
MATMUL_DTYPE = jnp.bfloat16


# ----------------------------- hyperbolic math helpers (k = -1) -----------------------------
def _norm(x):
    return jnp.sqrt(jnp.maximum(jnp.sum(x * x, axis=-1, keepdims=True), 0.0))


def _artanh(x):
    x = jnp.clip(x, -ARTANH_CLIP, ARTANH_CLIP)
    return 0.5 * (jnp.log1p(x) - jnp.log1p(-x))


def _expmap0(u):
    n = jnp.maximum(_norm(u), EPS)
    return (jnp.tanh(n) / n) * u


def _logmap0(y):
    n = jnp.maximum(_norm(y), EPS)
    return (_artanh(n) / n) * y


def _project(x):
    n = jnp.maximum(_norm(x), EPS)
    maxnorm = 1.0 - PROJ_EPS
    return x * jnp.where(n > maxnorm, maxnorm / n, 1.0)


def _mobius_add(x, y):
    xy = jnp.sum(x * y, axis=-1, keepdims=True)
    x2 = jnp.sum(x * x, axis=-1, keepdims=True)
    y2 = jnp.sum(y * y, axis=-1, keepdims=True)
    num = (1.0 + 2.0 * xy + y2) * x + (1.0 - x2) * y
    den = jnp.maximum(1.0 + 2.0 * xy + x2 * y2, EPS)
    return num / den


def _tanh_rescale(mx, xn, at_xn):
    # second half of mobius_matvec: tanh(||Mx||/||x|| * artanh(||x||)) * Mx/||Mx||
    # (geoopt's zero-row guard is redundant: mx == 0 already yields 0 via mx/mxn)
    mxn = jnp.maximum(_norm(mx), EPS)
    return jnp.tanh((mxn / xn) * at_xn) * (mx / mxn)


def _mobius_matvec(x, w, xn=None, at_xn=None):
    # x: (N, din) f32; w: (din, dout) MATMUL_DTYPE (pre-transposed in the wrapper).
    if xn is None:
        xn = jnp.maximum(_norm(x), EPS)
    if at_xn is None:
        at_xn = _artanh(xn)
    mx = jnp.dot(x.astype(w.dtype), w, preferred_element_type=jnp.float32)
    return _tanh_rescale(mx, xn, at_xn)


def _mobius_linear(x, w, b, xn=None, at_xn=None):
    # MobiusLinear with hyperbolic_input=True, hyperbolic_bias=True
    out = _mobius_matvec(x, w, xn, at_xn)
    out = _mobius_add(out, b)
    return _project(out)


def _hyper_layernorm(x, gamma, beta, hbias):
    t = _logmap0(x)
    d = t.shape[-1]
    mean = jnp.mean(t, axis=-1, keepdims=True)
    diff = t - mean
    var = jnp.sum(diff * diff, axis=-1, keepdims=True) * (1.0 / float(d - 1))  # torch.std (unbiased)
    std = jnp.sqrt(var)
    normalized = diff / (std + LN_EPS)
    normalized = gamma * normalized + beta
    return _mobius_add(_expmap0(normalized), hbias)


# ----------------------------------- the Pallas kernel -------------------------------------
def _block_kernel(x_ref,
                  wqkv_ref, bq_ref, bk_ref, bv_ref,
                  wo_ref, bo_ref,
                  w1_ref, b1_ref, w2_ref, b2_ref,
                  g1_ref, be1_ref, hb1_ref,
                  g2_ref, be2_ref, hb2_ref,
                  out_ref, attn_ref,
                  *, num_heads, scale, q_chunk):
    Bt, S, D = x_ref.shape
    H = num_heads
    dk = D // H
    N = Bt * S                      # rows in this grid step (flattened for the linears)
    G = Bt * H                      # batched head groups for attention

    x = x_ref[...].reshape(N, D)

    # shared row norms / artanh for the fused Q/K/V Mobius projection
    xn = jnp.maximum(_norm(x), EPS)
    at_xn = _artanh(xn)

    # ----- fused Q/K/V projection: one MXU pass over the concatenated (D, 3D) weight -----
    wqkv = wqkv_ref[...]
    mx_all = jnp.dot(x.astype(wqkv.dtype), wqkv, preferred_element_type=jnp.float32)   # (N, 3D)

    def finish_proj(mx, b):
        res = _tanh_rescale(mx, xn, at_xn)
        return _project(_mobius_add(res, b))

    Q = finish_proj(mx_all[:, 0 * D:1 * D], bq_ref[...])
    K = finish_proj(mx_all[:, 1 * D:2 * D], bk_ref[...])
    V = finish_proj(mx_all[:, 2 * D:3 * D], bv_ref[...])

    # ----- head split/merge: one transpose chain per batch row (no per-head lane slices) -----
    def split_heads(t):                                   # (N, D) -> (Bt*H, S, dk)
        parts = []
        for bt in range(Bt):
            rows = t[bt * S:(bt + 1) * S, :]              # (S, D)   sublane-aligned slice
            rt = rows.T.reshape(H, dk, S)                 # (H, dk, S)  aligned reshape
            parts.append(jnp.swapaxes(rt, 1, 2))          # (H, S, dk)  last-two swap
        return jnp.concatenate(parts, axis=0) if Bt > 1 else parts[0]

    def merge_heads(t):                                   # (Bt*H, S, dk) -> (N, D)
        parts = []
        for bt in range(Bt):
            a = jnp.swapaxes(t[bt * H:(bt + 1) * H], 1, 2)  # (H, dk, S)
            parts.append(a.reshape(D, S).T)                  # (S, D)
        return jnp.concatenate(parts, axis=0) if Bt > 1 else parts[0]

    q = split_heads(Q)
    k = split_heads(K)
    v = split_heads(V)

    q2 = jnp.sum(q * q, axis=-1, keepdims=True)           # (G, S, 1)
    k2 = jnp.sum(k * k, axis=-1)[:, None, :]               # (G, 1, S)
    tv = _logmap0(v)                                        # tangent-space values (G, S, dk)

    # ----- q-chunked hyperbolic distances -> softmax -> Einstein midpoint (all f32) -----
    # d(q_i, k_j) = 2 artanh(||(-q_i) (+) k_j||) = log(den + sqrt(num2)) - log(den - sqrt(num2))
    n_chunks = S // q_chunk
    att_parts = []
    for ci in range(n_chunks):
        q0 = ci * q_chunk
        qc = q[:, q0:q0 + q_chunk, :] if n_chunks > 1 else q
        q2c = q2[:, q0:q0 + q_chunk, :] if n_chunks > 1 else q2

        xy = jnp.einsum('gqd,gkd->gqk', qc, k, preferred_element_type=jnp.float32)  # (G,qc,S)
        A = 1.0 - 2.0 * xy + k2
        Bm = 1.0 - q2c
        num2 = A * A * q2c - 2.0 * A * Bm * xy + Bm * Bm * k2
        den = jnp.maximum(1.0 - 2.0 * xy + q2c * k2, EPS)
        sq = jnp.sqrt(jnp.maximum(num2, 0.0))
        dist = jnp.log(den + sq) - jnp.log(jnp.maximum(den - sq, EPS))   # 2 logs, no recips

        scores = -dist * scale
        scores = scores - jnp.max(scores, axis=-1, keepdims=True)
        e = jnp.exp(scores)
        w = e / jnp.sum(e, axis=-1, keepdims=True)          # exact softmax (weights sum to 1)

        if n_chunks == 1:
            attn_ref[...] = w.reshape(Bt, H, S, S)
        else:
            attn_ref[:, :, q0:q0 + q_chunk, :] = w.reshape(Bt, H, q_chunk, S)

        # Einstein midpoint: expmap0( w @ logmap0(V) ), batched over head groups
        avg = jnp.einsum('gqk,gkd->gqd',
                         w.astype(MATMUL_DTYPE), tv.astype(MATMUL_DTYPE),
                         preferred_element_type=jnp.float32)
        att_parts.append(avg)

    att = jnp.concatenate(att_parts, axis=1) if n_chunks > 1 else att_parts[0]
    att = _expmap0(att)                                     # (G, S, dk)

    attended = merge_heads(att)                              # (N, D)

    # output projection + hyperbolic residual + hyperbolic layernorm
    attn_out = _mobius_linear(attended, wo_ref[...], bo_ref[...])
    x1 = _mobius_add(x, attn_out)
    x1 = _hyper_layernorm(x1, g1_ref[...], be1_ref[...], hb1_ref[...])

    # feed forward: MobiusLinear -> hyperbolic ReLU -> MobiusLinear
    hmid = _mobius_linear(x1, w1_ref[...], b1_ref[...])
    hmid = _expmap0(jnp.maximum(_logmap0(hmid), 0.0))
    ff = _mobius_linear(hmid, w2_ref[...], b2_ref[...])

    xo = _mobius_add(x1, ff)
    xo = _hyper_layernorm(xo, g2_ref[...], be2_ref[...], hb2_ref[...])

    out_ref[...] = xo.reshape(Bt, S, D)


# -------------------------------------- wrapper ---------------------------------------------
def _vmem_limit_bytes():
    # generation-aware VMEM budget: ~75% of physical, capped at 100 MiB
    # (-> ~96 MiB on v5e/v6e with 128 MiB, ~48 MiB on v7x with 64 MiB), never below 32 MiB.
    try:
        cap = int(pltpu.get_tpu_info().vmem_capacity_bytes)
    except Exception:
        cap = 64 * 1024 * 1024
    return max(32 * 1024 * 1024, min((cap * 3) // 4, 100 * 1024 * 1024))


def _const_index_map(ndim):
    return lambda b: (0,) * ndim


def hyperbolic_transformer_block(x, params, num_heads, *, batch_tile=1):
    B, S, D = x.shape
    assert D % num_heads == 0 and B % batch_tile == 0
    Bt = batch_tile
    scale = 1.0 / math.sqrt(D // num_heads)
    q_chunk = S if (S <= 128 or S % 128 != 0) else 128

    # one-time XLA-side prep: weights transposed to (din, dout), Q/K/V fused, cast for MXU bf16
    def prep_w(w):
        return jnp.asarray(w).T.astype(MATMUL_DTYPE)

    def row(v):
        return jnp.asarray(v, jnp.float32).reshape(1, -1)

    wqkv = jnp.concatenate(
        [prep_w(params["wq"]), prep_w(params["wk"]), prep_w(params["wv"])], axis=1)   # (D, 3D)

    args = (
        x,
        wqkv, row(params["bq"]), row(params["bk"]), row(params["bv"]),
        prep_w(params["wo"]), row(params["bo"]),
        prep_w(params["w1"]), row(params["b1"]),
        prep_w(params["w2"]), row(params["b2"]),
        row(params["gamma1"]), row(params["beta1"]), row(params["hbias1"]),
        row(params["gamma2"]), row(params["beta2"]), row(params["hbias2"]),
    )

    out_specs = [
        pl.BlockSpec((Bt, S, D), lambda b: (b, 0, 0)),
        pl.BlockSpec((Bt, num_heads, S, S), lambda b: (b, 0, 0, 0)),
    ]
    out_shape = [
        jax.ShapeDtypeStruct((B, S, D), jnp.float32),
        jax.ShapeDtypeStruct((B, num_heads, S, S), jnp.float32),
    ]

    kernel = partial(_block_kernel, num_heads=num_heads, scale=scale, q_chunk=q_chunk)
    cparams = pltpu.CompilerParams(
        dimension_semantics=("parallel",),
        vmem_limit_bytes=_vmem_limit_bytes(),
    )

    def call(single_buffer_weights):
        def const_spec(a):
            if single_buffer_weights:
                # constant blocks across the grid: single-buffer to halve their VMEM footprint
                return pl.BlockSpec(a.shape, _const_index_map(a.ndim),
                                    pipeline_mode=pl.Buffered(1))
            return pl.BlockSpec(a.shape, _const_index_map(a.ndim))

        in_specs = [pl.BlockSpec((Bt, S, D), lambda b: (b, 0, 0))] + \
                   [const_spec(a) for a in args[1:]]
        return pl.pallas_call(
            kernel,
            grid=(B // Bt,),
            in_specs=in_specs,
            out_specs=out_specs,
            out_shape=out_shape,
            compiler_params=cparams,
        )(*args)

    try:
        return jax.block_until_ready(call(True))
    except Exception:
        # TODO(synk): pipeline_mode=pl.Buffered(1) not supported by this jax/libtpu combo;
        # falling back to default double-buffered constant operands.
        return call(False)


# ---------------------------------------- main -----------------------------------------------
def _expmap0_host(u):
    n = jnp.sqrt(jnp.maximum(jnp.sum(u * u, axis=-1, keepdims=True), 1e-15))
    return jnp.tanh(n) * u / n


if __name__ == "__main__":
    B, S, D, H, DFF = 2, 8, 32, 4, 64

    key = jax.random.PRNGKey(0)
    ks = jax.random.split(key, 20)

    def normal(k, shape, s=1.0):
        return s * jax.random.normal(k, shape, dtype=jnp.float32)

    # input: points on the Poincaré ball
    x = _expmap0_host(normal(ks[0], (B, S, D), 0.1))

    params = {
        # attention MobiusLinears (weight: (out, in); bias: hyperbolic point)
        "wq": normal(ks[1], (D, D), 1.0 / math.sqrt(D)),
        "bq": _expmap0_host(normal(ks[2], (D,), 0.01)),
        "wk": normal(ks[3], (D, D), 1.0 / math.sqrt(D)),
        "bk": _expmap0_host(normal(ks[4], (D,), 0.01)),
        "wv": normal(ks[5], (D, D), 1.0 / math.sqrt(D)),
        "bv": _expmap0_host(normal(ks[6], (D,), 0.01)),
        "wo": normal(ks[7], (D, D), 1.0 / math.sqrt(D)),
        "bo": _expmap0_host(normal(ks[8], (D,), 0.01)),
        # feed forward
        "w1": normal(ks[9], (DFF, D), 1.0 / math.sqrt(D)),
        "b1": _expmap0_host(normal(ks[10], (DFF,), 0.01)),
        "w2": normal(ks[11], (D, DFF), 1.0 / math.sqrt(DFF)),
        "b2": _expmap0_host(normal(ks[12], (D,), 0.01)),
        # hyperbolic layernorms
        "gamma1": jnp.ones((D,), jnp.float32),
        "beta1": jnp.zeros((D,), jnp.float32),
        "hbias1": _expmap0_host(normal(ks[13], (D,), 0.01)),
        "gamma2": jnp.ones((D,), jnp.float32),
        "beta2": jnp.zeros((D,), jnp.float32),
        "hbias2": _expmap0_host(normal(ks[14], (D,), 0.01)),
    }

    # batch_tile=1 -> grid=(2,) marked "parallel": both v7x TensorCores get a step.
    # On single-TC v5e/v6e, batch_tile=B amortizes per-step overhead instead.
    y, attn_w = hyperbolic_transformer_block(x, params, num_heads=H, batch_tile=1)
    y = jax.block_until_ready(y)
    attn_w = jax.block_until_ready(attn_w)

    assert y.shape == (B, S, D) and attn_w.shape == (B, H, S, S)
    assert bool(jnp.all(jnp.isfinite(y))) and bool(jnp.all(jnp.isfinite(attn_w)))
    print("KERNEL_OK")
</pallas_src>

<mosaic_0001>
module attributes {stable_mosaic.version = 11 : i64} {
  func.func @_block_kernel(%arg0: i32, %arg1: memref<1x8x32xf32, #tpu.memory_space<vmem>>, %arg2: memref<32x96xbf16, #tpu.memory_space<vmem>>, %arg3: memref<1x32xf32, #tpu.memory_space<vmem>>, %arg4: memref<1x32xf32, #tpu.memory_space<vmem>>, %arg5: memref<1x32xf32, #tpu.memory_space<vmem>>, %arg6: memref<32x32xbf16, #tpu.memory_space<vmem>>, %arg7: memref<1x32xf32, #tpu.memory_space<vmem>>, %arg8: memref<32x64xbf16, #tpu.memory_space<vmem>>, %arg9: memref<1x64xf32, #tpu.memory_space<vmem>>, %arg10: memref<64x32xbf16, #tpu.memory_space<vmem>>, %arg11: memref<1x32xf32, #tpu.memory_space<vmem>>, %arg12: memref<1x32xf32, #tpu.memory_space<vmem>>, %arg13: memref<1x32xf32, #tpu.memory_space<vmem>>, %arg14: memref<1x32xf32, #tpu.memory_space<vmem>>, %arg15: memref<1x32xf32, #tpu.memory_space<vmem>>, %arg16: memref<1x32xf32, #tpu.memory_space<vmem>>, %arg17: memref<1x32xf32, #tpu.memory_space<vmem>>, %arg18: memref<1x8x32xf32, #tpu.memory_space<vmem>>, %arg19: memref<1x4x8x8xf32, #tpu.memory_space<vmem>>) attributes {dimension_semantics = [#tpu.dimension_semantics<parallel>], iteration_bounds = array<i64: 2>, scalar_prefetch = 0 : i64, scratch_operands = 0 : i64, tpu.core_type = #tpu.core_type<tc>, window_params = [{transform_indices = @transform_0, window_bounds = array<i64: 1, 8, 32>}, {pipeline_mode = #tpu.pipeline_mode<synchronous>, transform_indices = @transform_1, window_bounds = array<i64: 32, 96>}, {pipeline_mode = #tpu.pipeline_mode<synchronous>, transform_indices = @transform_2, window_bounds = array<i64: 1, 32>}, {pipeline_mode = #tpu.pipeline_mode<synchronous>, transform_indices = @transform_3, window_bounds = array<i64: 1, 32>}, {pipeline_mode = #tpu.pipeline_mode<synchronous>, transform_indices = @transform_4, window_bounds = array<i64: 1, 32>}, {pipeline_mode = #tpu.pipeline_mode<synchronous>, transform_indices = @transform_5, window_bounds = array<i64: 32, 32>}, {pipeline_mode = #tpu.pipeline_mode<synchronous>, transform_indices = @transform_6, window_bounds = array<i64: 1, 32>}, {pipeline_mode = #tpu.pipeline_mode<synchronous>, transform_indices = @transform_7, window_bounds = array<i64: 32, 64>}, {pipeline_mode = #tpu.pipeline_mode<synchronous>, transform_indices = @transform_8, window_bounds = array<i64: 1, 64>}, {pipeline_mode = #tpu.pipeline_mode<synchronous>, transform_indices = @transform_9, window_bounds = array<i64: 64, 32>}, {pipeline_mode = #tpu.pipeline_mode<synchronous>, transform_indices = @transform_10, window_bounds = array<i64: 1, 32>}, {pipeline_mode = #tpu.pipeline_mode<synchronous>, transform_indices = @transform_11, window_bounds = array<i64: 1, 32>}, {pipeline_mode = #tpu.pipeline_mode<synchronous>, transform_indices = @transform_12, window_bounds = array<i64: 1, 32>}, {pipeline_mode = #tpu.pipeline_mode<synchronous>, transform_indices = @transform_13, window_bounds = array<i64: 1, 32>}, {pipeline_mode = #tpu.pipeline_mode<synchronous>, transform_indices = @transform_14, window_bounds = array<i64: 1, 32>}, {pipeline_mode = #tpu.pipeline_mode<synchronous>, transform_indices = @transform_15, window_bounds = array<i64: 1, 32>}, {pipeline_mode = #tpu.pipeline_mode<synchronous>, transform_indices = @transform_16, window_bounds = array<i64: 1, 32>}, {transform_indices = @transform_17, window_bounds = array<i64: 1, 8, 32>}, {transform_indices = @transform_18, window_bounds = array<i64: 1, 4, 8, 8>}]} {
    %c0 = arith.constant 0 : index
    %c0_0 = arith.constant 0 : index
    %c0_1 = arith.constant 0 : index
    %0 = vector.load %arg1[%c0, %c0_0, %c0_1] : memref<1x8x32xf32, #tpu.memory_space<vmem>>, vector<1x8x32xf32>
    %1 = vector.shape_cast %0 : vector<1x8x32xf32> to vector<8x32xf32>
    %2 = arith.mulf %1, %1 : vector<8x32xf32>
    %cst = arith.constant dense<0.000000e+00> : vector<8xf32>
    %3 = vector.multi_reduction <add>, %2, %cst [1] : vector<8x32xf32> to vector<8xf32>
    %4 = vector.shape_cast %3 : vector<8xf32> to vector<8x1xf32>
    %cst_2 = arith.constant 0.000000e+00 : f32
    %5 = vector.broadcast %cst_2 : f32 to vector<8x1xf32>
    %6 = arith.maximumf %4, %5 : vector<8x1xf32>
    %7 = math.sqrt %6 : vector<8x1xf32>
    %cst_3 = arith.constant 1.000000e-07 : f32
    %8 = vector.broadcast %cst_3 : f32 to vector<8x1xf32>
    %9 = arith.maximumf %7, %8 : vector<8x1xf32>
    %cst_4 = arith.constant -0.999998986 : f32
    %cst_5 = arith.constant 0.999998986 : f32
    %10 = vector.broadcast %cst_4 : f32 to vector<8x1xf32>
    %11 = arith.maximumf %10, %9 : vector<8x1xf32>
    %12 = vector.broadcast %cst_5 : f32 to vector<8x1xf32>
    %13 = arith.minimumf %12, %11 : vector<8x1xf32>
    %14 = math.log1p %13 : vector<8x1xf32>
    %cst_6 = arith.constant 0.000000e+00 : f32
    %15 = vector.broadcast %cst_6 : f32 to vector<8x1xf32>
    %16 = arith.subf %15, %13 : vector<8x1xf32>
    %17 = math.log1p %16 : vector<8x1xf32>
    %18 = arith.subf %14, %17 : vector<8x1xf32>
    %cst_7 = arith.constant 5.000000e-01 : f32
    %19 = vector.broadcast %cst_7 : f32 to vector<8x1xf32>
    %20 = arith.mulf %19, %18 : vector<8x1xf32>
    %c0_8 = arith.constant 0 : index
    %c0_9 = arith.constant 0 : index
    %21 = vector.load %arg2[%c0_8, %c0_9] : memref<32x96xbf16, #tpu.memory_space<vmem>>, vector<32x96xbf16>
    %22 = arith.truncf %1 : vector<8x32xf32> to vector<8x32xbf16>
    %cst_10 = arith.constant dense<0.000000e+00> : vector<8x96xf32>
    %23 = tpu.matmul %22, %21, %cst_10 {dimension_numbers = #tpu.dot_dimension_numbers<[1], [0], [0], [1], [0, 0, 1, 1], [], []>} : vector<8x32xbf16>, vector<32x96xbf16>, vector<8x96xf32> -> vector<8x96xf32>
    %24 = vector.extract_strided_slice %23 {offsets = [0, 0], sizes = [8, 32], strides = [1, 1]} : vector<8x96xf32> to vector<8x32xf32>
    %c0_11 = arith.constant 0 : index
    %c0_12 = arith.constant 0 : index
    %25 = vector.load %arg3[%c0_11, %c0_12] : memref<1x32xf32, #tpu.memory_space<vmem>>, vector<1x32xf32>
    %26 = arith.mulf %24, %24 : vector<8x32xf32>
    %cst_13 = arith.constant dense<0.000000e+00> : vector<8xf32>
    %27 = vector.multi_reduction <add>, %26, %cst_13 [1] : vector<8x32xf32> to vector<8xf32>
    %28 = vector.shape_cast %27 : vector<8xf32> to vector<8x1xf32>
    %cst_14 = arith.constant 0.000000e+00 : f32
    %29 = vector.broadcast %cst_14 : f32 to vector<8x1xf32>
    %30 = arith.maximumf %28, %29 : vector<8x1xf32>
    %31 = math.sqrt %30 : vector<8x1xf32>
    %cst_15 = arith.constant 1.000000e-07 : f32
    %32 = vector.broadcast %cst_15 : f32 to vector<8x1xf32>
    %33 = arith.maximumf %31, %32 : vector<8x1xf32>
    %34 = arith.divf %33, %9 : vector<8x1xf32>
    %35 = arith.mulf %34, %20 : vector<8x1xf32>
    %36 = math.tanh %35 : vector<8x1xf32>
    %37 = vector.broadcast %33 : vector<8x1xf32> to vector<8x32xf32>
    %38 = arith.divf %24, %37 : vector<8x32xf32>
    %39 = vector.broadcast %36 : vector<8x1xf32> to vector<8x32xf32>
    %40 = arith.mulf %39, %38 : vector<8x32xf32>
    %41 = vector.broadcast %25 : vector<1x32xf32> to vector<8x32xf32>
    %42 = arith.mulf %40, %41 : vector<8x32xf32>
    %cst_16 = arith.constant dense<0.000000e+00> : vector<8xf32>
    %43 = vector.multi_reduction <add>, %42, %cst_16 [1] : vector<8x32xf32> to vector<8xf32>
    %44 = vector.shape_cast %43 : vector<8xf32> to vector<8x1xf32>
    %45 = arith.mulf %40, %40 : vector<8x32xf32>
    %cst_17 = arith.constant dense<0.000000e+00> : vector<8xf32>
    %46 = vector.multi_reduction <add>, %45, %cst_17 [1] : vector<8x32xf32> to vector<8xf32>
    %47 = vector.shape_cast %46 : vector<8xf32> to vector<8x1xf32>
    %48 = arith.mulf %25, %25 : vector<1x32xf32>
    %cst_18 = arith.constant dense<0.000000e+00> : vector<1xf32>
    %49 = vector.multi_reduction <add>, %48, %cst_18 [1] : vector<1x32xf32> to vector<1xf32>
    %50 = vector.shape_cast %49 : vector<1xf32> to vector<1x1xf32>
    %cst_19 = arith.constant 2.000000e+00 : f32
    %51 = vector.broadcast %cst_19 : f32 to vector<8x1xf32>
    %52 = arith.mulf %51, %44 : vector<8x1xf32>
    %cst_20 = arith.constant 1.000000e+00 : f32
    %53 = vector.broadcast %cst_20 : f32 to vector<8x1xf32>
    %54 = arith.addf %53, %52 : vector<8x1xf32>
    %55 = vector.broadcast %50 : vector<1x1xf32> to vector<8x1xf32>
    %56 = arith.addf %54, %55 : vector<8x1xf32>
    %57 = vector.broadcast %56 : vector<8x1xf32> to vector<8x32xf32>
    %58 = arith.mulf %57, %40 : vector<8x32xf32>
    %cst_21 = arith.constant 1.000000e+00 : f32
    %59 = vector.broadcast %cst_21 : f32 to vector<8x1xf32>
    %60 = arith.subf %59, %47 : vector<8x1xf32>
    %61 = vector.broadcast %60 : vector<8x1xf32> to vector<8x32xf32>
    %62 = vector.broadcast %25 : vector<1x32xf32> to vector<8x32xf32>
    %63 = arith.mulf %61, %62 : vector<8x32xf32>
    %64 = arith.addf %58, %63 : vector<8x32xf32>
    %cst_22 = arith.constant 2.000000e+00 : f32
    %65 = vector.broadcast %cst_22 : f32 to vector<8x1xf32>
    %66 = arith.mulf %65, %44 : vector<8x1xf32>
    %cst_23 = arith.constant 1.000000e+00 : f32
    %67 = vector.broadcast %cst_23 : f32 to vector<8x1xf32>
    %68 = arith.addf %67, %66 : vector<8x1xf32>
    %69 = vector.broadcast %50 : vector<1x1xf32> to vector<8x1xf32>
    %70 = arith.mulf %47, %69 : vector<8x1xf32>
    %71 = arith.addf %68, %70 : vector<8x1xf32>
    %cst_24 = arith.constant 1.000000e-07 : f32
    %72 = vector.broadcast %cst_24 : f32 to vector<8x1xf32>
    %73 = arith.maximumf %71, %72 : vector<8x1xf32>
    %74 = vector.broadcast %73 : vector<8x1xf32> to vector<8x32xf32>
    %75 = arith.divf %64, %74 : vector<8x32xf32>
    %76 = arith.mulf %75, %75 : vector<8x32xf32>
    %cst_25 = arith.constant dense<0.000000e+00> : vector<8xf32>
    %77 = vector.multi_reduction <add>, %76, %cst_25 [1] : vector<8x32xf32> to vector<8xf32>
    %78 = vector.shape_cast %77 : vector<8xf32> to vector<8x1xf32>
    %cst_26 = arith.constant 0.000000e+00 : f32
    %79 = vector.broadcast %cst_26 : f32 to vector<8x1xf32>
    %80 = arith.maximumf %78, %79 : vector<8x1xf32>
    %81 = math.sqrt %80 : vector<8x1xf32>
    %cst_27 = arith.constant 1.000000e-07 : f32
    %82 = vector.broadcast %cst_27 : f32 to vector<8x1xf32>
    %83 = arith.maximumf %81, %82 : vector<8x1xf32>
    %cst_28 = arith.constant 0.999989986 : f32
    %84 = vector.broadcast %cst_28 : f32 to vector<8x1xf32>
    %85 = arith.cmpf ogt, %83, %84 : vector<8x1xf32>
    %cst_29 = arith.constant 0.999989986 : f32
    %86 = vector.broadcast %cst_29 : f32 to vector<8x1xf32>
    %87 = arith.divf %86, %83 : vector<8x1xf32>
    %cst_30 = arith.constant 1.000000e+00 : f32
    %88 = vector.broadcast %cst_30 : f32 to vector<8x1xf32>
    %89 = arith.select %85, %87, %88 : vector<8x1xi1>, vector<8x1xf32>
    %90 = vector.broadcast %89 : vector<8x1xf32> to vector<8x32xf32>
    %91 = arith.mulf %75, %90 : vector<8x32xf32>
    %92 = vector.extract_strided_slice %23 {offsets = [0, 32], sizes = [8, 32], strides = [1, 1]} : vector<8x96xf32> to vector<8x32xf32>
    %c0_31 = arith.constant 0 : index
    %c0_32 = arith.constant 0 : index
    %93 = vector.load %arg4[%c0_31, %c0_32] : memref<1x32xf32, #tpu.memory_space<vmem>>, vector<1x32xf32>
    %94 = arith.mulf %92, %92 : vector<8x32xf32>
    %cst_33 = arith.constant dense<0.000000e+00> : vector<8xf32>
    %95 = vector.multi_reduction <add>, %94, %cst_33 [1] : vector<8x32xf32> to vector<8xf32>
    %96 = vector.shape_cast %95 : vector<8xf32> to vector<8x1xf32>
    %cst_34 = arith.constant 0.000000e+00 : f32
    %97 = vector.broadcast %cst_34 : f32 to vector<8x1xf32>
    %98 = arith.maximumf %96, %97 : vector<8x1xf32>
    %99 = math.sqrt %98 : vector<8x1xf32>
    %cst_35 = arith.constant 1.000000e-07 : f32
    %100 = vector.broadcast %cst_35 : f32 to vector<8x1xf32>
    %101 = arith.maximumf %99, %100 : vector<8x1xf32>
    %102 = arith.divf %101, %9 : vector<8x1xf32>
    %103 = arith.mulf %102, %20 : vector<8x1xf32>
    %104 = math.tanh %103 : vector<8x1xf32>
    %105 = vector.broadcast %101 : vector<8x1xf32> to vector<8x32xf32>
    %106 = arith.divf %92, %105 : vector<8x32xf32>
    %107 = vector.broadcast %104 : vector<8x1xf32> to vector<8x32xf32>
    %108 = arith.mulf %107, %106 : vector<8x32xf32>
    %109 = vector.broadcast %93 : vector<1x32xf32> to vector<8x32xf32>
    %110 = arith.mulf %108, %109 : vector<8x32xf32>
    %cst_36 = arith.constant dense<0.000000e+00> : vector<8xf32>
    %111 = vector.multi_reduction <add>, %110, %cst_36 [1] : vector<8x32xf32> to vector<8xf32>
    %112 = vector.shape_cast %111 : vector<8xf32> to vector<8x1xf32>
    %113 = arith.mulf %108, %108 : vector<8x32xf32>
    %cst_37 = arith.constant dense<0.000000e+00> : vector<8xf32>
    %114 = vector.multi_reduction <add>, %113, %cst_37 [1] : vector<8x32xf32> to vector<8xf32>
    %115 = vector.shape_cast %114 : vector<8xf32> to vector<8x1xf32>
    %116 = arith.mulf %93, %93 : vector<1x32xf32>
    %cst_38 = arith.constant dense<0.000000e+00> : vector<1xf32>
    %117 = vector.multi_reduction <add>, %116, %cst_38 [1] : vector<1x32xf32> to vector<1xf32>
    %118 = vector.shape_cast %117 : vector<1xf32> to vector<1x1xf32>
    %cst_39 = arith.constant 2.000000e+00 : f32
    %119 = vector.broadcast %cst_39 : f32 to vector<8x1xf32>
    %120 = arith.mulf %119, %112 : vector<8x1xf32>
    %cst_40 = arith.constant 1.000000e+00 : f32
    %121 = vector.broadcast %cst_40 : f32 to vector<8x1xf32>
    %122 = arith.addf %121, %120 : vector<8x1xf32>
    %123 = vector.broadcast %118 : vector<1x1xf32> to vector<8x1xf32>
    %124 = arith.addf %122, %123 : vector<8x1xf32>
    %125 = vector.broadcast %124 : vector<8x1xf32> to vector<8x32xf32>
    %126 = arith.mulf %125, %108 : vector<8x32xf32>
    %cst_41 = arith.constant 1.000000e+00 : f32
    %127 = vector.broadcast %cst_41 : f32 to vector<8x1xf32>
    %128 = arith.subf %127, %115 : vector<8x1xf32>
    %129 = vector.broadcast %128 : vector<8x1xf32> to vector<8x32xf32>
    %130 = vector.broadcast %93 : vector<1x32xf32> to vector<8x32xf32>
    %131 = arith.mulf %129, %130 : vector<8x32xf32>
    %132 = arith.addf %126, %131 : vector<8x32xf32>
    %cst_42 = arith.constant 2.000000e+00 : f32
    %133 = vector.broadcast %cst_42 : f32 to vector<8x1xf32>
    %134 = arith.mulf %133, %112 : vector<8x1xf32>
    %cst_43 = arith.constant 1.000000e+00 : f32
    %135 = vector.broadcast %cst_43 : f32 to vector<8x1xf32>
    %136 = arith.addf %135, %134 : vector<8x1xf32>
    %137 = vector.broadcast %118 : vector<1x1xf32> to vector<8x1xf32>
    %138 = arith.mulf %115, %137 : vector<8x1xf32>
    %139 = arith.addf %136, %138 : vector<8x1xf32>
    %cst_44 = arith.constant 1.000000e-07 : f32
    %140 = vector.broadcast %cst_44 : f32 to vector<8x1xf32>
    %141 = arith.maximumf %139, %140 : vector<8x1xf32>
    %142 = vector.broadcast %141 : vector<8x1xf32> to vector<8x32xf32>
    %143 = arith.divf %132, %142 : vector<8x32xf32>
    %144 = arith.mulf %143, %143 : vector<8x32xf32>
    %cst_45 = arith.constant dense<0.000000e+00> : vector<8xf32>
    %145 = vector.multi_reduction <add>, %144, %cst_45 [1] : vector<8x32xf32> to vector<8xf32>
    %146 = vector.shape_cast %145 : vector<8xf32> to vector<8x1xf32>
    %cst_46 = arith.constant 0.000000e+00 : f32
    %147 = vector.broadcast %cst_46 : f32 to vector<8x1xf32>
    %148 = arith.maximumf %146, %147 : vector<8x1xf32>
    %149 = math.sqrt %148 : vector<8x1xf32>
    %cst_47 = arith.constant 1.000000e-07 : f32
    %150 = vector.broadcast %cst_47 : f32 to vector<8x1xf32>
    %151 = arith.maximumf %149, %150 : vector<8x1xf32>
    %cst_48 = arith.constant 0.999989986 : f32
    %152 = vector.broadcast %cst_48 : f32 to vector<8x1xf32>
    %153 = arith.cmpf ogt, %151, %152 : vector<8x1xf32>
    %cst_49 = arith.constant 0.999989986 : f32
    %154 = vector.broadcast %cst_49 : f32 to vector<8x1xf32>
    %155 = arith.divf %154, %151 : vector<8x1xf32>
    %cst_50 = arith.constant 1.000000e+00 : f32
    %156 = vector.broadcast %cst_50 : f32 to vector<8x1xf32>
    %157 = arith.select %153, %155, %156 : vector<8x1xi1>, vector<8x1xf32>
    %158 = vector.broadcast %157 : vector<8x1xf32> to vector<8x32xf32>
    %159 = arith.mulf %143, %158 : vector<8x32xf32>
    %160 = vector.extract_strided_slice %23 {offsets = [0, 64], sizes = [8, 32], strides = [1, 1]} : vector<8x96xf32> to vector<8x32xf32>
    %c0_51 = arith.constant 0 : index
    %c0_52 = arith.constant 0 : index
    %161 = vector.load %arg5[%c0_51, %c0_52] : memref<1x32xf32, #tpu.memory_space<vmem>>, vector<1x32xf32>
    %162 = arith.mulf %160, %160 : vector<8x32xf32>
    %cst_53 = arith.constant dense<0.000000e+00> : vector<8xf32>
    %163 = vector.multi_reduction <add>, %162, %cst_53 [1] : vector<8x32xf32> to vector<8xf32>
    %164 = vector.shape_cast %163 : vector<8xf32> to vector<8x1xf32>
    %cst_54 = arith.constant 0.000000e+00 : f32
    %165 = vector.broadcast %cst_54 : f32 to vector<8x1xf32>
    %166 = arith.maximumf %164, %165 : vector<8x1xf32>
    %167 = math.sqrt %166 : vector<8x1xf32>
    %cst_55 = arith.constant 1.000000e-07 : f32
    %168 = vector.broadcast %cst_55 : f32 to vector<8x1xf32>
    %169 = arith.maximumf %167, %168 : vector<8x1xf32>
    %170 = arith.divf %169, %9 : vector<8x1xf32>
    %171 = arith.mulf %170, %20 : vector<8x1xf32>
    %172 = math.tanh %171 : vector<8x1xf32>
    %173 = vector.broadcast %169 : vector<8x1xf32> to vector<8x32xf32>
    %174 = arith.divf %160, %173 : vector<8x32xf32>
    %175 = vector.broadcast %172 : vector<8x1xf32> to vector<8x32xf32>
    %176 = arith.mulf %175, %174 : vector<8x32xf32>
    %177 = vector.broadcast %161 : vector<1x32xf32> to vector<8x32xf32>
    %178 = arith.mulf %176, %177 : vector<8x32xf32>
    %cst_56 = arith.constant dense<0.000000e+00> : vector<8xf32>
    %179 = vector.multi_reduction <add>, %178, %cst_56 [1] : vector<8x32xf32> to vector<8xf32>
    %180 = vector.shape_cast %179 : vector<8xf32> to vector<8x1xf32>
    %181 = arith.mulf %176, %176 : vector<8x32xf32>
    %cst_57 = arith.constant dense<0.000000e+00> : vector<8xf32>
    %182 = vector.multi_reduction <add>, %181, %cst_57 [1] : vector<8x32xf32> to vector<8xf32>
    %183 = vector.shape_cast %182 : vector<8xf32> to vector<8x1xf32>
    %184 = arith.mulf %161, %161 : vector<1x32xf32>
    %cst_58 = arith.constant dense<0.000000e+00> : vector<1xf32>
    %185 = vector.multi_reduction <add>, %184, %cst_58 [1] : vector<1x32xf32> to vector<1xf32>
    %186 = vector.shape_cast %185 : vector<1xf32> to vector<1x1xf32>
    %cst_59 = arith.constant 2.000000e+00 : f32
    %187 = vector.broadcast %cst_59 : f32 to vector<8x1xf32>
    %188 = arith.mulf %187, %180 : vector<8x1xf32>
    %cst_60 = arith.constant 1.000000e+00 : f32
    %189 = vector.broadcast %cst_60 : f32 to vector<8x1xf32>
    %190 = arith.addf %189, %188 : vector<8x1xf32>
    %191 = vector.broadcast %186 : vector<1x1xf32> to vector<8x1xf32>
    %192 = arith.addf %190, %191 : vector<8x1xf32>
    %193 = vector.broadcast %192 : vector<8x1xf32> to vector<8x32xf32>
    %194 = arith.mulf %193, %176 : vector<8x32xf32>
    %cst_61 = arith.constant 1.000000e+00 : f32
    %195 = vector.broadcast %cst_61 : f32 to vector<8x1xf32>
    %196 = arith.subf %195, %183 : vector<8x1xf32>
    %197 = vector.broadcast %196 : vector<8x1xf32> to vector<8x32xf32>
    %198 = vector.broadcast %161 : vector<1x32xf32> to vector<8x32xf32>
    %199 = arith.mulf %197, %198 : vector<8x32xf32>
    %200 = arith.addf %194, %199 : vector<8x32xf32>
    %cst_62 = arith.constant 2.000000e+00 : f32
    %201 = vector.broadcast %cst_62 : f32 to vector<8x1xf32>
    %202 = arith.mulf %201, %180 : vector<8x1xf32>
    %cst_63 = arith.constant 1.000000e+00 : f32
    %203 = vector.broadcast %cst_63 : f32 to vector<8x1xf32>
    %204 = arith.addf %203, %202 : vector<8x1xf32>
    %205 = vector.broadcast %186 : vector<1x1xf32> to vector<8x1xf32>
    %206 = arith.mulf %183, %205 : vector<8x1xf32>
    %207 = arith.addf %204, %206 : vector<8x1xf32>
    %cst_64 = arith.constant 1.000000e-07 : f32
    %208 = vector.broadcast %cst_64 : f32 to vector<8x1xf32>
    %209 = arith.maximumf %207, %208 : vector<8x1xf32>
    %210 = vector.broadcast %209 : vector<8x1xf32> to vector<8x32xf32>
    %211 = arith.divf %200, %210 : vector<8x32xf32>
    %212 = arith.mulf %211, %211 : vector<8x32xf32>
    %cst_65 = arith.constant dense<0.000000e+00> : vector<8xf32>
    %213 = vector.multi_reduction <add>, %212, %cst_65 [1] : vector<8x32xf32> to vector<8xf32>
    %214 = vector.shape_cast %213 : vector<8xf32> to vector<8x1xf32>
    %cst_66 = arith.constant 0.000000e+00 : f32
    %215 = vector.broadcast %cst_66 : f32 to vector<8x1xf32>
    %216 = arith.maximumf %214, %215 : vector<8x1xf32>
    %217 = math.sqrt %216 : vector<8x1xf32>
    %cst_67 = arith.constant 1.000000e-07 : f32
    %218 = vector.broadcast %cst_67 : f32 to vector<8x1xf32>
    %219 = arith.maximumf %217, %218 : vector<8x1xf32>
    %cst_68 = arith.constant 0.999989986 : f32
    %220 = vector.broadcast %cst_68 : f32 to vector<8x1xf32>
    %221 = arith.cmpf ogt, %219, %220 : vector<8x1xf32>
    %cst_69 = arith.constant 0.999989986 : f32
    %222 = vector.broadcast %cst_69 : f32 to vector<8x1xf32>
    %223 = arith.divf %222, %219 : vector<8x1xf32>
    %cst_70 = arith.constant 1.000000e+00 : f32
    %224 = vector.broadcast %cst_70 : f32 to vector<8x1xf32>
    %225 = arith.select %221, %223, %224 : vector<8x1xi1>, vector<8x1xf32>
    %226 = vector.broadcast %225 : vector<8x1xf32> to vector<8x32xf32>
    %227 = arith.mulf %211, %226 : vector<8x32xf32>
    %228 = tpu.transpose %91, [1, 0] : vector<8x32xf32> -> vector<32x8xf32>
    %229 = vector.shape_cast %228 : vector<32x8xf32> to vector<4x8x8xf32>
    %230 = tpu.transpose %229, [0, 2, 1] : vector<4x8x8xf32> -> vector<4x8x8xf32>
    %231 = tpu.transpose %159, [1, 0] : vector<8x32xf32> -> vector<32x8xf32>
    %232 = vector.shape_cast %231 : vector<32x8xf32> to vector<4x8x8xf32>
    %233 = tpu.transpose %232, [0, 2, 1] : vector<4x8x8xf32> -> vector<4x8x8xf32>
    %234 = tpu.transpose %227, [1, 0] : vector<8x32xf32> -> vector<32x8xf32>
    %235 = vector.shape_cast %234 : vector<32x8xf32> to vector<4x8x8xf32>
    %236 = tpu.transpose %235, [0, 2, 1] : vector<4x8x8xf32> -> vector<4x8x8xf32>
    %237 = arith.mulf %230, %230 : vector<4x8x8xf32>
    %cst_71 = arith.constant dense<0.000000e+00> : vector<4x8xf32>
    %238 = vector.multi_reduction <add>, %237, %cst_71 [2] : vector<4x8x8xf32> to vector<4x8xf32>
    %239 = vector.shape_cast %238 : vector<4x8xf32> to vector<4x8x1xf32>
    %240 = arith.mulf %233, %233 : vector<4x8x8xf32>
    %cst_72 = arith.constant dense<0.000000e+00> : vector<4x8xf32>
    %241 = vector.multi_reduction <add>, %240, %cst_72 [2] : vector<4x8x8xf32> to vector<4x8xf32>
    %242 = vector.shape_cast %241 : vector<4x8xf32> to vector<4x1x8xf32>
    %243 = arith.mulf %236, %236 : vector<4x8x8xf32>
    %cst_73 = arith.constant dense<0.000000e+00> : vector<4x8xf32>
    %244 = vector.multi_reduction <add>, %243, %cst_73 [2] : vector<4x8x8xf32> to vector<4x8xf32>
    %245 = vector.shape_cast %244 : vector<4x8xf32> to vector<4x8x1xf32>
    %cst_74 = arith.constant 0.000000e+00 : f32
    %246 = vector.broadcast %cst_74 : f32 to vector<4x8x1xf32>
    %247 = arith.maximumf %245, %246 : vector<4x8x1xf32>
    %248 = math.sqrt %247 : vector<4x8x1xf32>
    %cst_75 = arith.constant 1.000000e-07 : f32
    %249 = vector.broadcast %cst_75 : f32 to vector<4x8x1xf32>
    %250 = arith.maximumf %248, %249 : vector<4x8x1xf32>
    %cst_76 = arith.constant -0.999998986 : f32
    %cst_77 = arith.constant 0.999998986 : f32
    %251 = vector.broadcast %cst_76 : f32 to vector<4x8x1xf32>
    %252 = arith.maximumf %251, %250 : vector<4x8x1xf32>
    %253 = vector.broadcast %cst_77 : f32 to vector<4x8x1xf32>
    %254 = arith.minimumf %253, %252 : vector<4x8x1xf32>
    %255 = math.log1p %254 : vector<4x8x1xf32>
    %cst_78 = arith.constant 0.000000e+00 : f32
    %256 = vector.broadcast %cst_78 : f32 to vector<4x8x1xf32>
    %257 = arith.subf %256, %254 : vector<4x8x1xf32>
    %258 = math.log1p %257 : vector<4x8x1xf32>
    %259 = arith.subf %255, %258 : vector<4x8x1xf32>
    %cst_79 = arith.constant 5.000000e-01 : f32
    %260 = vector.broadcast %cst_79 : f32 to vector<4x8x1xf32>
    %261 = arith.mulf %260, %259 : vector<4x8x1xf32>
    %262 = arith.divf %261, %250 : vector<4x8x1xf32>
    %263 = vector.broadcast %262 : vector<4x8x1xf32> to vector<4x8x8xf32>
    %264 = arith.mulf %263, %236 : vector<4x8x8xf32>
    "tpu.trace_start"() <{level = 10 : i32, message = "gqd,gkd->gqk"}> : () -> ()
    %cst_80 = arith.constant dense<0.000000e+00> : vector<4x8x8xf32>
    %265 = tpu.matmul %230, %233, %cst_80 {dimension_numbers = #tpu.dot_dimension_numbers<[2], [2], [1], [1], [0, 0, 0, 1, 1, 1], [0], [0]>} : vector<4x8x8xf32>, vector<4x8x8xf32>, vector<4x8x8xf32> -> vector<4x8x8xf32>
    "tpu.trace_stop"() : () -> ()
    %cst_81 = arith.constant 2.000000e+00 : f32
    %266 = vector.broadcast %cst_81 : f32 to vector<4x8x8xf32>
    %267 = arith.mulf %266, %265 : vector<4x8x8xf32>
    %cst_82 = arith.constant 1.000000e+00 : f32
    %268 = vector.broadcast %cst_82 : f32 to vector<4x8x8xf32>
    %269 = arith.subf %268, %267 : vector<4x8x8xf32>
    %270 = vector.broadcast %242 : vector<4x1x8xf32> to vector<4x8x8xf32>
    %271 = arith.addf %269, %270 : vector<4x8x8xf32>
    %cst_83 = arith.constant 1.000000e+00 : f32
    %272 = vector.broadcast %cst_83 : f32 to vector<4x8x1xf32>
    %273 = arith.subf %272, %239 : vector<4x8x1xf32>
    %274 = arith.mulf %271, %271 : vector<4x8x8xf32>
    %275 = vector.broadcast %239 : vector<4x8x1xf32> to vector<4x8x8xf32>
    %276 = arith.mulf %274, %275 : vector<4x8x8xf32>
    %cst_84 = arith.constant 2.000000e+00 : f32
    %277 = vector.broadcast %cst_84 : f32 to vector<4x8x8xf32>
    %278 = arith.mulf %277, %271 : vector<4x8x8xf32>
    %279 = vector.broadcast %273 : vector<4x8x1xf32> to vector<4x8x8xf32>
    %280 = arith.mulf %278, %279 : vector<4x8x8xf32>
    %281 = arith.mulf %280, %265 : vector<4x8x8xf32>
    %282 = arith.subf %276, %281 : vector<4x8x8xf32>
    %283 = arith.mulf %273, %273 : vector<4x8x1xf32>
    %284 = vector.broadcast %283 : vector<4x8x1xf32> to vector<4x8x8xf32>
    %285 = vector.broadcast %242 : vector<4x1x8xf32> to vector<4x8x8xf32>
    %286 = arith.mulf %284, %285 : vector<4x8x8xf32>
    %287 = arith.addf %282, %286 : vector<4x8x8xf32>
    %cst_85 = arith.constant 2.000000e+00 : f32
    %288 = vector.broadcast %cst_85 : f32 to vector<4x8x8xf32>
    %289 = arith.mulf %288, %265 : vector<4x8x8xf32>
    %cst_86 = arith.constant 1.000000e+00 : f32
    %290 = vector.broadcast %cst_86 : f32 to vector<4x8x8xf32>
    %291 = arith.subf %290, %289 : vector<4x8x8xf32>
    %292 = vector.broadcast %239 : vector<4x8x1xf32> to vector<4x8x8xf32>
    %293 = vector.broadcast %242 : vector<4x1x8xf32> to vector<4x8x8xf32>
    %294 = arith.mulf %292, %293 : vector<4x8x8xf32>
    %295 = arith.addf %291, %294 : vector<4x8x8xf32>
    %cst_87 = arith.constant 1.000000e-07 : f32
    %296 = vector.broadcast %cst_87 : f32 to vector<4x8x8xf32>
    %297 = arith.maximumf %295, %296 : vector<4x8x8xf32>
    %cst_88 = arith.constant 0.000000e+00 : f32
    %298 = vector.broadcast %cst_88 : f32 to vector<4x8x8xf32>
    %299 = arith.maximumf %287, %298 : vector<4x8x8xf32>
    %300 = math.sqrt %299 : vector<4x8x8xf32>
    %301 = arith.addf %297, %300 : vector<4x8x8xf32>
    %302 = math.log %301 : vector<4x8x8xf32>
    %303 = arith.subf %297, %300 : vector<4x8x8xf32>
    %cst_89 = arith.constant 1.000000e-07 : f32
    %304 = vector.broadcast %cst_89 : f32 to vector<4x8x8xf32>
    %305 = arith.maximumf %303, %304 : vector<4x8x8xf32>
    %306 = math.log %305 : vector<4x8x8xf32>
    %307 = arith.subf %302, %306 : vector<4x8x8xf32>
    %cst_90 = arith.constant 0.000000e+00 : f32
    %308 = vector.broadcast %cst_90 : f32 to vector<4x8x8xf32>
    %309 = arith.subf %308, %307 : vector<4x8x8xf32>
    %cst_91 = arith.constant 0.353553385 : f32
    %310 = vector.broadcast %cst_91 : f32 to vector<4x8x8xf32>
    %311 = arith.mulf %309, %310 : vector<4x8x8xf32>
    %cst_92 = arith.constant dense<0xFF800000> : vector<4x8xf32>
    %312 = vector.multi_reduction <maximumf>, %311, %cst_92 [2] : vector<4x8x8xf32> to vector<4x8xf32>
    %313 = vector.shape_cast %312 : vector<4x8xf32> to vector<4x8x1xf32>
    %314 = vector.broadcast %313 : vector<4x8x1xf32> to vector<4x8x8xf32>
    %315 = arith.subf %311, %314 : vector<4x8x8xf32>
    %316 = math.exp %315 : vector<4x8x8xf32>
    %cst_93 = arith.constant dense<0.000000e+00> : vector<4x8xf32>
    %317 = vector.multi_reduction <add>, %316, %cst_93 [2] : vector<4x8x8xf32> to vector<4x8xf32>
    %318 = vector.shape_cast %317 : vector<4x8xf32> to vector<4x8x1xf32>
    %319 = vector.broadcast %318 : vector<4x8x1xf32> to vector<4x8x8xf32>
    %320 = arith.divf %316, %319 : vector<4x8x8xf32>
    %321 = vector.shape_cast %320 : vector<4x8x8xf32> to vector<1x4x8x8xf32>
    %c0_94 = arith.constant 0 : index
    %c0_95 = arith.constant 0 : index
    %c0_96 = arith.constant 0 : index
    %c0_97 = arith.constant 0 : index
    %322 = vector.load %arg19[%c0_94, %c0_95, %c0_96, %c0_97] : memref<1x4x8x8xf32, #tpu.memory_space<vmem>>, vector<1x4x8x8xf32>
    tpu.vector_store %arg19[%c0_94, %c0_95, %c0_96, %c0_97], %321 {strides = array<i32>} : memref<1x4x8x8xf32, #tpu.memory_space<vmem>>, vector<1x4x8x8xf32>,
    %323 = arith.truncf %320 : vector<4x8x8xf32> to vector<4x8x8xbf16>
    %324 = arith.truncf %264 : vector<4x8x8xf32> to vector<4x8x8xbf16>
    "tpu.trace_start"() <{level = 10 : i32, message = "gqk,gkd->gqd"}> : () -> ()
    %cst_98 = arith.constant dense<0.000000e+00> : vector<4x8x8xf32>
    %325 = tpu.matmul %323, %324, %cst_98 {dimension_numbers = #tpu.dot_dimension_numbers<[2], [1], [1], [2], [0, 0, 0, 1, 1, 2], [0], [0]>} : vector<4x8x8xbf16>, vector<4x8x8xbf16>, vector<4x8x8xf32> -> vector<4x8x8xf32>
    "tpu.trace_stop"() : () -> ()
    %326 = arith.mulf %325, %325 : vector<4x8x8xf32>
    %cst_99 = arith.constant dense<0.000000e+00> : vector<4x8xf32>
    %327 = vector.multi_reduction <add>, %326, %cst_99 [2] : vector<4x8x8xf32> to vector<4x8xf32>
    %328 = vector.shape_cast %327 : vector<4x8xf32> to vector<4x8x1xf32>
    %cst_100 = arith.constant 0.000000e+00 : f32
    %329 = vector.broadcast %cst_100 : f32 to vector<4x8x1xf32>
    %330 = arith.maximumf %328, %329 : vector<4x8x1xf32>
    %331 = math.sqrt %330 : vector<4x8x1xf32>
    %cst_101 = arith.constant 1.000000e-07 : f32
    %332 = vector.broadcast %cst_101 : f32 to vector<4x8x1xf32>
    %333 = arith.maximumf %331, %332 : vector<4x8x1xf32>
    %334 = math.tanh %333 : vector<4x8x1xf32>
    %335 = arith.divf %334, %333 : vector<4x8x1xf32>
    %336 = vector.broadcast %335 : vector<4x8x1xf32> to vector<4x8x8xf32>
    %337 = arith.mulf %336, %325 : vector<4x8x8xf32>
    %338 = tpu.transpose %337, [0, 2, 1] : vector<4x8x8xf32> -> vector<4x8x8xf32>
    %339 = vector.shape_cast %338 : vector<4x8x8xf32> to vector<32x8xf32>
    %340 = tpu.transpose %339, [1, 0] : vector<32x8xf32> -> vector<8x32xf32>
    %c0_102 = arith.constant 0 : index
    %c0_103 = arith.constant 0 : index
    %341 = vector.load %arg6[%c0_102, %c0_103] : memref<32x32xbf16, #tpu.memory_space<vmem>>, vector<32x32xbf16>
    %c0_104 = arith.constant 0 : index
    %c0_105 = arith.constant 0 : index
    %342 = vector.load %arg7[%c0_104, %c0_105] : memref<1x32xf32, #tpu.memory_space<vmem>>, vector<1x32xf32>
    %343 = arith.mulf %340, %340 : vector<8x32xf32>
    %cst_106 = arith.constant dense<0.000000e+00> : vector<8xf32>
    %344 = vector.multi_reduction <add>, %343, %cst_106 [1] : vector<8x32xf32> to vector<8xf32>
    %345 = vector.shape_cast %344 : vector<8xf32> to vector<8x1xf32>
    %cst_107 = arith.constant 0.000000e+00 : f32
    %346 = vector.broadcast %cst_107 : f32 to vector<8x1xf32>
    %347 = arith.maximumf %345, %346 : vector<8x1xf32>
    %348 = math.sqrt %347 : vector<8x1xf32>
    %cst_108 = arith.constant 1.000000e-07 : f32
    %349 = vector.broadcast %cst_108 : f32 to vector<8x1xf32>
    %350 = arith.maximumf %348, %349 : vector<8x1xf32>
    %cst_109 = arith.constant -0.999998986 : f32
    %cst_110 = arith.constant 0.999998986 : f32
    %351 = vector.broadcast %cst_109 : f32 to vector<8x1xf32>
    %352 = arith.maximumf %351, %350 : vector<8x1xf32>
    %353 = vector.broadcast %cst_110 : f32 to vector<8x1xf32>
    %354 = arith.minimumf %353, %352 : vector<8x1xf32>
    %355 = math.log1p %354 : vector<8x1xf32>
    %cst_111 = arith.constant 0.000000e+00 : f32
    %356 = vector.broadcast %cst_111 : f32 to vector<8x1xf32>
    %357 = arith.subf %356, %354 : vector<8x1xf32>
    %358 = math.log1p %357 : vector<8x1xf32>
    %359 = arith.subf %355, %358 : vector<8x1xf32>
    %cst_112 = arith.constant 5.000000e-01 : f32
    %360 = vector.broadcast %cst_112 : f32 to vector<8x1xf32>
    %361 = arith.mulf %360, %359 : vector<8x1xf32>
    %362 = arith.truncf %340 : vector<8x32xf32> to vector<8x32xbf16>
    %cst_113 = arith.constant dense<0.000000e+00> : vector<8x32xf32>
    %363 = tpu.matmul %362, %341, %cst_113 {dimension_numbers = #tpu.dot_dimension_numbers<[1], [0], [0], [1], [0, 0, 1, 1], [], []>} : vector<8x32xbf16>, vector<32x32xbf16>, vector<8x32xf32> -> vector<8x32xf32>
    %364 = arith.mulf %363, %363 : vector<8x32xf32>
    %cst_114 = arith.constant dense<0.000000e+00> : vector<8xf32>
    %365 = vector.multi_reduction <add>, %364, %cst_114 [1] : vector<8x32xf32> to vector<8xf32>
    %366 = vector.shape_cast %365 : vector<8xf32> to vector<8x1xf32>
    %cst_115 = arith.constant 0.000000e+00 : f32
    %367 = vector.broadcast %cst_115 : f32 to vector<8x1xf32>
    %368 = arith.maximumf %366, %367 : vector<8x1xf32>
    %369 = math.sqrt %368 : vector<8x1xf32>
    %cst_116 = arith.constant 1.000000e-07 : f32
    %370 = vector.broadcast %cst_116 : f32 to vector<8x1xf32>
    %371 = arith.maximumf %369, %370 : vector<8x1xf32>
    %372 = arith.divf %371, %350 : vector<8x1xf32>
    %373 = arith.mulf %372, %361 : vector<8x1xf32>
    %374 = math.tanh %373 : vector<8x1xf32>
    %375 = vector.broadcast %371 : vector<8x1xf32> to vector<8x32xf32>
    %376 = arith.divf %363, %375 : vector<8x32xf32>
    %377 = vector.broadcast %374 : vector<8x1xf32> to vector<8x32xf32>
    %378 = arith.mulf %377, %376 : vector<8x32xf32>
    %379 = vector.broadcast %342 : vector<1x32xf32> to vector<8x32xf32>
    %380 = arith.mulf %378, %379 : vector<8x32xf32>
    %cst_117 = arith.constant dense<0.000000e+00> : vector<8xf32>
    %381 = vector.multi_reduction <add>, %380, %cst_117 [1] : vector<8x32xf32> to vector<8xf32>
    %382 = vector.shape_cast %381 : vector<8xf32> to vector<8x1xf32>
    %383 = arith.mulf %378, %378 : vector<8x32xf32>
    %cst_118 = arith.constant dense<0.000000e+00> : vector<8xf32>
    %384 = vector.multi_reduction <add>, %383, %cst_118 [1] : vector<8x32xf32> to vector<8xf32>
    %385 = vector.shape_cast %384 : vector<8xf32> to vector<8x1xf32>
    %386 = arith.mulf %342, %342 : vector<1x32xf32>
    %cst_119 = arith.constant dense<0.000000e+00> : vector<1xf32>
    %387 = vector.multi_reduction <add>, %386, %cst_119 [1] : vector<1x32xf32> to vector<1xf32>
    %388 = vector.shape_cast %387 : vector<1xf32> to vector<1x1xf32>
    %cst_120 = arith.constant 2.000000e+00 : f32
    %389 = vector.broadcast %cst_120 : f32 to vector<8x1xf32>
    %390 = arith.mulf %389, %382 : vector<8x1xf32>
    %cst_121 = arith.constant 1.000000e+00 : f32
    %391 = vector.broadcast %cst_121 : f32 to vector<8x1xf32>
    %392 = arith.addf %391, %390 : vector<8x1xf32>
    %393 = vector.broadcast %388 : vector<1x1xf32> to vector<8x1xf32>
    %394 = arith.addf %392, %393 : vector<8x1xf32>
    %395 = vector.broadcast %394 : vector<8x1xf32> to vector<8x32xf32>
    %396 = arith.mulf %395, %378 : vector<8x32xf32>
    %cst_122 = arith.constant 1.000000e+00 : f32
    %397 = vector.broadcast %cst_122 : f32 to vector<8x1xf32>
    %398 = arith.subf %397, %385 : vector<8x1xf32>
    %399 = vector.broadcast %398 : vector<8x1xf32> to vector<8x32xf32>
    %400 = vector.broadcast %342 : vector<1x32xf32> to vector<8x32xf32>
    %401 = arith.mulf %399, %400 : vector<8x32xf32>
    %402 = arith.addf %396, %401 : vector<8x32xf32>
    %cst_123 = arith.constant 2.000000e+00 : f32
    %403 = vector.broadcast %cst_123 : f32 to vector<8x1xf32>
    %404 = arith.mulf %403, %382 : vector<8x1xf32>
    %cst_124 = arith.constant 1.000000e+00 : f32
    %405 = vector.broadcast %cst_124 : f32 to vector<8x1xf32>
    %406 = arith.addf %405, %404 : vector<8x1xf32>
    %407 = vector.broadcast %388 : vector<1x1xf32> to vector<8x1xf32>
    %408 = arith.mulf %385, %407 : vector<8x1xf32>
    %409 = arith.addf %406, %408 : vector<8x1xf32>
    %cst_125 = arith.constant 1.000000e-07 : f32
    %410 = vector.broadcast %cst_125 : f32 to vector<8x1xf32>
    %411 = arith.maximumf %409, %410 : vector<8x1xf32>
    %412 = vector.broadcast %411 : vector<8x1xf32> to vector<8x32xf32>
    %413 = arith.divf %402, %412 : vector<8x32xf32>
    %414 = arith.mulf %413, %413 : vector<8x32xf32>
    %cst_126 = arith.constant dense<0.000000e+00> : vector<8xf32>
    %415 = vector.multi_reduction <add>, %414, %cst_126 [1] : vector<8x32xf32> to vector<8xf32>
    %416 = vector.shape_cast %415 : vector<8xf32> to vector<8x1xf32>
    %cst_127 = arith.constant 0.000000e+00 : f32
    %417 = vector.broadcast %cst_127 : f32 to vector<8x1xf32>
    %418 = arith.maximumf %416, %417 : vector<8x1xf32>
    %419 = math.sqrt %418 : vector<8x1xf32>
    %cst_128 = arith.constant 1.000000e-07 : f32
    %420 = vector.broadcast %cst_128 : f32 to vector<8x1xf32>
    %421 = arith.maximumf %419, %420 : vector<8x1xf32>
    %cst_129 = arith.constant 0.999989986 : f32
    %422 = vector.broadcast %cst_129 : f32 to vector<8x1xf32>
    %423 = arith.cmpf ogt, %421, %422 : vector<8x1xf32>
    %cst_130 = arith.constant 0.999989986 : f32
    %424 = vector.broadcast %cst_130 : f32 to vector<8x1xf32>
    %425 = arith.divf %424, %421 : vector<8x1xf32>
    %cst_131 = arith.constant 1.000000e+00 : f32
    %426 = vector.broadcast %cst_131 : f32 to vector<8x1xf32>
    %427 = arith.select %423, %425, %426 : vector<8x1xi1>, vector<8x1xf32>
    %428 = vector.broadcast %427 : vector<8x1xf32> to vector<8x32xf32>
    %429 = arith.mulf %413, %428 : vector<8x32xf32>
    %430 = arith.mulf %1, %429 : vector<8x32xf32>
    %cst_132 = arith.constant dense<0.000000e+00> : vector<8xf32>
    %431 = vector.multi_reduction <add>, %430, %cst_132 [1] : vector<8x32xf32> to vector<8xf32>
    %432 = vector.shape_cast %431 : vector<8xf32> to vector<8x1xf32>
    %433 = arith.mulf %1, %1 : vector<8x32xf32>
    %cst_133 = arith.constant dense<0.000000e+00> : vector<8xf32>
    %434 = vector.multi_reduction <add>, %433, %cst_133 [1] : vector<8x32xf32> to vector<8xf32>
    %435 = vector.shape_cast %434 : vector<8xf32> to vector<8x1xf32>
    %436 = arith.mulf %429, %429 : vector<8x32xf32>
    %cst_134 = arith.constant dense<0.000000e+00> : vector<8xf32>
    %437 = vector.multi_reduction <add>, %436, %cst_134 [1] : vector<8x32xf32> to vector<8xf32>
    %438 = vector.shape_cast %437 : vector<8xf32> to vector<8x1xf32>
    %cst_135 = arith.constant 2.000000e+00 : f32
    %439 = vector.broadcast %cst_135 : f32 to vector<8x1xf32>
    %440 = arith.mulf %439, %432 : vector<8x1xf32>
    %cst_136 = arith.constant 1.000000e+00 : f32
    %441 = vector.broadcast %cst_136 : f32 to vector<8x1xf32>
    %442 = arith.addf %441, %440 : vector<8x1xf32>
    %443 = arith.addf %442, %438 : vector<8x1xf32>
    %444 = vector.broadcast %443 : vector<8x1xf32> to vector<8x32xf32>
    %445 = arith.mulf %444, %1 : vector<8x32xf32>
    %cst_137 = arith.constant 1.000000e+00 : f32
    %446 = vector.broadcast %cst_137 : f32 to vector<8x1xf32>
    %447 = arith.subf %446, %435 : vector<8x1xf32>
    %448 = vector.broadcast %447 : vector<8x1xf32> to vector<8x32xf32>
    %449 = arith.mulf %448, %429 : vector<8x32xf32>
    %450 = arith.addf %445, %449 : vector<8x32xf32>
    %cst_138 = arith.constant 2.000000e+00 : f32
    %451 = vector.broadcast %cst_138 : f32 to vector<8x1xf32>
    %452 = arith.mulf %451, %432 : vector<8x1xf32>
    %cst_139 = arith.constant 1.000000e+00 : f32
    %453 = vector.broadcast %cst_139 : f32 to vector<8x1xf32>
    %454 = arith.addf %453, %452 : vector<8x1xf32>
    %455 = arith.mulf %435, %438 : vector<8x1xf32>
    %456 = arith.addf %454, %455 : vector<8x1xf32>
    %cst_140 = arith.constant 1.000000e-07 : f32
    %457 = vector.broadcast %cst_140 : f32 to vector<8x1xf32>
    %458 = arith.maximumf %456, %457 : vector<8x1xf32>
    %459 = vector.broadcast %458 : vector<8x1xf32> to vector<8x32xf32>
    %460 = arith.divf %450, %459 : vector<8x32xf32>
    %c0_141 = arith.constant 0 : index
    %c0_142 = arith.constant 0 : index
    %461 = vector.load %arg12[%c0_141, %c0_142] : memref<1x32xf32, #tpu.memory_space<vmem>>, vector<1x32xf32>
    %c0_143 = arith.constant 0 : index
    %c0_144 = arith.constant 0 : index
    %462 = vector.load %arg13[%c0_143, %c0_144] : memref<1x32xf32, #tpu.memory_space<vmem>>, vector<1x32xf32>
    %c0_145 = arith.constant 0 : index
    %c0_146 = arith.constant 0 : index
    %463 = vector.load %arg14[%c0_145, %c0_146] : memref<1x32xf32, #tpu.memory_space<vmem>>, vector<1x32xf32>
    %464 = arith.mulf %460, %460 : vector<8x32xf32>
    %cst_147 = arith.constant dense<0.000000e+00> : vector<8xf32>
    %465 = vector.multi_reduction <add>, %464, %cst_147 [1] : vector<8x32xf32> to vector<8xf32>
    %466 = vector.shape_cast %465 : vector<8xf32> to vector<8x1xf32>
    %cst_148 = arith.constant 0.000000e+00 : f32
    %467 = vector.broadcast %cst_148 : f32 to vector<8x1xf32>
    %468 = arith.maximumf %466, %467 : vector<8x1xf32>
    %469 = math.sqrt %468 : vector<8x1xf32>
    %cst_149 = arith.constant 1.000000e-07 : f32
    %470 = vector.broadcast %cst_149 : f32 to vector<8x1xf32>
    %471 = arith.maximumf %469, %470 : vector<8x1xf32>
    %cst_150 = arith.constant -0.999998986 : f32
    %cst_151 = arith.constant 0.999998986 : f32
    %472 = vector.broadcast %cst_150 : f32 to vector<8x1xf32>
    %473 = arith.maximumf %472, %471 : vector<8x1xf32>
    %474 = vector.broadcast %cst_151 : f32 to vector<8x1xf32>
    %475 = arith.minimumf %474, %473 : vector<8x1xf32>
    %476 = math.log1p %475 : vector<8x1xf32>
    %cst_152 = arith.constant 0.000000e+00 : f32
    %477 = vector.broadcast %cst_152 : f32 to vector<8x1xf32>
    %478 = arith.subf %477, %475 : vector<8x1xf32>
    %479 = math.log1p %478 : vector<8x1xf32>
    %480 = arith.subf %476, %479 : vector<8x1xf32>
    %cst_153 = arith.constant 5.000000e-01 : f32
    %481 = vector.broadcast %cst_153 : f32 to vector<8x1xf32>
    %482 = arith.mulf %481, %480 : vector<8x1xf32>
    %483 = arith.divf %482, %471 : vector<8x1xf32>
    %484 = vector.broadcast %483 : vector<8x1xf32> to vector<8x32xf32>
    %485 = arith.mulf %484, %460 : vector<8x32xf32>
    %cst_154 = arith.constant dense<0.000000e+00> : vector<8xf32>
    %486 = vector.multi_reduction <add>, %485, %cst_154 [1] : vector<8x32xf32> to vector<8xf32>
    %487 = vector.shape_cast %486 : vector<8xf32> to vector<8x1xf32>
    %cst_155 = arith.constant 3.200000e+01 : f32
    %488 = vector.broadcast %cst_155 : f32 to vector<8x1xf32>
    %489 = arith.divf %487, %488 : vector<8x1xf32>
    %490 = vector.broadcast %489 : vector<8x1xf32> to vector<8x32xf32>
    %491 = arith.subf %485, %490 : vector<8x32xf32>
    %492 = arith.mulf %491, %491 : vector<8x32xf32>
    %cst_156 = arith.constant dense<0.000000e+00> : vector<8xf32>
    %493 = vector.multi_reduction <add>, %492, %cst_156 [1] : vector<8x32xf32> to vector<8xf32>
    %494 = vector.shape_cast %493 : vector<8xf32> to vector<8x1xf32>
    %cst_157 = arith.constant 0.0322580636 : f32
    %495 = vector.broadcast %cst_157 : f32 to vector<8x1xf32>
    %496 = arith.mulf %494, %495 : vector<8x1xf32>
    %497 = math.sqrt %496 : vector<8x1xf32>
    %cst_158 = arith.constant 9.99999997E-7 : f32
    %498 = vector.broadcast %cst_158 : f32 to vector<8x1xf32>
    %499 = arith.addf %497, %498 : vector<8x1xf32>
    %500 = vector.broadcast %499 : vector<8x1xf32> to vector<8x32xf32>
    %501 = arith.divf %491, %500 : vector<8x32xf32>
    %502 = vector.broadcast %461 : vector<1x32xf32> to vector<8x32xf32>
    %503 = arith.mulf %502, %501 : vector<8x32xf32>
    %504 = vector.broadcast %462 : vector<1x32xf32> to vector<8x32xf32>
    %505 = arith.addf %503, %504 : vector<8x32xf32>
    %506 = arith.mulf %505, %505 : vector<8x32xf32>
    %cst_159 = arith.constant dense<0.000000e+00> : vector<8xf32>
    %507 = vector.multi_reduction <add>, %506, %cst_159 [1] : vector<8x32xf32> to vector<8xf32>
    %508 = vector.shape_cast %507 : vector<8xf32> to vector<8x1xf32>
    %cst_160 = arith.constant 0.000000e+00 : f32
    %509 = vector.broadcast %cst_160 : f32 to vector<8x1xf32>
    %510 = arith.maximumf %508, %509 : vector<8x1xf32>
    %511 = math.sqrt %510 : vector<8x1xf32>
    %cst_161 = arith.constant 1.000000e-07 : f32
    %512 = vector.broadcast %cst_161 : f32 to vector<8x1xf32>
    %513 = arith.maximumf %511, %512 : vector<8x1xf32>
    %514 = math.tanh %513 : vector<8x1xf32>
    %515 = arith.divf %514, %513 : vector<8x1xf32>
    %516 = vector.broadcast %515 : vector<8x1xf32> to vector<8x32xf32>
    %517 = arith.mulf %516, %505 : vector<8x32xf32>
    %518 = vector.broadcast %463 : vector<1x32xf32> to vector<8x32xf32>
    %519 = arith.mulf %517, %518 : vector<8x32xf32>
    %cst_162 = arith.constant dense<0.000000e+00> : vector<8xf32>
    %520 = vector.multi_reduction <add>, %519, %cst_162 [1] : vector<8x32xf32> to vector<8xf32>
    %521 = vector.shape_cast %520 : vector<8xf32> to vector<8x1xf32>
    %522 = arith.mulf %517, %517 : vector<8x32xf32>
    %cst_163 = arith.constant dense<0.000000e+00> : vector<8xf32>
    %523 = vector.multi_reduction <add>, %522, %cst_163 [1] : vector<8x32xf32> to vector<8xf32>
    %524 = vector.shape_cast %523 : vector<8xf32> to vector<8x1xf32>
    %525 = arith.mulf %463, %463 : vector<1x32xf32>
    %cst_164 = arith.constant dense<0.000000e+00> : vector<1xf32>
    %526 = vector.multi_reduction <add>, %525, %cst_164 [1] : vector<1x32xf32> to vector<1xf32>
    %527 = vector.shape_cast %526 : vector<1xf32> to vector<1x1xf32>
    %cst_165 = arith.constant 2.000000e+00 : f32
    %528 = vector.broadcast %cst_165 : f32 to vector<8x1xf32>
    %529 = arith.mulf %528, %521 : vector<8x1xf32>
    %cst_166 = arith.constant 1.000000e+00 : f32
    %530 = vector.broadcast %cst_166 : f32 to vector<8x1xf32>
    %531 = arith.addf %530, %529 : vector<8x1xf32>
    %532 = vector.broadcast %527 : vector<1x1xf32> to vector<8x1xf32>
    %533 = arith.addf %531, %532 : vector<8x1xf32>
    %534 = vector.broadcast %533 : vector<8x1xf32> to vector<8x32xf32>
    %535 = arith.mulf %534, %517 : vector<8x32xf32>
    %cst_167 = arith.constant 1.000000e+00 : f32
    %536 = vector.broadcast %cst_167 : f32 to vector<8x1xf32>
    %537 = arith.subf %536, %524 : vector<8x1xf32>
    %538 = vector.broadcast %537 : vector<8x1xf32> to vector<8x32xf32>
    %539 = vector.broadcast %463 : vector<1x32xf32> to vector<8x32xf32>
    %540 = arith.mulf %538, %539 : vector<8x32xf32>
    %541 = arith.addf %535, %540 : vector<8x32xf32>
    %cst_168 = arith.constant 2.000000e+00 : f32
    %542 = vector.broadcast %cst_168 : f32 to vector<8x1xf32>
    %543 = arith.mulf %542, %521 : vector<8x1xf32>
    %cst_169 = arith.constant 1.000000e+00 : f32
    %544 = vector.broadcast %cst_169 : f32 to vector<8x1xf32>
    %545 = arith.addf %544, %543 : vector<8x1xf32>
    %546 = vector.broadcast %527 : vector<1x1xf32> to vector<8x1xf32>
    %547 = arith.mulf %524, %546 : vector<8x1xf32>
    %548 = arith.addf %545, %547 : vector<8x1xf32>
    %cst_170 = arith.constant 1.000000e-07 : f32
    %549 = vector.broadcast %cst_170 : f32 to vector<8x1xf32>
    %550 = arith.maximumf %548, %549 : vector<8x1xf32>
    %551 = vector.broadcast %550 : vector<8x1xf32> to vector<8x32xf32>
    %552 = arith.divf %541, %551 : vector<8x32xf32>
    %c0_171 = arith.constant 0 : index
    %c0_172 = arith.constant 0 : index
    %553 = vector.load %arg8[%c0_171, %c0_172] : memref<32x64xbf16, #tpu.memory_space<vmem>>, vector<32x64xbf16>
    %c0_173 = arith.constant 0 : index
    %c0_174 = arith.constant 0 : index
    %554 = vector.load %arg9[%c0_173, %c0_174] : memref<1x64xf32, #tpu.memory_space<vmem>>, vector<1x64xf32>
    %555 = arith.mulf %552, %552 : vector<8x32xf32>
    %cst_175 = arith.constant dense<0.000000e+00> : vector<8xf32>
    %556 = vector.multi_reduction <add>, %555, %cst_175 [1] : vector<8x32xf32> to vector<8xf32>
    %557 = vector.shape_cast %556 : vector<8xf32> to vector<8x1xf32>
    %cst_176 = arith.constant 0.000000e+00 : f32
    %558 = vector.broadcast %cst_176 : f32 to vector<8x1xf32>
    %559 = arith.maximumf %557, %558 : vector<8x1xf32>
    %560 = math.sqrt %559 : vector<8x1xf32>
    %cst_177 = arith.constant 1.000000e-07 : f32
    %561 = vector.broadcast %cst_177 : f32 to vector<8x1xf32>
    %562 = arith.maximumf %560, %561 : vector<8x1xf32>
    %cst_178 = arith.constant -0.999998986 : f32
    %cst_179 = arith.constant 0.999998986 : f32
    %563 = vector.broadcast %cst_178 : f32 to vector<8x1xf32>
    %564 = arith.maximumf %563, %562 : vector<8x1xf32>
    %565 = vector.broadcast %cst_179 : f32 to vector<8x1xf32>
    %566 = arith.minimumf %565, %564 : vector<8x1xf32>
    %567 = math.log1p %566 : vector<8x1xf32>
    %cst_180 = arith.constant 0.000000e+00 : f32
    %568 = vector.broadcast %cst_180 : f32 to vector<8x1xf32>
    %569 = arith.subf %568, %566 : vector<8x1xf32>
    %570 = math.log1p %569 : vector<8x1xf32>
    %571 = arith.subf %567, %570 : vector<8x1xf32>
    %cst_181 = arith.constant 5.000000e-01 : f32
    %572 = vector.broadcast %cst_181 : f32 to vector<8x1xf32>
    %573 = arith.mulf %572, %571 : vector<8x1xf32>
    %574 = arith.truncf %552 : vector<8x32xf32> to vector<8x32xbf16>
    %cst_182 = arith.constant dense<0.000000e+00> : vector<8x64xf32>
    %575 = tpu.matmul %574, %553, %cst_182 {dimension_numbers = #tpu.dot_dimension_numbers<[1], [0], [0], [1], [0, 0, 1, 1], [], []>} : vector<8x32xbf16>, vector<32x64xbf16>, vector<8x64xf32> -> vector<8x64xf32>
    %576 = arith.mulf %575, %575 : vector<8x64xf32>
    %cst_183 = arith.constant dense<0.000000e+00> : vector<8xf32>
    %577 = vector.multi_reduction <add>, %576, %cst_183 [1] : vector<8x64xf32> to vector<8xf32>
    %578 = vector.shape_cast %577 : vector<8xf32> to vector<8x1xf32>
    %cst_184 = arith.constant 0.000000e+00 : f32
    %579 = vector.broadcast %cst_184 : f32 to vector<8x1xf32>
    %580 = arith.maximumf %578, %579 : vector<8x1xf32>
    %581 = math.sqrt %580 : vector<8x1xf32>
    %cst_185 = arith.constant 1.000000e-07 : f32
    %582 = vector.broadcast %cst_185 : f32 to vector<8x1xf32>
    %583 = arith.maximumf %581, %582 : vector<8x1xf32>
    %584 = arith.divf %583, %562 : vector<8x1xf32>
    %585 = arith.mulf %584, %573 : vector<8x1xf32>
    %586 = math.tanh %585 : vector<8x1xf32>
    %587 = vector.broadcast %583 : vector<8x1xf32> to vector<8x64xf32>
    %588 = arith.divf %575, %587 : vector<8x64xf32>
    %589 = vector.broadcast %586 : vector<8x1xf32> to vector<8x64xf32>
    %590 = arith.mulf %589, %588 : vector<8x64xf32>
    %591 = vector.broadcast %554 : vector<1x64xf32> to vector<8x64xf32>
    %592 = arith.mulf %590, %591 : vector<8x64xf32>
    %cst_186 = arith.constant dense<0.000000e+00> : vector<8xf32>
    %593 = vector.multi_reduction <add>, %592, %cst_186 [1] : vector<8x64xf32> to vector<8xf32>
    %594 = vector.shape_cast %593 : vector<8xf32> to vector<8x1xf32>
    %595 = arith.mulf %590, %590 : vector<8x64xf32>
    %cst_187 = arith.constant dense<0.000000e+00> : vector<8xf32>
    %596 = vector.multi_reduction <add>, %595, %cst_187 [1] : vector<8x64xf32> to vector<8xf32>
    %597 = vector.shape_cast %596 : vector<8xf32> to vector<8x1xf32>
    %598 = arith.mulf %554, %554 : vector<1x64xf32>
    %cst_188 = arith.constant dense<0.000000e+00> : vector<1xf32>
    %599 = vector.multi_reduction <add>, %598, %cst_188 [1] : vector<1x64xf32> to vector<1xf32>
    %600 = vector.shape_cast %599 : vector<1xf32> to vector<1x1xf32>
    %cst_189 = arith.constant 2.000000e+00 : f32
    %601 = vector.broadcast %cst_189 : f32 to vector<8x1xf32>
    %602 = arith.mulf %601, %594 : vector<8x1xf32>
    %cst_190 = arith.constant 1.000000e+00 : f32
    %603 = vector.broadcast %cst_190 : f32 to vector<8x1xf32>
    %604 = arith.addf %603, %602 : vector<8x1xf32>
    %605 = vector.broadcast %600 : vector<1x1xf32> to vector<8x1xf32>
    %606 = arith.addf %604, %605 : vector<8x1xf32>
    %607 = vector.broadcast %606 : vector<8x1xf32> to vector<8x64xf32>
    %608 = arith.mulf %607, %590 : vector<8x64xf32>
    %cst_191 = arith.constant 1.000000e+00 : f32
    %609 = vector.broadcast %cst_191 : f32 to vector<8x1xf32>
    %610 = arith.subf %609, %597 : vector<8x1xf32>
    %611 = vector.broadcast %610 : vector<8x1xf32> to vector<8x64xf32>
    %612 = vector.broadcast %554 : vector<1x64xf32> to vector<8x64xf32>
    %613 = arith.mulf %611, %612 : vector<8x64xf32>
    %614 = arith.addf %608, %613 : vector<8x64xf32>
    %cst_192 = arith.constant 2.000000e+00 : f32
    %615 = vector.broadcast %cst_192 : f32 to vector<8x1xf32>
    %616 = arith.mulf %615, %594 : vector<8x1xf32>
    %cst_193 = arith.constant 1.000000e+00 : f32
    %617 = vector.broadcast %cst_193 : f32 to vector<8x1xf32>
    %618 = arith.addf %617, %616 : vector<8x1xf32>
    %619 = vector.broadcast %600 : vector<1x1xf32> to vector<8x1xf32>
    %620 = arith.mulf %597, %619 : vector<8x1xf32>
    %621 = arith.addf %618, %620 : vector<8x1xf32>
    %cst_194 = arith.constant 1.000000e-07 : f32
    %622 = vector.broadcast %cst_194 : f32 to vector<8x1xf32>
    %623 = arith.maximumf %621, %622 : vector<8x1xf32>
    %624 = vector.broadcast %623 : vector<8x1xf32> to vector<8x64xf32>
    %625 = arith.divf %614, %624 : vector<8x64xf32>
    %626 = arith.mulf %625, %625 : vector<8x64xf32>
    %cst_195 = arith.constant dense<0.000000e+00> : vector<8xf32>
    %627 = vector.multi_reduction <add>, %626, %cst_195 [1] : vector<8x64xf32> to vector<8xf32>
    %628 = vector.shape_cast %627 : vector<8xf32> to vector<8x1xf32>
    %cst_196 = arith.constant 0.000000e+00 : f32
    %629 = vector.broadcast %cst_196 : f32 to vector<8x1xf32>
    %630 = arith.maximumf %628, %629 : vector<8x1xf32>
    %631 = math.sqrt %630 : vector<8x1xf32>
    %cst_197 = arith.constant 1.000000e-07 : f32
    %632 = vector.broadcast %cst_197 : f32 to vector<8x1xf32>
    %633 = arith.maximumf %631, %632 : vector<8x1xf32>
    %cst_198 = arith.constant 0.999989986 : f32
    %634 = vector.broadcast %cst_198 : f32 to vector<8x1xf32>
    %635 = arith.cmpf ogt, %633, %634 : vector<8x1xf32>
    %cst_199 = arith.constant 0.999989986 : f32
    %636 = vector.broadcast %cst_199 : f32 to vector<8x1xf32>
    %637 = arith.divf %636, %633 : vector<8x1xf32>
    %cst_200 = arith.constant 1.000000e+00 : f32
    %638 = vector.broadcast %cst_200 : f32 to vector<8x1xf32>
    %639 = arith.select %635, %637, %638 : vector<8x1xi1>, vector<8x1xf32>
    %640 = vector.broadcast %639 : vector<8x1xf32> to vector<8x64xf32>
    %641 = arith.mulf %625, %640 : vector<8x64xf32>
    %642 = arith.mulf %641, %641 : vector<8x64xf32>
    %cst_201 = arith.constant dense<0.000000e+00> : vector<8xf32>
    %643 = vector.multi_reduction <add>, %642, %cst_201 [1] : vector<8x64xf32> to vector<8xf32>
    %644 = vector.shape_cast %643 : vector<8xf32> to vector<8x1xf32>
    %cst_202 = arith.constant 0.000000e+00 : f32
    %645 = vector.broadcast %cst_202 : f32 to vector<8x1xf32>
    %646 = arith.maximumf %644, %645 : vector<8x1xf32>
    %647 = math.sqrt %646 : vector<8x1xf32>
    %cst_203 = arith.constant 1.000000e-07 : f32
    %648 = vector.broadcast %cst_203 : f32 to vector<8x1xf32>
    %649 = arith.maximumf %647, %648 : vector<8x1xf32>
    %cst_204 = arith.constant -0.999998986 : f32
    %cst_205 = arith.constant 0.999998986 : f32
    %650 = vector.broadcast %cst_204 : f32 to vector<8x1xf32>
    %651 = arith.maximumf %650, %649 : vector<8x1xf32>
    %652 = vector.broadcast %cst_205 : f32 to vector<8x1xf32>
    %653 = arith.minimumf %652, %651 : vector<8x1xf32>
    %654 = math.log1p %653 : vector<8x1xf32>
    %cst_206 = arith.constant 0.000000e+00 : f32
    %655 = vector.broadcast %cst_206 : f32 to vector<8x1xf32>
    %656 = arith.subf %655, %653 : vector<8x1xf32>
    %657 = math.log1p %656 : vector<8x1xf32>
    %658 = arith.subf %654, %657 : vector<8x1xf32>
    %cst_207 = arith.constant 5.000000e-01 : f32
    %659 = vector.broadcast %cst_207 : f32 to vector<8x1xf32>
    %660 = arith.mulf %659, %658 : vector<8x1xf32>
    %661 = arith.divf %660, %649 : vector<8x1xf32>
    %662 = vector.broadcast %661 : vector<8x1xf32> to vector<8x64xf32>
    %663 = arith.mulf %662, %641 : vector<8x64xf32>
    %cst_208 = arith.constant 0.000000e+00 : f32
    %664 = vector.broadcast %cst_208 : f32 to vector<8x64xf32>
    %665 = arith.maximumf %663, %664 : vector<8x64xf32>
    %666 = arith.mulf %665, %665 : vector<8x64xf32>
    %cst_209 = arith.constant dense<0.000000e+00> : vector<8xf32>
    %667 = vector.multi_reduction <add>, %666, %cst_209 [1] : vector<8x64xf32> to vector<8xf32>
    %668 = vector.shape_cast %667 : vector<8xf32> to vector<8x1xf32>
    %cst_210 = arith.constant 0.000000e+00 : f32
    %669 = vector.broadcast %cst_210 : f32 to vector<8x1xf32>
    %670 = arith.maximumf %668, %669 : vector<8x1xf32>
    %671 = math.sqrt %670 : vector<8x1xf32>
    %cst_211 = arith.constant 1.000000e-07 : f32
    %672 = vector.broadcast %cst_211 : f32 to vector<8x1xf32>
    %673 = arith.maximumf %671, %672 : vector<8x1xf32>
    %674 = math.tanh %673 : vector<8x1xf32>
    %675 = arith.divf %674, %673 : vector<8x1xf32>
    %676 = vector.broadcast %675 : vector<8x1xf32> to vector<8x64xf32>
    %677 = arith.mulf %676, %665 : vector<8x64xf32>
    %c0_212 = arith.constant 0 : index
    %c0_213 = arith.constant 0 : index
    %678 = vector.load %arg10[%c0_212, %c0_213] : memref<64x32xbf16, #tpu.memory_space<vmem>>, vector<64x32xbf16>
    %c0_214 = arith.constant 0 : index
    %c0_215 = arith.constant 0 : index
    %679 = vector.load %arg11[%c0_214, %c0_215] : memref<1x32xf32, #tpu.memory_space<vmem>>, vector<1x32xf32>
    %680 = arith.mulf %677, %677 : vector<8x64xf32>
    %cst_216 = arith.constant dense<0.000000e+00> : vector<8xf32>
    %681 = vector.multi_reduction <add>, %680, %cst_216 [1] : vector<8x64xf32> to vector<8xf32>
    %682 = vector.shape_cast %681 : vector<8xf32> to vector<8x1xf32>
    %cst_217 = arith.constant 0.000000e+00 : f32
    %683 = vector.broadcast %cst_217 : f32 to vector<8x1xf32>
    %684 = arith.maximumf %682, %683 : vector<8x1xf32>
    %685 = math.sqrt %684 : vector<8x1xf32>
    %cst_218 = arith.constant 1.000000e-07 : f32
    %686 = vector.broadcast %cst_218 : f32 to vector<8x1xf32>
    %687 = arith.maximumf %685, %686 : vector<8x1xf32>
    %cst_219 = arith.constant -0.999998986 : f32
    %cst_220 = arith.constant 0.999998986 : f32
    %688 = vector.broadcast %cst_219 : f32 to vector<8x1xf32>
    %689 = arith.maximumf %688, %687 : vector<8x1xf32>
    %690 = vector.broadcast %cst_220 : f32 to vector<8x1xf32>
    %691 = arith.minimumf %690, %689 : vector<8x1xf32>
    %692 = math.log1p %691 : vector<8x1xf32>
    %cst_221 = arith.constant 0.000000e+00 : f32
    %693 = vector.broadcast %cst_221 : f32 to vector<8x1xf32>
    %694 = arith.subf %693, %691 : vector<8x1xf32>
    %695 = math.log1p %694 : vector<8x1xf32>
    %696 = arith.subf %692, %695 : vector<8x1xf32>
    %cst_222 = arith.constant 5.000000e-01 : f32
    %697 = vector.broadcast %cst_222 : f32 to vector<8x1xf32>
    %698 = arith.mulf %697, %696 : vector<8x1xf32>
    %699 = arith.truncf %677 : vector<8x64xf32> to vector<8x64xbf16>
    %cst_223 = arith.constant dense<0.000000e+00> : vector<8x32xf32>
    %700 = tpu.matmul %699, %678, %cst_223 {dimension_numbers = #tpu.dot_dimension_numbers<[1], [0], [0], [1], [0, 0, 1, 1], [], []>} : vector<8x64xbf16>, vector<64x32xbf16>, vector<8x32xf32> -> vector<8x32xf32>
    %701 = arith.mulf %700, %700 : vector<8x32xf32>
    %cst_224 = arith.constant dense<0.000000e+00> : vector<8xf32>
    %702 = vector.multi_reduction <add>, %701, %cst_224 [1] : vector<8x32xf32> to vector<8xf32>
    %703 = vector.shape_cast %702 : vector<8xf32> to vector<8x1xf32>
    %cst_225 = arith.constant 0.000000e+00 : f32
    %704 = vector.broadcast %cst_225 : f32 to vector<8x1xf32>
    %705 = arith.maximumf %703, %704 : vector<8x1xf32>
    %706 = math.sqrt %705 : vector<8x1xf32>
    %cst_226 = arith.constant 1.000000e-07 : f32
    %707 = vector.broadcast %cst_226 : f32 to vector<8x1xf32>
    %708 = arith.maximumf %706, %707 : vector<8x1xf32>
    %709 = arith.divf %708, %687 : vector<8x1xf32>
    %710 = arith.mulf %709, %698 : vector<8x1xf32>
    %711 = math.tanh %710 : vector<8x1xf32>
    %712 = vector.broadcast %708 : vector<8x1xf32> to vector<8x32xf32>
    %713 = arith.divf %700, %712 : vector<8x32xf32>
    %714 = vector.broadcast %711 : vector<8x1xf32> to vector<8x32xf32>
    %715 = arith.mulf %714, %713 : vector<8x32xf32>
    %716 = vector.broadcast %679 : vector<1x32xf32> to vector<8x32xf32>
    %717 = arith.mulf %715, %716 : vector<8x32xf32>
    %cst_227 = arith.constant dense<0.000000e+00> : vector<8xf32>
    %718 = vector.multi_reduction <add>, %717, %cst_227 [1] : vector<8x32xf32> to vector<8xf32>
    %719 = vector.shape_cast %718 : vector<8xf32> to vector<8x1xf32>
    %720 = arith.mulf %715, %715 : vector<8x32xf32>
    %cst_228 = arith.constant dense<0.000000e+00> : vector<8xf32>
    %721 = vector.multi_reduction <add>, %720, %cst_228 [1] : vector<8x32xf32> to vector<8xf32>
    %722 = vector.shape_cast %721 : vector<8xf32> to vector<8x1xf32>
    %723 = arith.mulf %679, %679 : vector<1x32xf32>
    %cst_229 = arith.constant dense<0.000000e+00> : vector<1xf32>
    %724 = vector.multi_reduction <add>, %723, %cst_229 [1] : vector<1x32xf32> to vector<1xf32>
    %725 = vector.shape_cast %724 : vector<1xf32> to vector<1x1xf32>
    %cst_230 = arith.constant 2.000000e+00 : f32
    %726 = vector.broadcast %cst_230 : f32 to vector<8x1xf32>
    %727 = arith.mulf %726, %719 : vector<8x1xf32>
    %cst_231 = arith.constant 1.000000e+00 : f32
    %728 = vector.broadcast %cst_231 : f32 to vector<8x1xf32>
    %729 = arith.addf %728, %727 : vector<8x1xf32>
    %730 = vector.broadcast %725 : vector<1x1xf32> to vector<8x1xf32>
    %731 = arith.addf %729, %730 : vector<8x1xf32>
    %732 = vector.broadcast %731 : vector<8x1xf32> to vector<8x32xf32>
    %733 = arith.mulf %732, %715 : vector<8x32xf32>
    %cst_232 = arith.constant 1.000000e+00 : f32
    %734 = vector.broadcast %cst_232 : f32 to vector<8x1xf32>
    %735 = arith.subf %734, %722 : vector<8x1xf32>
    %736 = vector.broadcast %735 : vector<8x1xf32> to vector<8x32xf32>
    %737 = vector.broadcast %679 : vector<1x32xf32> to vector<8x32xf32>
    %738 = arith.mulf %736, %737 : vector<8x32xf32>
    %739 = arith.addf %733, %738 : vector<8x32xf32>
    %cst_233 = arith.constant 2.000000e+00 : f32
    %740 = vector.broadcast %cst_233 : f32 to vector<8x1xf32>
    %741 = arith.mulf %740, %719 : vector<8x1xf32>
    %cst_234 = arith.constant 1.000000e+00 : f32
    %742 = vector.broadcast %cst_234 : f32 to vector<8x1xf32>
    %743 = arith.addf %742, %741 : vector<8x1xf32>
    %744 = vector.broadcast %725 : vector<1x1xf32> to vector<8x1xf32>
    %745 = arith.mulf %722, %744 : vector<8x1xf32>
    %746 = arith.addf %743, %745 : vector<8x1xf32>
    %cst_235 = arith.constant 1.000000e-07 : f32
    %747 = vector.broadcast %cst_235 : f32 to vector<8x1xf32>
    %748 = arith.maximumf %746, %747 : vector<8x1xf32>
    %749 = vector.broadcast %748 : vector<8x1xf32> to vector<8x32xf32>
    %750 = arith.divf %739, %749 : vector<8x32xf32>
    %751 = arith.mulf %750, %750 : vector<8x32xf32>
    %cst_236 = arith.constant dense<0.000000e+00> : vector<8xf32>
    %752 = vector.multi_reduction <add>, %751, %cst_236 [1] : vector<8x32xf32> to vector<8xf32>
    %753 = vector.shape_cast %752 : vector<8xf32> to vector<8x1xf32>
    %cst_237 = arith.constant 0.000000e+00 : f32
    %754 = vector.broadcast %cst_237 : f32 to vector<8x1xf32>
    %755 = arith.maximumf %753, %754 : vector<8x1xf32>
    %756 = math.sqrt %755 : vector<8x1xf32>
    %cst_238 = arith.constant 1.000000e-07 : f32
    %757 = vector.broadcast %cst_238 : f32 to vector<8x1xf32>
    %758 = arith.maximumf %756, %757 : vector<8x1xf32>
    %cst_239 = arith.constant 0.999989986 : f32
    %759 = vector.broadcast %cst_239 : f32 to vector<8x1xf32>
    %760 = arith.cmpf ogt, %758, %759 : vector<8x1xf32>
    %cst_240 = arith.constant 0.999989986 : f32
    %761 = vector.broadcast %cst_240 : f32 to vector<8x1xf32>
    %762 = arith.divf %761, %758 : vector<8x1xf32>
    %cst_241 = arith.constant 1.000000e+00 : f32
    %763 = vector.broadcast %cst_241 : f32 to vector<8x1xf32>
    %764 = arith.select %760, %762, %763 : vector<8x1xi1>, vector<8x1xf32>
    %765 = vector.broadcast %764 : vector<8x1xf32> to vector<8x32xf32>
    %766 = arith.mulf %750, %765 : vector<8x32xf32>
    %767 = arith.mulf %552, %766 : vector<8x32xf32>
    %cst_242 = arith.constant dense<0.000000e+00> : vector<8xf32>
    %768 = vector.multi_reduction <add>, %767, %cst_242 [1] : vector<8x32xf32> to vector<8xf32>
    %769 = vector.shape_cast %768 : vector<8xf32> to vector<8x1xf32>
    %770 = arith.mulf %552, %552 : vector<8x32xf32>
    %cst_243 = arith.constant dense<0.000000e+00> : vector<8xf32>
    %771 = vector.multi_reduction <add>, %770, %cst_243 [1] : vector<8x32xf32> to vector<8xf32>
    %772 = vector.shape_cast %771 : vector<8xf32> to vector<8x1xf32>
    %773 = arith.mulf %766, %766 : vector<8x32xf32>
    %cst_244 = arith.constant dense<0.000000e+00> : vector<8xf32>
    %774 = vector.multi_reduction <add>, %773, %cst_244 [1] : vector<8x32xf32> to vector<8xf32>
    %775 = vector.shape_cast %774 : vector<8xf32> to vector<8x1xf32>
    %cst_245 = arith.constant 2.000000e+00 : f32
    %776 = vector.broadcast %cst_245 : f32 to vector<8x1xf32>
    %777 = arith.mulf %776, %769 : vector<8x1xf32>
    %cst_246 = arith.constant 1.000000e+00 : f32
    %778 = vector.broadcast %cst_246 : f32 to vector<8x1xf32>
    %779 = arith.addf %778, %777 : vector<8x1xf32>
    %780 = arith.addf %779, %775 : vector<8x1xf32>
    %781 = vector.broadcast %780 : vector<8x1xf32> to vector<8x32xf32>
    %782 = arith.mulf %781, %552 : vector<8x32xf32>
    %cst_247 = arith.constant 1.000000e+00 : f32
    %783 = vector.broadcast %cst_247 : f32 to vector<8x1xf32>
    %784 = arith.subf %783, %772 : vector<8x1xf32>
    %785 = vector.broadcast %784 : vector<8x1xf32> to vector<8x32xf32>
    %786 = arith.mulf %785, %766 : vector<8x32xf32>
    %787 = arith.addf %782, %786 : vector<8x32xf32>
    %cst_248 = arith.constant 2.000000e+00 : f32
    %788 = vector.broadcast %cst_248 : f32 to vector<8x1xf32>
    %789 = arith.mulf %788, %769 : vector<8x1xf32>
    %cst_249 = arith.constant 1.000000e+00 : f32
    %790 = vector.broadcast %cst_249 : f32 to vector<8x1xf32>
    %791 = arith.addf %790, %789 : vector<8x1xf32>
    %792 = arith.mulf %772, %775 : vector<8x1xf32>
    %793 = arith.addf %791, %792 : vector<8x1xf32>
    %cst_250 = arith.constant 1.000000e-07 : f32
    %794 = vector.broadcast %cst_250 : f32 to vector<8x1xf32>
    %795 = arith.maximumf %793, %794 : vector<8x1xf32>
    %796 = vector.broadcast %795 : vector<8x1xf32> to vector<8x32xf32>
    %797 = arith.divf %787, %796 : vector<8x32xf32>
    %c0_251 = arith.constant 0 : index
    %c0_252 = arith.constant 0 : index
    %798 = vector.load %arg15[%c0_251, %c0_252] : memref<1x32xf32, #tpu.memory_space<vmem>>, vector<1x32xf32>
    %c0_253 = arith.constant 0 : index
    %c0_254 = arith.constant 0 : index
    %799 = vector.load %arg16[%c0_253, %c0_254] : memref<1x32xf32, #tpu.memory_space<vmem>>, vector<1x32xf32>
    %c0_255 = arith.constant 0 : index
    %c0_256 = arith.constant 0 : index
    %800 = vector.load %arg17[%c0_255, %c0_256] : memref<1x32xf32, #tpu.memory_space<vmem>>, vector<1x32xf32>
    %801 = arith.mulf %797, %797 : vector<8x32xf32>
    %cst_257 = arith.constant dense<0.000000e+00> : vector<8xf32>
    %802 = vector.multi_reduction <add>, %801, %cst_257 [1] : vector<8x32xf32> to vector<8xf32>
    %803 = vector.shape_cast %802 : vector<8xf32> to vector<8x1xf32>
    %cst_258 = arith.constant 0.000000e+00 : f32
    %804 = vector.broadcast %cst_258 : f32 to vector<8x1xf32>
    %805 = arith.maximumf %803, %804 : vector<8x1xf32>
    %806 = math.sqrt %805 : vector<8x1xf32>
    %cst_259 = arith.constant 1.000000e-07 : f32
    %807 = vector.broadcast %cst_259 : f32 to vector<8x1xf32>
    %808 = arith.maximumf %806, %807 : vector<8x1xf32>
    %cst_260 = arith.constant -0.999998986 : f32
    %cst_261 = arith.constant 0.999998986 : f32
    %809 = vector.broadcast %cst_260 : f32 to vector<8x1xf32>
    %810 = arith.maximumf %809, %808 : vector<8x1xf32>
    %811 = vector.broadcast %cst_261 : f32 to vector<8x1xf32>
    %812 = arith.minimumf %811, %810 : vector<8x1xf32>
    %813 = math.log1p %812 : vector<8x1xf32>
    %cst_262 = arith.constant 0.000000e+00 : f32
    %814 = vector.broadcast %cst_262 : f32 to vector<8x1xf32>
    %815 = arith.subf %814, %812 : vector<8x1xf32>
    %816 = math.log1p %815 : vector<8x1xf32>
    %817 = arith.subf %813, %816 : vector<8x1xf32>
    %cst_263 = arith.constant 5.000000e-01 : f32
    %818 = vector.broadcast %cst_263 : f32 to vector<8x1xf32>
    %819 = arith.mulf %818, %817 : vector<8x1xf32>
    %820 = arith.divf %819, %808 : vector<8x1xf32>
    %821 = vector.broadcast %820 : vector<8x1xf32> to vector<8x32xf32>
    %822 = arith.mulf %821, %797 : vector<8x32xf32>
    %cst_264 = arith.constant dense<0.000000e+00> : vector<8xf32>
    %823 = vector.multi_reduction <add>, %822, %cst_264 [1] : vector<8x32xf32> to vector<8xf32>
    %824 = vector.shape_cast %823 : vector<8xf32> to vector<8x1xf32>
    %cst_265 = arith.constant 3.200000e+01 : f32
    %825 = vector.broadcast %cst_265 : f32 to vector<8x1xf32>
    %826 = arith.divf %824, %825 : vector<8x1xf32>
    %827 = vector.broadcast %826 : vector<8x1xf32> to vector<8x32xf32>
    %828 = arith.subf %822, %827 : vector<8x32xf32>
    %829 = arith.mulf %828, %828 : vector<8x32xf32>
    %cst_266 = arith.constant dense<0.000000e+00> : vector<8xf32>
    %830 = vector.multi_reduction <add>, %829, %cst_266 [1] : vector<8x32xf32> to vector<8xf32>
    %831 = vector.shape_cast %830 : vector<8xf32> to vector<8x1xf32>
    %cst_267 = arith.constant 0.0322580636 : f32
    %832 = vector.broadcast %cst_267 : f32 to vector<8x1xf32>
    %833 = arith.mulf %831, %832 : vector<8x1xf32>
    %834 = math.sqrt %833 : vector<8x1xf32>
    %cst_268 = arith.constant 9.99999997E-7 : f32
    %835 = vector.broadcast %cst_268 : f32 to vector<8x1xf32>
    %836 = arith.addf %834, %835 : vector<8x1xf32>
    %837 = vector.broadcast %836 : vector<8x1xf32> to vector<8x32xf32>
    %838 = arith.divf %828, %837 : vector<8x32xf32>
    %839 = vector.broadcast %798 : vector<1x32xf32> to vector<8x32xf32>
    %840 = arith.mulf %839, %838 : vector<8x32xf32>
    %841 = vector.broadcast %799 : vector<1x32xf32> to vector<8x32xf32>
    %842 = arith.addf %840, %841 : vector<8x32xf32>
    %843 = arith.mulf %842, %842 : vector<8x32xf32>
    %cst_269 = arith.constant dense<0.000000e+00> : vector<8xf32>
    %844 = vector.multi_reduction <add>, %843, %cst_269 [1] : vector<8x32xf32> to vector<8xf32>
    %845 = vector.shape_cast %844 : vector<8xf32> to vector<8x1xf32>
    %cst_270 = arith.constant 0.000000e+00 : f32
    %846 = vector.broadcast %cst_270 : f32 to vector<8x1xf32>
    %847 = arith.maximumf %845, %846 : vector<8x1xf32>
    %848 = math.sqrt %847 : vector<8x1xf32>
    %cst_271 = arith.constant 1.000000e-07 : f32
    %849 = vector.broadcast %cst_271 : f32 to vector<8x1xf32>
    %850 = arith.maximumf %848, %849 : vector<8x1xf32>
    %851 = math.tanh %850 : vector<8x1xf32>
    %852 = arith.divf %851, %850 : vector<8x1xf32>
    %853 = vector.broadcast %852 : vector<8x1xf32> to vector<8x32xf32>
    %854 = arith.mulf %853, %842 : vector<8x32xf32>
    %855 = vector.broadcast %800 : vector<1x32xf32> to vector<8x32xf32>
    %856 = arith.mulf %854, %855 : vector<8x32xf32>
    %cst_272 = arith.constant dense<0.000000e+00> : vector<8xf32>
    %857 = vector.multi_reduction <add>, %856, %cst_272 [1] : vector<8x32xf32> to vector<8xf32>
    %858 = vector.shape_cast %857 : vector<8xf32> to vector<8x1xf32>
    %859 = arith.mulf %854, %854 : vector<8x32xf32>
    %cst_273 = arith.constant dense<0.000000e+00> : vector<8xf32>
    %860 = vector.multi_reduction <add>, %859, %cst_273 [1] : vector<8x32xf32> to vector<8xf32>
    %861 = vector.shape_cast %860 : vector<8xf32> to vector<8x1xf32>
    %862 = arith.mulf %800, %800 : vector<1x32xf32>
    %cst_274 = arith.constant dense<0.000000e+00> : vector<1xf32>
    %863 = vector.multi_reduction <add>, %862, %cst_274 [1] : vector<1x32xf32> to vector<1xf32>
    %864 = vector.shape_cast %863 : vector<1xf32> to vector<1x1xf32>
    %cst_275 = arith.constant 2.000000e+00 : f32
    %865 = vector.broadcast %cst_275 : f32 to vector<8x1xf32>
    %866 = arith.mulf %865, %858 : vector<8x1xf32>
    %cst_276 = arith.constant 1.000000e+00 : f32
    %867 = vector.broadcast %cst_276 : f32 to vector<8x1xf32>
    %868 = arith.addf %867, %866 : vector<8x1xf32>
    %869 = vector.broadcast %864 : vector<1x1xf32> to vector<8x1xf32>
    %870 = arith.addf %868, %869 : vector<8x1xf32>
    %871 = vector.broadcast %870 : vector<8x1xf32> to vector<8x32xf32>
    %872 = arith.mulf %871, %854 : vector<8x32xf32>
    %cst_277 = arith.constant 1.000000e+00 : f32
    %873 = vector.broadcast %cst_277 : f32 to vector<8x1xf32>
    %874 = arith.subf %873, %861 : vector<8x1xf32>
    %875 = vector.broadcast %874 : vector<8x1xf32> to vector<8x32xf32>
    %876 = vector.broadcast %800 : vector<1x32xf32> to vector<8x32xf32>
    %877 = arith.mulf %875, %876 : vector<8x32xf32>
    %878 = arith.addf %872, %877 : vector<8x32xf32>
    %cst_278 = arith.constant 2.000000e+00 : f32
    %879 = vector.broadcast %cst_278 : f32 to vector<8x1xf32>
    %880 = arith.mulf %879, %858 : vector<8x1xf32>
    %cst_279 = arith.constant 1.000000e+00 : f32
    %881 = vector.broadcast %cst_279 : f32 to vector<8x1xf32>
    %882 = arith.addf %881, %880 : vector<8x1xf32>
    %883 = vector.broadcast %864 : vector<1x1xf32> to vector<8x1xf32>
    %884 = arith.mulf %861, %883 : vector<8x1xf32>
    %885 = arith.addf %882, %884 : vector<8x1xf32>
    %cst_280 = arith.constant 1.000000e-07 : f32
    %886 = vector.broadcast %cst_280 : f32 to vector<8x1xf32>
    %887 = arith.maximumf %885, %886 : vector<8x1xf32>
    %888 = vector.broadcast %887 : vector<8x1xf32> to vector<8x32xf32>
    %889 = arith.divf %878, %888 : vector<8x32xf32>
    %890 = vector.shape_cast %889 : vector<8x32xf32> to vector<1x8x32xf32>
    %c0_281 = arith.constant 0 : index
    %c0_282 = arith.constant 0 : index
    %c0_283 = arith.constant 0 : index
    %891 = vector.load %arg18[%c0_281, %c0_282, %c0_283] : memref<1x8x32xf32, #tpu.memory_space<vmem>>, vector<1x8x32xf32>
    tpu.vector_store %arg18[%c0_281, %c0_282, %c0_283], %890 {strides = array<i32>} : memref<1x8x32xf32, #tpu.memory_space<vmem>>, vector<1x8x32xf32>,
    return
  }
  func.func @transform_0(%arg0: i32) -> (i32, i32, i32) {
    %c0_i32 = arith.constant 0 : i32
    %c0_i32_0 = arith.constant 0 : i32
    %c0_i32_1 = arith.constant 0 : i32
    return %arg0, %c0_i32, %c0_i32_0 : i32, i32, i32
  }
  func.func @transform_1(%arg0: i32) -> (i32, i32) {
    %c0_i32 = arith.constant 0 : i32
    %c0_i32_0 = arith.constant 0 : i32
    %c0_i32_1 = arith.constant 0 : i32
    return %c0_i32, %c0_i32_0 : i32, i32
  }
  func.func @transform_2(%arg0: i32) -> (i32, i32) {
    %c0_i32 = arith.constant 0 : i32
    %c0_i32_0 = arith.constant 0 : i32
    %c0_i32_1 = arith.constant 0 : i32
    return %c0_i32, %c0_i32_0 : i32, i32
  }
  func.func @transform_3(%arg0: i32) -> (i32, i32) {
    %c0_i32 = arith.constant 0 : i32
    %c0_i32_0 = arith.constant 0 : i32
    %c0_i32_1 = arith.constant 0 : i32
    return %c0_i32, %c0_i32_0 : i32, i32
  }
  func.func @transform_4(%arg0: i32) -> (i32, i32) {
    %c0_i32 = arith.constant 0 : i32
    %c0_i32_0 = arith.constant 0 : i32
    %c0_i32_1 = arith.constant 0 : i32
    return %c0_i32, %c0_i32_0 : i32, i32
  }
  func.func @transform_5(%arg0: i32) -> (i32, i32) {
    %c0_i32 = arith.constant 0 : i32
    %c0_i32_0 = arith.constant 0 : i32
    %c0_i32_1 = arith.constant 0 : i32
    return %c0_i32, %c0_i32_0 : i32, i32
  }
  func.func @transform_6(%arg0: i32) -> (i32, i32) {
    %c0_i32 = arith.constant 0 : i32
    %c0_i32_0 = arith.constant 0 : i32
    %c0_i32_1 = arith.constant 0 : i32
    return %c0_i32, %c0_i32_0 : i32, i32
  }
  func.func @transform_7(%arg0: i32) -> (i32, i32) {
    %c0_i32 = arith.constant 0 : i32
    %c0_i32_0 = arith.constant 0 : i32
    %c0_i32_1 = arith.constant 0 : i32
    return %c0_i32, %c0_i32_0 : i32, i32
  }
  func.func @transform_8(%arg0: i32) -> (i32, i32) {
    %c0_i32 = arith.constant 0 : i32
    %c0_i32_0 = arith.constant 0 : i32
    %c0_i32_1 = arith.constant 0 : i32
    return %c0_i32, %c0_i32_0 : i32, i32
  }
  func.func @transform_9(%arg0: i32) -> (i32, i32) {
    %c0_i32 = arith.constant 0 : i32
    %c0_i32_0 = arith.constant 0 : i32
    %c0_i32_1 = arith.constant 0 : i32
    return %c0_i32, %c0_i32_0 : i32, i32
  }
  func.func @transform_10(%arg0: i32) -> (i32, i32) {
    %c0_i32 = arith.constant 0 : i32
    %c0_i32_0 = arith.constant 0 : i32
    %c0_i32_1 = arith.constant 0 : i32
    return %c0_i32, %c0_i32_0 : i32, i32
  }
  func.func @transform_11(%arg0: i32) -> (i32, i32) {
    %c0_i32 = arith.constant 0 : i32
    %c0_i32_0 = arith.constant 0 : i32
    %c0_i32_1 = arith.constant 0 : i32
    return %c0_i32, %c0_i32_0 : i32, i32
  }
  func.func @transform_12(%arg0: i32) -> (i32, i32) {
    %c0_i32 = arith.constant 0 : i32
    %c0_i32_0 = arith.constant 0 : i32
    %c0_i32_1 = arith.constant 0 : i32
    return %c0_i32, %c0_i32_0 : i32, i32
  }
  func.func @transform_13(%arg0: i32) -> (i32, i32) {
    %c0_i32 = arith.constant 0 : i32
    %c0_i32_0 = arith.constant 0 : i32
    %c0_i32_1 = arith.constant 0 : i32
    return %c0_i32, %c0_i32_0 : i32, i32
  }
  func.func @transform_14(%arg0: i32) -> (i32, i32) {
    %c0_i32 = arith.constant 0 : i32
    %c0_i32_0 = arith.constant 0 : i32
    %c0_i32_1 = arith.constant 0 : i32
    return %c0_i32, %c0_i32_0 : i32, i32
  }
  func.func @transform_15(%arg0: i32) -> (i32, i32) {
    %c0_i32 = arith.constant 0 : i32
    %c0_i32_0 = arith.constant 0 : i32
    %c0_i32_1 = arith.constant 0 : i32
    return %c0_i32, %c0_i32_0 : i32, i32
  }
  func.func @transform_16(%arg0: i32) -> (i32, i32) {
    %c0_i32 = arith.constant 0 : i32
    %c0_i32_0 = arith.constant 0 : i32
    %c0_i32_1 = arith.constant 0 : i32
    return %c0_i32, %c0_i32_0 : i32, i32
  }
  func.func @transform_17(%arg0: i32) -> (i32, i32, i32) {
    %c0_i32 = arith.constant 0 : i32
    %c0_i32_0 = arith.constant 0 : i32
    %c0_i32_1 = arith.constant 0 : i32
    return %arg0, %c0_i32, %c0_i32_0 : i32, i32, i32
  }
  func.func @transform_18(%arg0: i32) -> (i32, i32, i32, i32) {
    %c0_i32 = arith.constant 0 : i32
    %c0_i32_0 = arith.constant 0 : i32
    %c0_i32_1 = arith.constant 0 : i32
    %c0_i32_2 = arith.constant 0 : i32
    return %arg0, %c0_i32, %c0_i32_0, %c0_i32_1 : i32, i32, i32, i32
  }
}

module attributes {stable_mosaic.version = 11 : i64} {
  func.func @_block_kernel(%arg0: i32, %arg1: memref<1x8x32xf32, #tpu.memory_space<vmem>>, %arg2: memref<32x96xbf16, #tpu.memory_space<vmem>>, %arg3: memref<1x32xf32, #tpu.memory_space<vmem>>, %arg4: memref<1x32xf32, #tpu.memory_space<vmem>>, %arg5: memref<1x32xf32, #tpu.memory_space<vmem>>, %arg6: memref<32x32xbf16, #tpu.memory_space<vmem>>, %arg7: memref<1x32xf32, #tpu.memory_space<vmem>>, %arg8: memref<32x64xbf16, #tpu.memory_space<vmem>>, %arg9: memref<1x64xf32, #tpu.memory_space<vmem>>, %arg10: memref<64x32xbf16, #tpu.memory_space<vmem>>, %arg11: memref<1x32xf32, #tpu.memory_space<vmem>>, %arg12: memref<1x32xf32, #tpu.memory_space<vmem>>, %arg13: memref<1x32xf32, #tpu.memory_space<vmem>>, %arg14: memref<1x32xf32, #tpu.memory_space<vmem>>, %arg15: memref<1x32xf32, #tpu.memory_space<vmem>>, %arg16: memref<1x32xf32, #tpu.memory_space<vmem>>, %arg17: memref<1x32xf32, #tpu.memory_space<vmem>>, %arg18: memref<1x8x32xf32, #tpu.memory_space<vmem>>, %arg19: memref<1x4x8x8xf32, #tpu.memory_space<vmem>>) attributes {dimension_semantics = [#tpu.dimension_semantics<parallel>], iteration_bounds = array<i64: 2>, scalar_prefetch = 0 : i64, scratch_operands = 0 : i64, tpu.core_type = #tpu.core_type<tc>, window_params = [{transform_indices = @transform_0, window_bounds = array<i64: 1, 8, 32>}, {pipeline_mode = #tpu.pipeline_mode<synchronous>, transform_indices = @transform_1, window_bounds = array<i64: 32, 96>}, {pipeline_mode = #tpu.pipeline_mode<synchronous>, transform_indices = @transform_2, window_bounds = array<i64: 1, 32>}, {pipeline_mode = #tpu.pipeline_mode<synchronous>, transform_indices = @transform_3, window_bounds = array<i64: 1, 32>}, {pipeline_mode = #tpu.pipeline_mode<synchronous>, transform_indices = @transform_4, window_bounds = array<i64: 1, 32>}, {pipeline_mode = #tpu.pipeline_mode<synchronous>, transform_indices = @transform_5, window_bounds = array<i64: 32, 32>}, {pipeline_mode = #tpu.pipeline_mode<synchronous>, transform_indices = @transform_6, window_bounds = array<i64: 1, 32>}, {pipeline_mode = #tpu.pipeline_mode<synchronous>, transform_indices = @transform_7, window_bounds = array<i64: 32, 64>}, {pipeline_mode = #tpu.pipeline_mode<synchronous>, transform_indices = @transform_8, window_bounds = array<i64: 1, 64>}, {pipeline_mode = #tpu.pipeline_mode<synchronous>, transform_indices = @transform_9, window_bounds = array<i64: 64, 32>}, {pipeline_mode = #tpu.pipeline_mode<synchronous>, transform_indices = @transform_10, window_bounds = array<i64: 1, 32>}, {pipeline_mode = #tpu.pipeline_mode<synchronous>, transform_indices = @transform_11, window_bounds = array<i64: 1, 32>}, {pipeline_mode = #tpu.pipeline_mode<synchronous>, transform_indices = @transform_12, window_bounds = array<i64: 1, 32>}, {pipeline_mode = #tpu.pipeline_mode<synchronous>, transform_indices = @transform_13, window_bounds = array<i64: 1, 32>}, {pipeline_mode = #tpu.pipeline_mode<synchronous>, transform_indices = @transform_14, window_bounds = array<i64: 1, 32>}, {pipeline_mode = #tpu.pipeline_mode<synchronous>, transform_indices = @transform_15, window_bounds = array<i64: 1, 32>}, {pipeline_mode = #tpu.pipeline_mode<synchronous>, transform_indices = @transform_16, window_bounds = array<i64: 1, 32>}, {transform_indices = @transform_17, window_bounds = array<i64: 1, 8, 32>}, {transform_indices = @transform_18, window_bounds = array<i64: 1, 4, 8, 8>}]} {
    %c0 = arith.constant 0 : index
    %c0_0 = arith.constant 0 : index
    %c0_1 = arith.constant 0 : index
    %0 = vector.load %arg1[%c0, %c0_0, %c0_1] : memref<1x8x32xf32, #tpu.memory_space<vmem>>, vector<1x8x32xf32>
    %1 = vector.shape_cast %0 : vector<1x8x32xf32> to vector<8x32xf32>
    %2 = arith.mulf %1, %1 : vector<8x32xf32>
    %cst = arith.constant dense<0.000000e+00> : vector<8xf32>
    %3 = vector.multi_reduction <add>, %2, %cst [1] : vector<8x32xf32> to vector<8xf32>
    %4 = vector.shape_cast %3 : vector<8xf32> to vector<8x1xf32>
    %cst_2 = arith.constant 0.000000e+00 : f32
    %5 = vector.broadcast %cst_2 : f32 to vector<8x1xf32>
    %6 = arith.maximumf %4, %5 : vector<8x1xf32>
    %7 = math.sqrt %6 : vector<8x1xf32>
    %cst_3 = arith.constant 1.000000e-07 : f32
    %8 = vector.broadcast %cst_3 : f32 to vector<8x1xf32>
    %9 = arith.maximumf %7, %8 : vector<8x1xf32>
    %cst_4 = arith.constant -0.999998986 : f32
    %cst_5 = arith.constant 0.999998986 : f32
    %10 = vector.broadcast %cst_4 : f32 to vector<8x1xf32>
    %11 = arith.maximumf %10, %9 : vector<8x1xf32>
    %12 = vector.broadcast %cst_5 : f32 to vector<8x1xf32>
    %13 = arith.minimumf %12, %11 : vector<8x1xf32>
    %14 = math.log1p %13 : vector<8x1xf32>
    %cst_6 = arith.constant 0.000000e+00 : f32
    %15 = vector.broadcast %cst_6 : f32 to vector<8x1xf32>
    %16 = arith.subf %15, %13 : vector<8x1xf32>
    %17 = math.log1p %16 : vector<8x1xf32>
    %18 = arith.subf %14, %17 : vector<8x1xf32>
    %cst_7 = arith.constant 5.000000e-01 : f32
    %19 = vector.broadcast %cst_7 : f32 to vector<8x1xf32>
    %20 = arith.mulf %19, %18 : vector<8x1xf32>
    %c0_8 = arith.constant 0 : index
    %c0_9 = arith.constant 0 : index
    %21 = vector.load %arg2[%c0_8, %c0_9] : memref<32x96xbf16, #tpu.memory_space<vmem>>, vector<32x96xbf16>
    %22 = arith.truncf %1 : vector<8x32xf32> to vector<8x32xbf16>
    %cst_10 = arith.constant dense<0.000000e+00> : vector<8x96xf32>
    %23 = tpu.matmul %22, %21, %cst_10 {dimension_numbers = #tpu.dot_dimension_numbers<[1], [0], [0], [1], [0, 0, 1, 1], [], []>} : vector<8x32xbf16>, vector<32x96xbf16>, vector<8x96xf32> -> vector<8x96xf32>
    %24 = vector.extract_strided_slice %23 {offsets = [0, 0], sizes = [8, 32], strides = [1, 1]} : vector<8x96xf32> to vector<8x32xf32>
    %c0_11 = arith.constant 0 : index
    %c0_12 = arith.constant 0 : index
    %25 = vector.load %arg3[%c0_11, %c0_12] : memref<1x32xf32, #tpu.memory_space<vmem>>, vector<1x32xf32>
    %26 = arith.mulf %24, %24 : vector<8x32xf32>
    %cst_13 = arith.constant dense<0.000000e+00> : vector<8xf32>
    %27 = vector.multi_reduction <add>, %26, %cst_13 [1] : vector<8x32xf32> to vector<8xf32>
    %28 = vector.shape_cast %27 : vector<8xf32> to vector<8x1xf32>
    %cst_14 = arith.constant 0.000000e+00 : f32
    %29 = vector.broadcast %cst_14 : f32 to vector<8x1xf32>
    %30 = arith.maximumf %28, %29 : vector<8x1xf32>
    %31 = math.sqrt %30 : vector<8x1xf32>
    %cst_15 = arith.constant 1.000000e-07 : f32
    %32 = vector.broadcast %cst_15 : f32 to vector<8x1xf32>
    %33 = arith.maximumf %31, %32 : vector<8x1xf32>
    %34 = arith.divf %33, %9 : vector<8x1xf32>
    %35 = arith.mulf %34, %20 : vector<8x1xf32>
    %36 = math.tanh %35 : vector<8x1xf32>
    %37 = vector.broadcast %33 : vector<8x1xf32> to vector<8x32xf32>
    %38 = arith.divf %24, %37 : vector<8x32xf32>
    %39 = vector.broadcast %36 : vector<8x1xf32> to vector<8x32xf32>
    %40 = arith.mulf %39, %38 : vector<8x32xf32>
    %41 = vector.broadcast %25 : vector<1x32xf32> to vector<8x32xf32>
    %42 = arith.mulf %40, %41 : vector<8x32xf32>
    %cst_16 = arith.constant dense<0.000000e+00> : vector<8xf32>
    %43 = vector.multi_reduction <add>, %42, %cst_16 [1] : vector<8x32xf32> to vector<8xf32>
    %44 = vector.shape_cast %43 : vector<8xf32> to vector<8x1xf32>
    %45 = arith.mulf %40, %40 : vector<8x32xf32>
    %cst_17 = arith.constant dense<0.000000e+00> : vector<8xf32>
    %46 = vector.multi_reduction <add>, %45, %cst_17 [1] : vector<8x32xf32> to vector<8xf32>
    %47 = vector.shape_cast %46 : vector<8xf32> to vector<8x1xf32>
    %48 = arith.mulf %25, %25 : vector<1x32xf32>
    %cst_18 = arith.constant dense<0.000000e+00> : vector<1xf32>
    %49 = vector.multi_reduction <add>, %48, %cst_18 [1] : vector<1x32xf32> to vector<1xf32>
    %50 = vector.shape_cast %49 : vector<1xf32> to vector<1x1xf32>
    %cst_19 = arith.constant 2.000000e+00 : f32
    %51 = vector.broadcast %cst_19 : f32 to vector<8x1xf32>
    %52 = arith.mulf %51, %44 : vector<8x1xf32>
    %cst_20 = arith.constant 1.000000e+00 : f32
    %53 = vector.broadcast %cst_20 : f32 to vector<8x1xf32>
    %54 = arith.addf %53, %52 : vector<8x1xf32>
    %55 = vector.broadcast %50 : vector<1x1xf32> to vector<8x1xf32>
    %56 = arith.addf %54, %55 : vector<8x1xf32>
    %57 = vector.broadcast %56 : vector<8x1xf32> to vector<8x32xf32>
    %58 = arith.mulf %57, %40 : vector<8x32xf32>
    %cst_21 = arith.constant 1.000000e+00 : f32
    %59 = vector.broadcast %cst_21 : f32 to vector<8x1xf32>
    %60 = arith.subf %59, %47 : vector<8x1xf32>
    %61 = vector.broadcast %60 : vector<8x1xf32> to vector<8x32xf32>
    %62 = vector.broadcast %25 : vector<1x32xf32> to vector<8x32xf32>
    %63 = arith.mulf %61, %62 : vector<8x32xf32>
    %64 = arith.addf %58, %63 : vector<8x32xf32>
    %cst_22 = arith.constant 2.000000e+00 : f32
    %65 = vector.broadcast %cst_22 : f32 to vector<8x1xf32>
    %66 = arith.mulf %65, %44 : vector<8x1xf32>
    %cst_23 = arith.constant 1.000000e+00 : f32
    %67 = vector.broadcast %cst_23 : f32 to vector<8x1xf32>
    %68 = arith.addf %67, %66 : vector<8x1xf32>
    %69 = vector.broadcast %50 : vector<1x1xf32> to vector<8x1xf32>
    %70 = arith.mulf %47, %69 : vector<8x1xf32>
    %71 = arith.addf %68, %70 : vector<8x1xf32>
    %cst_24 = arith.constant 1.000000e-07 : f32
    %72 = vector.broadcast %cst_24 : f32 to vector<8x1xf32>
    %73 = arith.maximumf %71, %72 : vector<8x1xf32>
    %74 = vector.broadcast %73 : vector<8x1xf32> to vector<8x32xf32>
    %75 = arith.divf %64, %74 : vector<8x32xf32>
    %76 = arith.mulf %75, %75 : vector<8x32xf32>
    %cst_25 = arith.constant dense<0.000000e+00> : vector<8xf32>
    %77 = vector.multi_reduction <add>, %76, %cst_25 [1] : vector<8x32xf32> to vector<8xf32>
    %78 = vector.shape_cast %77 : vector<8xf32> to vector<8x1xf32>
    %cst_26 = arith.constant 0.000000e+00 : f32
    %79 = vector.broadcast %cst_26 : f32 to vector<8x1xf32>
    %80 = arith.maximumf %78, %79 : vector<8x1xf32>
    %81 = math.sqrt %80 : vector<8x1xf32>
    %cst_27 = arith.constant 1.000000e-07 : f32
    %82 = vector.broadcast %cst_27 : f32 to vector<8x1xf32>
    %83 = arith.maximumf %81, %82 : vector<8x1xf32>
    %cst_28 = arith.constant 0.999989986 : f32
    %84 = vector.broadcast %cst_28 : f32 to vector<8x1xf32>
    %85 = arith.cmpf ogt, %83, %84 : vector<8x1xf32>
    %cst_29 = arith.constant 0.999989986 : f32
    %86 = vector.broadcast %cst_29 : f32 to vector<8x1xf32>
    %87 = arith.divf %86, %83 : vector<8x1xf32>
    %cst_30 = arith.constant 1.000000e+00 : f32
    %88 = vector.broadcast %cst_30 : f32 to vector<8x1xf32>
    %89 = arith.select %85, %87, %88 : vector<8x1xi1>, vector<8x1xf32>
    %90 = vector.broadcast %89 : vector<8x1xf32> to vector<8x32xf32>
    %91 = arith.mulf %75, %90 : vector<8x32xf32>
    %92 = vector.extract_strided_slice %23 {offsets = [0, 32], sizes = [8, 32], strides = [1, 1]} : vector<8x96xf32> to vector<8x32xf32>
    %c0_31 = arith.constant 0 : index
    %c0_32 = arith.constant 0 : index
    %93 = vector.load %arg4[%c0_31, %c0_32] : memref<1x32xf32, #tpu.memory_space<vmem>>, vector<1x32xf32>
    %94 = arith.mulf %92, %92 : vector<8x32xf32>
    %cst_33 = arith.constant dense<0.000000e+00> : vector<8xf32>
    %95 = vector.multi_reduction <add>, %94, %cst_33 [1] : vector<8x32xf32> to vector<8xf32>
    %96 = vector.shape_cast %95 : vector<8xf32> to vector<8x1xf32>
    %cst_34 = arith.constant 0.000000e+00 : f32
    %97 = vector.broadcast %cst_34 : f32 to vector<8x1xf32>
    %98 = arith.maximumf %96, %97 : vector<8x1xf32>
    %99 = math.sqrt %98 : vector<8x1xf32>
    %cst_35 = arith.constant 1.000000e-07 : f32
    %100 = vector.broadcast %cst_35 : f32 to vector<8x1xf32>
    %101 = arith.maximumf %99, %100 : vector<8x1xf32>
    %102 = arith.divf %101, %9 : vector<8x1xf32>
    %103 = arith.mulf %102, %20 : vector<8x1xf32>
    %104 = math.tanh %103 : vector<8x1xf32>
    %105 = vector.broadcast %101 : vector<8x1xf32> to vector<8x32xf32>
    %106 = arith.divf %92, %105 : vector<8x32xf32>
    %107 = vector.broadcast %104 : vector<8x1xf32> to vector<8x32xf32>
    %108 = arith.mulf %107, %106 : vector<8x32xf32>
    %109 = vector.broadcast %93 : vector<1x32xf32> to vector<8x32xf32>
    %110 = arith.mulf %108, %109 : vector<8x32xf32>
    %cst_36 = arith.constant dense<0.000000e+00> : vector<8xf32>
    %111 = vector.multi_reduction <add>, %110, %cst_36 [1] : vector<8x32xf32> to vector<8xf32>
    %112 = vector.shape_cast %111 : vector<8xf32> to vector<8x1xf32>
    %113 = arith.mulf %108, %108 : vector<8x32xf32>
    %cst_37 = arith.constant dense<0.000000e+00> : vector<8xf32>
    %114 = vector.multi_reduction <add>, %113, %cst_37 [1] : vector<8x32xf32> to vector<8xf32>
    %115 = vector.shape_cast %114 : vector<8xf32> to vector<8x1xf32>
    %116 = arith.mulf %93, %93 : vector<1x32xf32>
    %cst_38 = arith.constant dense<0.000000e+00> : vector<1xf32>
    %117 = vector.multi_reduction <add>, %116, %cst_38 [1] : vector<1x32xf32> to vector<1xf32>
    %118 = vector.shape_cast %117 : vector<1xf32> to vector<1x1xf32>
    %cst_39 = arith.constant 2.000000e+00 : f32
    %119 = vector.broadcast %cst_39 : f32 to vector<8x1xf32>
    %120 = arith.mulf %119, %112 : vector<8x1xf32>
    %cst_40 = arith.constant 1.000000e+00 : f32
    %121 = vector.broadcast %cst_40 : f32 to vector<8x1xf32>
    %122 = arith.addf %121, %120 : vector<8x1xf32>
    %123 = vector.broadcast %118 : vector<1x1xf32> to vector<8x1xf32>
    %124 = arith.addf %122, %123 : vector<8x1xf32>
    %125 = vector.broadcast %124 : vector<8x1xf32> to vector<8x32xf32>
    %126 = arith.mulf %125, %108 : vector<8x32xf32>
    %cst_41 = arith.constant 1.000000e+00 : f32
    %127 = vector.broadcast %cst_41 : f32 to vector<8x1xf32>
    %128 = arith.subf %127, %115 : vector<8x1xf32>
    %129 = vector.broadcast %128 : vector<8x1xf32> to vector<8x32xf32>
    %130 = vector.broadcast %93 : vector<1x32xf32> to vector<8x32xf32>
    %131 = arith.mulf %129, %130 : vector<8x32xf32>
    %132 = arith.addf %126, %131 : vector<8x32xf32>
    %cst_42 = arith.constant 2.000000e+00 : f32
    %133 = vector.broadcast %cst_42 : f32 to vector<8x1xf32>
    %134 = arith.mulf %133, %112 : vector<8x1xf32>
    %cst_43 = arith.constant 1.000000e+00 : f32
    %135 = vector.broadcast %cst_43 : f32 to vector<8x1xf32>
    %136 = arith.addf %135, %134 : vector<8x1xf32>
    %137 = vector.broadcast %118 : vector<1x1xf32> to vector<8x1xf32>
    %138 = arith.mulf %115, %137 : vector<8x1xf32>
    %139 = arith.addf %136, %138 : vector<8x1xf32>
    %cst_44 = arith.constant 1.000000e-07 : f32
    %140 = vector.broadcast %cst_44 : f32 to vector<8x1xf32>
    %141 = arith.maximumf %139, %140 : vector<8x1xf32>
    %142 = vector.broadcast %141 : vector<8x1xf32> to vector<8x32xf32>
    %143 = arith.divf %132, %142 : vector<8x32xf32>
    %144 = arith.mulf %143, %143 : vector<8x32xf32>
    %cst_45 = arith.constant dense<0.000000e+00> : vector<8xf32>
    %145 = vector.multi_reduction <add>, %144, %cst_45 [1] : vector<8x32xf32> to vector<8xf32>
    %146 = vector.shape_cast %145 : vector<8xf32> to vector<8x1xf32>
    %cst_46 = arith.constant 0.000000e+00 : f32
    %147 = vector.broadcast %cst_46 : f32 to vector<8x1xf32>
    %148 = arith.maximumf %146, %147 : vector<8x1xf32>
    %149 = math.sqrt %148 : vector<8x1xf32>
    %cst_47 = arith.constant 1.000000e-07 : f32
    %150 = vector.broadcast %cst_47 : f32 to vector<8x1xf32>
    %151 = arith.maximumf %149, %150 : vector<8x1xf32>
    %cst_48 = arith.constant 0.999989986 : f32
    %152 = vector.broadcast %cst_48 : f32 to vector<8x1xf32>
    %153 = arith.cmpf ogt, %151, %152 : vector<8x1xf32>
    %cst_49 = arith.constant 0.999989986 : f32
    %154 = vector.broadcast %cst_49 : f32 to vector<8x1xf32>
    %155 = arith.divf %154, %151 : vector<8x1xf32>
    %cst_50 = arith.constant 1.000000e+00 : f32
    %156 = vector.broadcast %cst_50 : f32 to vector<8x1xf32>
    %157 = arith.select %153, %155, %156 : vector<8x1xi1>, vector<8x1xf32>
    %158 = vector.broadcast %157 : vector<8x1xf32> to vector<8x32xf32>
    %159 = arith.mulf %143, %158 : vector<8x32xf32>
    %160 = vector.extract_strided_slice %23 {offsets = [0, 64], sizes = [8, 32], strides = [1, 1]} : vector<8x96xf32> to vector<8x32xf32>
    %c0_51 = arith.constant 0 : index
    %c0_52 = arith.constant 0 : index
    %161 = vector.load %arg5[%c0_51, %c0_52] : memref<1x32xf32, #tpu.memory_space<vmem>>, vector<1x32xf32>
    %162 = arith.mulf %160, %160 : vector<8x32xf32>
    %cst_53 = arith.constant dense<0.000000e+00> : vector<8xf32>
    %163 = vector.multi_reduction <add>, %162, %cst_53 [1] : vector<8x32xf32> to vector<8xf32>
    %164 = vector.shape_cast %163 : vector<8xf32> to vector<8x1xf32>
    %cst_54 = arith.constant 0.000000e+00 : f32
    %165 = vector.broadcast %cst_54 : f32 to vector<8x1xf32>
    %166 = arith.maximumf %164, %165 : vector<8x1xf32>
    %167 = math.sqrt %166 : vector<8x1xf32>
    %cst_55 = arith.constant 1.000000e-07 : f32
    %168 = vector.broadcast %cst_55 : f32 to vector<8x1xf32>
    %169 = arith.maximumf %167, %168 : vector<8x1xf32>
    %170 = arith.divf %169, %9 : vector<8x1xf32>
    %171 = arith.mulf %170, %20 : vector<8x1xf32>
    %172 = math.tanh %171 : vector<8x1xf32>
    %173 = vector.broadcast %169 : vector<8x1xf32> to vector<8x32xf32>
    %174 = arith.divf %160, %173 : vector<8x32xf32>
    %175 = vector.broadcast %172 : vector<8x1xf32> to vector<8x32xf32>
    %176 = arith.mulf %175, %174 : vector<8x32xf32>
    %177 = vector.broadcast %161 : vector<1x32xf32> to vector<8x32xf32>
    %178 = arith.mulf %176, %177 : vector<8x32xf32>
    %cst_56 = arith.constant dense<0.000000e+00> : vector<8xf32>
    %179 = vector.multi_reduction <add>, %178, %cst_56 [1] : vector<8x32xf32> to vector<8xf32>
    %180 = vector.shape_cast %179 : vector<8xf32> to vector<8x1xf32>
    %181 = arith.mulf %176, %176 : vector<8x32xf32>
    %cst_57 = arith.constant dense<0.000000e+00> : vector<8xf32>
    %182 = vector.multi_reduction <add>, %181, %cst_57 [1] : vector<8x32xf32> to vector<8xf32>
    %183 = vector.shape_cast %182 : vector<8xf32> to vector<8x1xf32>
    %184 = arith.mulf %161, %161 : vector<1x32xf32>
    %cst_58 = arith.constant dense<0.000000e+00> : vector<1xf32>
    %185 = vector.multi_reduction <add>, %184, %cst_58 [1] : vector<1x32xf32> to vector<1xf32>
    %186 = vector.shape_cast %185 : vector<1xf32> to vector<1x1xf32>
    %cst_59 = arith.constant 2.000000e+00 : f32
    %187 = vector.broadcast %cst_59 : f32 to vector<8x1xf32>
    %188 = arith.mulf %187, %180 : vector<8x1xf32>
    %cst_60 = arith.constant 1.000000e+00 : f32
    %189 = vector.broadcast %cst_60 : f32 to vector<8x1xf32>
    %190 = arith.addf %189, %188 : vector<8x1xf32>
    %191 = vector.broadcast %186 : vector<1x1xf32> to vector<8x1xf32>
    %192 = arith.addf %190, %191 : vector<8x1xf32>
    %193 = vector.broadcast %192 : vector<8x1xf32> to vector<8x32xf32>
    %194 = arith.mulf %193, %176 : vector<8x32xf32>
    %cst_61 = arith.constant 1.000000e+00 : f32
    %195 = vector.broadcast %cst_61 : f32 to vector<8x1xf32>
    %196 = arith.subf %195, %183 : vector<8x1xf32>
    %197 = vector.broadcast %196 : vector<8x1xf32> to vector<8x32xf32>
    %198 = vector.broadcast %161 : vector<1x32xf32> to vector<8x32xf32>
    %199 = arith.mulf %197, %198 : vector<8x32xf32>
    %200 = arith.addf %194, %199 : vector<8x32xf32>
    %cst_62 = arith.constant 2.000000e+00 : f32
    %201 = vector.broadcast %cst_62 : f32 to vector<8x1xf32>
    %202 = arith.mulf %201, %180 : vector<8x1xf32>
    %cst_63 = arith.constant 1.000000e+00 : f32
    %203 = vector.broadcast %cst_63 : f32 to vector<8x1xf32>
    %204 = arith.addf %203, %202 : vector<8x1xf32>
    %205 = vector.broadcast %186 : vector<1x1xf32> to vector<8x1xf32>
    %206 = arith.mulf %183, %205 : vector<8x1xf32>
    %207 = arith.addf %204, %206 : vector<8x1xf32>
    %cst_64 = arith.constant 1.000000e-07 : f32
    %208 = vector.broadcast %cst_64 : f32 to vector<8x1xf32>
    %209 = arith.maximumf %207, %208 : vector<8x1xf32>
    %210 = vector.broadcast %209 : vector<8x1xf32> to vector<8x32xf32>
    %211 = arith.divf %200, %210 : vector<8x32xf32>
    %212 = arith.mulf %211, %211 : vector<8x32xf32>
    %cst_65 = arith.constant dense<0.000000e+00> : vector<8xf32>
    %213 = vector.multi_reduction <add>, %212, %cst_65 [1] : vector<8x32xf32> to vector<8xf32>
    %214 = vector.shape_cast %213 : vector<8xf32> to vector<8x1xf32>
    %cst_66 = arith.constant 0.000000e+00 : f32
    %215 = vector.broadcast %cst_66 : f32 to vector<8x1xf32>
    %216 = arith.maximumf %214, %215 : vector<8x1xf32>
    %217 = math.sqrt %216 : vector<8x1xf32>
    %cst_67 = arith.constant 1.000000e-07 : f32
    %218 = vector.broadcast %cst_67 : f32 to vector<8x1xf32>
    %219 = arith.maximumf %217, %218 : vector<8x1xf32>
    %cst_68 = arith.constant 0.999989986 : f32
    %220 = vector.broadcast %cst_68 : f32 to vector<8x1xf32>
    %221 = arith.cmpf ogt, %219, %220 : vector<8x1xf32>
    %cst_69 = arith.constant 0.999989986 : f32
    %222 = vector.broadcast %cst_69 : f32 to vector<8x1xf32>
    %223 = arith.divf %222, %219 : vector<8x1xf32>
    %cst_70 = arith.constant 1.000000e+00 : f32
    %224 = vector.broadcast %cst_70 : f32 to vector<8x1xf32>
    %225 = arith.select %221, %223, %224 : vector<8x1xi1>, vector<8x1xf32>
    %226 = vector.broadcast %225 : vector<8x1xf32> to vector<8x32xf32>
    %227 = arith.mulf %211, %226 : vector<8x32xf32>
    %228 = tpu.transpose %91, [1, 0] : vector<8x32xf32> -> vector<32x8xf32>
    %229 = vector.shape_cast %228 : vector<32x8xf32> to vector<4x8x8xf32>
    %230 = tpu.transpose %229, [0, 2, 1] : vector<4x8x8xf32> -> vector<4x8x8xf32>
    %231 = tpu.transpose %159, [1, 0] : vector<8x32xf32> -> vector<32x8xf32>
    %232 = vector.shape_cast %231 : vector<32x8xf32> to vector<4x8x8xf32>
    %233 = tpu.transpose %232, [0, 2, 1] : vector<4x8x8xf32> -> vector<4x8x8xf32>
    %234 = tpu.transpose %227, [1, 0] : vector<8x32xf32> -> vector<32x8xf32>
    %235 = vector.shape_cast %234 : vector<32x8xf32> to vector<4x8x8xf32>
    %236 = tpu.transpose %235, [0, 2, 1] : vector<4x8x8xf32> -> vector<4x8x8xf32>
    %237 = arith.mulf %230, %230 : vector<4x8x8xf32>
    %cst_71 = arith.constant dense<0.000000e+00> : vector<4x8xf32>
    %238 = vector.multi_reduction <add>, %237, %cst_71 [2] : vector<4x8x8xf32> to vector<4x8xf32>
    %239 = vector.shape_cast %238 : vector<4x8xf32> to vector<4x8x1xf32>
    %240 = arith.mulf %233, %233 : vector<4x8x8xf32>
    %cst_72 = arith.constant dense<0.000000e+00> : vector<4x8xf32>
    %241 = vector.multi_reduction <add>, %240, %cst_72 [2] : vector<4x8x8xf32> to vector<4x8xf32>
    %242 = vector.shape_cast %241 : vector<4x8xf32> to vector<4x1x8xf32>
    %243 = arith.mulf %236, %236 : vector<4x8x8xf32>
    %cst_73 = arith.constant dense<0.000000e+00> : vector<4x8xf32>
    %244 = vector.multi_reduction <add>, %243, %cst_73 [2] : vector<4x8x8xf32> to vector<4x8xf32>
    %245 = vector.shape_cast %244 : vector<4x8xf32> to vector<4x8x1xf32>
    %cst_74 = arith.constant 0.000000e+00 : f32
    %246 = vector.broadcast %cst_74 : f32 to vector<4x8x1xf32>
    %247 = arith.maximumf %245, %246 : vector<4x8x1xf32>
    %248 = math.sqrt %247 : vector<4x8x1xf32>
    %cst_75 = arith.constant 1.000000e-07 : f32
    %249 = vector.broadcast %cst_75 : f32 to vector<4x8x1xf32>
    %250 = arith.maximumf %248, %249 : vector<4x8x1xf32>
    %cst_76 = arith.constant -0.999998986 : f32
    %cst_77 = arith.constant 0.999998986 : f32
    %251 = vector.broadcast %cst_76 : f32 to vector<4x8x1xf32>
    %252 = arith.maximumf %251, %250 : vector<4x8x1xf32>
    %253 = vector.broadcast %cst_77 : f32 to vector<4x8x1xf32>
    %254 = arith.minimumf %253, %252 : vector<4x8x1xf32>
    %255 = math.log1p %254 : vector<4x8x1xf32>
    %cst_78 = arith.constant 0.000000e+00 : f32
    %256 = vector.broadcast %cst_78 : f32 to vector<4x8x1xf32>
    %257 = arith.subf %256, %254 : vector<4x8x1xf32>
    %258 = math.log1p %257 : vector<4x8x1xf32>
    %259 = arith.subf %255, %258 : vector<4x8x1xf32>
    %cst_79 = arith.constant 5.000000e-01 : f32
    %260 = vector.broadcast %cst_79 : f32 to vector<4x8x1xf32>
    %261 = arith.mulf %260, %259 : vector<4x8x1xf32>
    %262 = arith.divf %261, %250 : vector<4x8x1xf32>
    %263 = vector.broadcast %262 : vector<4x8x1xf32> to vector<4x8x8xf32>
    %264 = arith.mulf %263, %236 : vector<4x8x8xf32>
    "tpu.trace_start"() <{level = 10 : i32, message = "gqd,gkd->gqk"}> : () -> ()
    %cst_80 = arith.constant dense<0.000000e+00> : vector<4x8x8xf32>
    %265 = tpu.matmul %230, %233, %cst_80 {dimension_numbers = #tpu.dot_dimension_numbers<[2], [2], [1], [1], [0, 0, 0, 1, 1, 1], [0], [0]>} : vector<4x8x8xf32>, vector<4x8x8xf32>, vector<4x8x8xf32> -> vector<4x8x8xf32>
    "tpu.trace_stop"() : () -> ()
    %cst_81 = arith.constant 2.000000e+00 : f32
    %266 = vector.broadcast %cst_81 : f32 to vector<4x8x8xf32>
    %267 = arith.mulf %266, %265 : vector<4x8x8xf32>
    %cst_82 = arith.constant 1.000000e+00 : f32
    %268 = vector.broadcast %cst_82 : f32 to vector<4x8x8xf32>
    %269 = arith.subf %268, %267 : vector<4x8x8xf32>
    %270 = vector.broadcast %242 : vector<4x1x8xf32> to vector<4x8x8xf32>
    %271 = arith.addf %269, %270 : vector<4x8x8xf32>
    %cst_83 = arith.constant 1.000000e+00 : f32
    %272 = vector.broadcast %cst_83 : f32 to vector<4x8x1xf32>
    %273 = arith.subf %272, %239 : vector<4x8x1xf32>
    %274 = arith.mulf %271, %271 : vector<4x8x8xf32>
    %275 = vector.broadcast %239 : vector<4x8x1xf32> to vector<4x8x8xf32>
    %276 = arith.mulf %274, %275 : vector<4x8x8xf32>
    %cst_84 = arith.constant 2.000000e+00 : f32
    %277 = vector.broadcast %cst_84 : f32 to vector<4x8x8xf32>
    %278 = arith.mulf %277, %271 : vector<4x8x8xf32>
    %279 = vector.broadcast %273 : vector<4x8x1xf32> to vector<4x8x8xf32>
    %280 = arith.mulf %278, %279 : vector<4x8x8xf32>
    %281 = arith.mulf %280, %265 : vector<4x8x8xf32>
    %282 = arith.subf %276, %281 : vector<4x8x8xf32>
    %283 = arith.mulf %273, %273 : vector<4x8x1xf32>
    %284 = vector.broadcast %283 : vector<4x8x1xf32> to vector<4x8x8xf32>
    %285 = vector.broadcast %242 : vector<4x1x8xf32> to vector<4x8x8xf32>
    %286 = arith.mulf %284, %285 : vector<4x8x8xf32>
    %287 = arith.addf %282, %286 : vector<4x8x8xf32>
    %cst_85 = arith.constant 2.000000e+00 : f32
    %288 = vector.broadcast %cst_85 : f32 to vector<4x8x8xf32>
    %289 = arith.mulf %288, %265 : vector<4x8x8xf32>
    %cst_86 = arith.constant 1.000000e+00 : f32
    %290 = vector.broadcast %cst_86 : f32 to vector<4x8x8xf32>
    %291 = arith.subf %290, %289 : vector<4x8x8xf32>
    %292 = vector.broadcast %239 : vector<4x8x1xf32> to vector<4x8x8xf32>
    %293 = vector.broadcast %242 : vector<4x1x8xf32> to vector<4x8x8xf32>
    %294 = arith.mulf %292, %293 : vector<4x8x8xf32>
    %295 = arith.addf %291, %294 : vector<4x8x8xf32>
    %cst_87 = arith.constant 1.000000e-07 : f32
    %296 = vector.broadcast %cst_87 : f32 to vector<4x8x8xf32>
    %297 = arith.maximumf %295, %296 : vector<4x8x8xf32>
    %cst_88 = arith.constant 0.000000e+00 : f32
    %298 = vector.broadcast %cst_88 : f32 to vector<4x8x8xf32>
    %299 = arith.maximumf %287, %298 : vector<4x8x8xf32>
    %300 = math.sqrt %299 : vector<4x8x8xf32>
    %301 = arith.addf %297, %300 : vector<4x8x8xf32>
    %302 = math.log %301 : vector<4x8x8xf32>
    %303 = arith.subf %297, %300 : vector<4x8x8xf32>
    %cst_89 = arith.constant 1.000000e-07 : f32
    %304 = vector.broadcast %cst_89 : f32 to vector<4x8x8xf32>
    %305 = arith.maximumf %303, %304 : vector<4x8x8xf32>
    %306 = math.log %305 : vector<4x8x8xf32>
    %307 = arith.subf %302, %306 : vector<4x8x8xf32>
    %cst_90 = arith.constant 0.000000e+00 : f32
    %308 = vector.broadcast %cst_90 : f32 to vector<4x8x8xf32>
    %309 = arith.subf %308, %307 : vector<4x8x8xf32>
    %cst_91 = arith.constant 0.353553385 : f32
    %310 = vector.broadcast %cst_91 : f32 to vector<4x8x8xf32>
    %311 = arith.mulf %309, %310 : vector<4x8x8xf32>
    %cst_92 = arith.constant dense<0xFF800000> : vector<4x8xf32>
    %312 = vector.multi_reduction <maximumf>, %311, %cst_92 [2] : vector<4x8x8xf32> to vector<4x8xf32>
    %313 = vector.shape_cast %312 : vector<4x8xf32> to vector<4x8x1xf32>
    %314 = vector.broadcast %313 : vector<4x8x1xf32> to vector<4x8x8xf32>
    %315 = arith.subf %311, %314 : vector<4x8x8xf32>
    %316 = math.exp %315 : vector<4x8x8xf32>
    %cst_93 = arith.constant dense<0.000000e+00> : vector<4x8xf32>
    %317 = vector.multi_reduction <add>, %316, %cst_93 [2] : vector<4x8x8xf32> to vector<4x8xf32>
    %318 = vector.shape_cast %317 : vector<4x8xf32> to vector<4x8x1xf32>
    %319 = vector.broadcast %318 : vector<4x8x1xf32> to vector<4x8x8xf32>
    %320 = arith.divf %316, %319 : vector<4x8x8xf32>
    %321 = vector.shape_cast %320 : vector<4x8x8xf32> to vector<1x4x8x8xf32>
    %c0_94 = arith.constant 0 : index
    %c0_95 = arith.constant 0 : index
    %c0_96 = arith.constant 0 : index
    %c0_97 = arith.constant 0 : index
    %322 = vector.load %arg19[%c0_94, %c0_95, %c0_96, %c0_97] : memref<1x4x8x8xf32, #tpu.memory_space<vmem>>, vector<1x4x8x8xf32>
    tpu.vector_store %arg19[%c0_94, %c0_95, %c0_96, %c0_97], %321 {strides = array<i32>} : memref<1x4x8x8xf32, #tpu.memory_space<vmem>>, vector<1x4x8x8xf32>,
    %323 = arith.truncf %320 : vector<4x8x8xf32> to vector<4x8x8xbf16>
    %324 = arith.truncf %264 : vector<4x8x8xf32> to vector<4x8x8xbf16>
    "tpu.trace_start"() <{level = 10 : i32, message = "gqk,gkd->gqd"}> : () -> ()
    %cst_98 = arith.constant dense<0.000000e+00> : vector<4x8x8xf32>
    %325 = tpu.matmul %323, %324, %cst_98 {dimension_numbers = #tpu.dot_dimension_numbers<[2], [1], [1], [2], [0, 0, 0, 1, 1, 2], [0], [0]>} : vector<4x8x8xbf16>, vector<4x8x8xbf16>, vector<4x8x8xf32> -> vector<4x8x8xf32>
    "tpu.trace_stop"() : () -> ()
    %326 = arith.mulf %325, %325 : vector<4x8x8xf32>
    %cst_99 = arith.constant dense<0.000000e+00> : vector<4x8xf32>
    %327 = vector.multi_reduction <add>, %326, %cst_99 [2] : vector<4x8x8xf32> to vector<4x8xf32>
    %328 = vector.shape_cast %327 : vector<4x8xf32> to vector<4x8x1xf32>
    %cst_100 = arith.constant 0.000000e+00 : f32
    %329 = vector.broadcast %cst_100 : f32 to vector<4x8x1xf32>
    %330 = arith.maximumf %328, %329 : vector<4x8x1xf32>
    %331 = math.sqrt %330 : vector<4x8x1xf32>
    %cst_101 = arith.constant 1.000000e-07 : f32
    %332 = vector.broadcast %cst_101 : f32 to vector<4x8x1xf32>
    %333 = arith.maximumf %331, %332 : vector<4x8x1xf32>
    %334 = math.tanh %333 : vector<4x8x1xf32>
    %335 = arith.divf %334, %333 : vector<4x8x1xf32>
    %336 = vector.broadcast %335 : vector<4x8x1xf32> to vector<4x8x8xf32>
    %337 = arith.mulf %336, %325 : vector<4x8x8xf32>
    %338 = tpu.transpose %337, [0, 2, 1] : vector<4x8x8xf32> -> vector<4x8x8xf32>
    %339 = vector.shape_cast %338 : vector<4x8x8xf32> to vector<32x8xf32>
    %340 = tpu.transpose %339, [1, 0] : vector<32x8xf32> -> vector<8x32xf32>
    %c0_102 = arith.constant 0 : index
    %c0_103 = arith.constant 0 : index
    %341 = vector.load %arg6[%c0_102, %c0_103] : memref<32x32xbf16, #tpu.memory_space<vmem>>, vector<32x32xbf16>
    %c0_104 = arith.constant 0 : index
    %c0_105 = arith.constant 0 : index
    %342 = vector.load %arg7[%c0_104, %c0_105] : memref<1x32xf32, #tpu.memory_space<vmem>>, vector<1x32xf32>
    %343 = arith.mulf %340, %340 : vector<8x32xf32>
    %cst_106 = arith.constant dense<0.000000e+00> : vector<8xf32>
    %344 = vector.multi_reduction <add>, %343, %cst_106 [1] : vector<8x32xf32> to vector<8xf32>
    %345 = vector.shape_cast %344 : vector<8xf32> to vector<8x1xf32>
    %cst_107 = arith.constant 0.000000e+00 : f32
    %346 = vector.broadcast %cst_107 : f32 to vector<8x1xf32>
    %347 = arith.maximumf %345, %346 : vector<8x1xf32>
    %348 = math.sqrt %347 : vector<8x1xf32>
    %cst_108 = arith.constant 1.000000e-07 : f32
    %349 = vector.broadcast %cst_108 : f32 to vector<8x1xf32>
    %350 = arith.maximumf %348, %349 : vector<8x1xf32>
    %cst_109 = arith.constant -0.999998986 : f32
    %cst_110 = arith.constant 0.999998986 : f32
    %351 = vector.broadcast %cst_109 : f32 to vector<8x1xf32>
    %352 = arith.maximumf %351, %350 : vector<8x1xf32>
    %353 = vector.broadcast %cst_110 : f32 to vector<8x1xf32>
    %354 = arith.minimumf %353, %352 : vector<8x1xf32>
    %355 = math.log1p %354 : vector<8x1xf32>
    %cst_111 = arith.constant 0.000000e+00 : f32
    %356 = vector.broadcast %cst_111 : f32 to vector<8x1xf32>
    %357 = arith.subf %356, %354 : vector<8x1xf32>
    %358 = math.log1p %357 : vector<8x1xf32>
    %359 = arith.subf %355, %358 : vector<8x1xf32>
    %cst_112 = arith.constant 5.000000e-01 : f32
    %360 = vector.broadcast %cst_112 : f32 to vector<8x1xf32>
    %361 = arith.mulf %360, %359 : vector<8x1xf32>
    %362 = arith.truncf %340 : vector<8x32xf32> to vector<8x32xbf16>
    %cst_113 = arith.constant dense<0.000000e+00> : vector<8x32xf32>
    %363 = tpu.matmul %362, %341, %cst_113 {dimension_numbers = #tpu.dot_dimension_numbers<[1], [0], [0], [1], [0, 0, 1, 1], [], []>} : vector<8x32xbf16>, vector<32x32xbf16>, vector<8x32xf32> -> vector<8x32xf32>
    %364 = arith.mulf %363, %363 : vector<8x32xf32>
    %cst_114 = arith.constant dense<0.000000e+00> : vector<8xf32>
    %365 = vector.multi_reduction <add>, %364, %cst_114 [1] : vector<8x32xf32> to vector<8xf32>
    %366 = vector.shape_cast %365 : vector<8xf32> to vector<8x1xf32>
    %cst_115 = arith.constant 0.000000e+00 : f32
    %367 = vector.broadcast %cst_115 : f32 to vector<8x1xf32>
    %368 = arith.maximumf %366, %367 : vector<8x1xf32>
    %369 = math.sqrt %368 : vector<8x1xf32>
    %cst_116 = arith.constant 1.000000e-07 : f32
    %370 = vector.broadcast %cst_116 : f32 to vector<8x1xf32>
    %371 = arith.maximumf %369, %370 : vector<8x1xf32>
    %372 = arith.divf %371, %350 : vector<8x1xf32>
    %373 = arith.mulf %372, %361 : vector<8x1xf32>
    %374 = math.tanh %373 : vector<8x1xf32>
    %375 = vector.broadcast %371 : vector<8x1xf32> to vector<8x32xf32>
    %376 = arith.divf %363, %375 : vector<8x32xf32>
    %377 = vector.broadcast %374 : vector<8x1xf32> to vector<8x32xf32>
    %378 = arith.mulf %377, %376 : vector<8x32xf32>
    %379 = vector.broadcast %342 : vector<1x32xf32> to vector<8x32xf32>
    %380 = arith.mulf %378, %379 : vector<8x32xf32>
    %cst_117 = arith.constant dense<0.000000e+00> : vector<8xf32>
    %381 = vector.multi_reduction <add>, %380, %cst_117 [1] : vector<8x32xf32> to vector<8xf32>
    %382 = vector.shape_cast %381 : vector<8xf32> to vector<8x1xf32>
    %383 = arith.mulf %378, %378 : vector<8x32xf32>
    %cst_118 = arith.constant dense<0.000000e+00> : vector<8xf32>
    %384 = vector.multi_reduction <add>, %383, %cst_118 [1] : vector<8x32xf32> to vector<8xf32>
    %385 = vector.shape_cast %384 : vector<8xf32> to vector<8x1xf32>
    %386 = arith.mulf %342, %342 : vector<1x32xf32>
    %cst_119 = arith.constant dense<0.000000e+00> : vector<1xf32>
    %387 = vector.multi_reduction <add>, %386, %cst_119 [1] : vector<1x32xf32> to vector<1xf32>
    %388 = vector.shape_cast %387 : vector<1xf32> to vector<1x1xf32>
    %cst_120 = arith.constant 2.000000e+00 : f32
    %389 = vector.broadcast %cst_120 : f32 to vector<8x1xf32>
    %390 = arith.mulf %389, %382 : vector<8x1xf32>
    %cst_121 = arith.constant 1.000000e+00 : f32
    %391 = vector.broadcast %cst_121 : f32 to vector<8x1xf32>
    %392 = arith.addf %391, %390 : vector<8x1xf32>
    %393 = vector.broadcast %388 : vector<1x1xf32> to vector<8x1xf32>
    %394 = arith.addf %392, %393 : vector<8x1xf32>
    %395 = vector.broadcast %394 : vector<8x1xf32> to vector<8x32xf32>
    %396 = arith.mulf %395, %378 : vector<8x32xf32>
    %cst_122 = arith.constant 1.000000e+00 : f32
    %397 = vector.broadcast %cst_122 : f32 to vector<8x1xf32>
    %398 = arith.subf %397, %385 : vector<8x1xf32>
    %399 = vector.broadcast %398 : vector<8x1xf32> to vector<8x32xf32>
    %400 = vector.broadcast %342 : vector<1x32xf32> to vector<8x32xf32>
    %401 = arith.mulf %399, %400 : vector<8x32xf32>
    %402 = arith.addf %396, %401 : vector<8x32xf32>
    %cst_123 = arith.constant 2.000000e+00 : f32
    %403 = vector.broadcast %cst_123 : f32 to vector<8x1xf32>
    %404 = arith.mulf %403, %382 : vector<8x1xf32>
    %cst_124 = arith.constant 1.000000e+00 : f32
    %405 = vector.broadcast %cst_124 : f32 to vector<8x1xf32>
    %406 = arith.addf %405, %404 : vector<8x1xf32>
    %407 = vector.broadcast %388 : vector<1x1xf32> to vector<8x1xf32>
    %408 = arith.mulf %385, %407 : vector<8x1xf32>
    %409 = arith.addf %406, %408 : vector<8x1xf32>
    %cst_125 = arith.constant 1.000000e-07 : f32
    %410 = vector.broadcast %cst_125 : f32 to vector<8x1xf32>
    %411 = arith.maximumf %409, %410 : vector<8x1xf32>
    %412 = vector.broadcast %411 : vector<8x1xf32> to vector<8x32xf32>
    %413 = arith.divf %402, %412 : vector<8x32xf32>
    %414 = arith.mulf %413, %413 : vector<8x32xf32>
    %cst_126 = arith.constant dense<0.000000e+00> : vector<8xf32>
    %415 = vector.multi_reduction <add>, %414, %cst_126 [1] : vector<8x32xf32> to vector<8xf32>
    %416 = vector.shape_cast %415 : vector<8xf32> to vector<8x1xf32>
    %cst_127 = arith.constant 0.000000e+00 : f32
    %417 = vector.broadcast %cst_127 : f32 to vector<8x1xf32>
    %418 = arith.maximumf %416, %417 : vector<8x1xf32>
    %419 = math.sqrt %418 : vector<8x1xf32>
    %cst_128 = arith.constant 1.000000e-07 : f32
    %420 = vector.broadcast %cst_128 : f32 to vector<8x1xf32>
    %421 = arith.maximumf %419, %420 : vector<8x1xf32>
    %cst_129 = arith.constant 0.999989986 : f32
    %422 = vector.broadcast %cst_129 : f32 to vector<8x1xf32>
    %423 = arith.cmpf ogt, %421, %422 : vector<8x1xf32>
    %cst_130 = arith.constant 0.999989986 : f32
    %424 = vector.broadcast %cst_130 : f32 to vector<8x1xf32>
    %425 = arith.divf %424, %421 : vector<8x1xf32>
    %cst_131 = arith.constant 1.000000e+00 : f32
    %426 = vector.broadcast %cst_131 : f32 to vector<8x1xf32>
    %427 = arith.select %423, %425, %426 : vector<8x1xi1>, vector<8x1xf32>
    %428 = vector.broadcast %427 : vector<8x1xf32> to vector<8x32xf32>
    %429 = arith.mulf %413, %428 : vector<8x32xf32>
    %430 = arith.mulf %1, %429 : vector<8x32xf32>
    %cst_132 = arith.constant dense<0.000000e+00> : vector<8xf32>
    %431 = vector.multi_reduction <add>, %430, %cst_132 [1] : vector<8x32xf32> to vector<8xf32>
    %432 = vector.shape_cast %431 : vector<8xf32> to vector<8x1xf32>
    %433 = arith.mulf %1, %1 : vector<8x32xf32>
    %cst_133 = arith.constant dense<0.000000e+00> : vector<8xf32>
    %434 = vector.multi_reduction <add>, %433, %cst_133 [1] : vector<8x32xf32> to vector<8xf32>
    %435 = vector.shape_cast %434 : vector<8xf32> to vector<8x1xf32>
    %436 = arith.mulf %429, %429 : vector<8x32xf32>
    %cst_134 = arith.constant dense<0.000000e+00> : vector<8xf32>
    %437 = vector.multi_reduction <add>, %436, %cst_134 [1] : vector<8x32xf32> to vector<8xf32>
    %438 = vector.shape_cast %437 : vector<8xf32> to vector<8x1xf32>
    %cst_135 = arith.constant 2.000000e+00 : f32
    %439 = vector.broadcast %cst_135 : f32 to vector<8x1xf32>
    %440 = arith.mulf %439, %432 : vector<8x1xf32>
    %cst_136 = arith.constant 1.000000e+00 : f32
    %441 = vector.broadcast %cst_136 : f32 to vector<8x1xf32>
    %442 = arith.addf %441, %440 : vector<8x1xf32>
    %443 = arith.addf %442, %438 : vector<8x1xf32>
    %444 = vector.broadcast %443 : vector<8x1xf32> to vector<8x32xf32>
    %445 = arith.mulf %444, %1 : vector<8x32xf32>
    %cst_137 = arith.constant 1.000000e+00 : f32
    %446 = vector.broadcast %cst_137 : f32 to vector<8x1xf32>
    %447 = arith.subf %446, %435 : vector<8x1xf32>
    %448 = vector.broadcast %447 : vector<8x1xf32> to vector<8x32xf32>
    %449 = arith.mulf %448, %429 : vector<8x32xf32>
    %450 = arith.addf %445, %449 : vector<8x32xf32>
    %cst_138 = arith.constant 2.000000e+00 : f32
    %451 = vector.broadcast %cst_138 : f32 to vector<8x1xf32>
    %452 = arith.mulf %451, %432 : vector<8x1xf32>
    %cst_139 = arith.constant 1.000000e+00 : f32
    %453 = vector.broadcast %cst_139 : f32 to vector<8x1xf32>
    %454 = arith.addf %453, %452 : vector<8x1xf32>
    %455 = arith.mulf %435, %438 : vector<8x1xf32>
    %456 = arith.addf %454, %455 : vector<8x1xf32>
    %cst_140 = arith.constant 1.000000e-07 : f32
    %457 = vector.broadcast %cst_140 : f32 to vector<8x1xf32>
    %458 = arith.maximumf %456, %457 : vector<8x1xf32>
    %459 = vector.broadcast %458 : vector<8x1xf32> to vector<8x32xf32>
    %460 = arith.divf %450, %459 : vector<8x32xf32>
    %c0_141 = arith.constant 0 : index
    %c0_142 = arith.constant 0 : index
    %461 = vector.load %arg12[%c0_141, %c0_142] : memref<1x32xf32, #tpu.memory_space<vmem>>, vector<1x32xf32>
    %c0_143 = arith.constant 0 : index
    %c0_144 = arith.constant 0 : index
    %462 = vector.load %arg13[%c0_143, %c0_144] : memref<1x32xf32, #tpu.memory_space<vmem>>, vector<1x32xf32>
    %c0_145 = arith.constant 0 : index
    %c0_146 = arith.constant 0 : index
    %463 = vector.load %arg14[%c0_145, %c0_146] : memref<1x32xf32, #tpu.memory_space<vmem>>, vector<1x32xf32>
    %464 = arith.mulf %460, %460 : vector<8x32xf32>
    %cst_147 = arith.constant dense<0.000000e+00> : vector<8xf32>
    %465 = vector.multi_reduction <add>, %464, %cst_147 [1] : vector<8x32xf32> to vector<8xf32>
    %466 = vector.shape_cast %465 : vector<8xf32> to vector<8x1xf32>
    %cst_148 = arith.constant 0.000000e+00 : f32
    %467 = vector.broadcast %cst_148 : f32 to vector<8x1xf32>
    %468 = arith.maximumf %466, %467 : vector<8x1xf32>
    %469 = math.sqrt %468 : vector<8x1xf32>
    %cst_149 = arith.constant 1.000000e-07 : f32
    %470 = vector.broadcast %cst_149 : f32 to vector<8x1xf32>
    %471 = arith.maximumf %469, %470 : vector<8x1xf32>
    %cst_150 = arith.constant -0.999998986 : f32
    %cst_151 = arith.constant 0.999998986 : f32
    %472 = vector.broadcast %cst_150 : f32 to vector<8x1xf32>
    %473 = arith.maximumf %472, %471 : vector<8x1xf32>
    %474 = vector.broadcast %cst_151 : f32 to vector<8x1xf32>
    %475 = arith.minimumf %474, %473 : vector<8x1xf32>
    %476 = math.log1p %475 : vector<8x1xf32>
    %cst_152 = arith.constant 0.000000e+00 : f32
    %477 = vector.broadcast %cst_152 : f32 to vector<8x1xf32>
    %478 = arith.subf %477, %475 : vector<8x1xf32>
    %479 = math.log1p %478 : vector<8x1xf32>
    %480 = arith.subf %476, %479 : vector<8x1xf32>
    %cst_153 = arith.constant 5.000000e-01 : f32
    %481 = vector.broadcast %cst_153 : f32 to vector<8x1xf32>
    %482 = arith.mulf %481, %480 : vector<8x1xf32>
    %483 = arith.divf %482, %471 : vector<8x1xf32>
    %484 = vector.broadcast %483 : vector<8x1xf32> to vector<8x32xf32>
    %485 = arith.mulf %484, %460 : vector<8x32xf32>
    %cst_154 = arith.constant dense<0.000000e+00> : vector<8xf32>
    %486 = vector.multi_reduction <add>, %485, %cst_154 [1] : vector<8x32xf32> to vector<8xf32>
    %487 = vector.shape_cast %486 : vector<8xf32> to vector<8x1xf32>
    %cst_155 = arith.constant 3.200000e+01 : f32
    %488 = vector.broadcast %cst_155 : f32 to vector<8x1xf32>
    %489 = arith.divf %487, %488 : vector<8x1xf32>
    %490 = vector.broadcast %489 : vector<8x1xf32> to vector<8x32xf32>
    %491 = arith.subf %485, %490 : vector<8x32xf32>
    %492 = arith.mulf %491, %491 : vector<8x32xf32>
    %cst_156 = arith.constant dense<0.000000e+00> : vector<8xf32>
    %493 = vector.multi_reduction <add>, %492, %cst_156 [1] : vector<8x32xf32> to vector<8xf32>
    %494 = vector.shape_cast %493 : vector<8xf32> to vector<8x1xf32>
    %cst_157 = arith.constant 0.0322580636 : f32
    %495 = vector.broadcast %cst_157 : f32 to vector<8x1xf32>
    %496 = arith.mulf %494, %495 : vector<8x1xf32>
    %497 = math.sqrt %496 : vector<8x1xf32>
    %cst_158 = arith.constant 9.99999997E-7 : f32
    %498 = vector.broadcast %cst_158 : f32 to vector<8x1xf32>
    %499 = arith.addf %497, %498 : vector<8x1xf32>
    %500 = vector.broadcast %499 : vector<8x1xf32> to vector<8x32xf32>
    %501 = arith.divf %491, %500 : vector<8x32xf32>
    %502 = vector.broadcast %461 : vector<1x32xf32> to vector<8x32xf32>
    %503 = arith.mulf %502, %501 : vector<8x32xf32>
    %504 = vector.broadcast %462 : vector<1x32xf32> to vector<8x32xf32>
    %505 = arith.addf %503, %504 : vector<8x32xf32>
    %506 = arith.mulf %505, %505 : vector<8x32xf32>
    %cst_159 = arith.constant dense<0.000000e+00> : vector<8xf32>
    %507 = vector.multi_reduction <add>, %506, %cst_159 [1] : vector<8x32xf32> to vector<8xf32>
    %508 = vector.shape_cast %507 : vector<8xf32> to vector<8x1xf32>
    %cst_160 = arith.constant 0.000000e+00 : f32
    %509 = vector.broadcast %cst_160 : f32 to vector<8x1xf32>
    %510 = arith.maximumf %508, %509 : vector<8x1xf32>
    %511 = math.sqrt %510 : vector<8x1xf32>
    %cst_161 = arith.constant 1.000000e-07 : f32
    %512 = vector.broadcast %cst_161 : f32 to vector<8x1xf32>
    %513 = arith.maximumf %511, %512 : vector<8x1xf32>
    %514 = math.tanh %513 : vector<8x1xf32>
    %515 = arith.divf %514, %513 : vector<8x1xf32>
    %516 = vector.broadcast %515 : vector<8x1xf32> to vector<8x32xf32>
    %517 = arith.mulf %516, %505 : vector<8x32xf32>
    %518 = vector.broadcast %463 : vector<1x32xf32> to vector<8x32xf32>
    %519 = arith.mulf %517, %518 : vector<8x32xf32>
    %cst_162 = arith.constant dense<0.000000e+00> : vector<8xf32>
    %520 = vector.multi_reduction <add>, %519, %cst_162 [1] : vector<8x32xf32> to vector<8xf32>
    %521 = vector.shape_cast %520 : vector<8xf32> to vector<8x1xf32>
    %522 = arith.mulf %517, %517 : vector<8x32xf32>
    %cst_163 = arith.constant dense<0.000000e+00> : vector<8xf32>
    %523 = vector.multi_reduction <add>, %522, %cst_163 [1] : vector<8x32xf32> to vector<8xf32>
    %524 = vector.shape_cast %523 : vector<8xf32> to vector<8x1xf32>
    %525 = arith.mulf %463, %463 : vector<1x32xf32>
    %cst_164 = arith.constant dense<0.000000e+00> : vector<1xf32>
    %526 = vector.multi_reduction <add>, %525, %cst_164 [1] : vector<1x32xf32> to vector<1xf32>
    %527 = vector.shape_cast %526 : vector<1xf32> to vector<1x1xf32>
    %cst_165 = arith.constant 2.000000e+00 : f32
    %528 = vector.broadcast %cst_165 : f32 to vector<8x1xf32>
    %529 = arith.mulf %528, %521 : vector<8x1xf32>
    %cst_166 = arith.constant 1.000000e+00 : f32
    %530 = vector.broadcast %cst_166 : f32 to vector<8x1xf32>
    %531 = arith.addf %530, %529 : vector<8x1xf32>
    %532 = vector.broadcast %527 : vector<1x1xf32> to vector<8x1xf32>
    %533 = arith.addf %531, %532 : vector<8x1xf32>
    %534 = vector.broadcast %533 : vector<8x1xf32> to vector<8x32xf32>
    %535 = arith.mulf %534, %517 : vector<8x32xf32>
    %cst_167 = arith.constant 1.000000e+00 : f32
    %536 = vector.broadcast %cst_167 : f32 to vector<8x1xf32>
    %537 = arith.subf %536, %524 : vector<8x1xf32>
    %538 = vector.broadcast %537 : vector<8x1xf32> to vector<8x32xf32>
    %539 = vector.broadcast %463 : vector<1x32xf32> to vector<8x32xf32>
    %540 = arith.mulf %538, %539 : vector<8x32xf32>
    %541 = arith.addf %535, %540 : vector<8x32xf32>
    %cst_168 = arith.constant 2.000000e+00 : f32
    %542 = vector.broadcast %cst_168 : f32 to vector<8x1xf32>
    %543 = arith.mulf %542, %521 : vector<8x1xf32>
    %cst_169 = arith.constant 1.000000e+00 : f32
    %544 = vector.broadcast %cst_169 : f32 to vector<8x1xf32>
    %545 = arith.addf %544, %543 : vector<8x1xf32>
    %546 = vector.broadcast %527 : vector<1x1xf32> to vector<8x1xf32>
    %547 = arith.mulf %524, %546 : vector<8x1xf32>
    %548 = arith.addf %545, %547 : vector<8x1xf32>
    %cst_170 = arith.constant 1.000000e-07 : f32
    %549 = vector.broadcast %cst_170 : f32 to vector<8x1xf32>
    %550 = arith.maximumf %548, %549 : vector<8x1xf32>
    %551 = vector.broadcast %550 : vector<8x1xf32> to vector<8x32xf32>
    %552 = arith.divf %541, %551 : vector<8x32xf32>
    %c0_171 = arith.constant 0 : index
    %c0_172 = arith.constant 0 : index
    %553 = vector.load %arg8[%c0_171, %c0_172] : memref<32x64xbf16, #tpu.memory_space<vmem>>, vector<32x64xbf16>
    %c0_173 = arith.constant 0 : index
    %c0_174 = arith.constant 0 : index
    %554 = vector.load %arg9[%c0_173, %c0_174] : memref<1x64xf32, #tpu.memory_space<vmem>>, vector<1x64xf32>
    %555 = arith.mulf %552, %552 : vector<8x32xf32>
    %cst_175 = arith.constant dense<0.000000e+00> : vector<8xf32>
    %556 = vector.multi_reduction <add>, %555, %cst_175 [1] : vector<8x32xf32> to vector<8xf32>
    %557 = vector.shape_cast %556 : vector<8xf32> to vector<8x1xf32>
    %cst_176 = arith.constant 0.000000e+00 : f32
    %558 = vector.broadcast %cst_176 : f32 to vector<8x1xf32>
    %559 = arith.maximumf %557, %558 : vector<8x1xf32>
    %560 = math.sqrt %559 : vector<8x1xf32>
    %cst_177 = arith.constant 1.000000e-07 : f32
    %561 = vector.broadcast %cst_177 : f32 to vector<8x1xf32>
    %562 = arith.maximumf %560, %561 : vector<8x1xf32>
    %cst_178 = arith.constant -0.999998986 : f32
    %cst_179 = arith.constant 0.999998986 : f32
    %563 = vector.broadcast %cst_178 : f32 to vector<8x1xf32>
    %564 = arith.maximumf %563, %562 : vector<8x1xf32>
    %565 = vector.broadcast %cst_179 : f32 to vector<8x1xf32>
    %566 = arith.minimumf %565, %564 : vector<8x1xf32>
    %567 = math.log1p %566 : vector<8x1xf32>
    %cst_180 = arith.constant 0.000000e+00 : f32
    %568 = vector.broadcast %cst_180 : f32 to vector<8x1xf32>
    %569 = arith.subf %568, %566 : vector<8x1xf32>
    %570 = math.log1p %569 : vector<8x1xf32>
    %571 = arith.subf %567, %570 : vector<8x1xf32>
    %cst_181 = arith.constant 5.000000e-01 : f32
    %572 = vector.broadcast %cst_181 : f32 to vector<8x1xf32>
    %573 = arith.mulf %572, %571 : vector<8x1xf32>
    %574 = arith.truncf %552 : vector<8x32xf32> to vector<8x32xbf16>
    %cst_182 = arith.constant dense<0.000000e+00> : vector<8x64xf32>
    %575 = tpu.matmul %574, %553, %cst_182 {dimension_numbers = #tpu.dot_dimension_numbers<[1], [0], [0], [1], [0, 0, 1, 1], [], []>} : vector<8x32xbf16>, vector<32x64xbf16>, vector<8x64xf32> -> vector<8x64xf32>
    %576 = arith.mulf %575, %575 : vector<8x64xf32>
    %cst_183 = arith.constant dense<0.000000e+00> : vector<8xf32>
    %577 = vector.multi_reduction <add>, %576, %cst_183 [1] : vector<8x64xf32> to vector<8xf32>
    %578 = vector.shape_cast %577 : vector<8xf32> to vector<8x1xf32>
    %cst_184 = arith.constant 0.000000e+00 : f32
    %579 = vector.broadcast %cst_184 : f32 to vector<8x1xf32>
    %580 = arith.maximumf %578, %579 : vector<8x1xf32>
    %581 = math.sqrt %580 : vector<8x1xf32>
    %cst_185 = arith.constant 1.000000e-07 : f32
    %582 = vector.broadcast %cst_185 : f32 to vector<8x1xf32>
    %583 = arith.maximumf %581, %582 : vector<8x1xf32>
    %584 = arith.divf %583, %562 : vector<8x1xf32>
    %585 = arith.mulf %584, %573 : vector<8x1xf32>
    %586 = math.tanh %585 : vector<8x1xf32>
    %587 = vector.broadcast %583 : vector<8x1xf32> to vector<8x64xf32>
    %588 = arith.divf %575, %587 : vector<8x64xf32>
    %589 = vector.broadcast %586 : vector<8x1xf32> to vector<8x64xf32>
    %590 = arith.mulf %589, %588 : vector<8x64xf32>
    %591 = vector.broadcast %554 : vector<1x64xf32> to vector<8x64xf32>
    %592 = arith.mulf %590, %591 : vector<8x64xf32>
    %cst_186 = arith.constant dense<0.000000e+00> : vector<8xf32>
    %593 = vector.multi_reduction <add>, %592, %cst_186 [1] : vector<8x64xf32> to vector<8xf32>
    %594 = vector.shape_cast %593 : vector<8xf32> to vector<8x1xf32>
    %595 = arith.mulf %590, %590 : vector<8x64xf32>
    %cst_187 = arith.constant dense<0.000000e+00> : vector<8xf32>
    %596 = vector.multi_reduction <add>, %595, %cst_187 [1] : vector<8x64xf32> to vector<8xf32>
    %597 = vector.shape_cast %596 : vector<8xf32> to vector<8x1xf32>
    %598 = arith.mulf %554, %554 : vector<1x64xf32>
    %cst_188 = arith.constant dense<0.000000e+00> : vector<1xf32>
    %599 = vector.multi_reduction <add>, %598, %cst_188 [1] : vector<1x64xf32> to vector<1xf32>
    %600 = vector.shape_cast %599 : vector<1xf32> to vector<1x1xf32>
    %cst_189 = arith.constant 2.000000e+00 : f32
    %601 = vector.broadcast %cst_189 : f32 to vector<8x1xf32>
    %602 = arith.mulf %601, %594 : vector<8x1xf32>
    %cst_190 = arith.constant 1.000000e+00 : f32
    %603 = vector.broadcast %cst_190 : f32 to vector<8x1xf32>
    %604 = arith.addf %603, %602 : vector<8x1xf32>
    %605 = vector.broadcast %600 : vector<1x1xf32> to vector<8x1xf32>
    %606 = arith.addf %604, %605 : vector<8x1xf32>
    %607 = vector.broadcast %606 : vector<8x1xf32> to vector<8x64xf32>
    %608 = arith.mulf %607, %590 : vector<8x64xf32>
    %cst_191 = arith.constant 1.000000e+00 : f32
    %609 = vector.broadcast %cst_191 : f32 to vector<8x1xf32>
    %610 = arith.subf %609, %597 : vector<8x1xf32>
    %611 = vector.broadcast %610 : vector<8x1xf32> to vector<8x64xf32>
    %612 = vector.broadcast %554 : vector<1x64xf32> to vector<8x64xf32>
    %613 = arith.mulf %611, %612 : vector<8x64xf32>
    %614 = arith.addf %608, %613 : vector<8x64xf32>
    %cst_192 = arith.constant 2.000000e+00 : f32
    %615 = vector.broadcast %cst_192 : f32 to vector<8x1xf32>
    %616 = arith.mulf %615, %594 : vector<8x1xf32>
    %cst_193 = arith.constant 1.000000e+00 : f32
    %617 = vector.broadcast %cst_193 : f32 to vector<8x1xf32>
    %618 = arith.addf %617, %616 : vector<8x1xf32>
    %619 = vector.broadcast %600 : vector<1x1xf32> to vector<8x1xf32>
    %620 = arith.mulf %597, %619 : vector<8x1xf32>
    %621 = arith.addf %618, %620 : vector<8x1xf32>
    %cst_194 = arith.constant 1.000000e-07 : f32
    %622 = vector.broadcast %cst_194 : f32 to vector<8x1xf32>
    %623 = arith.maximumf %621, %622 : vector<8x1xf32>
    %624 = vector.broadcast %623 : vector<8x1xf32> to vector<8x64xf32>
    %625 = arith.divf %614, %624 : vector<8x64xf32>
    %626 = arith.mulf %625, %625 : vector<8x64xf32>
    %cst_195 = arith.constant dense<0.000000e+00> : vector<8xf32>
    %627 = vector.multi_reduction <add>, %626, %cst_195 [1] : vector<8x64xf32> to vector<8xf32>
    %628 = vector.shape_cast %627 : vector<8xf32> to vector<8x1xf32>
    %cst_196 = arith.constant 0.000000e+00 : f32
    %629 = vector.broadcast %cst_196 : f32 to vector<8x1xf32>
    %630 = arith.maximumf %628, %629 : vector<8x1xf32>
    %631 = math.sqrt %630 : vector<8x1xf32>
    %cst_197 = arith.constant 1.000000e-07 : f32
    %632 = vector.broadcast %cst_197 : f32 to vector<8x1xf32>
    %633 = arith.maximumf %631, %632 : vector<8x1xf32>
    %cst_198 = arith.constant 0.999989986 : f32
    %634 = vector.broadcast %cst_198 : f32 to vector<8x1xf32>
    %635 = arith.cmpf ogt, %633, %634 : vector<8x1xf32>
    %cst_199 = arith.constant 0.999989986 : f32
    %636 = vector.broadcast %cst_199 : f32 to vector<8x1xf32>
    %637 = arith.divf %636, %633 : vector<8x1xf32>
    %cst_200 = arith.constant 1.000000e+00 : f32
    %638 = vector.broadcast %cst_200 : f32 to vector<8x1xf32>
    %639 = arith.select %635, %637, %638 : vector<8x1xi1>, vector<8x1xf32>
    %640 = vector.broadcast %639 : vector<8x1xf32> to vector<8x64xf32>
    %641 = arith.mulf %625, %640 : vector<8x64xf32>
    %642 = arith.mulf %641, %641 : vector<8x64xf32>
    %cst_201 = arith.constant dense<0.000000e+00> : vector<8xf32>
    %643 = vector.multi_reduction <add>, %642, %cst_201 [1] : vector<8x64xf32> to vector<8xf32>
    %644 = vector.shape_cast %643 : vector<8xf32> to vector<8x1xf32>
    %cst_202 = arith.constant 0.000000e+00 : f32
    %645 = vector.broadcast %cst_202 : f32 to vector<8x1xf32>
    %646 = arith.maximumf %644, %645 : vector<8x1xf32>
    %647 = math.sqrt %646 : vector<8x1xf32>
    %cst_203 = arith.constant 1.000000e-07 : f32
    %648 = vector.broadcast %cst_203 : f32 to vector<8x1xf32>
    %649 = arith.maximumf %647, %648 : vector<8x1xf32>
    %cst_204 = arith.constant -0.999998986 : f32
    %cst_205 = arith.constant 0.999998986 : f32
    %650 = vector.broadcast %cst_204 : f32 to vector<8x1xf32>
    %651 = arith.maximumf %650, %649 : vector<8x1xf32>
    %652 = vector.broadcast %cst_205 : f32 to vector<8x1xf32>
    %653 = arith.minimumf %652, %651 : vector<8x1xf32>
    %654 = math.log1p %653 : vector<8x1xf32>
    %cst_206 = arith.constant 0.000000e+00 : f32
    %655 = vector.broadcast %cst_206 : f32 to vector<8x1xf32>
    %656 = arith.subf %655, %653 : vector<8x1xf32>
    %657 = math.log1p %656 : vector<8x1xf32>
    %658 = arith.subf %654, %657 : vector<8x1xf32>
    %cst_207 = arith.constant 5.000000e-01 : f32
    %659 = vector.broadcast %cst_207 : f32 to vector<8x1xf32>
    %660 = arith.mulf %659, %658 : vector<8x1xf32>
    %661 = arith.divf %660, %649 : vector<8x1xf32>
    %662 = vector.broadcast %661 : vector<8x1xf32> to vector<8x64xf32>
    %663 = arith.mulf %662, %641 : vector<8x64xf32>
    %cst_208 = arith.constant 0.000000e+00 : f32
    %664 = vector.broadcast %cst_208 : f32 to vector<8x64xf32>
    %665 = arith.maximumf %663, %664 : vector<8x64xf32>
    %666 = arith.mulf %665, %665 : vector<8x64xf32>
    %cst_209 = arith.constant dense<0.000000e+00> : vector<8xf32>
    %667 = vector.multi_reduction <add>, %666, %cst_209 [1] : vector<8x64xf32> to vector<8xf32>
    %668 = vector.shape_cast %667 : vector<8xf32> to vector<8x1xf32>
    %cst_210 = arith.constant 0.000000e+00 : f32
    %669 = vector.broadcast %cst_210 : f32 to vector<8x1xf32>
    %670 = arith.maximumf %668, %669 : vector<8x1xf32>
    %671 = math.sqrt %670 : vector<8x1xf32>
    %cst_211 = arith.constant 1.000000e-07 : f32
    %672 = vector.broadcast %cst_211 : f32 to vector<8x1xf32>
    %673 = arith.maximumf %671, %672 : vector<8x1xf32>
    %674 = math.tanh %673 : vector<8x1xf32>
    %675 = arith.divf %674, %673 : vector<8x1xf32>
    %676 = vector.broadcast %675 : vector<8x1xf32> to vector<8x64xf32>
    %677 = arith.mulf %676, %665 : vector<8x64xf32>
    %c0_212 = arith.constant 0 : index
    %c0_213 = arith.constant 0 : index
    %678 = vector.load %arg10[%c0_212, %c0_213] : memref<64x32xbf16, #tpu.memory_space<vmem>>, vector<64x32xbf16>
    %c0_214 = arith.constant 0 : index
    %c0_215 = arith.constant 0 : index
    %679 = vector.load %arg11[%c0_214, %c0_215] : memref<1x32xf32, #tpu.memory_space<vmem>>, vector<1x32xf32>
    %680 = arith.mulf %677, %677 : vector<8x64xf32>
    %cst_216 = arith.constant dense<0.000000e+00> : vector<8xf32>
    %681 = vector.multi_reduction <add>, %680, %cst_216 [1] : vector<8x64xf32> to vector<8xf32>
    %682 = vector.shape_cast %681 : vector<8xf32> to vector<8x1xf32>
    %cst_217 = arith.constant 0.000000e+00 : f32
    %683 = vector.broadcast %cst_217 : f32 to vector<8x1xf32>
    %684 = arith.maximumf %682, %683 : vector<8x1xf32>
    %685 = math.sqrt %684 : vector<8x1xf32>
    %cst_218 = arith.constant 1.000000e-07 : f32
    %686 = vector.broadcast %cst_218 : f32 to vector<8x1xf32>
    %687 = arith.maximumf %685, %686 : vector<8x1xf32>
    %cst_219 = arith.constant -0.999998986 : f32
    %cst_220 = arith.constant 0.999998986 : f32
    %688 = vector.broadcast %cst_219 : f32 to vector<8x1xf32>
    %689 = arith.maximumf %688, %687 : vector<8x1xf32>
    %690 = vector.broadcast %cst_220 : f32 to vector<8x1xf32>
    %691 = arith.minimumf %690, %689 : vector<8x1xf32>
    %692 = math.log1p %691 : vector<8x1xf32>
    %cst_221 = arith.constant 0.000000e+00 : f32
    %693 = vector.broadcast %cst_221 : f32 to vector<8x1xf32>
    %694 = arith.subf %693, %691 : vector<8x1xf32>
    %695 = math.log1p %694 : vector<8x1xf32>
    %696 = arith.subf %692, %695 : vector<8x1xf32>
    %cst_222 = arith.constant 5.000000e-01 : f32
    %697 = vector.broadcast %cst_222 : f32 to vector<8x1xf32>
    %698 = arith.mulf %697, %696 : vector<8x1xf32>
    %699 = arith.truncf %677 : vector<8x64xf32> to vector<8x64xbf16>
    %cst_223 = arith.constant dense<0.000000e+00> : vector<8x32xf32>
    %700 = tpu.matmul %699, %678, %cst_223 {dimension_numbers = #tpu.dot_dimension_numbers<[1], [0], [0], [1], [0, 0, 1, 1], [], []>} : vector<8x64xbf16>, vector<64x32xbf16>, vector<8x32xf32> -> vector<8x32xf32>
    %701 = arith.mulf %700, %700 : vector<8x32xf32>
    %cst_224 = arith.constant dense<0.000000e+00> : vector<8xf32>
    %702 = vector.multi_reduction <add>, %701, %cst_224 [1] : vector<8x32xf32> to vector<8xf32>
    %703 = vector.shape_cast %702 : vector<8xf32> to vector<8x1xf32>
    %cst_225 = arith.constant 0.000000e+00 : f32
    %704 = vector.broadcast %cst_225 : f32 to vector<8x1xf32>
    %705 = arith.maximumf %703, %704 : vector<8x1xf32>
    %706 = math.sqrt %705 : vector<8x1xf32>
    %cst_226 = arith.constant 1.000000e-07 : f32
    %707 = vector.broadcast %cst_226 : f32 to vector<8x1xf32>
    %708 = arith.maximumf %706, %707 : vector<8x1xf32>
    %709 = arith.divf %708, %687 : vector<8x1xf32>
    %710 = arith.mulf %709, %698 : vector<8x1xf32>
    %711 = math.tanh %710 : vector<8x1xf32>
    %712 = vector.broadcast %708 : vector<8x1xf32> to vector<8x32xf32>
    %713 = arith.divf %700, %712 : vector<8x32xf32>
    %714 = vector.broadcast %711 : vector<8x1xf32> to vector<8x32xf32>
    %715 = arith.mulf %714, %713 : vector<8x32xf32>
    %716 = vector.broadcast %679 : vector<1x32xf32> to vector<8x32xf32>
    %717 = arith.mulf %715, %716 : vector<8x32xf32>
    %cst_227 = arith.constant dense<0.000000e+00> : vector<8xf32>
    %718 = vector.multi_reduction <add>, %717, %cst_227 [1] : vector<8x32xf32> to vector<8xf32>
    %719 = vector.shape_cast %718 : vector<8xf32> to vector<8x1xf32>
    %720 = arith.mulf %715, %715 : vector<8x32xf32>
    %cst_228 = arith.constant dense<0.000000e+00> : vector<8xf32>
    %721 = vector.multi_reduction <add>, %720, %cst_228 [1] : vector<8x32xf32> to vector<8xf32>
    %722 = vector.shape_cast %721 : vector<8xf32> to vector<8x1xf32>
    %723 = arith.mulf %679, %679 : vector<1x32xf32>
    %cst_229 = arith.constant dense<0.000000e+00> : vector<1xf32>
    %724 = vector.multi_reduction <add>, %723, %cst_229 [1] : vector<1x32xf32> to vector<1xf32>
    %725 = vector.shape_cast %724 : vector<1xf32> to vector<1x1xf32>
    %cst_230 = arith.constant 2.000000e+00 : f32
    %726 = vector.broadcast %cst_230 : f32 to vector<8x1xf32>
    %727 = arith.mulf %726, %719 : vector<8x1xf32>
    %cst_231 = arith.constant 1.000000e+00 : f32
    %728 = vector.broadcast %cst_231 : f32 to vector<8x1xf32>
    %729 = arith.addf %728, %727 : vector<8x1xf32>
    %730 = vector.broadcast %725 : vector<1x1xf32> to vector<8x1xf32>
    %731 = arith.addf %729, %730 : vector<8x1xf32>
    %732 = vector.broadcast %731 : vector<8x1xf32> to vector<8x32xf32>
    %733 = arith.mulf %732, %715 : vector<8x32xf32>
    %cst_232 = arith.constant 1.000000e+00 : f32
    %734 = vector.broadcast %cst_232 : f32 to vector<8x1xf32>
    %735 = arith.subf %734, %722 : vector<8x1xf32>
    %736 = vector.broadcast %735 : vector<8x1xf32> to vector<8x32xf32>
    %737 = vector.broadcast %679 : vector<1x32xf32> to vector<8x32xf32>
    %738 = arith.mulf %736, %737 : vector<8x32xf32>
    %739 = arith.addf %733, %738 : vector<8x32xf32>
    %cst_233 = arith.constant 2.000000e+00 : f32
    %740 = vector.broadcast %cst_233 : f32 to vector<8x1xf32>
    %741 = arith.mulf %740, %719 : vector<8x1xf32>
    %cst_234 = arith.constant 1.000000e+00 : f32
    %742 = vector.broadcast %cst_234 : f32 to vector<8x1xf32>
    %743 = arith.addf %742, %741 : vector<8x1xf32>
    %744 = vector.broadcast %725 : vector<1x1xf32> to vector<8x1xf32>
    %745 = arith.mulf %722, %744 : vector<8x1xf32>
    %746 = arith.addf %743, %745 : vector<8x1xf32>
    %cst_235 = arith.constant 1.000000e-07 : f32
    %747 = vector.broadcast %cst_235 : f32 to vector<8x1xf32>
    %748 = arith.maximumf %746, %747 : vector<8x1xf32>
    %749 = vector.broadcast %748 : vector<8x1xf32> to vector<8x32xf32>
    %750 = arith.divf %739, %749 : vector<8x32xf32>
    %751 = arith.mulf %750, %750 : vector<8x32xf32>
    %cst_236 = arith.constant dense<0.000000e+00> : vector<8xf32>
    %752 = vector.multi_reduction <add>, %751, %cst_236 [1] : vector<8x32xf32> to vector<8xf32>
    %753 = vector.shape_cast %752 : vector<8xf32> to vector<8x1xf32>
    %cst_237 = arith.constant 0.000000e+00 : f32
    %754 = vector.broadcast %cst_237 : f32 to vector<8x1xf32>
    %755 = arith.maximumf %753, %754 : vector<8x1xf32>
    %756 = math.sqrt %755 : vector<8x1xf32>
    %cst_238 = arith.constant 1.000000e-07 : f32
    %757 = vector.broadcast %cst_238 : f32 to vector<8x1xf32>
    %758 = arith.maximumf %756, %757 : vector<8x1xf32>
    %cst_239 = arith.constant 0.999989986 : f32
    %759 = vector.broadcast %cst_239 : f32 to vector<8x1xf32>
    %760 = arith.cmpf ogt, %758, %759 : vector<8x1xf32>
    %cst_240 = arith.constant 0.999989986 : f32
    %761 = vector.broadcast %cst_240 : f32 to vector<8x1xf32>
    %762 = arith.divf %761, %758 : vector<8x1xf32>
    %cst_241 = arith.constant 1.000000e+00 : f32
    %763 = vector.broadcast %cst_241 : f32 to vector<8x1xf32>
    %764 = arith.select %760, %762, %763 : vector<8x1xi1>, vector<8x1xf32>
    %765 = vector.broadcast %764 : vector<8x1xf32> to vector<8x32xf32>
    %766 = arith.mulf %750, %765 : vector<8x32xf32>
    %767 = arith.mulf %552, %766 : vector<8x32xf32>
    %cst_242 = arith.constant dense<0.000000e+00> : vector<8xf32>
    %768 = vector.multi_reduction <add>, %767, %cst_242 [1] : vector<8x32xf32> to vector<8xf32>
    %769 = vector.shape_cast %768 : vector<8xf32> to vector<8x1xf32>
    %770 = arith.mulf %552, %552 : vector<8x32xf32>
    %cst_243 = arith.constant dense<0.000000e+00> : vector<8xf32>
    %771 = vector.multi_reduction <add>, %770, %cst_243 [1] : vector<8x32xf32> to vector<8xf32>
    %772 = vector.shape_cast %771 : vector<8xf32> to vector<8x1xf32>
    %773 = arith.mulf %766, %766 : vector<8x32xf32>
    %cst_244 = arith.constant dense<0.000000e+00> : vector<8xf32>
    %774 = vector.multi_reduction <add>, %773, %cst_244 [1] : vector<8x32xf32> to vector<8xf32>
    %775 = vector.shape_cast %774 : vector<8xf32> to vector<8x1xf32>
    %cst_245 = arith.constant 2.000000e+00 : f32
    %776 = vector.broadcast %cst_245 : f32 to vector<8x1xf32>
    %777 = arith.mulf %776, %769 : vector<8x1xf32>
    %cst_246 = arith.constant 1.000000e+00 : f32
    %778 = vector.broadcast %cst_246 : f32 to vector<8x1xf32>
    %779 = arith.addf %778, %777 : vector<8x1xf32>
    %780 = arith.addf %779, %775 : vector<8x1xf32>
    %781 = vector.broadcast %780 : vector<8x1xf32> to vector<8x32xf32>
    %782 = arith.mulf %781, %552 : vector<8x32xf32>
    %cst_247 = arith.constant 1.000000e+00 : f32
    %783 = vector.broadcast %cst_247 : f32 to vector<8x1xf32>
    %784 = arith.subf %783, %772 : vector<8x1xf32>
    %785 = vector.broadcast %784 : vector<8x1xf32> to vector<8x32xf32>
    %786 = arith.mulf %785, %766 : vector<8x32xf32>
    %787 = arith.addf %782, %786 : vector<8x32xf32>
    %cst_248 = arith.constant 2.000000e+00 : f32
    %788 = vector.broadcast %cst_248 : f32 to vector<8x1xf32>
    %789 = arith.mulf %788, %769 : vector<8x1xf32>
    %cst_249 = arith.constant 1.000000e+00 : f32
    %790 = vector.broadcast %cst_249 : f32 to vector<8x1xf32>
    %791 = arith.addf %790, %789 : vector<8x1xf32>
    %792 = arith.mulf %772, %775 : vector<8x1xf32>
    %793 = arith.addf %791, %792 : vector<8x1xf32>
    %cst_250 = arith.constant 1.000000e-07 : f32
    %794 = vector.broadcast %cst_250 : f32 to vector<8x1xf32>
    %795 = arith.maximumf %793, %794 : vector<8x1xf32>
    %796 = vector.broadcast %795 : vector<8x1xf32> to vector<8x32xf32>
    %797 = arith.divf %787, %796 : vector<8x32xf32>
    %c0_251 = arith.constant 0 : index
    %c0_252 = arith.constant 0 : index
    %798 = vector.load %arg15[%c0_251, %c0_252] : memref<1x32xf32, #tpu.memory_space<vmem>>, vector<1x32xf32>
    %c0_253 = arith.constant 0 : index
    %c0_254 = arith.constant 0 : index
    %799 = vector.load %arg16[%c0_253, %c0_254] : memref<1x32xf32, #tpu.memory_space<vmem>>, vector<1x32xf32>
    %c0_255 = arith.constant 0 : index
    %c0_256 = arith.constant 0 : index
    %800 = vector.load %arg17[%c0_255, %c0_256] : memref<1x32xf32, #tpu.memory_space<vmem>>, vector<1x32xf32>
    %801 = arith.mulf %797, %797 : vector<8x32xf32>
    %cst_257 = arith.constant dense<0.000000e+00> : vector<8xf32>
    %802 = vector.multi_reduction <add>, %801, %cst_257 [1] : vector<8x32xf32> to vector<8xf32>
    %803 = vector.shape_cast %802 : vector<8xf32> to vector<8x1xf32>
    %cst_258 = arith.constant 0.000000e+00 : f32
    %804 = vector.broadcast %cst_258 : f32 to vector<8x1xf32>
    %805 = arith.maximumf %803, %804 : vector<8x1xf32>
    %806 = math.sqrt %805 : vector<8x1xf32>
    %cst_259 = arith.constant 1.000000e-07 : f32
    %807 = vector.broadcast %cst_259 : f32 to vector<8x1xf32>
    %808 = arith.maximumf %806, %807 : vector<8x1xf32>
    %cst_260 = arith.constant -0.999998986 : f32
    %cst_261 = arith.constant 0.999998986 : f32
    %809 = vector.broadcast %cst_260 : f32 to vector<8x1xf32>
    %810 = arith.maximumf %809, %808 : vector<8x1xf32>
    %811 = vector.broadcast %cst_261 : f32 to vector<8x1xf32>
    %812 = arith.minimumf %811, %810 : vector<8x1xf32>
    %813 = math.log1p %812 : vector<8x1xf32>
    %cst_262 = arith.constant 0.000000e+00 : f32
    %814 = vector.broadcast %cst_262 : f32 to vector<8x1xf32>
    %815 = arith.subf %814, %812 : vector<8x1xf32>
    %816 = math.log1p %815 : vector<8x1xf32>
    %817 = arith.subf %813, %816 : vector<8x1xf32>
    %cst_263 = arith.constant 5.000000e-01 : f32
    %818 = vector.broadcast %cst_263 : f32 to vector<8x1xf32>
    %819 = arith.mulf %818, %817 : vector<8x1xf32>
    %820 = arith.divf %819, %808 : vector<8x1xf32>
    %821 = vector.broadcast %820 : vector<8x1xf32> to vector<8x32xf32>
    %822 = arith.mulf %821, %797 : vector<8x32xf32>
    %cst_264 = arith.constant dense<0.000000e+00> : vector<8xf32>
    %823 = vector.multi_reduction <add>, %822, %cst_264 [1] : vector<8x32xf32> to vector<8xf32>
    %824 = vector.shape_cast %823 : vector<8xf32> to vector<8x1xf32>
    %cst_265 = arith.constant 3.200000e+01 : f32
    %825 = vector.broadcast %cst_265 : f32 to vector<8x1xf32>
    %826 = arith.divf %824, %825 : vector<8x1xf32>
    %827 = vector.broadcast %826 : vector<8x1xf32> to vector<8x32xf32>
    %828 = arith.subf %822, %827 : vector<8x32xf32>
    %829 = arith.mulf %828, %828 : vector<8x32xf32>
    %cst_266 = arith.constant dense<0.000000e+00> : vector<8xf32>
    %830 = vector.multi_reduction <add>, %829, %cst_266 [1] : vector<8x32xf32> to vector<8xf32>
    %831 = vector.shape_cast %830 : vector<8xf32> to vector<8x1xf32>
    %cst_267 = arith.constant 0.0322580636 : f32
    %832 = vector.broadcast %cst_267 : f32 to vector<8x1xf32>
    %833 = arith.mulf %831, %832 : vector<8x1xf32>
    %834 = math.sqrt %833 : vector<8x1xf32>
    %cst_268 = arith.constant 9.99999997E-7 : f32
    %835 = vector.broadcast %cst_268 : f32 to vector<8x1xf32>
    %836 = arith.addf %834, %835 : vector<8x1xf32>
    %837 = vector.broadcast %836 : vector<8x1xf32> to vector<8x32xf32>
    %838 = arith.divf %828, %837 : vector<8x32xf32>
    %839 = vector.broadcast %798 : vector<1x32xf32> to vector<8x32xf32>
    %840 = arith.mulf %839, %838 : vector<8x32xf32>
    %841 = vector.broadcast %799 : vector<1x32xf32> to vector<8x32xf32>
    %842 = arith.addf %840, %841 : vector<8x32xf32>
    %843 = arith.mulf %842, %842 : vector<8x32xf32>
    %cst_269 = arith.constant dense<0.000000e+00> : vector<8xf32>
    %844 = vector.multi_reduction <add>, %843, %cst_269 [1] : vector<8x32xf32> to vector<8xf32>
    %845 = vector.shape_cast %844 : vector<8xf32> to vector<8x1xf32>
    %cst_270 = arith.constant 0.000000e+00 : f32
    %846 = vector.broadcast %cst_270 : f32 to vector<8x1xf32>
    %847 = arith.maximumf %845, %846 : vector<8x1xf32>
    %848 = math.sqrt %847 : vector<8x1xf32>
    %cst_271 = arith.constant 1.000000e-07 : f32
    %849 = vector.broadcast %cst_271 : f32 to vector<8x1xf32>
    %850 = arith.maximumf %848, %849 : vector<8x1xf32>
    %851 = math.tanh %850 : vector<8x1xf32>
    %852 = arith.divf %851, %850 : vector<8x1xf32>
    %853 = vector.broadcast %852 : vector<8x1xf32> to vector<8x32xf32>
    %854 = arith.mulf %853, %842 : vector<8x32xf32>
    %855 = vector.broadcast %800 : vector<1x32xf32> to vector<8x32xf32>
    %856 = arith.mulf %854, %855 : vector<8x32xf32>
    %cst_272 = arith.constant dense<0.000000e+00> : vector<8xf32>
    %857 = vector.multi_reduction <add>, %856, %cst_272 [1] : vector<8x32xf32> to vector<8xf32>
    %858 = vector.shape_cast %857 : vector<8xf32> to vector<8x1xf32>
    %859 = arith.mulf %854, %854 : vector<8x32xf32>
    %cst_273 = arith.constant dense<0.000000e+00> : vector<8xf32>
    %860 = vector.multi_reduction <add>, %859, %cst_273 [1] : vector<8x32xf32> to vector<8xf32>
    %861 = vector.shape_cast %860 : vector<8xf32> to vector<8x1xf32>
    %862 = arith.mulf %800, %800 : vector<1x32xf32>
    %cst_274 = arith.constant dense<0.000000e+00> : vector<1xf32>
    %863 = vector.multi_reduction <add>, %862, %cst_274 [1] : vector<1x32xf32> to vector<1xf32>
    %864 = vector.shape_cast %863 : vector<1xf32> to vector<1x1xf32>
    %cst_275 = arith.constant 2.000000e+00 : f32
    %865 = vector.broadcast %cst_275 : f32 to vector<8x1xf32>
    %866 = arith.mulf %865, %858 : vector<8x1xf32>
    %cst_276 = arith.constant 1.000000e+00 : f32
    %867 = vector.broadcast %cst_276 : f32 to vector<8x1xf32>
    %868 = arith.addf %867, %866 : vector<8x1xf32>
    %869 = vector.broadcast %864 : vector<1x1xf32> to vector<8x1xf32>
    %870 = arith.addf %868, %869 : vector<8x1xf32>
    %871 = vector.broadcast %870 : vector<8x1xf32> to vector<8x32xf32>
    %872 = arith.mulf %871, %854 : vector<8x32xf32>
    %cst_277 = arith.constant 1.000000e+00 : f32
    %873 = vector.broadcast %cst_277 : f32 to vector<8x1xf32>
    %874 = arith.subf %873, %861 : vector<8x1xf32>
    %875 = vector.broadcast %874 : vector<8x1xf32> to vector<8x32xf32>
    %876 = vector.broadcast %800 : vector<1x32xf32> to vector<8x32xf32>
    %877 = arith.mulf %875, %876 : vector<8x32xf32>
    %878 = arith.addf %872, %877 : vector<8x32xf32>
    %cst_278 = arith.constant 2.000000e+00 : f32
    %879 = vector.broadcast %cst_278 : f32 to vector<8x1xf32>
    %880 = arith.mulf %879, %858 : vector<8x1xf32>
    %cst_279 = arith.constant 1.000000e+00 : f32
    %881 = vector.broadcast %cst_279 : f32 to vector<8x1xf32>
    %882 = arith.addf %881, %880 : vector<8x1xf32>
    %883 = vector.broadcast %864 : vector<1x1xf32> to vector<8x1xf32>
    %884 = arith.mulf %861, %883 : vector<8x1xf32>
    %885 = arith.addf %882, %884 : vector<8x1xf32>
    %cst_280 = arith.constant 1.000000e-07 : f32
    %886 = vector.broadcast %cst_280 : f32 to vector<8x1xf32>
    %887 = arith.maximumf %885, %886 : vector<8x1xf32>
    %888 = vector.broadcast %887 : vector<8x1xf32> to vector<8x32xf32>
    %889 = arith.divf %878, %888 : vector<8x32xf32>
    %890 = vector.shape_cast %889 : vector<8x32xf32> to vector<1x8x32xf32>
    %c0_281 = arith.constant 0 : index
    %c0_282 = arith.constant 0 : index
    %c0_283 = arith.constant 0 : index
    %891 = vector.load %arg18[%c0_281, %c0_282, %c0_283] : memref<1x8x32xf32, #tpu.memory_space<vmem>>, vector<1x8x32xf32>
    tpu.vector_store %arg18[%c0_281, %c0_282, %c0_283], %890 {strides = array<i32>} : memref<1x8x32xf32, #tpu.memory_space<vmem>>, vector<1x8x32xf32>,
    return
  }
  func.func @transform_0(%arg0: i32) -> (i32, i32, i32) {
    %c0_i32 = arith.constant 0 : i32
    %c0_i32_0 = arith.constant 0 : i32
    %c0_i32_1 = arith.constant 0 : i32
    return %arg0, %c0_i32, %c0_i32_0 : i32, i32, i32
  }
  func.func @transform_1(%arg0: i32) -> (i32, i32) {
    %c0_i32 = arith.constant 0 : i32
    %c0_i32_0 = arith.constant 0 : i32
    %c0_i32_1 = arith.constant 0 : i32
    return %c0_i32, %c0_i32_0 : i32, i32
  }
  func.func @transform_2(%arg0: i32) -> (i32, i32) {
    %c0_i32 = arith.constant 0 : i32
    %c0_i32_0 = arith.constant 0 : i32
    %c0_i32_1 = arith.constant 0 : i32
    return %c0_i32, %c0_i32_0 : i32, i32
  }
  func.func @transform_3(%arg0: i32) -> (i32, i32) {
    %c0_i32 = arith.constant 0 : i32
    %c0_i32_0 = arith.constant 0 : i32
    %c0_i32_1 = arith.constant 0 : i32
    return %c0_i32, %c0_i32_0 : i32, i32
  }
  func.func @transform_4(%arg0: i32) -> (i32, i32) {
    %c0_i32 = arith.constant 0 : i32
    %c0_i32_0 = arith.constant 0 : i32
    %c0_i32_1 = arith.constant 0 : i32
    return %c0_i32, %c0_i32_0 : i32, i32
  }
  func.func @transform_5(%arg0: i32) -> (i32, i32) {
    %c0_i32 = arith.constant 0 : i32
    %c0_i32_0 = arith.constant 0 : i32
    %c0_i32_1 = arith.constant 0 : i32
    return %c0_i32, %c0_i32_0 : i32, i32
  }
  func.func @transform_6(%arg0: i32) -> (i32, i32) {
    %c0_i32 = arith.constant 0 : i32
    %c0_i32_0 = arith.constant 0 : i32
    %c0_i32_1 = arith.constant 0 : i32
    return %c0_i32, %c0_i32_0 : i32, i32
  }
  func.func @transform_7(%arg0: i32) -> (i32, i32) {
    %c0_i32 = arith.constant 0 : i32
    %c0_i32_0 = arith.constant 0 : i32
    %c0_i32_1 = arith.constant 0 : i32
    return %c0_i32, %c0_i32_0 : i32, i32
  }
  func.func @transform_8(%arg0: i32) -> (i32, i32) {
    %c0_i32 = arith.constant 0 : i32
    %c0_i32_0 = arith.constant 0 : i32
    %c0_i32_1 = arith.constant 0 : i32
    return %c0_i32, %c0_i32_0 : i32, i32
  }
  func.func @transform_9(%arg0: i32) -> (i32, i32) {
    %c0_i32 = arith.constant 0 : i32
    %c0_i32_0 = arith.constant 0 : i32
    %c0_i32_1 = arith.constant 0 : i32
    return %c0_i32, %c0_i32_0 : i32, i32
  }
  func.func @transform_10(%arg0: i32) -> (i32, i32) {
    %c0_i32 = arith.constant 0 : i32
    %c0_i32_0 = arith.constant 0 : i32
    %c0_i32_1 = arith.constant 0 : i32
    return %c0_i32, %c0_i32_0 : i32, i32
  }
  func.func @transform_11(%arg0: i32) -> (i32, i32) {
    %c0_i32 = arith.constant 0 : i32
    %c0_i32_0 = arith.constant 0 : i32
    %c0_i32_1 = arith.constant 0 : i32
    return %c0_i32, %c0_i32_0 : i32, i32
  }
  func.func @transform_12(%arg0: i32) -> (i32, i32) {
    %c0_i32 = arith.constant 0 : i32
    %c0_i32_0 = arith.constant 0 : i32
    %c0_i32_1 = arith.constant 0 : i32
    return %c0_i32, %c0_i32_0 : i32, i32
  }
  func.func @transform_13(%arg0: i32) -> (i32, i32) {
    %c0_i32 = arith.constant 0 : i32
    %c0_i32_0 = arith.constant 0 : i32
    %c0_i32_1 = arith.constant 0 : i32
    return %c0_i32, %c0_i32_0 : i32, i32
  }
  func.func @transform_14(%arg0: i32) -> (i32, i32) {
    %c0_i32 = arith.constant 0 : i32
    %c0_i32_0 = arith.constant 0 : i32
    %c0_i32_1 = arith.constant 0 : i32
    return %c0_i32, %c0_i32_0 : i32, i32
  }
  func.func @transform_15(%arg0: i32) -> (i32, i32) {
    %c0_i32 = arith.constant 0 : i32
    %c0_i32_0 = arith.constant 0 : i32
    %c0_i32_1 = arith.constant 0 : i32
    return %c0_i32, %c0_i32_0 : i32, i32
  }
  func.func @transform_16(%arg0: i32) -> (i32, i32) {
    %c0_i32 = arith.constant 0 : i32
    %c0_i32_0 = arith.constant 0 : i32
    %c0_i32_1 = arith.constant 0 : i32
    return %c0_i32, %c0_i32_0 : i32, i32
  }
  func.func @transform_17(%arg0: i32) -> (i32, i32, i32) {
    %c0_i32 = arith.constant 0 : i32
    %c0_i32_0 = arith.constant 0 : i32
    %c0_i32_1 = arith.constant 0 : i32
    return %arg0, %c0_i32, %c0_i32_0 : i32, i32, i32
  }
  func.func @transform_18(%arg0: i32) -> (i32, i32, i32, i32) {
    %c0_i32 = arith.constant 0 : i32
    %c0_i32_0 = arith.constant 0 : i32
    %c0_i32_1 = arith.constant 0 : i32
    %c0_i32_2 = arith.constant 0 : i32
    return %arg0, %c0_i32, %c0_i32_0, %c0_i32_1 : i32, i32, i32, i32
  }
}

</mosaic_0001>

<llo_original>
// kernel: tpu_custom_call.1
$region0: #{tpu_custom_call.1}
  #allocation0 [shape = 'u32[]', space=smem, size = 0x4, offset = 0x4, fixed_abs, tag = 'smem constant byte address 0x4 - core index']
  #allocation1 [shape = 'u32[144,128]{1,0:T(1,128)}', space=vmem, size = 0x12000, scoped, tag = 'internal scratch']
  %s0 = inlined_call_operand.vmem [shape: f32[2,8,32], index: 0, kind: input, shape index: {}]
  %s1 = inlined_call_operand.vmem [shape: bf16[32,96], index: 1, kind: input, shape index: {}]
  %s2 = inlined_call_operand.hbm [shape: f32[1,32], index: 2, kind: input, shape index: {}]
  %s3 = inlined_call_operand.hbm [shape: f32[1,32], index: 3, kind: input, shape index: {}]
  %s4 = inlined_call_operand.hbm [shape: f32[1,32], index: 4, kind: input, shape index: {}]
  %s5 = inlined_call_operand.vmem [shape: bf16[32,32], index: 5, kind: input, shape index: {}]
  %s6 = inlined_call_operand.hbm [shape: f32[1,32], index: 6, kind: input, shape index: {}]
  %s7 = inlined_call_operand.hbm [shape: bf16[32,64], index: 7, kind: input, shape index: {}]
  %s8 = inlined_call_operand.hbm [shape: f32[1,64], index: 8, kind: input, shape index: {}]
  %s9 = inlined_call_operand.vmem [shape: bf16[64,32], index: 9, kind: input, shape index: {}]
  %s10 = inlined_call_operand.vmem [shape: f32[1,32], index: 10, kind: input, shape index: {}]
  %s11 = inlined_call_operand.vmem [shape: f32[1,32], index: 11, kind: input, shape index: {}]
  %s12 = inlined_call_operand.vmem [shape: f32[1,32], index: 12, kind: input, shape index: {}]
  %s13 = inlined_call_operand.vmem [shape: f32[1,32], index: 13, kind: input, shape index: {}]
  %s14 = inlined_call_operand.vmem [shape: f32[1,32], index: 14, kind: input, shape index: {}]
  %s15 = inlined_call_operand.vmem [shape: f32[1,32], index: 15, kind: input, shape index: {}]
  %s16 = inlined_call_operand.vmem [shape: f32[1,32], index: 16, kind: input, shape index: {}]
  %s17 = inlined_call_operand.hbm [shape: f32[2,8,32], index: 17, kind: output, shape index: {0}]
  %s18 = inlined_call_operand.hbm [shape: f32[2,4,8,8], index: 18, kind: output, shape index: {1}]
  %19 = xla_tuple %s17, %s18
  %s20 = sld [smem:[#allocation0]]
  $region133: #{tpu_custom_call.1} parent=0
    _
  %s22 = ssub.s32 1, %s20
  %s23 = scalar_select 0, %s22, %s20
  $region1: #{tpu_custom_call.1} parent=0
    #allocation2 [shape = 'u8[512]{0}', space=vmem, size = 0x400, scoped, tag = 'input window, operand 2, single buffered']
    #allocation3 [shape = 's32[2]{0}', space=sflag, size = 0x8, scoped, tag = 'scoped memory for tpu_custom_call.1']
    #allocation4 [shape = 's32[2]{0}', space=sflag, size = 0x8, scoped, tag = 'scoped memory for tpu_custom_call.1']
    #allocation5 [shape = 'u8[512]{0}', space=vmem, size = 0x400, scoped, tag = 'input window, operand 3, single buffered']
    #allocation6 [shape = 's32[1]{0}', space=sflag, size = 0x4, scoped, tag = 'scoped memory for tpu_custom_call.1']
    #allocation7 [shape = 'u8[512]{0}', space=vmem, size = 0x400, scoped, tag = 'input window, operand 4, single buffered']
    #allocation8 [shape = 'u8[512]{0}', space=vmem, size = 0x400, scoped, tag = 'input window, operand 6, single buffered']
    #allocation9 [shape = 's32[1]{0}', space=sflag, size = 0x4, scoped, tag = 'scoped memory for tpu_custom_call.1']
    #allocation10 [shape = 'u8[8192]{0}', space=vmem, size = 0x2000, scoped, tag = 'input window, operand 7, single buffered']
    #allocation11 [shape = 'u8[512]{0}', space=vmem, size = 0x400, scoped, tag = 'input window, operand 8, single buffered']
    #allocation12 [shape = 's32[1]{0}', space=sflag, size = 0x4, scoped, tag = 'scoped memory for tpu_custom_call.1']
    #allocation13 [shape = 'u8[8192]{0}', space=vmem, size = 0x2000, scoped, tag = 'output window, operand 0']
    #allocation14 [shape = 'u8[32768]{0}', space=vmem, size = 0x8000, scoped, tag = 'output window, operand 1']
    #allocation15 [shape = 's32[2]{0}', space=sflag, size = 0x8, scoped, tag = 'scoped memory for tpu_custom_call.1']
    %24 = vsyncpa [#allocation3], 0
    %25 = vsyncpa [#allocation6], 0
    %26 = vsyncpa [#allocation9], 0
    %27 = vsyncpa [#allocation12], 0
    %28 = vsyncpa [#allocation4], 0
    %s29 = scalar_lea.sflag [#allocation4], 1
    %30 = vsyncpa %s29, 0
    %31 = vsyncpa [#allocation15], 0
    %s32 = scalar_lea.sflag [#allocation15], 1
    %33 = vsyncpa %s32, 0
    loop: start=0, step=1, limit=4
    $region2: #{tpu_custom_call.1} parent=1 // loop_pre_header
      _
    $region3: #{tpu_custom_call.1} parent=1 // loop_header
      %s35 = sphi 0, %s39
      %p36 = scmp.ge.s32.totalorder %s35, 4
      %s45 = sphi 0, %s47
      %s48 = sphi 0, %s45
      %s49 = sphi 0, %s48
      %s65 = sphi 0, %s49
      %s69 = sphi 0, %s69
      %s71 = sphi 0, %s69
      %s72 = sphi 0, %s71
      %s86 = sphi 0, %s72
      %s90 = sphi 0, %s90
      %s92 = sphi 0, %s90
      %s93 = sphi 0, %s92
      %s107 = sphi 0, %s93
      %s111 = sphi 0, %s111
      %s113 = sphi 0, %s111
      %s114 = sphi 0, %s113
      %s128 = sphi 0, %s114
      %s132 = sphi 0, %s132
      %s134 = sphi 0, %s132
      %s135 = sphi 0, %s134
      %s149 = sphi 0, %s135
      %s153 = sphi 0, %s153
      %s155 = sphi 0, %s153
      %s156 = sphi 0, %s155
      %s170 = sphi 0, %s156
      %s174 = sphi 0, %s174
      %s176 = sphi 0, %s174
      %s177 = sphi 0, %s176
      %s191 = sphi 0, %s177
      %s195 = sphi 0, %s195
      %s197 = sphi 0, %s195
      %s198 = sphi 0, %s197
      %s212 = sphi 0, %s198
      %s216 = sphi 0, %s216
      %s218 = sphi 0, %s216
      %s219 = sphi 0, %s218
      %s233 = sphi 0, %s219
      %s237 = sphi 0, %s237
      %s239 = sphi 0, %s237
      %s240 = sphi 0, %s239
      %s254 = sphi 0, %s240
      %s258 = sphi 0, %s258
      %s260 = sphi 0, %s258
      %s261 = sphi 0, %s260
      %s275 = sphi 0, %s261
      %s279 = sphi 0, %s279
      %s281 = sphi 0, %s279
      %s282 = sphi 0, %s281
      %s296 = sphi 0, %s282
      %s300 = sphi 0, %s300
      %s302 = sphi 0, %s300
      %s303 = sphi 0, %s302
      %s317 = sphi 0, %s303
      %s321 = sphi 0, %s321
      %s323 = sphi 0, %s321
      %s324 = sphi 0, %s323
      %s338 = sphi 0, %s324
      %s342 = sphi 0, %s342
      %s344 = sphi 0, %s342
      %s345 = sphi 0, %s344
      %s359 = sphi 0, %s345
      %s363 = sphi 0, %s363
      %s365 = sphi 0, %s363
      %s366 = sphi 0, %s365
      %s380 = sphi 0, %s366
      %s384 = sphi 0, %s384
      %s386 = sphi 0, %s384
      %s387 = sphi 0, %s386
      %s401 = sphi 0, %s387
      %s407 = sphi 0, %s409
      %s410 = sphi 0, %s407
      %s411 = sphi 0, %s410
      %s427 = sphi 0, %s411
      %s433 = sphi 0, %s435
      %s436 = sphi 0, %s433
      %s437 = sphi 0, %s436
      %s453 = sphi 0, %s437
    $region4: #{tpu_custom_call.1} parent=1 // loop_header_branch
      %38 = sbr.rel (%p36) target = $region8
    $region5: #{tpu_custom_call.1} parent=1 // loop_body
      %s40 = ssub.s32 %s35, 1
      %s41 = ssub.s32 %s35, 2
      %s42 = sadd.s32 %s35, 1
      %s43 = ssub.s32 %s35, %s42
      %p44 = scmp.eq.s32.totalorder %s43, 0
      %s46 = sadd.s32 %s45, 1
      %s47 = scalar_select %p44, %s45, %s46
      %p50 = pneg %p44
      %p51 = scmp.eq.s32.totalorder %s35, 1
      %p52 = por %p50, %p51
      %p53 = scmp.ne.s32.totalorder %s45, %s48
      %p54 = scmp.eq.s32.totalorder %s35, 0
      %p55 = por %p53, %p54
      %p56 = scmp.ne.s32.totalorder %s45, %s48
      %p57 = scmp.eq.s32.totalorder %s40, 1
      %p58 = por %p56, %p57
      %p59 = scmp.ne.s32.totalorder %s48, %s49
      %p60 = scmp.eq.s32.totalorder %s40, 0
      %p61 = por %p59, %p60
      %p62 = scmp.ne.s32.totalorder %s48, %s49
      %p63 = scmp.eq.s32.totalorder %s41, 1
      %p64 = por %p62, %p63
      %p66 = scmp.ne.s32.totalorder %s49, %s65
      %p67 = scmp.eq.s32.totalorder %s41, 0
      %p68 = por %p66, %p67
      %s70 = sadd.s32 %s69, 1
      %p73 = scmp.eq.s32.totalorder %s35, 1
      %p74 = scmp.ne.s32.totalorder %s69, %s71
      %p75 = scmp.eq.s32.totalorder %s35, 0
      %p76 = por %p74, %p75
      %p77 = scmp.ne.s32.totalorder %s69, %s71
      %p78 = scmp.eq.s32.totalorder %s40, 1
      %p79 = por %p77, %p78
      %p80 = scmp.ne.s32.totalorder %s71, %s72
      %p81 = scmp.eq.s32.totalorder %s40, 0
      %p82 = por %p80, %p81
      %p83 = scmp.ne.s32.totalorder %s71, %s72
      %p84 = scmp.eq.s32.totalorder %s41, 1
      %p85 = por %p83, %p84
      %p87 = scmp.ne.s32.totalorder %s72, %s86
      %p88 = scmp.eq.s32.totalorder %s41, 0
      %p89 = por %p87, %p88
      %s91 = sadd.s32 %s90, 1
      %p94 = scmp.eq.s32.totalorder %s35, 1
      %p95 = scmp.ne.s32.totalorder %s90, %s92
      %p96 = scmp.eq.s32.totalorder %s35, 0
      %p97 = por %p95, %p96
      %p98 = scmp.ne.s32.totalorder %s90, %s92
      %p99 = scmp.eq.s32.totalorder %s40, 1
      %p100 = por %p98, %p99
      %p101 = scmp.ne.s32.totalorder %s92, %s93
      %p102 = scmp.eq.s32.totalorder %s40, 0
      %p103 = por %p101, %p102
      %p104 = scmp.ne.s32.totalorder %s92, %s93
      %p105 = scmp.eq.s32.totalorder %s41, 1
      %p106 = por %p104, %p105
      %p108 = scmp.ne.s32.totalorder %s93, %s107
      %p109 = scmp.eq.s32.totalorder %s41, 0
      %p110 = por %p108, %p109
      %s112 = sadd.s32 %s111, 1
      %p115 = scmp.eq.s32.totalorder %s35, 1
      %p116 = scmp.ne.s32.totalorder %s111, %s113
      %p117 = scmp.eq.s32.totalorder %s35, 0
      %p118 = por %p116, %p117
      %p119 = scmp.ne.s32.totalorder %s111, %s113
      %p120 = scmp.eq.s32.totalorder %s40, 1
      %p121 = por %p119, %p120
      %p122 = scmp.ne.s32.totalorder %s113, %s114
      %p123 = scmp.eq.s32.totalorder %s40, 0
      %p124 = por %p122, %p123
      %p125 = scmp.ne.s32.totalorder %s113, %s114
      %p126 = scmp.eq.s32.totalorder %s41, 1
      %p127 = por %p125, %p126
      %p129 = scmp.ne.s32.totalorder %s114, %s128
      %p130 = scmp.eq.s32.totalorder %s41, 0
      %p131 = por %p129, %p130
      %s133 = sadd.s32 %s132, 1
      %p136 = scmp.eq.s32.totalorder %s35, 1
      %p137 = scmp.ne.s32.totalorder %s132, %s134
      %p138 = scmp.eq.s32.totalorder %s35, 0
      %p139 = por %p137, %p138
      %p140 = scmp.ne.s32.totalorder %s132, %s134
      %p141 = scmp.eq.s32.totalorder %s40, 1
      %p142 = por %p140, %p141
      %p143 = scmp.ne.s32.totalorder %s134, %s135
      %p144 = scmp.eq.s32.totalorder %s40, 0
      %p145 = por %p143, %p144
      %p146 = scmp.ne.s32.totalorder %s134, %s135
      %p147 = scmp.eq.s32.totalorder %s41, 1
      %p148 = por %p146, %p147
      %p150 = scmp.ne.s32.totalorder %s135, %s149
      %p151 = scmp.eq.s32.totalorder %s41, 0
      %p152 = por %p150, %p151
      %s154 = sadd.s32 %s153, 1
      %p157 = scmp.eq.s32.totalorder %s35, 1
      %p158 = scmp.ne.s32.totalorder %s153, %s155
      %p159 = scmp.eq.s32.totalorder %s35, 0
      %p160 = por %p158, %p159
      %p161 = scmp.ne.s32.totalorder %s153, %s155
      %p162 = scmp.eq.s32.totalorder %s40, 1
      %p163 = por %p161, %p162
      %p164 = scmp.ne.s32.totalorder %s155, %s156
      %p165 = scmp.eq.s32.totalorder %s40, 0
      %p166 = por %p164, %p165
      %p167 = scmp.ne.s32.totalorder %s155, %s156
      %p168 = scmp.eq.s32.totalorder %s41, 1
      %p169 = por %p167, %p168
      %p171 = scmp.ne.s32.totalorder %s156, %s170
      %p172 = scmp.eq.s32.totalorder %s41, 0
      %p173 = por %p171, %p172
      %s175 = sadd.s32 %s174, 1
      %p178 = scmp.eq.s32.totalorder %s35, 1
      %p179 = scmp.ne.s32.totalorder %s174, %s176
      %p180 = scmp.eq.s32.totalorder %s35, 0
      %p181 = por %p179, %p180
      %p182 = scmp.ne.s32.totalorder %s174, %s176
      %p183 = scmp.eq.s32.totalorder %s40, 1
      %p184 = por %p182, %p183
      %p185 = scmp.ne.s32.totalorder %s176, %s177
      %p186 = scmp.eq.s32.totalorder %s40, 0
      %p187 = por %p185, %p186
      %p188 = scmp.ne.s32.totalorder %s176, %s177
      %p189 = scmp.eq.s32.totalorder %s41, 1
      %p190 = por %p188, %p189
      %p192 = scmp.ne.s32.totalorder %s177, %s191
      %p193 = scmp.eq.s32.totalorder %s41, 0
      %p194 = por %p192, %p193
      %s196 = sadd.s32 %s195, 1
      %p199 = scmp.eq.s32.totalorder %s35, 1
      %p200 = scmp.ne.s32.totalorder %s195, %s197
      %p201 = scmp.eq.s32.totalorder %s35, 0
      %p202 = por %p200, %p201
      %p203 = scmp.ne.s32.totalorder %s195, %s197
      %p204 = scmp.eq.s32.totalorder %s40, 1
      %p205 = por %p203, %p204
      %p206 = scmp.ne.s32.totalorder %s197, %s198
      %p207 = scmp.eq.s32.totalorder %s40, 0
      %p208 = por %p206, %p207
      %p209 = scmp.ne.s32.totalorder %s197, %s198
      %p210 = scmp.eq.s32.totalorder %s41, 1
      %p211 = por %p209, %p210
      %p213 = scmp.ne.s32.totalorder %s198, %s212
      %p214 = scmp.eq.s32.totalorder %s41, 0
      %p215 = por %p213, %p214
      %s217 = sadd.s32 %s216, 1
      %p220 = scmp.eq.s32.totalorder %s35, 1
      %p221 = scmp.ne.s32.totalorder %s216, %s218
      %p222 = scmp.eq.s32.totalorder %s35, 0
      %p223 = por %p221, %p222
      %p224 = scmp.ne.s32.totalorder %s216, %s218
      %p225 = scmp.eq.s32.totalorder %s40, 1
      %p226 = por %p224, %p225
      %p227 = scmp.ne.s32.totalorder %s218, %s219
      %p228 = scmp.eq.s32.totalorder %s40, 0
      %p229 = por %p227, %p228
      %p230 = scmp.ne.s32.totalorder %s218, %s219
      %p231 = scmp.eq.s32.totalorder %s41, 1
      %p232 = por %p230, %p231
      %p234 = scmp.ne.s32.totalorder %s219, %s233
      %p235 = scmp.eq.s32.totalorder %s41, 0
      %p236 = por %p234, %p235
      %s238 = sadd.s32 %s237, 1
      %p241 = scmp.eq.s32.totalorder %s35, 1
      %p242 = scmp.ne.s32.totalorder %s237, %s239
      %p243 = scmp.eq.s32.totalorder %s35, 0
      %p244 = por %p242, %p243
      %p245 = scmp.ne.s32.totalorder %s237, %s239
      %p246 = scmp.eq.s32.totalorder %s40, 1
      %p247 = por %p245, %p246
      %p248 = scmp.ne.s32.totalorder %s239, %s240
      %p249 = scmp.eq.s32.totalorder %s40, 0
      %p250 = por %p248, %p249
      %p251 = scmp.ne.s32.totalorder %s239, %s240
      %p252 = scmp.eq.s32.totalorder %s41, 1
      %p253 = por %p251, %p252
      %p255 = scmp.ne.s32.totalorder %s240, %s254
      %p256 = scmp.eq.s32.totalorder %s41, 0
      %p257 = por %p255, %p256
      %s259 = sadd.s32 %s258, 1
      %p262 = scmp.eq.s32.totalorder %s35, 1
      %p263 = scmp.ne.s32.totalorder %s258, %s260
      %p264 = scmp.eq.s32.totalorder %s35, 0
      %p265 = por %p263, %p264
      %p266 = scmp.ne.s32.totalorder %s258, %s260
      %p267 = scmp.eq.s32.totalorder %s40, 1
      %p268 = por %p266, %p267
      %p269 = scmp.ne.s32.totalorder %s260, %s261
      %p270 = scmp.eq.s32.totalorder %s40, 0
      %p271 = por %p269, %p270
      %p272 = scmp.ne.s32.totalorder %s260, %s261
      %p273 = scmp.eq.s32.totalorder %s41, 1
      %p274 = por %p272, %p273
      %p276 = scmp.ne.s32.totalorder %s261, %s275
      %p277 = scmp.eq.s32.totalorder %s41, 0
      %p278 = por %p276, %p277
      %s280 = sadd.s32 %s279, 1
      %p283 = scmp.eq.s32.totalorder %s35, 1
      %p284 = scmp.ne.s32.totalorder %s279, %s281
      %p285 = scmp.eq.s32.totalorder %s35, 0
      %p286 = por %p284, %p285
      %p287 = scmp.ne.s32.totalorder %s279, %s281
      %p288 = scmp.eq.s32.totalorder %s40, 1
      %p289 = por %p287, %p288
      %p290 = scmp.ne.s32.totalorder %s281, %s282
      %p291 = scmp.eq.s32.totalorder %s40, 0
      %p292 = por %p290, %p291
      %p293 = scmp.ne.s32.totalorder %s281, %s282
      %p294 = scmp.eq.s32.totalorder %s41, 1
      %p295 = por %p293, %p294
      %p297 = scmp.ne.s32.totalorder %s282, %s296
      %p298 = scmp.eq.s32.totalorder %s41, 0
      %p299 = por %p297, %p298
      %s301 = sadd.s32 %s300, 1
      %p304 = scmp.eq.s32.totalorder %s35, 1
      %p305 = scmp.ne.s32.totalorder %s300, %s302
      %p306 = scmp.eq.s32.totalorder %s35, 0
      %p307 = por %p305, %p306
      %p308 = scmp.ne.s32.totalorder %s300, %s302
      %p309 = scmp.eq.s32.totalorder %s40, 1
      %p310 = por %p308, %p309
      %p311 = scmp.ne.s32.totalorder %s302, %s303
      %p312 = scmp.eq.s32.totalorder %s40, 0
      %p313 = por %p311, %p312
      %p314 = scmp.ne.s32.totalorder %s302, %s303
      %p315 = scmp.eq.s32.totalorder %s41, 1
      %p316 = por %p314, %p315
      %p318 = scmp.ne.s32.totalorder %s303, %s317
      %p319 = scmp.eq.s32.totalorder %s41, 0
      %p320 = por %p318, %p319
      %s322 = sadd.s32 %s321, 1
      %p325 = scmp.eq.s32.totalorder %s35, 1
      %p326 = scmp.ne.s32.totalorder %s321, %s323
      %p327 = scmp.eq.s32.totalorder %s35, 0
      %p328 = por %p326, %p327
      %p329 = scmp.ne.s32.totalorder %s321, %s323
      %p330 = scmp.eq.s32.totalorder %s40, 1
      %p331 = por %p329, %p330
      %p332 = scmp.ne.s32.totalorder %s323, %s324
      %p333 = scmp.eq.s32.totalorder %s40, 0
      %p334 = por %p332, %p333
      %p335 = scmp.ne.s32.totalorder %s323, %s324
      %p336 = scmp.eq.s32.totalorder %s41, 1
      %p337 = por %p335, %p336
      %p339 = scmp.ne.s32.totalorder %s324, %s338
      %p340 = scmp.eq.s32.totalorder %s41, 0
      %p341 = por %p339, %p340
      %s343 = sadd.s32 %s342, 1
      %p346 = scmp.eq.s32.totalorder %s35, 1
      %p347 = scmp.ne.s32.totalorder %s342, %s344
      %p348 = scmp.eq.s32.totalorder %s35, 0
      %p349 = por %p347, %p348
      %p350 = scmp.ne.s32.totalorder %s342, %s344
      %p351 = scmp.eq.s32.totalorder %s40, 1
      %p352 = por %p350, %p351
      %p353 = scmp.ne.s32.totalorder %s344, %s345
      %p354 = scmp.eq.s32.totalorder %s40, 0
      %p355 = por %p353, %p354
      %p356 = scmp.ne.s32.totalorder %s344, %s345
      %p357 = scmp.eq.s32.totalorder %s41, 1
      %p358 = por %p356, %p357
      %p360 = scmp.ne.s32.totalorder %s345, %s359
      %p361 = scmp.eq.s32.totalorder %s41, 0
      %p362 = por %p360, %p361
      %s364 = sadd.s32 %s363, 1
      %p367 = scmp.eq.s32.totalorder %s35, 1
      %p368 = scmp.ne.s32.totalorder %s363, %s365
      %p369 = scmp.eq.s32.totalorder %s35, 0
      %p370 = por %p368, %p369
      %p371 = scmp.ne.s32.totalorder %s363, %s365
      %p372 = scmp.eq.s32.totalorder %s40, 1
      %p373 = por %p371, %p372
      %p374 = scmp.ne.s32.totalorder %s365, %s366
      %p375 = scmp.eq.s32.totalorder %s40, 0
      %p376 = por %p374, %p375
      %p377 = scmp.ne.s32.totalorder %s365, %s366
      %p378 = scmp.eq.s32.totalorder %s41, 1
      %p379 = por %p377, %p378
      %p381 = scmp.ne.s32.totalorder %s366, %s380
      %p382 = scmp.eq.s32.totalorder %s41, 0
      %p383 = por %p381, %p382
      %s385 = sadd.s32 %s384, 1
      %p388 = scmp.eq.s32.totalorder %s35, 1
      %p389 = scmp.ne.s32.totalorder %s384, %s386
      %p390 = scmp.eq.s32.totalorder %s35, 0
      %p391 = por %p389, %p390
      %p392 = scmp.ne.s32.totalorder %s384, %s386
      %p393 = scmp.eq.s32.totalorder %s40, 1
      %p394 = por %p392, %p393
      %p395 = scmp.ne.s32.totalorder %s386, %s387
      %p396 = scmp.eq.s32.totalorder %s40, 0
      %p397 = por %p395, %p396
      %p398 = scmp.ne.s32.totalorder %s386, %s387
      %p399 = scmp.eq.s32.totalorder %s41, 1
      %p400 = por %p398, %p399
      %p402 = scmp.ne.s32.totalorder %s387, %s401
      %p403 = scmp.eq.s32.totalorder %s41, 0
      %p404 = por %p402, %p403
      %s405 = ssub.s32 %s35, %s42
      %p406 = scmp.eq.s32.totalorder %s405, 0
      %s408 = sadd.s32 %s407, 1
      %s409 = scalar_select %p406, %s407, %s408
      %p412 = pneg %p406
      %p413 = scmp.eq.s32.totalorder %s35, 1
      %p414 = por %p412, %p413
      %p415 = scmp.ne.s32.totalorder %s407, %s410
      %p416 = scmp.eq.s32.totalorder %s35, 0
      %p417 = por %p415, %p416
      %p418 = scmp.ne.s32.totalorder %s407, %s410
      %p419 = scmp.eq.s32.totalorder %s40, 1
      %p420 = por %p418, %p419
      %p421 = scmp.ne.s32.totalorder %s410, %s411
      %p422 = scmp.eq.s32.totalorder %s40, 0
      %p423 = por %p421, %p422
      %p424 = scmp.ne.s32.totalorder %s410, %s411
      %p425 = scmp.eq.s32.totalorder %s41, 1
      %p426 = por %p424, %p425
      %p428 = scmp.ne.s32.totalorder %s411, %s427
      %p429 = scmp.eq.s32.totalorder %s41, 0
      %p430 = por %p428, %p429
      %s431 = ssub.s32 %s35, %s42
      %p432 = scmp.eq.s32.totalorder %s431, 0
      %s434 = sadd.s32 %s433, 1
      %s435 = scalar_select %p432, %s433, %s434
      %p438 = pneg %p432
      %p439 = scmp.eq.s32.totalorder %s35, 1
      %p440 = por %p438, %p439
      %p441 = scmp.ne.s32.totalorder %s433, %s436
      %p442 = scmp.eq.s32.totalorder %s35, 0
      %p443 = por %p441, %p442
      %p444 = scmp.ne.s32.totalorder %s433, %s436
      %p445 = scmp.eq.s32.totalorder %s40, 1
      %p446 = por %p444, %p445
      %p447 = scmp.ne.s32.totalorder %s436, %s437
      %p448 = scmp.eq.s32.totalorder %s40, 0
      %p449 = por %p447, %p448
      %p450 = scmp.ne.s32.totalorder %s436, %s437
      %p451 = scmp.eq.s32.totalorder %s41, 1
      %p452 = por %p450, %p451
      %p454 = scmp.ne.s32.totalorder %s437, %s453
      %p455 = scmp.eq.s32.totalorder %s41, 0
      %p456 = por %p454, %p455
      %p457 = scmp.le.s32.totalorder 1, %s35
      %p458 = scmp.lt.s32.totalorder %s35, 3
      %p459 = pnand %p457, %p458
      %p460 = pneg %p459
      // Predicated region
      $region9: #{tpu_custom_call.1} parent=5 // pred_check
        _
      $region10: #{tpu_custom_call.1} parent=5 // pred_check_branch
        %462 = sbr.rel (%p459) target = $region12
      $region11: #{tpu_custom_call.1} parent=5 // pred_region
        %s463 = ssub.s32 %s35, 1
        // Predicated region
        $region13: #{tpu_custom_call.1} parent=11 // pred_check
          %p464 = pneg %p82
        $region14: #{tpu_custom_call.1} parent=11 // pred_check_branch
          %466 = sbr.rel (%p464) target = $region16
        $region15: #{tpu_custom_call.1} parent=11 // pred_region
          _
        $region16: #{tpu_custom_call.1} parent=11 // pred_fallthru
          _
        // Predicated region
        $region17: #{tpu_custom_call.1} parent=11 // pred_check
          %p467 = pneg %p103
        $region18: #{tpu_custom_call.1} parent=11 // pred_check_branch
          %469 = sbr.rel (%p467) target = $region20
        $region19: #{tpu_custom_call.1} parent=11 // pred_region
          %s471 = ssub.s32 16, 16
          %472 = vsyncadd [#allocation3], %s471
          %s474 = sshll.u32 [#allocation2], 4
          %s475 = int_to_ptr.vmem [resolvable:$true] %s474
          %477 = dma.hbm_to_vmem [thread:$0]  %s2, 16, %s475, [#allocation3]
        $region20: #{tpu_custom_call.1} parent=11 // pred_fallthru
          _
        // Predicated region
        $region21: #{tpu_custom_call.1} parent=11 // pred_check
          %p478 = pneg %p124
        $region22: #{tpu_custom_call.1} parent=11 // pred_check_branch
          %480 = sbr.rel (%p478) target = $region24
        $region23: #{tpu_custom_call.1} parent=11 // pred_region
          %s482 = ssub.s32 16, 16
          %483 = vsyncadd [#allocation6], %s482
          %s485 = sshll.u32 [#allocation5], 4
          %s486 = int_to_ptr.vmem [resolvable:$true] %s485
          %488 = dma.hbm_to_vmem [thread:$0]  %s3, 16, %s486, [#allocation6]
        $region24: #{tpu_custom_call.1} parent=11 // pred_fallthru
          _
        // Predicated region
        $region25: #{tpu_custom_call.1} parent=11 // pred_check
          %p489 = pneg %p145
        $region26: #{tpu_custom_call.1} parent=11 // pred_check_branch
          %491 = sbr.rel (%p489) target = $region28
        $region27: #{tpu_custom_call.1} parent=11 // pred_region
          %s493 = ssub.s32 16, 16
          %494 = vsyncadd [#allocation6], %s493
          %s496 = sshll.u32 [#allocation7], 4
          %s497 = int_to_ptr.vmem [resolvable:$true] %s496
          %499 = dma.hbm_to_vmem [thread:$0]  %s4, 16, %s497, [#allocation6]
        $region28: #{tpu_custom_call.1} parent=11 // pred_fallthru
          _
        // Predicated region
        $region29: #{tpu_custom_call.1} parent=11 // pred_check
          %p500 = pneg %p166
        $region30: #{tpu_custom_call.1} parent=11 // pred_check_branch
          %502 = sbr.rel (%p500) target = $region32
        $region31: #{tpu_custom_call.1} parent=11 // pred_region
          _
        $region32: #{tpu_custom_call.1} parent=11 // pred_fallthru
          _
        // Predicated region
        $region33: #{tpu_custom_call.1} parent=11 // pred_check
          %p503 = pneg %p187
        $region34: #{tpu_custom_call.1} parent=11 // pred_check_branch
          %505 = sbr.rel (%p503) target = $region36
        $region35: #{tpu_custom_call.1} parent=11 // pred_region
          %s507 = ssub.s32 16, 16
          %508 = vsyncadd [#allocation9], %s507
          %s510 = sshll.u32 [#allocation8], 4
          %s511 = int_to_ptr.vmem [resolvable:$true] %s510
          %513 = dma.hbm_to_vmem [thread:$0]  %s6, 16, %s511, [#allocation9]
        $region36: #{tpu_custom_call.1} parent=11 // pred_fallthru
          _
        // Predicated region
        $region37: #{tpu_custom_call.1} parent=11 // pred_check
          %p514 = pneg %p208
        $region38: #{tpu_custom_call.1} parent=11 // pred_check_branch
          %516 = sbr.rel (%p514) target = $region40
        $region39: #{tpu_custom_call.1} parent=11 // pred_region
          %s518 = ssub.s32 256, 256
          %519 = vsyncadd [#allocation9], %s518
          %s520 = sshll.u32 [#allocation10], 4
          %s521 = int_to_ptr.vmem [resolvable:$true] %s520
          %526 = dma.hbm_to_vmem [thread:$0]  %s7, 256, %s521, [#allocation9], 64, 64, 4
        $region40: #{tpu_custom_call.1} parent=11 // pred_fallthru
          _
        // Predicated region
        $region41: #{tpu_custom_call.1} parent=11 // pred_check
          %p527 = pneg %p229
        $region42: #{tpu_custom_call.1} parent=11 // pred_check_branch
          %529 = sbr.rel (%p527) target = $region44
        $region43: #{tpu_custom_call.1} parent=11 // pred_region
          %s531 = ssub.s32 16, 16
          %532 = vsyncadd [#allocation12], %s531
          %s534 = sshll.u32 [#allocation11], 4
          %s535 = int_to_ptr.vmem [resolvable:$true] %s534
          %537 = dma.hbm_to_vmem [thread:$0]  %s8, 16, %s535, [#allocation12]
        $region44: #{tpu_custom_call.1} parent=11 // pred_fallthru
          _
        // Predicated region
        $region45: #{tpu_custom_call.1} parent=11 // pred_check
          %p538 = pneg %p250
        $region46: #{tpu_custom_call.1} parent=11 // pred_check_branch
          %540 = sbr.rel (%p538) target = $region48
        $region47: #{tpu_custom_call.1} parent=11 // pred_region
          _
        $region48: #{tpu_custom_call.1} parent=11 // pred_fallthru
          _
        // Predicated region
        $region49: #{tpu_custom_call.1} parent=11 // pred_check
          %p541 = pneg %p271
        $region50: #{tpu_custom_call.1} parent=11 // pred_check_branch
          %543 = sbr.rel (%p541) target = $region52
        $region51: #{tpu_custom_call.1} parent=11 // pred_region
          _
        $region52: #{tpu_custom_call.1} parent=11 // pred_fallthru
          _
        // Predicated region
        $region53: #{tpu_custom_call.1} parent=11 // pred_check
          %p544 = pneg %p292
        $region54: #{tpu_custom_call.1} parent=11 // pred_check_branch
          %546 = sbr.rel (%p544) target = $region56
        $region55: #{tpu_custom_call.1} parent=11 // pred_region
          _
        $region56: #{tpu_custom_call.1} parent=11 // pred_fallthru
          _
        // Predicated region
        $region57: #{tpu_custom_call.1} parent=11 // pred_check
          %p547 = pneg %p313
        $region58: #{tpu_custom_call.1} parent=11 // pred_check_branch
          %549 = sbr.rel (%p547) target = $region60
        $region59: #{tpu_custom_call.1} parent=11 // pred_region
          _
        $region60: #{tpu_custom_call.1} parent=11 // pred_fallthru
          _
        // Predicated region
        $region61: #{tpu_custom_call.1} parent=11 // pred_check
          %p550 = pneg %p334
        $region62: #{tpu_custom_call.1} parent=11 // pred_check_branch
          %552 = sbr.rel (%p550) target = $region64
        $region63: #{tpu_custom_call.1} parent=11 // pred_region
          _
        $region64: #{tpu_custom_call.1} parent=11 // pred_fallthru
          _
        // Predicated region
        $region65: #{tpu_custom_call.1} parent=11 // pred_check
          %p553 = pneg %p355
        $region66: #{tpu_custom_call.1} parent=11 // pred_check_branch
          %555 = sbr.rel (%p553) target = $region68
        $region67: #{tpu_custom_call.1} parent=11 // pred_region
          _
        $region68: #{tpu_custom_call.1} parent=11 // pred_fallthru
          _
        // Predicated region
        $region69: #{tpu_custom_call.1} parent=11 // pred_check
          %p556 = pneg %p376
        $region70: #{tpu_custom_call.1} parent=11 // pred_check_branch
          %558 = sbr.rel (%p556) target = $region72
        $region71: #{tpu_custom_call.1} parent=11 // pred_region
          _
        $region72: #{tpu_custom_call.1} parent=11 // pred_fallthru
          _
        // Predicated region
        $region73: #{tpu_custom_call.1} parent=11 // pred_check
          %p559 = pneg %p397
        $region74: #{tpu_custom_call.1} parent=11 // pred_check_branch
          %561 = sbr.rel (%p559) target = $region76
        $region75: #{tpu_custom_call.1} parent=11 // pred_region
          _
        $region76: #{tpu_custom_call.1} parent=11 // pred_fallthru
          _
      $region12: #{tpu_custom_call.1} parent=5 // pred_fallthru
        _
      %p562 = scmp.lt.s32.totalorder %s35, 2
      // Predicated region
      $region77: #{tpu_custom_call.1} parent=5 // pred_check
        %p563 = pneg %p562
      $region78: #{tpu_custom_call.1} parent=5 // pred_check_branch
        %565 = sbr.rel (%p563) target = $region80
      $region79: #{tpu_custom_call.1} parent=5 // pred_region
        // Predicated region
        $region81: #{tpu_custom_call.1} parent=79 // pred_check
          %p566 = pneg %p55
        $region82: #{tpu_custom_call.1} parent=79 // pred_check_branch
          %568 = sbr.rel (%p566) target = $region84
        $region83: #{tpu_custom_call.1} parent=79 // pred_region
          %p569 = scmp.lt.s32.totalorder %s35, 1
          %s570 = scalar_select %p569, %s35, 1
          %s571 = smul.addr %s570, 8
          %s572 = scalar_lea.vmem %s0, %s571
        $region84: #{tpu_custom_call.1} parent=79 // pred_fallthru
          _
      $region80: #{tpu_custom_call.1} parent=5 // pred_fallthru
        _
      %p573 = scmp.le.s32.totalorder 1, %s35
      %p574 = scmp.lt.s32.totalorder %s35, 3
      %p575 = pnand %p573, %p574
      %p576 = pneg %p575
      // Predicated region
      $region85: #{tpu_custom_call.1} parent=5 // pred_check
        _
      $region86: #{tpu_custom_call.1} parent=5 // pred_check_branch
        %578 = sbr.rel (%p575) target = $region88
      $region87: #{tpu_custom_call.1} parent=5 // pred_region
        %s579 = ssub.s32 %s35, 1
        // Predicated region
        $region89: #{tpu_custom_call.1} parent=87 // pred_check
          %p580 = pneg %p103
        $region90: #{tpu_custom_call.1} parent=87 // pred_check_branch
          %582 = sbr.rel (%p580) target = $region92
        $region91: #{tpu_custom_call.1} parent=87 // pred_region
          %583 = dma.done [#allocation3], 16
        $region92: #{tpu_custom_call.1} parent=87 // pred_fallthru
          _
        // Predicated region
        $region93: #{tpu_custom_call.1} parent=87 // pred_check
          %p584 = pneg %p124
        $region94: #{tpu_custom_call.1} parent=87 // pred_check_branch
          %586 = sbr.rel (%p584) target = $region96
        $region95: #{tpu_custom_call.1} parent=87 // pred_region
          %587 = dma.done [#allocation6], 16
        $region96: #{tpu_custom_call.1} parent=87 // pred_fallthru
          _
        // Predicated region
        $region97: #{tpu_custom_call.1} parent=87 // pred_check
          %p588 = pneg %p145
        $region98: #{tpu_custom_call.1} parent=87 // pred_check_branch
          %590 = sbr.rel (%p588) target = $region100
        $region99: #{tpu_custom_call.1} parent=87 // pred_region
          %591 = dma.done [#allocation6], 16
        $region100: #{tpu_custom_call.1} parent=87 // pred_fallthru
          _
        // Predicated region
        $region101: #{tpu_custom_call.1} parent=87 // pred_check
          %p592 = pneg %p187
        $region102: #{tpu_custom_call.1} parent=87 // pred_check_branch
          %594 = sbr.rel (%p592) target = $region104
        $region103: #{tpu_custom_call.1} parent=87 // pred_region
          %595 = dma.done [#allocation9], 16
        $region104: #{tpu_custom_call.1} parent=87 // pred_fallthru
          _
        // Predicated region
        $region105: #{tpu_custom_call.1} parent=87 // pred_check
          %p596 = pneg %p208
        $region106: #{tpu_custom_call.1} parent=87 // pred_check_branch
          %598 = sbr.rel (%p596) target = $region108
        $region107: #{tpu_custom_call.1} parent=87 // pred_region
          %599 = dma.done [#allocation9], 256
        $region108: #{tpu_custom_call.1} parent=87 // pred_fallthru
          _
        // Predicated region
        $region109: #{tpu_custom_call.1} parent=87 // pred_check
          %p600 = pneg %p229
        $region110: #{tpu_custom_call.1} parent=87 // pred_check_branch
          %602 = sbr.rel (%p600) target = $region112
        $region111: #{tpu_custom_call.1} parent=87 // pred_region
          %603 = dma.done [#allocation12], 16
        $region112: #{tpu_custom_call.1} parent=87 // pred_fallthru
          _
        %p604 = scmp.lt.s32.totalorder %s40, 1
        %s605 = scalar_select %p604, %s40, 1
        %s606 = smul.addr %s605, 8
        %s607 = scalar_lea.vmem %s0, %s606
        %p608 = pneg %p61
        %p609 = pneg %p58
        %p610 = pneg %p82
        %p611 = pneg %p79
        %p612 = pneg %p103
        %p613 = pneg %p100
        %p614 = pneg %p124
        %p615 = pneg %p121
        %p616 = pneg %p145
        %p617 = pneg %p142
        %p618 = pneg %p166
        %p619 = pneg %p163
        %p620 = pneg %p187
        %p621 = pneg %p184
        %p622 = pneg %p208
        %p623 = pneg %p205
        %p624 = pneg %p229
        %p625 = pneg %p226
        %p626 = pneg %p250
        %p627 = pneg %p247
        %p628 = pneg %p271
        %p629 = pneg %p268
        %p630 = pneg %p292
        %p631 = pneg %p289
        %p632 = pneg %p313
        %p633 = pneg %p310
        %p634 = pneg %p334
        %p635 = pneg %p331
        %p636 = pneg %p355
        %p637 = pneg %p352
        %p638 = pneg %p376
        %p639 = pneg %p373
        %p640 = pneg %p397
        %p641 = pneg %p394
        %p642 = pneg %p423
        %p643 = pneg %p420
        %s644 = sand.u32 %s410, 1
        %s645 = scalar_lea.sflag [#allocation4], %s644
        %s646 = sand.u32 %s410, 1
        %s647 = smul.addr %s646, 8
        %s648 = scalar_lea.vmem [#allocation13], %s647
        %p649 = pneg %p449
        %p650 = pneg %p446
        %s651 = sand.u32 %s436, 1
        %s652 = scalar_lea.sflag [#allocation15], %s651
        %s653 = sand.u32 %s436, 1
        %s654 = smul.addr %s653, 32
        %s655 = scalar_lea.vmem [#allocation14], %s654
        %p656 = scmp.lt.s32.totalorder %s40, 1
        %s657 = scalar_select %p656, %s40, 1
        %s658 = smul.addr %s657, 8
        %s659 = scalar_lea.vmem %s0, %s658
        %v661 = vld [vmem:[%s659] sm:$0xff]
        %v662 = vmul.f32 %v661, %v661
        %vm663 = vcmask 261120
        %v664 = vsel %vm663, %v662, 0.0
        %665 = vadd.xlane.f32.xlu0 %v664
        %v666 = vpop.xlane.xlu0 %665
        %v667 = vmax.f32 %v666, 0.0
        %v668 = vrsqrt.pop %v667
        %v669 = vmul.f32 %v667, %v668
        %vm670 = vcmp.eq.f32.partialorder %v667, inf
        %v671 = vsel %vm670, %v667, %v669
        %vm672 = vcmp.eq.f32.partialorder %v667, 0.0
        %v673 = vand.u32 %v667, 2147483648
        %v674 = vsel %vm672, %v673, %v671
        %v675 = vmax.f32 %v674, 1e-07
        %v676 = vmax.f32 %v675, -0.999999
        %v677 = vmin.f32 %v676, 0.999999
        %v678 = vadd.f32 %v677, 1.0
        %v679 = vlog2.pop %v678
        %v680 = vmul.f32 %v679, 0.6931472
        %v681 = vmul.f32 -0.5, %v677
        %v682 = vadd.f32 %v681, 1.0
        %v683 = vmul.f32 %v682, %v677
        %v684 = vand.u32 2147483647, %v677
        %vm685 = vcmp.lt.f32.partialorder %v684, 0.0004427343
        %v686 = vsel %vm685, %v683, %v680
        %v687 = vsub.f32 0.0, %v677
        %v688 = vadd.f32 %v687, 1.0
        %v689 = vlog2.pop %v688
        %v690 = vmul.f32 %v689, 0.6931472
        %v691 = vmul.f32 -0.5, %v687
        %v692 = vadd.f32 %v691, 1.0
        %v693 = vmul.f32 %v692, %v687
        %v694 = vand.u32 2147483647, %v687
        %vm695 = vcmp.lt.f32.partialorder %v694, 0.0004427343
        %v696 = vsel %vm695, %v693, %v690
        %v697 = vsub.f32 %v686, %v696
        %v698 = vmul.f32 %v697, 0.5
        %v699 = vld [vmem:[%s1] sm:$0xf]
        %v700 = vld [vmem:[%s1 + $0x4] sm:$0xf]
        %v701 = vld [vmem:[%s1 + $0x8] sm:$0xf]
        %v702 = vld [vmem:[%s1 + $0xc] sm:$0xf]
        %v703 = vpack.c.bf16 %v661, %v661
        %v708 = vunpack.c.l.b16 %v699
        %v709 = vunpack.c.l.b16 %v700
        %v710 = vunpack.c.l.b16 %v701
        %v711 = vunpack.c.l.b16 %v702
        %v712 = vpack.c.b16 %v709, %v708
        %v713 = vpack.c.b16 %v711, %v710
        %v717 = vsel %vm663, %v703, 0
        %719 = vmatprep.subr.bf16.mxu0 0
        %720 = vmatpush1.bf16.msra.mxu0 0
        %721 = vmatprep.subr.bf16.mxu0 0
        %722 = vmatpush1.bf16.msra.mxu0 0
        %723 = vmatprep.subr.bf16.mxu0 0
        %724 = vmatpush1.bf16.msra.mxu0 0
        %725 = vmatprep.subr.bf16.mxu0 0
        %726 = vmatpush1.bf16.msra.mxu0 0
        %727 = vmatprep.subr.bf16.mxu0 0
        %728 = vmatpush1.bf16.msra.mxu0 0
        %729 = vmatprep.subr.bf16.mxu0 0
        %730 = vmatpush1.bf16.msra.mxu0 0
        %731 = vmatprep.subr.bf16.mxu0 0
        %732 = vmatpush1.bf16.msra.mxu0 %v713
        %733 = vmatprep.subr.bf16.mxu0 0
        %734 = vmatpush1.bf16.msra.mxu0 %v712
        %735 = vmatprep.subr.bf16.mxu0 0
        %736 = vmatpush2.bf16.msra.mxu0 0
        %737 = vmatprep.subr.bf16.mxu0 0
        %738 = vmatpush2.bf16.msra.mxu0 0
        %739 = vmatprep.subr.bf16.mxu0 0
        %740 = vmatpush2.bf16.msra.mxu0 0
        %741 = vmatprep.subr.bf16.mxu0 0
        %742 = vmatpush2.bf16.msra.mxu0 0
        %743 = vmatprep.subr.bf16.mxu0 0
        %744 = vmatpush2.bf16.msra.mxu0 0
        %745 = vmatprep.subr.bf16.mxu0 0
        %746 = vmatpush2.bf16.msra.mxu0 0
        %747 = vmatprep.subr.bf16.mxu0 0
        %748 = vmatpush2.bf16.msra.mxu0 0
        %749 = vmatprep.subr.bf16.mxu0 0
        %750 = vmatpush2.bf16.msra.mxu0 0
        %751 = vmatprep.mubr.bf16.mxu0 0
        %752 = vmatmul.mubr.bf16.gmra.mxu0 %v717
        %v753 = vpop.f32.mrf.mxu0
        %v754 = vadd.f32 0.0, %v753
        %v755 = vpop.f32.mrf.mxu0
        %v756 = vpop.f32.mrf.mxu0
        %v757 = vpop.f32.mrf.mxu0
        %758 = vdwg.mxu0
        %v759 = vld [vmem:[#allocation2] sm:$0x1]
        %v760 = vmul.f32 %v754, %v754
        %v761 = vsel %vm663, %v760, 0.0
        %762 = vadd.xlane.f32.xlu0 %v761
        %v763 = vpop.xlane.xlu0 %762
        %v764 = vmax.f32 %v763, 0.0
        %v765 = vrsqrt.pop %v764
        %v766 = vmul.f32 %v764, %v765
        %vm767 = vcmp.eq.f32.partialorder %v764, inf
        %v768 = vsel %vm767, %v764, %v766
        %vm769 = vcmp.eq.f32.partialorder %v764, 0.0
        %v770 = vand.u32 %v764, 2147483648
        %v771 = vsel %vm769, %v770, %v768
        %v772 = vmax.f32 %v771, 1e-07
        %v773 = vrcp.pop %v675
        %v774 = vmul.f32 %v772, %v773
        %v775 = vmul.f32 %v774, %v698
        %v776 = vtanh.pop %v775
        %v777 = vrcp.pop %v772
        %v778 = vmul.f32 %v754, %v777
        %v779 = vmul.f32 %v776, %v778
        %v781 = vlaneseq
        %v782 = vshrl.u32 %v781, 7
        %v783 = vsub.s32 0, %v782
        %v784 = vrot.slane %v759, %v783
        %v786 = vmul.f32 %v779, %v784
        %v787 = vsel %vm663, %v786, 0.0
        %788 = vadd.xlane.f32.xlu0 %v787
        %v789 = vpop.xlane.xlu0 %788
        %v790 = vmul.f32 %v779, %v779
        %v791 = vsel %vm663, %v790, 0.0
        %792 = vadd.xlane.f32.xlu0 %v791
        %v793 = vpop.xlane.xlu0 %792
        %v794 = vmul.f32 %v759, %v759
        %vm795 = vcmask 253952
        %v796 = vsel %vm795, %v794, 0.0
        %797 = vadd.xlane.f32.xlu0 %v796
        %v798 = vpop.xlane.xlu0 %797
        %v799 = vmul.f32 %v789, 2.0
        %v800 = vadd.f32 %v799, 1.0
        %v801 = vlaneseq
        %v802 = vshrl.u32 %v801, 7
        %v803 = vsub.s32 0, %v802
        %v804 = vrot.slane %v798, %v803
        %v805 = vadd.f32 %v800, %v804
        %v806 = vmul.f32 %v805, %v779
        %v807 = vsub.f32 1.0, %v793
        %v808 = vmul.f32 %v807, %v784
        %v809 = vadd.f32 %v806, %v808
        %v810 = vmul.f32 %v793, %v804
        %v811 = vadd.f32 %v800, %v810
        %v812 = vmax.f32 %v811, 1e-07
        %v813 = vrcp.pop %v812
        %v814 = vmul.f32 %v809, %v813
        %v815 = vmul.f32 %v814, %v814
        %v816 = vsel %vm663, %v815, 0.0
        %817 = vadd.xlane.f32.xlu0 %v816
        %v818 = vpop.xlane.xlu0 %817
        %v819 = vmax.f32 %v818, 0.0
        %v820 = vrsqrt.pop %v819
        %v821 = vmul.f32 %v819, %v820
        %vm822 = vcmp.eq.f32.partialorder %v819, inf
        %v823 = vsel %vm822, %v819, %v821
        %vm824 = vcmp.eq.f32.partialorder %v819, 0.0
        %v825 = vand.u32 %v819, 2147483648
        %v826 = vsel %vm824, %v825, %v823
        %v827 = vmax.f32 %v826, 1e-07
        %vm828 = vcmp.gt.f32.partialorder %v827, 0.99999
        %v829 = vrcp.pop %v827
        %v830 = vmul.f32 0.99999, %v829
        %v831 = vsel %vm828, %v830, 1.0
        %v832 = vmul.f32 %v814, %v831
        %v833 = vld [vmem:[#allocation5] sm:$0x1]
        %835 = vrot.lane.b32.xlu0 %v760, 96
        %v836 = vpop.permute.xlu0 %835
        %v838 = vsel %vm663, %v836, 0.0
        %839 = vadd.xlane.f32.xlu0 %v838
        %v840 = vpop.xlane.xlu0 %839
        %v841 = vmax.f32 %v840, 0.0
        %v842 = vrsqrt.pop %v841
        %v843 = vmul.f32 %v841, %v842
        %vm844 = vcmp.eq.f32.partialorder %v841, inf
        %v845 = vsel %vm844, %v841, %v843
        %vm846 = vcmp.eq.f32.partialorder %v841, 0.0
        %v847 = vand.u32 %v841, 2147483648
        %v848 = vsel %vm846, %v847, %v845
        %v849 = vmax.f32 %v848, 1e-07
        %v850 = vmul.f32 %v849, %v773
        %v851 = vmul.f32 %v850, %v698
        %v852 = vtanh.pop %v851
        %v853 = vrcp.pop %v849
        %v854 = vmul.f32 %v754, %v853
        %v855 = vmul.f32 %v852, %v854
        %v857 = vlaneseq
        %v858 = vshrl.u32 %v857, 7
        %v859 = vsub.s32 0, %v858
        %v860 = vrot.slane %v833, %v859
        %862 = vrot.lane.b32.xlu0 %v860, 32
        %v863 = vpop.permute.xlu0 %862
        %v865 = vmul.f32 %v855, %v863
        %867 = vrot.lane.b32.xlu0 %v865, 96
        %v868 = vpop.permute.xlu0 %867
        %v870 = vsel %vm663, %v868, 0.0
        %871 = vadd.xlane.f32.xlu0 %v870
        %v872 = vpop.xlane.xlu0 %871
        %v873 = vmul.f32 %v855, %v855
        %875 = vrot.lane.b32.xlu0 %v873, 96
        %v876 = vpop.permute.xlu0 %875
        %v878 = vsel %vm663, %v876, 0.0
        %879 = vadd.xlane.f32.xlu0 %v878
        %v880 = vpop.xlane.xlu0 %879
        %v881 = vmul.f32 %v833, %v833
        %v882 = vsel %vm795, %v881, 0.0
        %883 = vadd.xlane.f32.xlu0 %v882
        %v884 = vpop.xlane.xlu0 %883
        %v885 = vmul.f32 %v872, 2.0
        %v886 = vadd.f32 %v885, 1.0
        %v887 = vlaneseq
        %v888 = vshrl.u32 %v887, 7
        %v889 = vsub.s32 0, %v888
        %v890 = vrot.slane %v884, %v889
        %v891 = vadd.f32 %v886, %v890
        %v892 = vmul.f32 %v891, %v855
        %v893 = vsub.f32 1.0, %v880
        %v894 = vmul.f32 %v893, %v860
        %896 = vrot.lane.b32.xlu0 %v894, 32
        %v897 = vpop.permute.xlu0 %896
        %v899 = vadd.f32 %v892, %v897
        %v900 = vmul.f32 %v880, %v890
        %v901 = vadd.f32 %v886, %v900
        %v902 = vmax.f32 %v901, 1e-07
        %v903 = vrcp.pop %v902
        %v904 = vmul.f32 %v899, %v903
        %v905 = vmul.f32 %v904, %v904
        %907 = vrot.lane.b32.xlu0 %v905, 96
        %v908 = vpop.permute.xlu0 %907
        %v910 = vsel %vm663, %v908, 0.0
        %911 = vadd.xlane.f32.xlu0 %v910
        %v912 = vpop.xlane.xlu0 %911
        %v913 = vmax.f32 %v912, 0.0
        %v914 = vrsqrt.pop %v913
        %v915 = vmul.f32 %v913, %v914
        %vm916 = vcmp.eq.f32.partialorder %v913, inf
        %v917 = vsel %vm916, %v913, %v915
        %vm918 = vcmp.eq.f32.partialorder %v913, 0.0
        %v919 = vand.u32 %v913, 2147483648
        %v920 = vsel %vm918, %v919, %v917
        %v921 = vmax.f32 %v920, 1e-07
        %vm922 = vcmp.gt.f32.partialorder %v921, 0.99999
        %v923 = vrcp.pop %v921
        %v924 = vmul.f32 0.99999, %v923
        %v925 = vsel %vm922, %v924, 1.0
        %v926 = vmul.f32 %v904, %v925
        %v927 = vld [vmem:[#allocation7] sm:$0x1]
        %928 = vrot.lane.b32.xlu0 %v760, 64
        %v929 = vpop.permute.xlu0 %928
        %v931 = vsel %vm663, %v929, 0.0
        %932 = vadd.xlane.f32.xlu0 %v931
        %v933 = vpop.xlane.xlu0 %932
        %v934 = vmax.f32 %v933, 0.0
        %v935 = vrsqrt.pop %v934
        %v936 = vmul.f32 %v934, %v935
        %vm937 = vcmp.eq.f32.partialorder %v934, inf
        %v938 = vsel %vm937, %v934, %v936
        %vm939 = vcmp.eq.f32.partialorder %v934, 0.0
        %v940 = vand.u32 %v934, 2147483648
        %v941 = vsel %vm939, %v940, %v938
        %v942 = vmax.f32 %v941, 1e-07
        %v943 = vmul.f32 %v942, %v773
        %v944 = vmul.f32 %v943, %v698
        %v945 = vtanh.pop %v944
        %v946 = vrcp.pop %v942
        %v947 = vmul.f32 %v754, %v946
        %v948 = vmul.f32 %v945, %v947
        %v950 = vlaneseq
        %v951 = vshrl.u32 %v950, 7
        %v952 = vsub.s32 0, %v951
        %v953 = vrot.slane %v927, %v952
        %955 = vrot.lane.b32.xlu0 %v953, 64
        %v956 = vpop.permute.xlu0 %955
        %v958 = vmul.f32 %v948, %v956
        %960 = vrot.lane.b32.xlu0 %v958, 64
        %v961 = vpop.permute.xlu0 %960
        %v963 = vsel %vm663, %v961, 0.0
        %964 = vadd.xlane.f32.xlu0 %v963
        %v965 = vpop.xlane.xlu0 %964
        %v966 = vmul.f32 %v948, %v948
        %968 = vrot.lane.b32.xlu0 %v966, 64
        %v969 = vpop.permute.xlu0 %968
        %v971 = vsel %vm663, %v969, 0.0
        %972 = vadd.xlane.f32.xlu0 %v971
        %v973 = vpop.xlane.xlu0 %972
        %v974 = vmul.f32 %v927, %v927
        %v975 = vsel %vm795, %v974, 0.0
        %976 = vadd.xlane.f32.xlu0 %v975
        %v977 = vpop.xlane.xlu0 %976
        %v978 = vmul.f32 %v965, 2.0
        %v979 = vadd.f32 %v978, 1.0
        %v980 = vlaneseq
        %v981 = vshrl.u32 %v980, 7
        %v982 = vsub.s32 0, %v981
        %v983 = vrot.slane %v977, %v982
        %v984 = vadd.f32 %v979, %v983
        %v985 = vmul.f32 %v984, %v948
        %v986 = vsub.f32 1.0, %v973
        %v987 = vmul.f32 %v986, %v953
        %989 = vrot.lane.b32.xlu0 %v987, 64
        %v990 = vpop.permute.xlu0 %989
        %v992 = vadd.f32 %v985, %v990
        %v993 = vmul.f32 %v973, %v983
        %v994 = vadd.f32 %v979, %v993
        %v995 = vmax.f32 %v994, 1e-07
        %v996 = vrcp.pop %v995
        %v997 = vmul.f32 %v992, %v996
        %v998 = vmul.f32 %v997, %v997
        %1000 = vrot.lane.b32.xlu0 %v998, 64
        %v1001 = vpop.permute.xlu0 %1000
        %v1003 = vsel %vm663, %v1001, 0.0
        %1004 = vadd.xlane.f32.xlu0 %v1003
        %v1005 = vpop.xlane.xlu0 %1004
        %v1006 = vmax.f32 %v1005, 0.0
        %v1007 = vrsqrt.pop %v1006
        %v1008 = vmul.f32 %v1006, %v1007
        %vm1009 = vcmp.eq.f32.partialorder %v1006, inf
        %v1010 = vsel %vm1009, %v1006, %v1008
        %vm1011 = vcmp.eq.f32.partialorder %v1006, 0.0
        %v1012 = vand.u32 %v1006, 2147483648
        %v1013 = vsel %vm1011, %v1012, %v1010
        %v1014 = vmax.f32 %v1013, 1e-07
        %vm1015 = vcmp.gt.f32.partialorder %v1014, 0.99999
        %v1016 = vrcp.pop %v1014
        %v1017 = vmul.f32 0.99999, %v1016
        %v1018 = vsel %vm1015, %v1017, 1.0
        %v1019 = vmul.f32 %v997, %v1018
        %1020 = vxpose.xlu0.b32.start [1/16] %v832, 128
        %1021 = vxpose.xlu0.b32.cont [2/16] 0.0, 128
        %1022 = vxpose.xlu0.b32.cont [3/16] 0.0, 128
        %1023 = vxpose.xlu0.b32.cont [4/16] 0.0, 128
        %1024 = vxpose.xlu0.b32.cont [5/16] 0.0, 128
        %1025 = vxpose.xlu0.b32.cont [6/16] 0.0, 128
        %1026 = vxpose.xlu0.b32.cont [7/16] 0.0, 128
        %1027 = vxpose.xlu0.b32.cont [8/16] 0.0, 128
        %1028 = vxpose.xlu0.b32.cont [9/16] 0.0, 128
        %1029 = vxpose.xlu0.b32.cont [10/16] 0.0, 128
        %1030 = vxpose.xlu0.b32.cont [11/16] 0.0, 128
        %1031 = vxpose.xlu0.b32.cont [12/16] 0.0, 128
        %1032 = vxpose.xlu0.b32.cont [13/16] 0.0, 128
        %1033 = vxpose.xlu0.b32.cont [14/16] 0.0, 128
        %1034 = vxpose.xlu0.b32.cont [15/16] 0.0, 128
        %1035 = vxpose.xlu0.b32.end [16/16] 0.0, 128
        %v1036 = vpop.trf.xlu0
        %v1037 = vpop.trf.xlu0
        %v1038 = vpop.trf.xlu0
        %v1039 = vpop.trf.xlu0
        %v1040 = vpop.trf.xlu0
        %v1041 = vpop.trf.xlu0
        %v1042 = vpop.trf.xlu0
        %v1043 = vpop.trf.xlu0
        %v1044 = vpop.trf.xlu0
        %v1045 = vpop.trf.xlu0
        %v1046 = vpop.trf.xlu0
        %v1047 = vpop.trf.xlu0
        %v1048 = vpop.trf.xlu0
        %v1049 = vpop.trf.xlu0
        %v1050 = vpop.trf.xlu0
        %v1051 = vpop.trf.xlu0
        %1052 = vxpose.xlu0.b32.start [1/16] %v1036, 128
        %1053 = vxpose.xlu0.b32.cont [2/16] 0.0, 128
        %1054 = vxpose.xlu0.b32.cont [3/16] 0.0, 128
        %1055 = vxpose.xlu0.b32.cont [4/16] 0.0, 128
        %1056 = vxpose.xlu0.b32.cont [5/16] 0.0, 128
        %1057 = vxpose.xlu0.b32.cont [6/16] 0.0, 128
        %1058 = vxpose.xlu0.b32.cont [7/16] 0.0, 128
        %1059 = vxpose.xlu0.b32.cont [8/16] 0.0, 128
        %1060 = vxpose.xlu0.b32.cont [9/16] 0.0, 128
        %1061 = vxpose.xlu0.b32.cont [10/16] 0.0, 128
        %1062 = vxpose.xlu0.b32.cont [11/16] 0.0, 128
        %1063 = vxpose.xlu0.b32.cont [12/16] 0.0, 128
        %1064 = vxpose.xlu0.b32.cont [13/16] 0.0, 128
        %1065 = vxpose.xlu0.b32.cont [14/16] 0.0, 128
        %1066 = vxpose.xlu0.b32.cont [15/16] 0.0, 128
        %1067 = vxpose.xlu0.b32.end [16/16] 0.0, 128
        %v1068 = vpop.trf.xlu0
        %v1069 = vpop.trf.xlu0
        %v1070 = vpop.trf.xlu0
        %v1071 = vpop.trf.xlu0
        %v1072 = vpop.trf.xlu0
        %v1073 = vpop.trf.xlu0
        %v1074 = vpop.trf.xlu0
        %v1075 = vpop.trf.xlu0
        %v1076 = vpop.trf.xlu0
        %v1077 = vpop.trf.xlu0
        %v1078 = vpop.trf.xlu0
        %v1079 = vpop.trf.xlu0
        %v1080 = vpop.trf.xlu0
        %v1081 = vpop.trf.xlu0
        %v1082 = vpop.trf.xlu0
        %v1083 = vpop.trf.xlu0
        %1084 = vxpose.xlu0.b32.start [1/16] %v1037, 128
        %1085 = vxpose.xlu0.b32.cont [2/16] 0.0, 128
        %1086 = vxpose.xlu0.b32.cont [3/16] 0.0, 128
        %1087 = vxpose.xlu0.b32.cont [4/16] 0.0, 128
        %1088 = vxpose.xlu0.b32.cont [5/16] 0.0, 128
        %1089 = vxpose.xlu0.b32.cont [6/16] 0.0, 128
        %1090 = vxpose.xlu0.b32.cont [7/16] 0.0, 128
        %1091 = vxpose.xlu0.b32.cont [8/16] 0.0, 128
        %1092 = vxpose.xlu0.b32.cont [9/16] 0.0, 128
        %1093 = vxpose.xlu0.b32.cont [10/16] 0.0, 128
        %1094 = vxpose.xlu0.b32.cont [11/16] 0.0, 128
        %1095 = vxpose.xlu0.b32.cont [12/16] 0.0, 128
        %1096 = vxpose.xlu0.b32.cont [13/16] 0.0, 128
        %1097 = vxpose.xlu0.b32.cont [14/16] 0.0, 128
        %1098 = vxpose.xlu0.b32.cont [15/16] 0.0, 128
        %1099 = vxpose.xlu0.b32.end [16/16] 0.0, 128
        %v1100 = vpop.trf.xlu0
        %v1101 = vpop.trf.xlu0
        %v1102 = vpop.trf.xlu0
        %v1103 = vpop.trf.xlu0
        %v1104 = vpop.trf.xlu0
        %v1105 = vpop.trf.xlu0
        %v1106 = vpop.trf.xlu0
        %v1107 = vpop.trf.xlu0
        %v1108 = vpop.trf.xlu0
        %v1109 = vpop.trf.xlu0
        %v1110 = vpop.trf.xlu0
        %v1111 = vpop.trf.xlu0
        %v1112 = vpop.trf.xlu0
        %v1113 = vpop.trf.xlu0
        %v1114 = vpop.trf.xlu0
        %v1115 = vpop.trf.xlu0
        %1116 = vxpose.xlu0.b32.start [1/16] %v1038, 128
        %1117 = vxpose.xlu0.b32.cont [2/16] 0.0, 128
        %1118 = vxpose.xlu0.b32.cont [3/16] 0.0, 128
        %1119 = vxpose.xlu0.b32.cont [4/16] 0.0, 128
        %1120 = vxpose.xlu0.b32.cont [5/16] 0.0, 128
        %1121 = vxpose.xlu0.b32.cont [6/16] 0.0, 128
        %1122 = vxpose.xlu0.b32.cont [7/16] 0.0, 128
        %1123 = vxpose.xlu0.b32.cont [8/16] 0.0, 128
        %1124 = vxpose.xlu0.b32.cont [9/16] 0.0, 128
        %1125 = vxpose.xlu0.b32.cont [10/16] 0.0, 128
        %1126 = vxpose.xlu0.b32.cont [11/16] 0.0, 128
        %1127 = vxpose.xlu0.b32.cont [12/16] 0.0, 128
        %1128 = vxpose.xlu0.b32.cont [13/16] 0.0, 128
        %1129 = vxpose.xlu0.b32.cont [14/16] 0.0, 128
        %1130 = vxpose.xlu0.b32.cont [15/16] 0.0, 128
        %1131 = vxpose.xlu0.b32.end [16/16] 0.0, 128
        %v1132 = vpop.trf.xlu0
        %v1133 = vpop.trf.xlu0
        %v1134 = vpop.trf.xlu0
        %v1135 = vpop.trf.xlu0
        %v1136 = vpop.trf.xlu0
        %v1137 = vpop.trf.xlu0
        %v1138 = vpop.trf.xlu0
        %v1139 = vpop.trf.xlu0
        %v1140 = vpop.trf.xlu0
        %v1141 = vpop.trf.xlu0
        %v1142 = vpop.trf.xlu0
        %v1143 = vpop.trf.xlu0
        %v1144 = vpop.trf.xlu0
        %v1145 = vpop.trf.xlu0
        %v1146 = vpop.trf.xlu0
        %v1147 = vpop.trf.xlu0
        %1148 = vxpose.xlu0.b32.start [1/16] %v1039, 128
        %1149 = vxpose.xlu0.b32.cont [2/16] 0.0, 128
        %1150 = vxpose.xlu0.b32.cont [3/16] 0.0, 128
        %1151 = vxpose.xlu0.b32.cont [4/16] 0.0, 128
        %1152 = vxpose.xlu0.b32.cont [5/16] 0.0, 128
        %1153 = vxpose.xlu0.b32.cont [6/16] 0.0, 128
        %1154 = vxpose.xlu0.b32.cont [7/16] 0.0, 128
        %1155 = vxpose.xlu0.b32.cont [8/16] 0.0, 128
        %1156 = vxpose.xlu0.b32.cont [9/16] 0.0, 128
        %1157 = vxpose.xlu0.b32.cont [10/16] 0.0, 128
        %1158 = vxpose.xlu0.b32.cont [11/16] 0.0, 128
        %1159 = vxpose.xlu0.b32.cont [12/16] 0.0, 128
        %1160 = vxpose.xlu0.b32.cont [13/16] 0.0, 128
        %1161 = vxpose.xlu0.b32.cont [14/16] 0.0, 128
        %1162 = vxpose.xlu0.b32.cont [15/16] 0.0, 128
        %1163 = vxpose.xlu0.b32.end [16/16] 0.0, 128
        %v1164 = vpop.trf.xlu0
        %v1165 = vpop.trf.xlu0
        %v1166 = vpop.trf.xlu0
        %v1167 = vpop.trf.xlu0
        %v1168 = vpop.trf.xlu0
        %v1169 = vpop.trf.xlu0
        %v1170 = vpop.trf.xlu0
        %v1171 = vpop.trf.xlu0
        %v1172 = vpop.trf.xlu0
        %v1173 = vpop.trf.xlu0
        %v1174 = vpop.trf.xlu0
        %v1175 = vpop.trf.xlu0
        %v1176 = vpop.trf.xlu0
        %v1177 = vpop.trf.xlu0
        %v1178 = vpop.trf.xlu0
        %v1179 = vpop.trf.xlu0
        %1181 = vrot.lane.b32.xlu0 %v926, 96
        %v1182 = vpop.permute.xlu0 %1181
        %1184 = vxpose.xlu0.b32.start [1/16] %v1182, 128
        %1185 = vxpose.xlu0.b32.cont [2/16] 0.0, 128
        %1186 = vxpose.xlu0.b32.cont [3/16] 0.0, 128
        %1187 = vxpose.xlu0.b32.cont [4/16] 0.0, 128
        %1188 = vxpose.xlu0.b32.cont [5/16] 0.0, 128
        %1189 = vxpose.xlu0.b32.cont [6/16] 0.0, 128
        %1190 = vxpose.xlu0.b32.cont [7/16] 0.0, 128
        %1191 = vxpose.xlu0.b32.cont [8/16] 0.0, 128
        %1192 = vxpose.xlu0.b32.cont [9/16] 0.0, 128
        %1193 = vxpose.xlu0.b32.cont [10/16] 0.0, 128
        %1194 = vxpose.xlu0.b32.cont [11/16] 0.0, 128
        %1195 = vxpose.xlu0.b32.cont [12/16] 0.0, 128
        %1196 = vxpose.xlu0.b32.cont [13/16] 0.0, 128
        %1197 = vxpose.xlu0.b32.cont [14/16] 0.0, 128
        %1198 = vxpose.xlu0.b32.cont [15/16] 0.0, 128
        %1199 = vxpose.xlu0.b32.end [16/16] 0.0, 128
        %v1200 = vpop.trf.xlu0
        %v1201 = vpop.trf.xlu0
        %v1202 = vpop.trf.xlu0
        %v1203 = vpop.trf.xlu0
        %v1204 = vpop.trf.xlu0
        %v1205 = vpop.trf.xlu0
        %v1206 = vpop.trf.xlu0
        %v1207 = vpop.trf.xlu0
        %v1208 = vpop.trf.xlu0
        %v1209 = vpop.trf.xlu0
        %v1210 = vpop.trf.xlu0
        %v1211 = vpop.trf.xlu0
        %v1212 = vpop.trf.xlu0
        %v1213 = vpop.trf.xlu0
        %v1214 = vpop.trf.xlu0
        %v1215 = vpop.trf.xlu0
        %1216 = vxpose.xlu0.b32.start [1/16] %v1200, 128
        %1217 = vxpose.xlu0.b32.cont [2/16] 0.0, 128
        %1218 = vxpose.xlu0.b32.cont [3/16] 0.0, 128
        %1219 = vxpose.xlu0.b32.cont [4/16] 0.0, 128
        %1220 = vxpose.xlu0.b32.cont [5/16] 0.0, 128
        %1221 = vxpose.xlu0.b32.cont [6/16] 0.0, 128
        %1222 = vxpose.xlu0.b32.cont [7/16] 0.0, 128
        %1223 = vxpose.xlu0.b32.cont [8/16] 0.0, 128
        %1224 = vxpose.xlu0.b32.cont [9/16] 0.0, 128
        %1225 = vxpose.xlu0.b32.cont [10/16] 0.0, 128
        %1226 = vxpose.xlu0.b32.cont [11/16] 0.0, 128
        %1227 = vxpose.xlu0.b32.cont [12/16] 0.0, 128
        %1228 = vxpose.xlu0.b32.cont [13/16] 0.0, 128
        %1229 = vxpose.xlu0.b32.cont [14/16] 0.0, 128
        %1230 = vxpose.xlu0.b32.cont [15/16] 0.0, 128
        %1231 = vxpose.xlu0.b32.end [16/16] 0.0, 128
        %v1232 = vpop.trf.xlu0
        %v1233 = vpop.trf.xlu0
        %v1234 = vpop.trf.xlu0
        %v1235 = vpop.trf.xlu0
        %v1236 = vpop.trf.xlu0
        %v1237 = vpop.trf.xlu0
        %v1238 = vpop.trf.xlu0
        %v1239 = vpop.trf.xlu0
        %v1240 = vpop.trf.xlu0
        %v1241 = vpop.trf.xlu0
        %v1242 = vpop.trf.xlu0
        %v1243 = vpop.trf.xlu0
        %v1244 = vpop.trf.xlu0
        %v1245 = vpop.trf.xlu0
        %v1246 = vpop.trf.xlu0
        %v1247 = vpop.trf.xlu0
        %1248 = vxpose.xlu0.b32.start [1/16] %v1201, 128
        %1249 = vxpose.xlu0.b32.cont [2/16] 0.0, 128
        %1250 = vxpose.xlu0.b32.cont [3/16] 0.0, 128
        %1251 = vxpose.xlu0.b32.cont [4/16] 0.0, 128
        %1252 = vxpose.xlu0.b32.cont [5/16] 0.0, 128
        %1253 = vxpose.xlu0.b32.cont [6/16] 0.0, 128
        %1254 = vxpose.xlu0.b32.cont [7/16] 0.0, 128
        %1255 = vxpose.xlu0.b32.cont [8/16] 0.0, 128
        %1256 = vxpose.xlu0.b32.cont [9/16] 0.0, 128
        %1257 = vxpose.xlu0.b32.cont [10/16] 0.0, 128
        %1258 = vxpose.xlu0.b32.cont [11/16] 0.0, 128
        %1259 = vxpose.xlu0.b32.cont [12/16] 0.0, 128
        %1260 = vxpose.xlu0.b32.cont [13/16] 0.0, 128
        %1261 = vxpose.xlu0.b32.cont [14/16] 0.0, 128
        %1262 = vxpose.xlu0.b32.cont [15/16] 0.0, 128
        %1263 = vxpose.xlu0.b32.end [16/16] 0.0, 128
        %v1264 = vpop.trf.xlu0
        %v1265 = vpop.trf.xlu0
        %v1266 = vpop.trf.xlu0
        %v1267 = vpop.trf.xlu0
        %v1268 = vpop.trf.xlu0
        %v1269 = vpop.trf.xlu0
        %v1270 = vpop.trf.xlu0
        %v1271 = vpop.trf.xlu0
        %v1272 = vpop.trf.xlu0
        %v1273 = vpop.trf.xlu0
        %v1274 = vpop.trf.xlu0
        %v1275 = vpop.trf.xlu0
        %v1276 = vpop.trf.xlu0
        %v1277 = vpop.trf.xlu0
        %v1278 = vpop.trf.xlu0
        %v1279 = vpop.trf.xlu0
        %1280 = vxpose.xlu0.b32.start [1/16] %v1202, 128
        %1281 = vxpose.xlu0.b32.cont [2/16] 0.0, 128
        %1282 = vxpose.xlu0.b32.cont [3/16] 0.0, 128
        %1283 = vxpose.xlu0.b32.cont [4/16] 0.0, 128
        %1284 = vxpose.xlu0.b32.cont [5/16] 0.0, 128
        %1285 = vxpose.xlu0.b32.cont [6/16] 0.0, 128
        %1286 = vxpose.xlu0.b32.cont [7/16] 0.0, 128
        %1287 = vxpose.xlu0.b32.cont [8/16] 0.0, 128
        %1288 = vxpose.xlu0.b32.cont [9/16] 0.0, 128
        %1289 = vxpose.xlu0.b32.cont [10/16] 0.0, 128
        %1290 = vxpose.xlu0.b32.cont [11/16] 0.0, 128
        %1291 = vxpose.xlu0.b32.cont [12/16] 0.0, 128
        %1292 = vxpose.xlu0.b32.cont [13/16] 0.0, 128
        %1293 = vxpose.xlu0.b32.cont [14/16] 0.0, 128
        %1294 = vxpose.xlu0.b32.cont [15/16] 0.0, 128
        %1295 = vxpose.xlu0.b32.end [16/16] 0.0, 128
        %v1296 = vpop.trf.xlu0
        %v1297 = vpop.trf.xlu0
        %v1298 = vpop.trf.xlu0
        %v1299 = vpop.trf.xlu0
        %v1300 = vpop.trf.xlu0
        %v1301 = vpop.trf.xlu0
        %v1302 = vpop.trf.xlu0
        %v1303 = vpop.trf.xlu0
        %v1304 = vpop.trf.xlu0
        %v1305 = vpop.trf.xlu0
        %v1306 = vpop.trf.xlu0
        %v1307 = vpop.trf.xlu0
        %v1308 = vpop.trf.xlu0
        %v1309 = vpop.trf.xlu0
        %v1310 = vpop.trf.xlu0
        %v1311 = vpop.trf.xlu0
        %1312 = vxpose.xlu0.b32.start [1/16] %v1203, 128
        %1313 = vxpose.xlu0.b32.cont [2/16] 0.0, 128
        %1314 = vxpose.xlu0.b32.cont [3/16] 0.0, 128
        %1315 = vxpose.xlu0.b32.cont [4/16] 0.0, 128
        %1316 = vxpose.xlu0.b32.cont [5/16] 0.0, 128
        %1317 = vxpose.xlu0.b32.cont [6/16] 0.0, 128
        %1318 = vxpose.xlu0.b32.cont [7/16] 0.0, 128
        %1319 = vxpose.xlu0.b32.cont [8/16] 0.0, 128
        %1320 = vxpose.xlu0.b32.cont [9/16] 0.0, 128
        %1321 = vxpose.xlu0.b32.cont [10/16] 0.0, 128
        %1322 = vxpose.xlu0.b32.cont [11/16] 0.0, 128
        %1323 = vxpose.xlu0.b32.cont [12/16] 0.0, 128
        %1324 = vxpose.xlu0.b32.cont [13/16] 0.0, 128
        %1325 = vxpose.xlu0.b32.cont [14/16] 0.0, 128
        %1326 = vxpose.xlu0.b32.cont [15/16] 0.0, 128
        %1327 = vxpose.xlu0.b32.end [16/16] 0.0, 128
        %v1328 = vpop.trf.xlu0
        %v1329 = vpop.trf.xlu0
        %v1330 = vpop.trf.xlu0
        %v1331 = vpop.trf.xlu0
        %v1332 = vpop.trf.xlu0
        %v1333 = vpop.trf.xlu0
        %v1334 = vpop.trf.xlu0
        %v1335 = vpop.trf.xlu0
        %v1336 = vpop.trf.xlu0
        %v1337 = vpop.trf.xlu0
        %v1338 = vpop.trf.xlu0
        %v1339 = vpop.trf.xlu0
        %v1340 = vpop.trf.xlu0
        %v1341 = vpop.trf.xlu0
        %v1342 = vpop.trf.xlu0
        %v1343 = vpop.trf.xlu0
        %1345 = vrot.lane.b32.xlu0 %v1019, 64
        %v1346 = vpop.permute.xlu0 %1345
        %1348 = vxpose.xlu0.b32.start [1/16] %v1346, 128
        %1349 = vxpose.xlu0.b32.cont [2/16] 0.0, 128
        %1350 = vxpose.xlu0.b32.cont [3/16] 0.0, 128
        %1351 = vxpose.xlu0.b32.cont [4/16] 0.0, 128
        %1352 = vxpose.xlu0.b32.cont [5/16] 0.0, 128
        %1353 = vxpose.xlu0.b32.cont [6/16] 0.0, 128
        %1354 = vxpose.xlu0.b32.cont [7/16] 0.0, 128
        %1355 = vxpose.xlu0.b32.cont [8/16] 0.0, 128
        %1356 = vxpose.xlu0.b32.cont [9/16] 0.0, 128
        %1357 = vxpose.xlu0.b32.cont [10/16] 0.0, 128
        %1358 = vxpose.xlu0.b32.cont [11/16] 0.0, 128
        %1359 = vxpose.xlu0.b32.cont [12/16] 0.0, 128
        %1360 = vxpose.xlu0.b32.cont [13/16] 0.0, 128
        %1361 = vxpose.xlu0.b32.cont [14/16] 0.0, 128
        %1362 = vxpose.xlu0.b32.cont [15/16] 0.0, 128
        %1363 = vxpose.xlu0.b32.end [16/16] 0.0, 128
        %v1364 = vpop.trf.xlu0
        %v1365 = vpop.trf.xlu0
        %v1366 = vpop.trf.xlu0
        %v1367 = vpop.trf.xlu0
        %v1368 = vpop.trf.xlu0
        %v1369 = vpop.trf.xlu0
        %v1370 = vpop.trf.xlu0
        %v1371 = vpop.trf.xlu0
        %v1372 = vpop.trf.xlu0
        %v1373 = vpop.trf.xlu0
        %v1374 = vpop.trf.xlu0
        %v1375 = vpop.trf.xlu0
        %v1376 = vpop.trf.xlu0
        %v1377 = vpop.trf.xlu0
        %v1378 = vpop.trf.xlu0
        %v1379 = vpop.trf.xlu0
        %1380 = vxpose.xlu0.b32.start [1/16] %v1364, 128
        %1381 = vxpose.xlu0.b32.cont [2/16] 0.0, 128
        %1382 = vxpose.xlu0.b32.cont [3/16] 0.0, 128
        %1383 = vxpose.xlu0.b32.cont [4/16] 0.0, 128
        %1384 = vxpose.xlu0.b32.cont [5/16] 0.0, 128
        %1385 = vxpose.xlu0.b32.cont [6/16] 0.0, 128
        %1386 = vxpose.xlu0.b32.cont [7/16] 0.0, 128
        %1387 = vxpose.xlu0.b32.cont [8/16] 0.0, 128
        %1388 = vxpose.xlu0.b32.cont [9/16] 0.0, 128
        %1389 = vxpose.xlu0.b32.cont [10/16] 0.0, 128
        %1390 = vxpose.xlu0.b32.cont [11/16] 0.0, 128
        %1391 = vxpose.xlu0.b32.cont [12/16] 0.0, 128
        %1392 = vxpose.xlu0.b32.cont [13/16] 0.0, 128
        %1393 = vxpose.xlu0.b32.cont [14/16] 0.0, 128
        %1394 = vxpose.xlu0.b32.cont [15/16] 0.0, 128
        %1395 = vxpose.xlu0.b32.end [16/16] 0.0, 128
        %v1396 = vpop.trf.xlu0
        %v1397 = vpop.trf.xlu0
        %v1398 = vpop.trf.xlu0
        %v1399 = vpop.trf.xlu0
        %v1400 = vpop.trf.xlu0
        %v1401 = vpop.trf.xlu0
        %v1402 = vpop.trf.xlu0
        %v1403 = vpop.trf.xlu0
        %v1404 = vpop.trf.xlu0
        %v1405 = vpop.trf.xlu0
        %v1406 = vpop.trf.xlu0
        %v1407 = vpop.trf.xlu0
        %v1408 = vpop.trf.xlu0
        %v1409 = vpop.trf.xlu0
        %v1410 = vpop.trf.xlu0
        %v1411 = vpop.trf.xlu0
        %1412 = vxpose.xlu0.b32.start [1/16] %v1365, 128
        %1413 = vxpose.xlu0.b32.cont [2/16] 0.0, 128
        %1414 = vxpose.xlu0.b32.cont [3/16] 0.0, 128
        %1415 = vxpose.xlu0.b32.cont [4/16] 0.0, 128
        %1416 = vxpose.xlu0.b32.cont [5/16] 0.0, 128
        %1417 = vxpose.xlu0.b32.cont [6/16] 0.0, 128
        %1418 = vxpose.xlu0.b32.cont [7/16] 0.0, 128
        %1419 = vxpose.xlu0.b32.cont [8/16] 0.0, 128
        %1420 = vxpose.xlu0.b32.cont [9/16] 0.0, 128
        %1421 = vxpose.xlu0.b32.cont [10/16] 0.0, 128
        %1422 = vxpose.xlu0.b32.cont [11/16] 0.0, 128
        %1423 = vxpose.xlu0.b32.cont [12/16] 0.0, 128
        %1424 = vxpose.xlu0.b32.cont [13/16] 0.0, 128
        %1425 = vxpose.xlu0.b32.cont [14/16] 0.0, 128
        %1426 = vxpose.xlu0.b32.cont [15/16] 0.0, 128
        %1427 = vxpose.xlu0.b32.end [16/16] 0.0, 128
        %v1428 = vpop.trf.xlu0
        %v1429 = vpop.trf.xlu0
        %v1430 = vpop.trf.xlu0
        %v1431 = vpop.trf.xlu0
        %v1432 = vpop.trf.xlu0
        %v1433 = vpop.trf.xlu0
        %v1434 = vpop.trf.xlu0
        %v1435 = vpop.trf.xlu0
        %v1436 = vpop.trf.xlu0
        %v1437 = vpop.trf.xlu0
        %v1438 = vpop.trf.xlu0
        %v1439 = vpop.trf.xlu0
        %v1440 = vpop.trf.xlu0
        %v1441 = vpop.trf.xlu0
        %v1442 = vpop.trf.xlu0
        %v1443 = vpop.trf.xlu0
        %1444 = vxpose.xlu0.b32.start [1/16] %v1366, 128
        %1445 = vxpose.xlu0.b32.cont [2/16] 0.0, 128
        %1446 = vxpose.xlu0.b32.cont [3/16] 0.0, 128
        %1447 = vxpose.xlu0.b32.cont [4/16] 0.0, 128
        %1448 = vxpose.xlu0.b32.cont [5/16] 0.0, 128
        %1449 = vxpose.xlu0.b32.cont [6/16] 0.0, 128
        %1450 = vxpose.xlu0.b32.cont [7/16] 0.0, 128
        %1451 = vxpose.xlu0.b32.cont [8/16] 0.0, 128
        %1452 = vxpose.xlu0.b32.cont [9/16] 0.0, 128
        %1453 = vxpose.xlu0.b32.cont [10/16] 0.0, 128
        %1454 = vxpose.xlu0.b32.cont [11/16] 0.0, 128
        %1455 = vxpose.xlu0.b32.cont [12/16] 0.0, 128
        %1456 = vxpose.xlu0.b32.cont [13/16] 0.0, 128
        %1457 = vxpose.xlu0.b32.cont [14/16] 0.0, 128
        %1458 = vxpose.xlu0.b32.cont [15/16] 0.0, 128
        %1459 = vxpose.xlu0.b32.end [16/16] 0.0, 128
        %v1460 = vpop.trf.xlu0
        %v1461 = vpop.trf.xlu0
        %v1462 = vpop.trf.xlu0
        %v1463 = vpop.trf.xlu0
        %v1464 = vpop.trf.xlu0
        %v1465 = vpop.trf.xlu0
        %v1466 = vpop.trf.xlu0
        %v1467 = vpop.trf.xlu0
        %v1468 = vpop.trf.xlu0
        %v1469 = vpop.trf.xlu0
        %v1470 = vpop.trf.xlu0
        %v1471 = vpop.trf.xlu0
        %v1472 = vpop.trf.xlu0
        %v1473 = vpop.trf.xlu0
        %v1474 = vpop.trf.xlu0
        %v1475 = vpop.trf.xlu0
        %1476 = vxpose.xlu0.b32.start [1/16] %v1367, 128
        %1477 = vxpose.xlu0.b32.cont [2/16] 0.0, 128
        %1478 = vxpose.xlu0.b32.cont [3/16] 0.0, 128
        %1479 = vxpose.xlu0.b32.cont [4/16] 0.0, 128
        %1480 = vxpose.xlu0.b32.cont [5/16] 0.0, 128
        %1481 = vxpose.xlu0.b32.cont [6/16] 0.0, 128
        %1482 = vxpose.xlu0.b32.cont [7/16] 0.0, 128
        %1483 = vxpose.xlu0.b32.cont [8/16] 0.0, 128
        %1484 = vxpose.xlu0.b32.cont [9/16] 0.0, 128
        %1485 = vxpose.xlu0.b32.cont [10/16] 0.0, 128
        %1486 = vxpose.xlu0.b32.cont [11/16] 0.0, 128
        %1487 = vxpose.xlu0.b32.cont [12/16] 0.0, 128
        %1488 = vxpose.xlu0.b32.cont [13/16] 0.0, 128
        %1489 = vxpose.xlu0.b32.cont [14/16] 0.0, 128
        %1490 = vxpose.xlu0.b32.cont [15/16] 0.0, 128
        %1491 = vxpose.xlu0.b32.end [16/16] 0.0, 128
        %v1492 = vpop.trf.xlu0
        %v1493 = vpop.trf.xlu0
        %v1494 = vpop.trf.xlu0
        %v1495 = vpop.trf.xlu0
        %v1496 = vpop.trf.xlu0
        %v1497 = vpop.trf.xlu0
        %v1498 = vpop.trf.xlu0
        %v1499 = vpop.trf.xlu0
        %v1500 = vpop.trf.xlu0
        %v1501 = vpop.trf.xlu0
        %v1502 = vpop.trf.xlu0
        %v1503 = vpop.trf.xlu0
        %v1504 = vpop.trf.xlu0
        %v1505 = vpop.trf.xlu0
        %v1506 = vpop.trf.xlu0
        %v1507 = vpop.trf.xlu0
        %v1508 = vmul.f32 %v1068, %v1068
        %v1509 = vmul.f32 %v1100, %v1100
        %v1510 = vmul.f32 %v1132, %v1132
        %v1511 = vmul.f32 %v1164, %v1164
        %vm1512 = vcmask 64512
        %v1513 = vsel %vm1512, %v1508, 0.0
        %1514 = vadd.xlane.f32.xlu0 %v1513
        %v1515 = vpop.xlane.xlu0 %1514
        %v1516 = vsel %vm1512, %v1509, 0.0
        %1517 = vadd.xlane.f32.xlu0 %v1516
        %v1518 = vpop.xlane.xlu0 %1517
        %v1519 = vsel %vm1512, %v1510, 0.0
        %1520 = vadd.xlane.f32.xlu0 %v1519
        %v1521 = vpop.xlane.xlu0 %1520
        %v1522 = vsel %vm1512, %v1511, 0.0
        %1523 = vadd.xlane.f32.xlu0 %v1522
        %v1524 = vpop.xlane.xlu0 %1523
        %v1525 = vmul.f32 %v1232, %v1232
        %v1526 = vmul.f32 %v1264, %v1264
        %v1527 = vmul.f32 %v1296, %v1296
        %v1528 = vmul.f32 %v1328, %v1328
        %v1529 = vsel %vm1512, %v1525, 0.0
        %1530 = vadd.xlane.f32.xlu0 %v1529
        %v1531 = vpop.xlane.xlu0 %1530
        %v1532 = vsel %vm1512, %v1526, 0.0
        %1533 = vadd.xlane.f32.xlu0 %v1532
        %v1534 = vpop.xlane.xlu0 %1533
        %v1535 = vsel %vm1512, %v1527, 0.0
        %1536 = vadd.xlane.f32.xlu0 %v1535
        %v1537 = vpop.xlane.xlu0 %1536
        %v1538 = vsel %vm1512, %v1528, 0.0
        %1539 = vadd.xlane.f32.xlu0 %v1538
        %v1540 = vpop.xlane.xlu0 %1539
        %v1541 = vmul.f32 %v1396, %v1396
        %v1542 = vmul.f32 %v1428, %v1428
        %v1543 = vmul.f32 %v1460, %v1460
        %v1544 = vmul.f32 %v1492, %v1492
        %v1545 = vsel %vm1512, %v1541, 0.0
        %1546 = vadd.xlane.f32.xlu0 %v1545
        %v1547 = vpop.xlane.xlu0 %1546
        %v1548 = vsel %vm1512, %v1542, 0.0
        %1549 = vadd.xlane.f32.xlu0 %v1548
        %v1550 = vpop.xlane.xlu0 %1549
        %v1551 = vsel %vm1512, %v1543, 0.0
        %1552 = vadd.xlane.f32.xlu0 %v1551
        %v1553 = vpop.xlane.xlu0 %1552
        %v1554 = vsel %vm1512, %v1544, 0.0
        %1555 = vadd.xlane.f32.xlu0 %v1554
        %v1556 = vpop.xlane.xlu0 %1555
        %v1557 = vmax.f32 %v1547, 0.0
        %v1558 = vmax.f32 %v1550, 0.0
        %v1559 = vmax.f32 %v1553, 0.0
        %v1560 = vmax.f32 %v1556, 0.0
        %v1561 = vrsqrt.pop %v1557
        %v1562 = vmul.f32 %v1557, %v1561
        %vm1563 = vcmp.eq.f32.partialorder %v1557, inf
        %v1564 = vsel %vm1563, %v1557, %v1562
        %vm1565 = vcmp.eq.f32.partialorder %v1557, 0.0
        %v1566 = vand.u32 %v1557, 2147483648
        %v1567 = vsel %vm1565, %v1566, %v1564
        %v1568 = vrsqrt.pop %v1558
        %v1569 = vmul.f32 %v1558, %v1568
        %vm1570 = vcmp.eq.f32.partialorder %v1558, inf
        %v1571 = vsel %vm1570, %v1558, %v1569
        %vm1572 = vcmp.eq.f32.partialorder %v1558, 0.0
        %v1573 = vand.u32 %v1558, 2147483648
        %v1574 = vsel %vm1572, %v1573, %v1571
        %v1575 = vrsqrt.pop %v1559
        %v1576 = vmul.f32 %v1559, %v1575
        %vm1577 = vcmp.eq.f32.partialorder %v1559, inf
        %v1578 = vsel %vm1577, %v1559, %v1576
        %vm1579 = vcmp.eq.f32.partialorder %v1559, 0.0
        %v1580 = vand.u32 %v1559, 2147483648
        %v1581 = vsel %vm1579, %v1580, %v1578
        %v1582 = vrsqrt.pop %v1560
        %v1583 = vmul.f32 %v1560, %v1582
        %vm1584 = vcmp.eq.f32.partialorder %v1560, inf
        %v1585 = vsel %vm1584, %v1560, %v1583
        %vm1586 = vcmp.eq.f32.partialorder %v1560, 0.0
        %v1587 = vand.u32 %v1560, 2147483648
        %v1588 = vsel %vm1586, %v1587, %v1585
        %v1589 = vmax.f32 %v1567, 1e-07
        %v1590 = vmax.f32 %v1574, 1e-07
        %v1591 = vmax.f32 %v1581, 1e-07
        %v1592 = vmax.f32 %v1588, 1e-07
        %v1593 = vmax.f32 %v1589, -0.999999
        %v1594 = vmax.f32 %v1590, -0.999999
        %v1595 = vmax.f32 %v1591, -0.999999
        %v1596 = vmax.f32 %v1592, -0.999999
        %v1597 = vmin.f32 %v1593, 0.999999
        %v1598 = vmin.f32 %v1594, 0.999999
        %v1599 = vmin.f32 %v1595, 0.999999
        %v1600 = vmin.f32 %v1596, 0.999999
        %v1601 = vadd.f32 %v1597, 1.0
        %v1602 = vlog2.pop %v1601
        %v1603 = vmul.f32 %v1602, 0.6931472
        %v1604 = vmul.f32 -0.5, %v1597
        %v1605 = vadd.f32 %v1604, 1.0
        %v1606 = vmul.f32 %v1605, %v1597
        %v1607 = vand.u32 2147483647, %v1597
        %vm1608 = vcmp.lt.f32.partialorder %v1607, 0.0004427343
        %v1609 = vsel %vm1608, %v1606, %v1603
        %v1610 = vadd.f32 %v1598, 1.0
        %v1611 = vlog2.pop %v1610
        %v1612 = vmul.f32 %v1611, 0.6931472
        %v1613 = vmul.f32 -0.5, %v1598
        %v1614 = vadd.f32 %v1613, 1.0
        %v1615 = vmul.f32 %v1614, %v1598
        %v1616 = vand.u32 2147483647, %v1598
        %vm1617 = vcmp.lt.f32.partialorder %v1616, 0.0004427343
        %v1618 = vsel %vm1617, %v1615, %v1612
        %v1619 = vadd.f32 %v1599, 1.0
        %v1620 = vlog2.pop %v1619
        %v1621 = vmul.f32 %v1620, 0.6931472
        %v1622 = vmul.f32 -0.5, %v1599
        %v1623 = vadd.f32 %v1622, 1.0
        %v1624 = vmul.f32 %v1623, %v1599
        %v1625 = vand.u32 2147483647, %v1599
        %vm1626 = vcmp.lt.f32.partialorder %v1625, 0.0004427343
        %v1627 = vsel %vm1626, %v1624, %v1621
        %v1628 = vadd.f32 %v1600, 1.0
        %v1629 = vlog2.pop %v1628
        %v1630 = vmul.f32 %v1629, 0.6931472
        %v1631 = vmul.f32 -0.5, %v1600
        %v1632 = vadd.f32 %v1631, 1.0
        %v1633 = vmul.f32 %v1632, %v1600
        %v1634 = vand.u32 2147483647, %v1600
        %vm1635 = vcmp.lt.f32.partialorder %v1634, 0.0004427343
        %v1636 = vsel %vm1635, %v1633, %v1630
        %v1637 = vsub.f32 0.0, %v1597
        %v1638 = vsub.f32 0.0, %v1598
        %v1639 = vsub.f32 0.0, %v1599
        %v1640 = vsub.f32 0.0, %v1600
        %v1641 = vadd.f32 %v1637, 1.0
        %v1642 = vlog2.pop %v1641
        %v1643 = vmul.f32 %v1642, 0.6931472
        %v1644 = vmul.f32 -0.5, %v1637
        %v1645 = vadd.f32 %v1644, 1.0
        %v1646 = vmul.f32 %v1645, %v1637
        %v1647 = vand.u32 2147483647, %v1637
        %vm1648 = vcmp.lt.f32.partialorder %v1647, 0.0004427343
        %v1649 = vsel %vm1648, %v1646, %v1643
        %v1650 = vadd.f32 %v1638, 1.0
        %v1651 = vlog2.pop %v1650
        %v1652 = vmul.f32 %v1651, 0.6931472
        %v1653 = vmul.f32 -0.5, %v1638
        %v1654 = vadd.f32 %v1653, 1.0
        %v1655 = vmul.f32 %v1654, %v1638
        %v1656 = vand.u32 2147483647, %v1638
        %vm1657 = vcmp.lt.f32.partialorder %v1656, 0.0004427343
        %v1658 = vsel %vm1657, %v1655, %v1652
        %v1659 = vadd.f32 %v1639, 1.0
        %v1660 = vlog2.pop %v1659
        %v1661 = vmul.f32 %v1660, 0.6931472
        %v1662 = vmul.f32 -0.5, %v1639
        %v1663 = vadd.f32 %v1662, 1.0
        %v1664 = vmul.f32 %v1663, %v1639
        %v1665 = vand.u32 2147483647, %v1639
        %vm1666 = vcmp.lt.f32.partialorder %v1665, 0.0004427343
        %v1667 = vsel %vm1666, %v1664, %v1661
        %v1668 = vadd.f32 %v1640, 1.0
        %v1669 = vlog2.pop %v1668
        %v1670 = vmul.f32 %v1669, 0.6931472
        %v1671 = vmul.f32 -0.5, %v1640
        %v1672 = vadd.f32 %v1671, 1.0
        %v1673 = vmul.f32 %v1672, %v1640
        %v1674 = vand.u32 2147483647, %v1640
        %vm1675 = vcmp.lt.f32.partialorder %v1674, 0.0004427343
        %v1676 = vsel %vm1675, %v1673, %v1670
        %v1677 = vsub.f32 %v1609, %v1649
        %v1678 = vsub.f32 %v1618, %v1658
        %v1679 = vsub.f32 %v1627, %v1667
        %v1680 = vsub.f32 %v1636, %v1676
        %v1681 = vmul.f32 %v1677, 0.5
        %v1682 = vmul.f32 %v1678, 0.5
        %v1683 = vmul.f32 %v1679, 0.5
        %v1684 = vmul.f32 %v1680, 0.5
        %v1685 = vrcp.pop %v1589
        %v1686 = vmul.f32 %v1681, %v1685
        %v1687 = vrcp.pop %v1590
        %v1688 = vmul.f32 %v1682, %v1687
        %v1689 = vrcp.pop %v1591
        %v1690 = vmul.f32 %v1683, %v1689
        %v1691 = vrcp.pop %v1592
        %v1692 = vmul.f32 %v1684, %v1691
        %v1693 = vmul.f32 %v1686, %v1396
        %v1694 = vmul.f32 %v1688, %v1428
        %v1695 = vmul.f32 %v1690, %v1460
        %v1696 = vmul.f32 %v1692, %v1492
        %v1698 = vsel %vm1512, %v1068, 0
        %v1701 = vsel %vm1512, %v1232, 0
        %1703 = vmatprep.subr.mxu0 0.0
        %1704 = vmatpush1.xpose.msra.mxu0 0.0
        %1705 = vmatprep.subr.mxu0 0.0
        %1706 = vmatpush1.xpose.msra.mxu0 0.0
        %1707 = vmatprep.subr.mxu0 0.0
        %1708 = vmatpush1.xpose.msra.mxu0 0.0
        %1709 = vmatprep.subr.mxu0 0.0
        %1710 = vmatpush1.xpose.msra.mxu0 0.0
        %1711 = vmatprep.subr.mxu0 0.0
        %1712 = vmatpush1.xpose.msra.mxu0 0.0
        %1713 = vmatprep.subr.mxu0 0.0
        %1714 = vmatpush1.xpose.msra.mxu0 0.0
        %1715 = vmatprep.subr.mxu0 0.0
        %1716 = vmatpush1.xpose.msra.mxu0 0.0
        %1717 = vmatprep.subr.mxu0 0.0
        %1718 = vmatpush1.xpose.msra.mxu0 0.0
        %1719 = vmatprep.subr.mxu0 0.0
        %1720 = vmatpush1.xpose.msra.mxu0 0.0
        %1721 = vmatprep.subr.mxu0 0.0
        %1722 = vmatpush1.xpose.msra.mxu0 0.0
        %1723 = vmatprep.subr.mxu0 0.0
        %1724 = vmatpush1.xpose.msra.mxu0 0.0
        %1725 = vmatprep.subr.mxu0 0.0
        %1726 = vmatpush1.xpose.msra.mxu0 0.0
        %1727 = vmatprep.subr.mxu0 0.0
        %1728 = vmatpush1.xpose.msra.mxu0 0.0
        %1729 = vmatprep.subr.mxu0 0.0
        %1730 = vmatpush1.xpose.msra.mxu0 0.0
        %1731 = vmatprep.subr.mxu0 0.0
        %1732 = vmatpush1.xpose.msra.mxu0 0.0
        %1733 = vmatprep.subr.mxu0 0.0
        %1734 = vmatpush1.xpose.msra.mxu0 %v1701
        %1735 = vmatprep.subr.mxu0 0.0
        %1736 = vmatpush2.xpose.msra.mxu0 0.0
        %1737 = vmatprep.subr.mxu0 0.0
        %1738 = vmatpush2.xpose.msra.mxu0 0.0
        %1739 = vmatprep.subr.mxu0 0.0
        %1740 = vmatpush2.xpose.msra.mxu0 0.0
        %1741 = vmatprep.subr.mxu0 0.0
        %1742 = vmatpush2.xpose.msra.mxu0 0.0
        %1743 = vmatprep.subr.mxu0 0.0
        %1744 = vmatpush2.xpose.msra.mxu0 0.0
        %1745 = vmatprep.subr.mxu0 0.0
        %1746 = vmatpush2.xpose.msra.mxu0 0.0
        %1747 = vmatprep.subr.mxu0 0.0
        %1748 = vmatpush2.xpose.msra.mxu0 0.0
        %1749 = vmatprep.subr.mxu0 0.0
        %1750 = vmatpush2.xpose.msra.mxu0 0.0
        %1751 = vmatprep.subr.mxu0 0.0
        %1752 = vmatpush2.xpose.msra.mxu0 0.0
        %1753 = vmatprep.subr.mxu0 0.0
        %1754 = vmatpush2.xpose.msra.mxu0 0.0
        %1755 = vmatprep.subr.mxu0 0.0
        %1756 = vmatpush2.xpose.msra.mxu0 0.0
        %1757 = vmatprep.subr.mxu0 0.0
        %1758 = vmatpush2.xpose.msra.mxu0 0.0
        %1759 = vmatprep.subr.mxu0 0.0
        %1760 = vmatpush2.xpose.msra.mxu0 0.0
        %1761 = vmatprep.subr.mxu0 0.0
        %1762 = vmatpush2.xpose.msra.mxu0 0.0
        %1763 = vmatprep.subr.mxu0 0.0
        %1764 = vmatpush2.xpose.msra.mxu0 0.0
        %1765 = vmatprep.subr.mxu0 0.0
        %1766 = vmatpush2.xpose.msra.mxu0 0.0
        %1767 = vmatprep.mubr.f32.mxu0 0.0
        %1768 = vmatmul.mubr.f32.gmra.mxu0 %v1698
        %v1769 = vpop.f32.mrf.mxu0
        %v1770 = vadd.f32 0.0, %v1769
        %v1771 = vpop.f32.mrf.mxu0
        %1772 = vdwg.mxu0
        %v1774 = vsel %vm1512, %v1100, 0
        %v1777 = vsel %vm1512, %v1264, 0
        %1779 = vmatprep.subr.mxu0 0.0
        %1780 = vmatpush1.xpose.msra.mxu0 0.0
        %1781 = vmatprep.subr.mxu0 0.0
        %1782 = vmatpush1.xpose.msra.mxu0 0.0
        %1783 = vmatprep.subr.mxu0 0.0
        %1784 = vmatpush1.xpose.msra.mxu0 0.0
        %1785 = vmatprep.subr.mxu0 0.0
        %1786 = vmatpush1.xpose.msra.mxu0 0.0
        %1787 = vmatprep.subr.mxu0 0.0
        %1788 = vmatpush1.xpose.msra.mxu0 0.0
        %1789 = vmatprep.subr.mxu0 0.0
        %1790 = vmatpush1.xpose.msra.mxu0 0.0
        %1791 = vmatprep.subr.mxu0 0.0
        %1792 = vmatpush1.xpose.msra.mxu0 0.0
        %1793 = vmatprep.subr.mxu0 0.0
        %1794 = vmatpush1.xpose.msra.mxu0 0.0
        %1795 = vmatprep.subr.mxu0 0.0
        %1796 = vmatpush1.xpose.msra.mxu0 0.0
        %1797 = vmatprep.subr.mxu0 0.0
        %1798 = vmatpush1.xpose.msra.mxu0 0.0
        %1799 = vmatprep.subr.mxu0 0.0
        %1800 = vmatpush1.xpose.msra.mxu0 0.0
        %1801 = vmatprep.subr.mxu0 0.0
        %1802 = vmatpush1.xpose.msra.mxu0 0.0
        %1803 = vmatprep.subr.mxu0 0.0
        %1804 = vmatpush1.xpose.msra.mxu0 0.0
        %1805 = vmatprep.subr.mxu0 0.0
        %1806 = vmatpush1.xpose.msra.mxu0 0.0
        %1807 = vmatprep.subr.mxu0 0.0
        %1808 = vmatpush1.xpose.msra.mxu0 0.0
        %1809 = vmatprep.subr.mxu0 0.0
        %1810 = vmatpush1.xpose.msra.mxu0 %v1777
        %1811 = vmatprep.subr.mxu0 0.0
        %1812 = vmatpush2.xpose.msra.mxu0 0.0
        %1813 = vmatprep.subr.mxu0 0.0
        %1814 = vmatpush2.xpose.msra.mxu0 0.0
        %1815 = vmatprep.subr.mxu0 0.0
        %1816 = vmatpush2.xpose.msra.mxu0 0.0
        %1817 = vmatprep.subr.mxu0 0.0
        %1818 = vmatpush2.xpose.msra.mxu0 0.0
        %1819 = vmatprep.subr.mxu0 0.0
        %1820 = vmatpush2.xpose.msra.mxu0 0.0
        %1821 = vmatprep.subr.mxu0 0.0
        %1822 = vmatpush2.xpose.msra.mxu0 0.0
        %1823 = vmatprep.subr.mxu0 0.0
        %1824 = vmatpush2.xpose.msra.mxu0 0.0
        %1825 = vmatprep.subr.mxu0 0.0
        %1826 = vmatpush2.xpose.msra.mxu0 0.0
        %1827 = vmatprep.subr.mxu0 0.0
        %1828 = vmatpush2.xpose.msra.mxu0 0.0
        %1829 = vmatprep.subr.mxu0 0.0
        %1830 = vmatpush2.xpose.msra.mxu0 0.0
        %1831 = vmatprep.subr.mxu0 0.0
        %1832 = vmatpush2.xpose.msra.mxu0 0.0
        %1833 = vmatprep.subr.mxu0 0.0
        %1834 = vmatpush2.xpose.msra.mxu0 0.0
        %1835 = vmatprep.subr.mxu0 0.0
        %1836 = vmatpush2.xpose.msra.mxu0 0.0
        %1837 = vmatprep.subr.mxu0 0.0
        %1838 = vmatpush2.xpose.msra.mxu0 0.0
        %1839 = vmatprep.subr.mxu0 0.0
        %1840 = vmatpush2.xpose.msra.mxu0 0.0
        %1841 = vmatprep.subr.mxu0 0.0
        %1842 = vmatpush2.xpose.msra.mxu0 0.0
        %1843 = vmatprep.mubr.f32.mxu0 0.0
        %1844 = vmatmul.mubr.f32.gmra.mxu0 %v1774
        %v1845 = vpop.f32.mrf.mxu0
        %v1846 = vadd.f32 0.0, %v1845
        %v1847 = vpop.f32.mrf.mxu0
        %1848 = vdwg.mxu0
        %v1850 = vsel %vm1512, %v1132, 0
        %v1853 = vsel %vm1512, %v1296, 0
        %1855 = vmatprep.subr.mxu0 0.0
        %1856 = vmatpush1.xpose.msra.mxu0 0.0
        %1857 = vmatprep.subr.mxu0 0.0
        %1858 = vmatpush1.xpose.msra.mxu0 0.0
        %1859 = vmatprep.subr.mxu0 0.0
        %1860 = vmatpush1.xpose.msra.mxu0 0.0
        %1861 = vmatprep.subr.mxu0 0.0
        %1862 = vmatpush1.xpose.msra.mxu0 0.0
        %1863 = vmatprep.subr.mxu0 0.0
        %1864 = vmatpush1.xpose.msra.mxu0 0.0
        %1865 = vmatprep.subr.mxu0 0.0
        %1866 = vmatpush1.xpose.msra.mxu0 0.0
        %1867 = vmatprep.subr.mxu0 0.0
        %1868 = vmatpush1.xpose.msra.mxu0 0.0
        %1869 = vmatprep.subr.mxu0 0.0
        %1870 = vmatpush1.xpose.msra.mxu0 0.0
        %1871 = vmatprep.subr.mxu0 0.0
        %1872 = vmatpush1.xpose.msra.mxu0 0.0
        %1873 = vmatprep.subr.mxu0 0.0
        %1874 = vmatpush1.xpose.msra.mxu0 0.0
        %1875 = vmatprep.subr.mxu0 0.0
        %1876 = vmatpush1.xpose.msra.mxu0 0.0
        %1877 = vmatprep.subr.mxu0 0.0
        %1878 = vmatpush1.xpose.msra.mxu0 0.0
        %1879 = vmatprep.subr.mxu0 0.0
        %1880 = vmatpush1.xpose.msra.mxu0 0.0
        %1881 = vmatprep.subr.mxu0 0.0
        %1882 = vmatpush1.xpose.msra.mxu0 0.0
        %1883 = vmatprep.subr.mxu0 0.0
        %1884 = vmatpush1.xpose.msra.mxu0 0.0
        %1885 = vmatprep.subr.mxu0 0.0
        %1886 = vmatpush1.xpose.msra.mxu0 %v1853
        %1887 = vmatprep.subr.mxu0 0.0
        %1888 = vmatpush2.xpose.msra.mxu0 0.0
        %1889 = vmatprep.subr.mxu0 0.0
        %1890 = vmatpush2.xpose.msra.mxu0 0.0
        %1891 = vmatprep.subr.mxu0 0.0
        %1892 = vmatpush2.xpose.msra.mxu0 0.0
        %1893 = vmatprep.subr.mxu0 0.0
        %1894 = vmatpush2.xpose.msra.mxu0 0.0
        %1895 = vmatprep.subr.mxu0 0.0
        %1896 = vmatpush2.xpose.msra.mxu0 0.0
        %1897 = vmatprep.subr.mxu0 0.0
        %1898 = vmatpush2.xpose.msra.mxu0 0.0
        %1899 = vmatprep.subr.mxu0 0.0
        %1900 = vmatpush2.xpose.msra.mxu0 0.0
        %1901 = vmatprep.subr.mxu0 0.0
        %1902 = vmatpush2.xpose.msra.mxu0 0.0
        %1903 = vmatprep.subr.mxu0 0.0
        %1904 = vmatpush2.xpose.msra.mxu0 0.0
        %1905 = vmatprep.subr.mxu0 0.0
        %1906 = vmatpush2.xpose.msra.mxu0 0.0
        %1907 = vmatprep.subr.mxu0 0.0
        %1908 = vmatpush2.xpose.msra.mxu0 0.0
        %1909 = vmatprep.subr.mxu0 0.0
        %1910 = vmatpush2.xpose.msra.mxu0 0.0
        %1911 = vmatprep.subr.mxu0 0.0
        %1912 = vmatpush2.xpose.msra.mxu0 0.0
        %1913 = vmatprep.subr.mxu0 0.0
        %1914 = vmatpush2.xpose.msra.mxu0 0.0
        %1915 = vmatprep.subr.mxu0 0.0
        %1916 = vmatpush2.xpose.msra.mxu0 0.0
        %1917 = vmatprep.subr.mxu0 0.0
        %1918 = vmatpush2.xpose.msra.mxu0 0.0
        %1919 = vmatprep.mubr.f32.mxu0 0.0
        %1920 = vmatmul.mubr.f32.gmra.mxu0 %v1850
        %v1921 = vpop.f32.mrf.mxu0
        %v1922 = vadd.f32 0.0, %v1921
        %v1923 = vpop.f32.mrf.mxu0
        %1924 = vdwg.mxu0
        %v1926 = vsel %vm1512, %v1164, 0
        %v1929 = vsel %vm1512, %v1328, 0
        %1931 = vmatprep.subr.mxu0 0.0
        %1932 = vmatpush1.xpose.msra.mxu0 0.0
        %1933 = vmatprep.subr.mxu0 0.0
        %1934 = vmatpush1.xpose.msra.mxu0 0.0
        %1935 = vmatprep.subr.mxu0 0.0
        %1936 = vmatpush1.xpose.msra.mxu0 0.0
        %1937 = vmatprep.subr.mxu0 0.0
        %1938 = vmatpush1.xpose.msra.mxu0 0.0
        %1939 = vmatprep.subr.mxu0 0.0
        %1940 = vmatpush1.xpose.msra.mxu0 0.0
        %1941 = vmatprep.subr.mxu0 0.0
        %1942 = vmatpush1.xpose.msra.mxu0 0.0
        %1943 = vmatprep.subr.mxu0 0.0
        %1944 = vmatpush1.xpose.msra.mxu0 0.0
        %1945 = vmatprep.subr.mxu0 0.0
        %1946 = vmatpush1.xpose.msra.mxu0 0.0
        %1947 = vmatprep.subr.mxu0 0.0
        %1948 = vmatpush1.xpose.msra.mxu0 0.0
        %1949 = vmatprep.subr.mxu0 0.0
        %1950 = vmatpush1.xpose.msra.mxu0 0.0
        %1951 = vmatprep.subr.mxu0 0.0
        %1952 = vmatpush1.xpose.msra.mxu0 0.0
        %1953 = vmatprep.subr.mxu0 0.0
        %1954 = vmatpush1.xpose.msra.mxu0 0.0
        %1955 = vmatprep.subr.mxu0 0.0
        %1956 = vmatpush1.xpose.msra.mxu0 0.0
        %1957 = vmatprep.subr.mxu0 0.0
        %1958 = vmatpush1.xpose.msra.mxu0 0.0
        %1959 = vmatprep.subr.mxu0 0.0
        %1960 = vmatpush1.xpose.msra.mxu0 0.0
        %1961 = vmatprep.subr.mxu0 0.0
        %1962 = vmatpush1.xpose.msra.mxu0 %v1929
        %1963 = vmatprep.subr.mxu0 0.0
        %1964 = vmatpush2.xpose.msra.mxu0 0.0
        %1965 = vmatprep.subr.mxu0 0.0
        %1966 = vmatpush2.xpose.msra.mxu0 0.0
        %1967 = vmatprep.subr.mxu0 0.0
        %1968 = vmatpush2.xpose.msra.mxu0 0.0
        %1969 = vmatprep.subr.mxu0 0.0
        %1970 = vmatpush2.xpose.msra.mxu0 0.0
        %1971 = vmatprep.subr.mxu0 0.0
        %1972 = vmatpush2.xpose.msra.mxu0 0.0
        %1973 = vmatprep.subr.mxu0 0.0
        %1974 = vmatpush2.xpose.msra.mxu0 0.0
        %1975 = vmatprep.subr.mxu0 0.0
        %1976 = vmatpush2.xpose.msra.mxu0 0.0
        %1977 = vmatprep.subr.mxu0 0.0
        %1978 = vmatpush2.xpose.msra.mxu0 0.0
        %1979 = vmatprep.subr.mxu0 0.0
        %1980 = vmatpush2.xpose.msra.mxu0 0.0
        %1981 = vmatprep.subr.mxu0 0.0
        %1982 = vmatpush2.xpose.msra.mxu0 0.0
        %1983 = vmatprep.subr.mxu0 0.0
        %1984 = vmatpush2.xpose.msra.mxu0 0.0
        %1985 = vmatprep.subr.mxu0 0.0
        %1986 = vmatpush2.xpose.msra.mxu0 0.0
        %1987 = vmatprep.subr.mxu0 0.0
        %1988 = vmatpush2.xpose.msra.mxu0 0.0
        %1989 = vmatprep.subr.mxu0 0.0
        %1990 = vmatpush2.xpose.msra.mxu0 0.0
        %1991 = vmatprep.subr.mxu0 0.0
        %1992 = vmatpush2.xpose.msra.mxu0 0.0
        %1993 = vmatprep.subr.mxu0 0.0
        %1994 = vmatpush2.xpose.msra.mxu0 0.0
        %1995 = vmatprep.mubr.f32.mxu0 0.0
        %1996 = vmatmul.mubr.f32.gmra.mxu0 %v1926
        %v1997 = vpop.f32.mrf.mxu0
        %v1998 = vadd.f32 0.0, %v1997
        %v1999 = vpop.f32.mrf.mxu0
        %2000 = vdwg.mxu0
        %v2001 = vmul.f32 %v1770, 2.0
        %v2002 = vmul.f32 %v1846, 2.0
        %v2003 = vmul.f32 %v1922, 2.0
        %v2004 = vmul.f32 %v1998, 2.0
        %v2005 = vsub.f32 1.0, %v2001
        %v2006 = vsub.f32 1.0, %v2002
        %v2007 = vsub.f32 1.0, %v2003
        %v2008 = vsub.f32 1.0, %v2004
        %v2013 = vlaneseq
        %v2014 = vand.u32 %v2013, 127
        %v2015 = vlaneseq
        %v2016 = vshrl.u32 %v2015, 7
        %v2017 = vsub.s32 %v2014, %v2016
        %v2018 = vrot.slane %v1531, %v2017
        %v2019 = vlaneseq
        %v2020 = vshrl.u32 %v2019, 7
        %v2021 = vsub.s32 %v2014, %v2020
        %v2022 = vrot.slane %v1534, %v2021
        %v2023 = vlaneseq
        %v2024 = vshrl.u32 %v2023, 7
        %v2025 = vsub.s32 %v2014, %v2024
        %v2026 = vrot.slane %v1537, %v2025
        %v2027 = vlaneseq
        %v2028 = vshrl.u32 %v2027, 7
        %v2029 = vsub.s32 %v2014, %v2028
        %v2030 = vrot.slane %v1540, %v2029
        %vm2031 = vcmask 1042434
        %v2032 = vsel %vm2031, %v2018, %v2018
        %vm2033 = vcmask 1043459
        %v2034 = vsel %vm2033, %v2018, %v2032
        %vm2035 = vcmask 1044484
        %v2036 = vsel %vm2035, %v2018, %v2034
        %vm2037 = vcmask 1045509
        %v2038 = vsel %vm2037, %v2018, %v2036
        %vm2039 = vcmask 1046534
        %v2040 = vsel %vm2039, %v2018, %v2038
        %vm2041 = vcmask 1047559
        %v2042 = vsel %vm2041, %v2018, %v2040
        %v2043 = vsel %vm2031, %v2022, %v2022
        %v2044 = vsel %vm2033, %v2022, %v2043
        %v2045 = vsel %vm2035, %v2022, %v2044
        %v2046 = vsel %vm2037, %v2022, %v2045
        %v2047 = vsel %vm2039, %v2022, %v2046
        %v2048 = vsel %vm2041, %v2022, %v2047
        %v2049 = vsel %vm2031, %v2026, %v2026
        %v2050 = vsel %vm2033, %v2026, %v2049
        %v2051 = vsel %vm2035, %v2026, %v2050
        %v2052 = vsel %vm2037, %v2026, %v2051
        %v2053 = vsel %vm2039, %v2026, %v2052
        %v2054 = vsel %vm2041, %v2026, %v2053
        %v2055 = vsel %vm2031, %v2030, %v2030
        %v2056 = vsel %vm2033, %v2030, %v2055
        %v2057 = vsel %vm2035, %v2030, %v2056
        %v2058 = vsel %vm2037, %v2030, %v2057
        %v2059 = vsel %vm2039, %v2030, %v2058
        %v2060 = vsel %vm2041, %v2030, %v2059
        %v2065 = vadd.f32 %v2005, %v2042
        %v2066 = vadd.f32 %v2006, %v2048
        %v2067 = vadd.f32 %v2007, %v2054
        %v2068 = vadd.f32 %v2008, %v2060
        %v2069 = vsub.f32 1.0, %v1515
        %v2070 = vsub.f32 1.0, %v1518
        %v2071 = vsub.f32 1.0, %v1521
        %v2072 = vsub.f32 1.0, %v1524
        %v2073 = vmul.f32 %v2065, %v2065
        %v2074 = vmul.f32 %v2066, %v2066
        %v2075 = vmul.f32 %v2067, %v2067
        %v2076 = vmul.f32 %v2068, %v2068
        %v2077 = vmul.f32 %v2073, %v1515
        %v2078 = vmul.f32 %v2074, %v1518
        %v2079 = vmul.f32 %v2075, %v1521
        %v2080 = vmul.f32 %v2076, %v1524
        %v2081 = vmul.f32 %v2065, 2.0
        %v2082 = vmul.f32 %v2066, 2.0
        %v2083 = vmul.f32 %v2067, 2.0
        %v2084 = vmul.f32 %v2068, 2.0
        %v2085 = vmul.f32 %v2081, %v2069
        %v2086 = vmul.f32 %v2082, %v2070
        %v2087 = vmul.f32 %v2083, %v2071
        %v2088 = vmul.f32 %v2084, %v2072
        %v2089 = vmul.f32 %v2085, %v1770
        %v2090 = vmul.f32 %v2086, %v1846
        %v2091 = vmul.f32 %v2087, %v1922
        %v2092 = vmul.f32 %v2088, %v1998
        %v2093 = vsub.f32 %v2077, %v2089
        %v2094 = vsub.f32 %v2078, %v2090
        %v2095 = vsub.f32 %v2079, %v2091
        %v2096 = vsub.f32 %v2080, %v2092
        %v2097 = vmul.f32 %v2069, %v2069
        %v2098 = vmul.f32 %v2070, %v2070
        %v2099 = vmul.f32 %v2071, %v2071
        %v2100 = vmul.f32 %v2072, %v2072
        %v2101 = vmul.f32 %v2097, %v2042
        %v2102 = vmul.f32 %v2098, %v2048
        %v2103 = vmul.f32 %v2099, %v2054
        %v2104 = vmul.f32 %v2100, %v2060
        %v2105 = vadd.f32 %v2093, %v2101
        %v2106 = vadd.f32 %v2094, %v2102
        %v2107 = vadd.f32 %v2095, %v2103
        %v2108 = vadd.f32 %v2096, %v2104
        %v2109 = vmul.f32 %v1515, %v2042
        %v2110 = vmul.f32 %v1518, %v2048
        %v2111 = vmul.f32 %v1521, %v2054
        %v2112 = vmul.f32 %v1524, %v2060
        %v2113 = vadd.f32 %v2005, %v2109
        %v2114 = vadd.f32 %v2006, %v2110
        %v2115 = vadd.f32 %v2007, %v2111
        %v2116 = vadd.f32 %v2008, %v2112
        %v2117 = vmax.f32 %v2113, 1e-07
        %v2118 = vmax.f32 %v2114, 1e-07
        %v2119 = vmax.f32 %v2115, 1e-07
        %v2120 = vmax.f32 %v2116, 1e-07
        %v2121 = vmax.f32 %v2105, 0.0
        %v2122 = vmax.f32 %v2106, 0.0
        %v2123 = vmax.f32 %v2107, 0.0
        %v2124 = vmax.f32 %v2108, 0.0
        %v2125 = vrsqrt.pop %v2121
        %v2126 = vmul.f32 %v2121, %v2125
        %vm2127 = vcmp.eq.f32.partialorder %v2121, inf
        %v2128 = vsel %vm2127, %v2121, %v2126
        %vm2129 = vcmp.eq.f32.partialorder %v2121, 0.0
        %v2130 = vand.u32 %v2121, 2147483648
        %v2131 = vsel %vm2129, %v2130, %v2128
        %v2132 = vrsqrt.pop %v2122
        %v2133 = vmul.f32 %v2122, %v2132
        %vm2134 = vcmp.eq.f32.partialorder %v2122, inf
        %v2135 = vsel %vm2134, %v2122, %v2133
        %vm2136 = vcmp.eq.f32.partialorder %v2122, 0.0
        %v2137 = vand.u32 %v2122, 2147483648
        %v2138 = vsel %vm2136, %v2137, %v2135
        %v2139 = vrsqrt.pop %v2123
        %v2140 = vmul.f32 %v2123, %v2139
        %vm2141 = vcmp.eq.f32.partialorder %v2123, inf
        %v2142 = vsel %vm2141, %v2123, %v2140
        %vm2143 = vcmp.eq.f32.partialorder %v2123, 0.0
        %v2144 = vand.u32 %v2123, 2147483648
        %v2145 = vsel %vm2143, %v2144, %v2142
        %v2146 = vrsqrt.pop %v2124
        %v2147 = vmul.f32 %v2124, %v2146
        %vm2148 = vcmp.eq.f32.partialorder %v2124, inf
        %v2149 = vsel %vm2148, %v2124, %v2147
        %vm2150 = vcmp.eq.f32.partialorder %v2124, 0.0
        %v2151 = vand.u32 %v2124, 2147483648
        %v2152 = vsel %vm2150, %v2151, %v2149
        %v2153 = vadd.f32 %v2117, %v2131
        %v2154 = vadd.f32 %v2118, %v2138
        %v2155 = vadd.f32 %v2119, %v2145
        %v2156 = vadd.f32 %v2120, %v2152
        %v2157 = vlog2.pop %v2153
        %v2158 = vmul.f32 %v2157, 0.6931472
        %v2159 = vlog2.pop %v2154
        %v2160 = vmul.f32 %v2159, 0.6931472
        %v2161 = vlog2.pop %v2155
        %v2162 = vmul.f32 %v2161, 0.6931472
        %v2163 = vlog2.pop %v2156
        %v2164 = vmul.f32 %v2163, 0.6931472
        %v2165 = vsub.f32 %v2117, %v2131
        %v2166 = vsub.f32 %v2118, %v2138
        %v2167 = vsub.f32 %v2119, %v2145
        %v2168 = vsub.f32 %v2120, %v2152
        %v2169 = vmax.f32 %v2165, 1e-07
        %v2170 = vmax.f32 %v2166, 1e-07
        %v2171 = vmax.f32 %v2167, 1e-07
        %v2172 = vmax.f32 %v2168, 1e-07
        %v2173 = vlog2.pop %v2169
        %v2174 = vmul.f32 %v2173, 0.6931472
        %v2175 = vlog2.pop %v2170
        %v2176 = vmul.f32 %v2175, 0.6931472
        %v2177 = vlog2.pop %v2171
        %v2178 = vmul.f32 %v2177, 0.6931472
        %v2179 = vlog2.pop %v2172
        %v2180 = vmul.f32 %v2179, 0.6931472
        %v2181 = vsub.f32 %v2158, %v2174
        %v2182 = vsub.f32 %v2160, %v2176
        %v2183 = vsub.f32 %v2162, %v2178
        %v2184 = vsub.f32 %v2164, %v2180
        %v2185 = vsub.f32 0.0, %v2181
        %v2186 = vsub.f32 0.0, %v2182
        %v2187 = vsub.f32 0.0, %v2183
        %v2188 = vsub.f32 0.0, %v2184
        %v2189 = vmul.f32 %v2185, 0.35355338
        %v2190 = vmul.f32 %v2186, 0.35355338
        %v2191 = vmul.f32 %v2187, 0.35355338
        %v2192 = vmul.f32 %v2188, 0.35355338
        %v2193 = vsel %vm1512, %v2189, -inf
        %2194 = vmax.xlane.f32.xlu0 %v2193
        %v2195 = vpop.xlane.xlu0 %2194
        %v2196 = vsel %vm1512, %v2190, -inf
        %2197 = vmax.xlane.f32.xlu0 %v2196
        %v2198 = vpop.xlane.xlu0 %2197
        %v2199 = vsel %vm1512, %v2191, -inf
        %2200 = vmax.xlane.f32.xlu0 %v2199
        %v2201 = vpop.xlane.xlu0 %2200
        %v2202 = vsel %vm1512, %v2192, -inf
        %2203 = vmax.xlane.f32.xlu0 %v2202
        %v2204 = vpop.xlane.xlu0 %2203
        %v2205 = vsub.f32 %v2189, %v2195
        %v2206 = vsub.f32 %v2190, %v2198
        %v2207 = vsub.f32 %v2191, %v2201
        %v2208 = vsub.f32 %v2192, %v2204
        %v2209 = vmul.f32 %v2205, 1.442695
        %v2210 = vpow.pop %v2209
        %v2211 = vmul.f32 %v2206, 1.442695
        %v2212 = vpow.pop %v2211
        %v2213 = vmul.f32 %v2207, 1.442695
        %v2214 = vpow.pop %v2213
        %v2215 = vmul.f32 %v2208, 1.442695
        %v2216 = vpow.pop %v2215
        %v2217 = vsel %vm1512, %v2210, 0.0
        %2218 = vadd.xlane.f32.xlu0 %v2217
        %v2219 = vpop.xlane.xlu0 %2218
        %v2220 = vsel %vm1512, %v2212, 0.0
        %2221 = vadd.xlane.f32.xlu0 %v2220
        %v2222 = vpop.xlane.xlu0 %2221
        %v2223 = vsel %vm1512, %v2214, 0.0
        %2224 = vadd.xlane.f32.xlu0 %v2223
        %v2225 = vpop.xlane.xlu0 %2224
        %v2226 = vsel %vm1512, %v2216, 0.0
        %2227 = vadd.xlane.f32.xlu0 %v2226
        %v2228 = vpop.xlane.xlu0 %2227
        %v2229 = vrcp.pop %v2219
        %v2230 = vmul.f32 %v2210, %v2229
        %v2231 = vrcp.pop %v2222
        %v2232 = vmul.f32 %v2212, %v2231
        %v2233 = vrcp.pop %v2225
        %v2234 = vmul.f32 %v2214, %v2233
        %v2235 = vrcp.pop %v2228
        %v2236 = vmul.f32 %v2216, %v2235
        %2237 = vst.msk [vmem:[%s655] sm:$0xff] %vm1512, %v2230
        %2238 = vst.msk [vmem:[%s655 + $0x8] sm:$0xff] %vm1512, %v2232
        %2239 = vst.msk [vmem:[%s655 + $0x10] sm:$0xff] %vm1512, %v2234
        %2240 = vst.msk [vmem:[%s655 + $0x18] sm:$0xff] %vm1512, %v2236
        %v2241 = vpack.c.bf16 %v2230, %v2230
        %v2242 = vpack.c.bf16 %v2232, %v2232
        %v2243 = vpack.c.bf16 %v2234, %v2234
        %v2244 = vpack.c.bf16 %v2236, %v2236
        %v2245 = vpack.c.bf16 %v1693, %v1693
        %v2246 = vpack.c.bf16 %v1694, %v1694
        %v2247 = vpack.c.bf16 %v1695, %v1695
        %v2248 = vpack.c.bf16 %v1696, %v1696
        %v2250 = vsel %vm1512, %v2241, 0
        %vm2252 = vcmask 1043456
        %v2254 = vsel %vm2252, %v2245, 0
        %2256 = vmatprep.subr.bf16.mxu0 0
        %2257 = vmatpush1.bf16.msra.mxu0 0
        %2258 = vmatprep.subr.bf16.mxu0 0
        %2259 = vmatpush1.bf16.msra.mxu0 0
        %2260 = vmatprep.subr.bf16.mxu0 0
        %2261 = vmatpush1.bf16.msra.mxu0 0
        %2262 = vmatprep.subr.bf16.mxu0 0
        %2263 = vmatpush1.bf16.msra.mxu0 0
        %2264 = vmatprep.subr.bf16.mxu0 0
        %2265 = vmatpush1.bf16.msra.mxu0 0
        %2266 = vmatprep.subr.bf16.mxu0 0
        %2267 = vmatpush1.bf16.msra.mxu0 0
        %2268 = vmatprep.subr.bf16.mxu0 0
        %2269 = vmatpush1.bf16.msra.mxu0 0
        %2270 = vmatprep.subr.bf16.mxu0 0
        %2271 = vmatpush1.bf16.msra.mxu0 %v2254
        %2272 = vmatprep.subr.bf16.mxu0 0
        %2273 = vmatpush2.bf16.msra.mxu0 0
        %2274 = vmatprep.subr.bf16.mxu0 0
        %2275 = vmatpush2.bf16.msra.mxu0 0
        %2276 = vmatprep.subr.bf16.mxu0 0
        %2277 = vmatpush2.bf16.msra.mxu0 0
        %2278 = vmatprep.subr.bf16.mxu0 0
        %2279 = vmatpush2.bf16.msra.mxu0 0
        %2280 = vmatprep.subr.bf16.mxu0 0
        %2281 = vmatpush2.bf16.msra.mxu0 0
        %2282 = vmatprep.subr.bf16.mxu0 0
        %2283 = vmatpush2.bf16.msra.mxu0 0
        %2284 = vmatprep.subr.bf16.mxu0 0
        %2285 = vmatpush2.bf16.msra.mxu0 0
        %2286 = vmatprep.subr.bf16.mxu0 0
        %2287 = vmatpush2.bf16.msra.mxu0 0
        %2288 = vmatprep.mubr.bf16.mxu0 0
        %2289 = vmatmul.mubr.bf16.gmra.mxu0 %v2250
        %v2290 = vpop.f32.mrf.mxu0
        %v2291 = vadd.f32 0.0, %v2290
        %v2292 = vpop.f32.mrf.mxu0
        %v2293 = vpop.f32.mrf.mxu0
        %v2294 = vpop.f32.mrf.mxu0
        %2295 = vdwg.mxu0
        %v2297 = vsel %vm1512, %v2242, 0
        %v2300 = vsel %vm2252, %v2246, 0
        %2302 = vmatprep.subr.bf16.mxu0 0
        %2303 = vmatpush1.bf16.msra.mxu0 0
        %2304 = vmatprep.subr.bf16.mxu0 0
        %2305 = vmatpush1.bf16.msra.mxu0 0
        %2306 = vmatprep.subr.bf16.mxu0 0
        %2307 = vmatpush1.bf16.msra.mxu0 0
        %2308 = vmatprep.subr.bf16.mxu0 0
        %2309 = vmatpush1.bf16.msra.mxu0 0
        %2310 = vmatprep.subr.bf16.mxu0 0
        %2311 = vmatpush1.bf16.msra.mxu0 0
        %2312 = vmatprep.subr.bf16.mxu0 0
        %2313 = vmatpush1.bf16.msra.mxu0 0
        %2314 = vmatprep.subr.bf16.mxu0 0
        %2315 = vmatpush1.bf16.msra.mxu0 0
        %2316 = vmatprep.subr.bf16.mxu0 0
        %2317 = vmatpush1.bf16.msra.mxu0 %v2300
        %2318 = vmatprep.subr.bf16.mxu0 0
        %2319 = vmatpush2.bf16.msra.mxu0 0
        %2320 = vmatprep.subr.bf16.mxu0 0
        %2321 = vmatpush2.bf16.msra.mxu0 0
        %2322 = vmatprep.subr.bf16.mxu0 0
        %2323 = vmatpush2.bf16.msra.mxu0 0
        %2324 = vmatprep.subr.bf16.mxu0 0
        %2325 = vmatpush2.bf16.msra.mxu0 0
        %2326 = vmatprep.subr.bf16.mxu0 0
        %2327 = vmatpush2.bf16.msra.mxu0 0
        %2328 = vmatprep.subr.bf16.mxu0 0
        %2329 = vmatpush2.bf16.msra.mxu0 0
        %2330 = vmatprep.subr.bf16.mxu0 0
        %2331 = vmatpush2.bf16.msra.mxu0 0
        %2332 = vmatprep.subr.bf16.mxu0 0
        %2333 = vmatpush2.bf16.msra.mxu0 0
        %2334 = vmatprep.mubr.bf16.mxu0 0
        %2335 = vmatmul.mubr.bf16.gmra.mxu0 %v2297
        %v2336 = vpop.f32.mrf.mxu0
        %v2337 = vadd.f32 0.0, %v2336
        %v2338 = vpop.f32.mrf.mxu0
        %v2339 = vpop.f32.mrf.mxu0
        %v2340 = vpop.f32.mrf.mxu0
        %2341 = vdwg.mxu0
        %v2343 = vsel %vm1512, %v2243, 0
        %v2346 = vsel %vm2252, %v2247, 0
        %2348 = vmatprep.subr.bf16.mxu0 0
        %2349 = vmatpush1.bf16.msra.mxu0 0
        %2350 = vmatprep.subr.bf16.mxu0 0
        %2351 = vmatpush1.bf16.msra.mxu0 0
        %2352 = vmatprep.subr.bf16.mxu0 0
        %2353 = vmatpush1.bf16.msra.mxu0 0
        %2354 = vmatprep.subr.bf16.mxu0 0
        %2355 = vmatpush1.bf16.msra.mxu0 0
        %2356 = vmatprep.subr.bf16.mxu0 0
        %2357 = vmatpush1.bf16.msra.mxu0 0
        %2358 = vmatprep.subr.bf16.mxu0 0
        %2359 = vmatpush1.bf16.msra.mxu0 0
        %2360 = vmatprep.subr.bf16.mxu0 0
        %2361 = vmatpush1.bf16.msra.mxu0 0
        %2362 = vmatprep.subr.bf16.mxu0 0
        %2363 = vmatpush1.bf16.msra.mxu0 %v2346
        %2364 = vmatprep.subr.bf16.mxu0 0
        %2365 = vmatpush2.bf16.msra.mxu0 0
        %2366 = vmatprep.subr.bf16.mxu0 0
        %2367 = vmatpush2.bf16.msra.mxu0 0
        %2368 = vmatprep.subr.bf16.mxu0 0
        %2369 = vmatpush2.bf16.msra.mxu0 0
        %2370 = vmatprep.subr.bf16.mxu0 0
        %2371 = vmatpush2.bf16.msra.mxu0 0
        %2372 = vmatprep.subr.bf16.mxu0 0
        %2373 = vmatpush2.bf16.msra.mxu0 0
        %2374 = vmatprep.subr.bf16.mxu0 0
        %2375 = vmatpush2.bf16.msra.mxu0 0
        %2376 = vmatprep.subr.bf16.mxu0 0
        %2377 = vmatpush2.bf16.msra.mxu0 0
        %2378 = vmatprep.subr.bf16.mxu0 0
        %2379 = vmatpush2.bf16.msra.mxu0 0
        %2380 = vmatprep.mubr.bf16.mxu0 0
        %2381 = vmatmul.mubr.bf16.gmra.mxu0 %v2343
        %v2382 = vpop.f32.mrf.mxu0
        %v2383 = vadd.f32 0.0, %v2382
        %v2384 = vpop.f32.mrf.mxu0
        %v2385 = vpop.f32.mrf.mxu0
        %v2386 = vpop.f32.mrf.mxu0
        %2387 = vdwg.mxu0
        %v2389 = vsel %vm1512, %v2244, 0
        %v2392 = vsel %vm2252, %v2248, 0
        %2394 = vmatprep.subr.bf16.mxu0 0
        %2395 = vmatpush1.bf16.msra.mxu0 0
        %2396 = vmatprep.subr.bf16.mxu0 0
        %2397 = vmatpush1.bf16.msra.mxu0 0
        %2398 = vmatprep.subr.bf16.mxu0 0
        %2399 = vmatpush1.bf16.msra.mxu0 0
        %2400 = vmatprep.subr.bf16.mxu0 0
        %2401 = vmatpush1.bf16.msra.mxu0 0
        %2402 = vmatprep.subr.bf16.mxu0 0
        %2403 = vmatpush1.bf16.msra.mxu0 0
        %2404 = vmatprep.subr.bf16.mxu0 0
        %2405 = vmatpush1.bf16.msra.mxu0 0
        %2406 = vmatprep.subr.bf16.mxu0 0
        %2407 = vmatpush1.bf16.msra.mxu0 0
        %2408 = vmatprep.subr.bf16.mxu0 0
        %2409 = vmatpush1.bf16.msra.mxu0 %v2392
        %2410 = vmatprep.subr.bf16.mxu0 0
        %2411 = vmatpush2.bf16.msra.mxu0 0
        %2412 = vmatprep.subr.bf16.mxu0 0
        %2413 = vmatpush2.bf16.msra.mxu0 0
        %2414 = vmatprep.subr.bf16.mxu0 0
        %2415 = vmatpush2.bf16.msra.mxu0 0
        %2416 = vmatprep.subr.bf16.mxu0 0
        %2417 = vmatpush2.bf16.msra.mxu0 0
        %2418 = vmatprep.subr.bf16.mxu0 0
        %2419 = vmatpush2.bf16.msra.mxu0 0
        %2420 = vmatprep.subr.bf16.mxu0 0
        %2421 = vmatpush2.bf16.msra.mxu0 0
        %2422 = vmatprep.subr.bf16.mxu0 0
        %2423 = vmatpush2.bf16.msra.mxu0 0
        %2424 = vmatprep.subr.bf16.mxu0 0
        %2425 = vmatpush2.bf16.msra.mxu0 0
        %2426 = vmatprep.mubr.bf16.mxu0 0
        %2427 = vmatmul.mubr.bf16.gmra.mxu0 %v2389
        %v2428 = vpop.f32.mrf.mxu0
        %v2429 = vadd.f32 0.0, %v2428
        %v2430 = vpop.f32.mrf.mxu0
        %v2431 = vpop.f32.mrf.mxu0
        %v2432 = vpop.f32.mrf.mxu0
        %2433 = vdwg.mxu0
        %v2434 = vmul.f32 %v2291, %v2291
        %v2435 = vmul.f32 %v2337, %v2337
        %v2436 = vmul.f32 %v2383, %v2383
        %v2437 = vmul.f32 %v2429, %v2429
        %v2438 = vsel %vm1512, %v2434, 0.0
        %2439 = vadd.xlane.f32.xlu0 %v2438
        %v2440 = vpop.xlane.xlu0 %2439
        %v2441 = vsel %vm1512, %v2435, 0.0
        %2442 = vadd.xlane.f32.xlu0 %v2441
        %v2443 = vpop.xlane.xlu0 %2442
        %v2444 = vsel %vm1512, %v2436, 0.0
        %2445 = vadd.xlane.f32.xlu0 %v2444
        %v2446 = vpop.xlane.xlu0 %2445
        %v2447 = vsel %vm1512, %v2437, 0.0
        %2448 = vadd.xlane.f32.xlu0 %v2447
        %v2449 = vpop.xlane.xlu0 %2448
        %v2450 = vmax.f32 %v2440, 0.0
        %v2451 = vmax.f32 %v2443, 0.0
        %v2452 = vmax.f32 %v2446, 0.0
        %v2453 = vmax.f32 %v2449, 0.0
        %v2454 = vrsqrt.pop %v2450
        %v2455 = vmul.f32 %v2450, %v2454
        %vm2456 = vcmp.eq.f32.partialorder %v2450, inf
        %v2457 = vsel %vm2456, %v2450, %v2455
        %vm2458 = vcmp.eq.f32.partialorder %v2450, 0.0
        %v2459 = vand.u32 %v2450, 2147483648
        %v2460 = vsel %vm2458, %v2459, %v2457
        %v2461 = vrsqrt.pop %v2451
        %v2462 = vmul.f32 %v2451, %v2461
        %vm2463 = vcmp.eq.f32.partialorder %v2451, inf
        %v2464 = vsel %vm2463, %v2451, %v2462
        %vm2465 = vcmp.eq.f32.partialorder %v2451, 0.0
        %v2466 = vand.u32 %v2451, 2147483648
        %v2467 = vsel %vm2465, %v2466, %v2464
        %v2468 = vrsqrt.pop %v2452
        %v2469 = vmul.f32 %v2452, %v2468
        %vm2470 = vcmp.eq.f32.partialorder %v2452, inf
        %v2471 = vsel %vm2470, %v2452, %v2469
        %vm2472 = vcmp.eq.f32.partialorder %v2452, 0.0
        %v2473 = vand.u32 %v2452, 2147483648
        %v2474 = vsel %vm2472, %v2473, %v2471
        %v2475 = vrsqrt.pop %v2453
        %v2476 = vmul.f32 %v2453, %v2475
        %vm2477 = vcmp.eq.f32.partialorder %v2453, inf
        %v2478 = vsel %vm2477, %v2453, %v2476
        %vm2479 = vcmp.eq.f32.partialorder %v2453, 0.0
        %v2480 = vand.u32 %v2453, 2147483648
        %v2481 = vsel %vm2479, %v2480, %v2478
        %v2482 = vmax.f32 %v2460, 1e-07
        %v2483 = vmax.f32 %v2467, 1e-07
        %v2484 = vmax.f32 %v2474, 1e-07
        %v2485 = vmax.f32 %v2481, 1e-07
        %v2486 = vtanh.pop %v2482
        %v2487 = vtanh.pop %v2483
        %v2488 = vtanh.pop %v2484
        %v2489 = vtanh.pop %v2485
        %v2490 = vrcp.pop %v2482
        %v2491 = vmul.f32 %v2486, %v2490
        %v2492 = vrcp.pop %v2483
        %v2493 = vmul.f32 %v2487, %v2492
        %v2494 = vrcp.pop %v2484
        %v2495 = vmul.f32 %v2488, %v2494
        %v2496 = vrcp.pop %v2485
        %v2497 = vmul.f32 %v2489, %v2496
        %v2498 = vmul.f32 %v2491, %v2291
        %v2499 = vmul.f32 %v2493, %v2337
        %v2500 = vmul.f32 %v2495, %v2383
        %v2501 = vmul.f32 %v2497, %v2429
        %2502 = vxpose.xlu0.b32.start [1/16] %v2498, 128
        %2503 = vxpose.xlu0.b32.cont [2/16] 0.0, 128
        %2504 = vxpose.xlu0.b32.cont [3/16] 0.0, 128
        %2505 = vxpose.xlu0.b32.cont [4/16] 0.0, 128
        %2506 = vxpose.xlu0.b32.cont [5/16] 0.0, 128
        %2507 = vxpose.xlu0.b32.cont [6/16] 0.0, 128
        %2508 = vxpose.xlu0.b32.cont [7/16] 0.0, 128
        %2509 = vxpose.xlu0.b32.cont [8/16] 0.0, 128
        %2510 = vxpose.xlu0.b32.cont [9/16] 0.0, 128
        %2511 = vxpose.xlu0.b32.cont [10/16] 0.0, 128
        %2512 = vxpose.xlu0.b32.cont [11/16] 0.0, 128
        %2513 = vxpose.xlu0.b32.cont [12/16] 0.0, 128
        %2514 = vxpose.xlu0.b32.cont [13/16] 0.0, 128
        %2515 = vxpose.xlu0.b32.cont [14/16] 0.0, 128
        %2516 = vxpose.xlu0.b32.cont [15/16] 0.0, 128
        %2517 = vxpose.xlu0.b32.end [16/16] 0.0, 128
        %v2518 = vpop.trf.xlu0
        %v2519 = vpop.trf.xlu0
        %v2520 = vpop.trf.xlu0
        %v2521 = vpop.trf.xlu0
        %v2522 = vpop.trf.xlu0
        %v2523 = vpop.trf.xlu0
        %v2524 = vpop.trf.xlu0
        %v2525 = vpop.trf.xlu0
        %v2526 = vpop.trf.xlu0
        %v2527 = vpop.trf.xlu0
        %v2528 = vpop.trf.xlu0
        %v2529 = vpop.trf.xlu0
        %v2530 = vpop.trf.xlu0
        %v2531 = vpop.trf.xlu0
        %v2532 = vpop.trf.xlu0
        %v2533 = vpop.trf.xlu0
        %2534 = vxpose.xlu0.b32.start [1/16] %v2499, 128
        %2535 = vxpose.xlu0.b32.cont [2/16] 0.0, 128
        %2536 = vxpose.xlu0.b32.cont [3/16] 0.0, 128
        %2537 = vxpose.xlu0.b32.cont [4/16] 0.0, 128
        %2538 = vxpose.xlu0.b32.cont [5/16] 0.0, 128
        %2539 = vxpose.xlu0.b32.cont [6/16] 0.0, 128
        %2540 = vxpose.xlu0.b32.cont [7/16] 0.0, 128
        %2541 = vxpose.xlu0.b32.cont [8/16] 0.0, 128
        %2542 = vxpose.xlu0.b32.cont [9/16] 0.0, 128
        %2543 = vxpose.xlu0.b32.cont [10/16] 0.0, 128
        %2544 = vxpose.xlu0.b32.cont [11/16] 0.0, 128
        %2545 = vxpose.xlu0.b32.cont [12/16] 0.0, 128
        %2546 = vxpose.xlu0.b32.cont [13/16] 0.0, 128
        %2547 = vxpose.xlu0.b32.cont [14/16] 0.0, 128
        %2548 = vxpose.xlu0.b32.cont [15/16] 0.0, 128
        %2549 = vxpose.xlu0.b32.end [16/16] 0.0, 128
        %v2550 = vpop.trf.xlu0
        %v2551 = vpop.trf.xlu0
        %v2552 = vpop.trf.xlu0
        %v2553 = vpop.trf.xlu0
        %v2554 = vpop.trf.xlu0
        %v2555 = vpop.trf.xlu0
        %v2556 = vpop.trf.xlu0
        %v2557 = vpop.trf.xlu0
        %v2558 = vpop.trf.xlu0
        %v2559 = vpop.trf.xlu0
        %v2560 = vpop.trf.xlu0
        %v2561 = vpop.trf.xlu0
        %v2562 = vpop.trf.xlu0
        %v2563 = vpop.trf.xlu0
        %v2564 = vpop.trf.xlu0
        %v2565 = vpop.trf.xlu0
        %2566 = vxpose.xlu0.b32.start [1/16] %v2500, 128
        %2567 = vxpose.xlu0.b32.cont [2/16] 0.0, 128
        %2568 = vxpose.xlu0.b32.cont [3/16] 0.0, 128
        %2569 = vxpose.xlu0.b32.cont [4/16] 0.0, 128
        %2570 = vxpose.xlu0.b32.cont [5/16] 0.0, 128
        %2571 = vxpose.xlu0.b32.cont [6/16] 0.0, 128
        %2572 = vxpose.xlu0.b32.cont [7/16] 0.0, 128
        %2573 = vxpose.xlu0.b32.cont [8/16] 0.0, 128
        %2574 = vxpose.xlu0.b32.cont [9/16] 0.0, 128
        %2575 = vxpose.xlu0.b32.cont [10/16] 0.0, 128
        %2576 = vxpose.xlu0.b32.cont [11/16] 0.0, 128
        %2577 = vxpose.xlu0.b32.cont [12/16] 0.0, 128
        %2578 = vxpose.xlu0.b32.cont [13/16] 0.0, 128
        %2579 = vxpose.xlu0.b32.cont [14/16] 0.0, 128
        %2580 = vxpose.xlu0.b32.cont [15/16] 0.0, 128
        %2581 = vxpose.xlu0.b32.end [16/16] 0.0, 128
        %v2582 = vpop.trf.xlu0
        %v2583 = vpop.trf.xlu0
        %v2584 = vpop.trf.xlu0
        %v2585 = vpop.trf.xlu0
        %v2586 = vpop.trf.xlu0
        %v2587 = vpop.trf.xlu0
        %v2588 = vpop.trf.xlu0
        %v2589 = vpop.trf.xlu0
        %v2590 = vpop.trf.xlu0
        %v2591 = vpop.trf.xlu0
        %v2592 = vpop.trf.xlu0
        %v2593 = vpop.trf.xlu0
        %v2594 = vpop.trf.xlu0
        %v2595 = vpop.trf.xlu0
        %v2596 = vpop.trf.xlu0
        %v2597 = vpop.trf.xlu0
        %2598 = vxpose.xlu0.b32.start [1/16] %v2501, 128
        %2599 = vxpose.xlu0.b32.cont [2/16] 0.0, 128
        %2600 = vxpose.xlu0.b32.cont [3/16] 0.0, 128
        %2601 = vxpose.xlu0.b32.cont [4/16] 0.0, 128
        %2602 = vxpose.xlu0.b32.cont [5/16] 0.0, 128
        %2603 = vxpose.xlu0.b32.cont [6/16] 0.0, 128
        %2604 = vxpose.xlu0.b32.cont [7/16] 0.0, 128
        %2605 = vxpose.xlu0.b32.cont [8/16] 0.0, 128
        %2606 = vxpose.xlu0.b32.cont [9/16] 0.0, 128
        %2607 = vxpose.xlu0.b32.cont [10/16] 0.0, 128
        %2608 = vxpose.xlu0.b32.cont [11/16] 0.0, 128
        %2609 = vxpose.xlu0.b32.cont [12/16] 0.0, 128
        %2610 = vxpose.xlu0.b32.cont [13/16] 0.0, 128
        %2611 = vxpose.xlu0.b32.cont [14/16] 0.0, 128
        %2612 = vxpose.xlu0.b32.cont [15/16] 0.0, 128
        %2613 = vxpose.xlu0.b32.end [16/16] 0.0, 128
        %v2614 = vpop.trf.xlu0
        %v2615 = vpop.trf.xlu0
        %v2616 = vpop.trf.xlu0
        %v2617 = vpop.trf.xlu0
        %v2618 = vpop.trf.xlu0
        %v2619 = vpop.trf.xlu0
        %v2620 = vpop.trf.xlu0
        %v2621 = vpop.trf.xlu0
        %v2622 = vpop.trf.xlu0
        %v2623 = vpop.trf.xlu0
        %v2624 = vpop.trf.xlu0
        %v2625 = vpop.trf.xlu0
        %v2626 = vpop.trf.xlu0
        %v2627 = vpop.trf.xlu0
        %v2628 = vpop.trf.xlu0
        %v2629 = vpop.trf.xlu0
        %2630 = vxpose.xlu0.b32.start [1/16] %v2518, 128
        %2631 = vxpose.xlu0.b32.cont [2/16] %v2550, 128
        %2632 = vxpose.xlu0.b32.cont [3/16] %v2582, 128
        %2633 = vxpose.xlu0.b32.cont [4/16] %v2614, 128
        %2634 = vxpose.xlu0.b32.cont [5/16] 0.0, 128
        %2635 = vxpose.xlu0.b32.cont [6/16] 0.0, 128
        %2636 = vxpose.xlu0.b32.cont [7/16] 0.0, 128
        %2637 = vxpose.xlu0.b32.cont [8/16] 0.0, 128
        %2638 = vxpose.xlu0.b32.cont [9/16] 0.0, 128
        %2639 = vxpose.xlu0.b32.cont [10/16] 0.0, 128
        %2640 = vxpose.xlu0.b32.cont [11/16] 0.0, 128
        %2641 = vxpose.xlu0.b32.cont [12/16] 0.0, 128
        %2642 = vxpose.xlu0.b32.cont [13/16] 0.0, 128
        %2643 = vxpose.xlu0.b32.cont [14/16] 0.0, 128
        %2644 = vxpose.xlu0.b32.cont [15/16] 0.0, 128
        %2645 = vxpose.xlu0.b32.end [16/16] 0.0, 128
        %v2646 = vpop.trf.xlu0
        %v2647 = vpop.trf.xlu0
        %v2648 = vpop.trf.xlu0
        %v2649 = vpop.trf.xlu0
        %v2650 = vpop.trf.xlu0
        %v2651 = vpop.trf.xlu0
        %v2652 = vpop.trf.xlu0
        %v2653 = vpop.trf.xlu0
        %v2654 = vpop.trf.xlu0
        %v2655 = vpop.trf.xlu0
        %v2656 = vpop.trf.xlu0
        %v2657 = vpop.trf.xlu0
        %v2658 = vpop.trf.xlu0
        %v2659 = vpop.trf.xlu0
        %v2660 = vpop.trf.xlu0
        %v2661 = vpop.trf.xlu0
        %v2662 = vld [vmem:[%s5] sm:$0xf]
        %v2663 = vld [vmem:[%s5 + $0x4] sm:$0xf]
        %v2664 = vld [vmem:[%s5 + $0x8] sm:$0xf]
        %v2665 = vld [vmem:[%s5 + $0xc] sm:$0xf]
        %v2666 = vld [vmem:[#allocation8] sm:$0x1]
        %v2667 = vmul.f32 %v2646, %v2646
        %v2668 = vsel %vm663, %v2667, 0.0
        %2669 = vadd.xlane.f32.xlu0 %v2668
        %v2670 = vpop.xlane.xlu0 %2669
        %v2671 = vmax.f32 %v2670, 0.0
        %v2672 = vrsqrt.pop %v2671
        %v2673 = vmul.f32 %v2671, %v2672
        %vm2674 = vcmp.eq.f32.partialorder %v2671, inf
        %v2675 = vsel %vm2674, %v2671, %v2673
        %vm2676 = vcmp.eq.f32.partialorder %v2671, 0.0
        %v2677 = vand.u32 %v2671, 2147483648
        %v2678 = vsel %vm2676, %v2677, %v2675
        %v2679 = vmax.f32 %v2678, 1e-07
        %v2680 = vmax.f32 %v2679, -0.999999
        %v2681 = vmin.f32 %v2680, 0.999999
        %v2682 = vadd.f32 %v2681, 1.0
        %v2683 = vlog2.pop %v2682
        %v2684 = vmul.f32 %v2683, 0.6931472
        %v2685 = vmul.f32 -0.5, %v2681
        %v2686 = vadd.f32 %v2685, 1.0
        %v2687 = vmul.f32 %v2686, %v2681
        %v2688 = vand.u32 2147483647, %v2681
        %vm2689 = vcmp.lt.f32.partialorder %v2688, 0.0004427343
        %v2690 = vsel %vm2689, %v2687, %v2684
        %v2691 = vsub.f32 0.0, %v2681
        %v2692 = vadd.f32 %v2691, 1.0
        %v2693 = vlog2.pop %v2692
        %v2694 = vmul.f32 %v2693, 0.6931472
        %v2695 = vmul.f32 -0.5, %v2691
        %v2696 = vadd.f32 %v2695, 1.0
        %v2697 = vmul.f32 %v2696, %v2691
        %v2698 = vand.u32 2147483647, %v2691
        %vm2699 = vcmp.lt.f32.partialorder %v2698, 0.0004427343
        %v2700 = vsel %vm2699, %v2697, %v2694
        %v2701 = vsub.f32 %v2690, %v2700
        %v2702 = vmul.f32 %v2701, 0.5
        %v2703 = vpack.c.bf16 %v2646, %v2646
        %v2708 = vunpack.c.l.b16 %v2662
        %v2709 = vunpack.c.l.b16 %v2663
        %v2710 = vunpack.c.l.b16 %v2664
        %v2711 = vunpack.c.l.b16 %v2665
        %v2712 = vpack.c.b16 %v2709, %v2708
        %v2713 = vpack.c.b16 %v2711, %v2710
        %v2717 = vsel %vm663, %v2703, 0
        %2719 = vmatprep.subr.bf16.mxu0 0
        %2720 = vmatpush1.bf16.msra.mxu0 0
        %2721 = vmatprep.subr.bf16.mxu0 0
        %2722 = vmatpush1.bf16.msra.mxu0 0
        %2723 = vmatprep.subr.bf16.mxu0 0
        %2724 = vmatpush1.bf16.msra.mxu0 0
        %2725 = vmatprep.subr.bf16.mxu0 0
        %2726 = vmatpush1.bf16.msra.mxu0 0
        %2727 = vmatprep.subr.bf16.mxu0 0
        %2728 = vmatpush1.bf16.msra.mxu0 0
        %2729 = vmatprep.subr.bf16.mxu0 0
        %2730 = vmatpush1.bf16.msra.mxu0 0
        %2731 = vmatprep.subr.bf16.mxu0 0
        %2732 = vmatpush1.bf16.msra.mxu0 %v2713
        %2733 = vmatprep.subr.bf16.mxu0 0
        %2734 = vmatpush1.bf16.msra.mxu0 %v2712
        %2735 = vmatprep.subr.bf16.mxu0 0
        %2736 = vmatpush2.bf16.msra.mxu0 0
        %2737 = vmatprep.subr.bf16.mxu0 0
        %2738 = vmatpush2.bf16.msra.mxu0 0
        %2739 = vmatprep.subr.bf16.mxu0 0
        %2740 = vmatpush2.bf16.msra.mxu0 0
        %2741 = vmatprep.subr.bf16.mxu0 0
        %2742 = vmatpush2.bf16.msra.mxu0 0
        %2743 = vmatprep.subr.bf16.mxu0 0
        %2744 = vmatpush2.bf16.msra.mxu0 0
        %2745 = vmatprep.subr.bf16.mxu0 0
        %2746 = vmatpush2.bf16.msra.mxu0 0
        %2747 = vmatprep.subr.bf16.mxu0 0
        %2748 = vmatpush2.bf16.msra.mxu0 0
        %2749 = vmatprep.subr.bf16.mxu0 0
        %2750 = vmatpush2.bf16.msra.mxu0 0
        %2751 = vmatprep.mubr.bf16.mxu0 0
        %2752 = vmatmul.mubr.bf16.gmra.mxu0 %v2717
        %v2753 = vpop.f32.mrf.mxu0
        %v2754 = vadd.f32 0.0, %v2753
        %v2755 = vpop.f32.mrf.mxu0
        %v2756 = vpop.f32.mrf.mxu0
        %v2757 = vpop.f32.mrf.mxu0
        %2758 = vdwg.mxu0
        %v2759 = vmul.f32 %v2754, %v2754
        %v2760 = vsel %vm663, %v2759, 0.0
        %2761 = vadd.xlane.f32.xlu0 %v2760
        %v2762 = vpop.xlane.xlu0 %2761
        %v2763 = vmax.f32 %v2762, 0.0
        %v2764 = vrsqrt.pop %v2763
        %v2765 = vmul.f32 %v2763, %v2764
        %vm2766 = vcmp.eq.f32.partialorder %v2763, inf
        %v2767 = vsel %vm2766, %v2763, %v2765
        %vm2768 = vcmp.eq.f32.partialorder %v2763, 0.0
        %v2769 = vand.u32 %v2763, 2147483648
        %v2770 = vsel %vm2768, %v2769, %v2767
        %v2771 = vmax.f32 %v2770, 1e-07
        %v2772 = vrcp.pop %v2679
        %v2773 = vmul.f32 %v2771, %v2772
        %v2774 = vmul.f32 %v2773, %v2702
        %v2775 = vtanh.pop %v2774
        %v2776 = vrcp.pop %v2771
        %v2777 = vmul.f32 %v2754, %v2776
        %v2778 = vmul.f32 %v2775, %v2777
        %v2780 = vlaneseq
        %v2781 = vshrl.u32 %v2780, 7
        %v2782 = vsub.s32 0, %v2781
        %v2783 = vrot.slane %v2666, %v2782
        %v2785 = vmul.f32 %v2778, %v2783
        %v2786 = vsel %vm663, %v2785, 0.0
        %2787 = vadd.xlane.f32.xlu0 %v2786
        %v2788 = vpop.xlane.xlu0 %2787
        %v2789 = vmul.f32 %v2778, %v2778
        %v2790 = vsel %vm663, %v2789, 0.0
        %2791 = vadd.xlane.f32.xlu0 %v2790
        %v2792 = vpop.xlane.xlu0 %2791
        %v2793 = vmul.f32 %v2666, %v2666
        %v2794 = vsel %vm795, %v2793, 0.0
        %2795 = vadd.xlane.f32.xlu0 %v2794
        %v2796 = vpop.xlane.xlu0 %2795
        %v2797 = vmul.f32 %v2788, 2.0
        %v2798 = vadd.f32 %v2797, 1.0
        %v2799 = vlaneseq
        %v2800 = vshrl.u32 %v2799, 7
        %v2801 = vsub.s32 0, %v2800
        %v2802 = vrot.slane %v2796, %v2801
        %v2803 = vadd.f32 %v2798, %v2802
        %v2804 = vmul.f32 %v2803, %v2778
        %v2805 = vsub.f32 1.0, %v2792
        %v2806 = vmul.f32 %v2805, %v2783
        %v2807 = vadd.f32 %v2804, %v2806
        %v2808 = vmul.f32 %v2792, %v2802
        %v2809 = vadd.f32 %v2798, %v2808
        %v2810 = vmax.f32 %v2809, 1e-07
        %v2811 = vrcp.pop %v2810
        %v2812 = vmul.f32 %v2807, %v2811
        %v2813 = vmul.f32 %v2812, %v2812
        %v2814 = vsel %vm663, %v2813, 0.0
        %2815 = vadd.xlane.f32.xlu0 %v2814
        %v2816 = vpop.xlane.xlu0 %2815
        %v2817 = vmax.f32 %v2816, 0.0
        %v2818 = vrsqrt.pop %v2817
        %v2819 = vmul.f32 %v2817, %v2818
        %vm2820 = vcmp.eq.f32.partialorder %v2817, inf
        %v2821 = vsel %vm2820, %v2817, %v2819
        %vm2822 = vcmp.eq.f32.partialorder %v2817, 0.0
        %v2823 = vand.u32 %v2817, 2147483648
        %v2824 = vsel %vm2822, %v2823, %v2821
        %v2825 = vmax.f32 %v2824, 1e-07
        %vm2826 = vcmp.gt.f32.partialorder %v2825, 0.99999
        %v2827 = vrcp.pop %v2825
        %v2828 = vmul.f32 0.99999, %v2827
        %v2829 = vsel %vm2826, %v2828, 1.0
        %v2830 = vmul.f32 %v2812, %v2829
        %v2831 = vmul.f32 %v661, %v2830
        %v2832 = vsel %vm663, %v2831, 0.0
        %2833 = vadd.xlane.f32.xlu0 %v2832
        %v2834 = vpop.xlane.xlu0 %2833
        %v2835 = vmul.f32 %v2830, %v2830
        %v2836 = vsel %vm663, %v2835, 0.0
        %2837 = vadd.xlane.f32.xlu0 %v2836
        %v2838 = vpop.xlane.xlu0 %2837
        %v2839 = vmul.f32 %v2834, 2.0
        %v2840 = vadd.f32 %v2839, 1.0
        %v2841 = vadd.f32 %v2840, %v2838
        %v2842 = vmul.f32 %v2841, %v661
        %v2843 = vsub.f32 1.0, %v666
        %v2844 = vmul.f32 %v2843, %v2830
        %v2845 = vadd.f32 %v2842, %v2844
        %v2846 = vmul.f32 %v666, %v2838
        %v2847 = vadd.f32 %v2840, %v2846
        %v2848 = vmax.f32 %v2847, 1e-07
        %v2849 = vrcp.pop %v2848
        %v2850 = vmul.f32 %v2845, %v2849
        %v2851 = vld [vmem:[%s11] sm:$0x1]
        %v2852 = vld [vmem:[%s12] sm:$0x1]
        %v2853 = vld [vmem:[%s13] sm:$0x1]
        %v2854 = vmul.f32 %v2850, %v2850
        %v2855 = vsel %vm663, %v2854, 0.0
        %2856 = vadd.xlane.f32.xlu0 %v2855
        %v2857 = vpop.xlane.xlu0 %2856
        %v2858 = vmax.f32 %v2857, 0.0
        %v2859 = vrsqrt.pop %v2858
        %v2860 = vmul.f32 %v2858, %v2859
        %vm2861 = vcmp.eq.f32.partialorder %v2858, inf
        %v2862 = vsel %vm2861, %v2858, %v2860
        %vm2863 = vcmp.eq.f32.partialorder %v2858, 0.0
        %v2864 = vand.u32 %v2858, 2147483648
        %v2865 = vsel %vm2863, %v2864, %v2862
        %v2866 = vmax.f32 %v2865, 1e-07
        %v2867 = vmax.f32 %v2866, -0.999999
        %v2868 = vmin.f32 %v2867, 0.999999
        %v2869 = vadd.f32 %v2868, 1.0
        %v2870 = vlog2.pop %v2869
        %v2871 = vmul.f32 %v2870, 0.6931472
        %v2872 = vmul.f32 -0.5, %v2868
        %v2873 = vadd.f32 %v2872, 1.0
        %v2874 = vmul.f32 %v2873, %v2868
        %v2875 = vand.u32 2147483647, %v2868
        %vm2876 = vcmp.lt.f32.partialorder %v2875, 0.0004427343
        %v2877 = vsel %vm2876, %v2874, %v2871
        %v2878 = vsub.f32 0.0, %v2868
        %v2879 = vadd.f32 %v2878, 1.0
        %v2880 = vlog2.pop %v2879
        %v2881 = vmul.f32 %v2880, 0.6931472
        %v2882 = vmul.f32 -0.5, %v2878
        %v2883 = vadd.f32 %v2882, 1.0
        %v2884 = vmul.f32 %v2883, %v2878
        %v2885 = vand.u32 2147483647, %v2878
        %vm2886 = vcmp.lt.f32.partialorder %v2885, 0.0004427343
        %v2887 = vsel %vm2886, %v2884, %v2881
        %v2888 = vsub.f32 %v2877, %v2887
        %v2889 = vmul.f32 %v2888, 0.5
        %v2890 = vrcp.pop %v2866
        %v2891 = vmul.f32 %v2889, %v2890
        %v2892 = vmul.f32 %v2891, %v2850
        %v2893 = vsel %vm663, %v2892, 0.0
        %2894 = vadd.xlane.f32.xlu0 %v2893
        %v2895 = vpop.xlane.xlu0 %2894
        %v2896 = vrcp.pop 32.0
        %v2897 = vmul.f32 %v2895, %v2896
        %v2898 = vsub.f32 %v2892, %v2897
        %v2899 = vmul.f32 %v2898, %v2898
        %v2900 = vsel %vm663, %v2899, 0.0
        %2901 = vadd.xlane.f32.xlu0 %v2900
        %v2902 = vpop.xlane.xlu0 %2901
        %v2903 = vmul.f32 %v2902, 0.032258064
        %v2904 = vrsqrt.pop %v2903
        %v2905 = vmul.f32 %v2903, %v2904
        %vm2906 = vcmp.eq.f32.partialorder %v2903, inf
        %v2907 = vsel %vm2906, %v2903, %v2905
        %vm2908 = vcmp.eq.f32.partialorder %v2903, 0.0
        %v2909 = vand.u32 %v2903, 2147483648
        %v2910 = vsel %vm2908, %v2909, %v2907
        %v2911 = vadd.f32 %v2910, 1e-06
        %v2912 = vrcp.pop %v2911
        %v2913 = vmul.f32 %v2898, %v2912
        %v2915 = vlaneseq
        %v2916 = vshrl.u32 %v2915, 7
        %v2917 = vsub.s32 0, %v2916
        %v2918 = vrot.slane %v2851, %v2917
        %v2920 = vmul.f32 %v2918, %v2913
        %v2922 = vlaneseq
        %v2923 = vshrl.u32 %v2922, 7
        %v2924 = vsub.s32 0, %v2923
        %v2925 = vrot.slane %v2852, %v2924
        %v2927 = vadd.f32 %v2920, %v2925
        %v2928 = vmul.f32 %v2927, %v2927
        %v2929 = vsel %vm663, %v2928, 0.0
        %2930 = vadd.xlane.f32.xlu0 %v2929
        %v2931 = vpop.xlane.xlu0 %2930
        %v2932 = vmax.f32 %v2931, 0.0
        %v2933 = vrsqrt.pop %v2932
        %v2934 = vmul.f32 %v2932, %v2933
        %vm2935 = vcmp.eq.f32.partialorder %v2932, inf
        %v2936 = vsel %vm2935, %v2932, %v2934
        %vm2937 = vcmp.eq.f32.partialorder %v2932, 0.0
        %v2938 = vand.u32 %v2932, 2147483648
        %v2939 = vsel %vm2937, %v2938, %v2936
        %v2940 = vmax.f32 %v2939, 1e-07
        %v2941 = vtanh.pop %v2940
        %v2942 = vrcp.pop %v2940
        %v2943 = vmul.f32 %v2941, %v2942
        %v2944 = vmul.f32 %v2943, %v2927
        %v2946 = vlaneseq
        %v2947 = vshrl.u32 %v2946, 7
        %v2948 = vsub.s32 0, %v2947
        %v2949 = vrot.slane %v2853, %v2948
        %v2951 = vmul.f32 %v2944, %v2949
        %v2952 = vsel %vm663, %v2951, 0.0
        %2953 = vadd.xlane.f32.xlu0 %v2952
        %v2954 = vpop.xlane.xlu0 %2953
        %v2955 = vmul.f32 %v2944, %v2944
        %v2956 = vsel %vm663, %v2955, 0.0
        %2957 = vadd.xlane.f32.xlu0 %v2956
        %v2958 = vpop.xlane.xlu0 %2957
        %v2959 = vmul.f32 %v2853, %v2853
        %v2960 = vsel %vm795, %v2959, 0.0
        %2961 = vadd.xlane.f32.xlu0 %v2960
        %v2962 = vpop.xlane.xlu0 %2961
        %v2963 = vmul.f32 %v2954, 2.0
        %v2964 = vadd.f32 %v2963, 1.0
        %v2965 = vlaneseq
        %v2966 = vshrl.u32 %v2965, 7
        %v2967 = vsub.s32 0, %v2966
        %v2968 = vrot.slane %v2962, %v2967
        %v2969 = vadd.f32 %v2964, %v2968
        %v2970 = vmul.f32 %v2969, %v2944
        %v2971 = vsub.f32 1.0, %v2958
        %v2972 = vmul.f32 %v2971, %v2949
        %v2973 = vadd.f32 %v2970, %v2972
        %v2974 = vmul.f32 %v2958, %v2968
        %v2975 = vadd.f32 %v2964, %v2974
        %v2976 = vmax.f32 %v2975, 1e-07
        %v2977 = vrcp.pop %v2976
        %v2978 = vmul.f32 %v2973, %v2977
        %v2979 = vld [vmem:[#allocation10] sm:$0xf]
        %v2980 = vld [vmem:[#allocation10 + $0x4] sm:$0xf]
        %v2981 = vld [vmem:[#allocation10 + $0x8] sm:$0xf]
        %v2982 = vld [vmem:[#allocation10 + $0xc] sm:$0xf]
        %v2983 = vld [vmem:[#allocation11] sm:$0x1]
        %v2984 = vmul.f32 %v2978, %v2978
        %v2985 = vsel %vm663, %v2984, 0.0
        %2986 = vadd.xlane.f32.xlu0 %v2985
        %v2987 = vpop.xlane.xlu0 %2986
        %v2988 = vmax.f32 %v2987, 0.0
        %v2989 = vrsqrt.pop %v2988
        %v2990 = vmul.f32 %v2988, %v2989
        %vm2991 = vcmp.eq.f32.partialorder %v2988, inf
        %v2992 = vsel %vm2991, %v2988, %v2990
        %vm2993 = vcmp.eq.f32.partialorder %v2988, 0.0
        %v2994 = vand.u32 %v2988, 2147483648
        %v2995 = vsel %vm2993, %v2994, %v2992
        %v2996 = vmax.f32 %v2995, 1e-07
        %v2997 = vmax.f32 %v2996, -0.999999
        %v2998 = vmin.f32 %v2997, 0.999999
        %v2999 = vadd.f32 %v2998, 1.0
        %v3000 = vlog2.pop %v2999
        %v3001 = vmul.f32 %v3000, 0.6931472
        %v3002 = vmul.f32 -0.5, %v2998
        %v3003 = vadd.f32 %v3002, 1.0
        %v3004 = vmul.f32 %v3003, %v2998
        %v3005 = vand.u32 2147483647, %v2998
        %vm3006 = vcmp.lt.f32.partialorder %v3005, 0.0004427343
        %v3007 = vsel %vm3006, %v3004, %v3001
        %v3008 = vsub.f32 0.0, %v2998
        %v3009 = vadd.f32 %v3008, 1.0
        %v3010 = vlog2.pop %v3009
        %v3011 = vmul.f32 %v3010, 0.6931472
        %v3012 = vmul.f32 -0.5, %v3008
        %v3013 = vadd.f32 %v3012, 1.0
        %v3014 = vmul.f32 %v3013, %v3008
        %v3015 = vand.u32 2147483647, %v3008
        %vm3016 = vcmp.lt.f32.partialorder %v3015, 0.0004427343
        %v3017 = vsel %vm3016, %v3014, %v3011
        %v3018 = vsub.f32 %v3007, %v3017
        %v3019 = vmul.f32 %v3018, 0.5
        %v3020 = vpack.c.bf16 %v2978, %v2978
        %v3025 = vunpack.c.l.b16 %v2979
        %v3026 = vunpack.c.l.b16 %v2980
        %v3027 = vunpack.c.l.b16 %v2981
        %v3028 = vunpack.c.l.b16 %v2982
        %v3029 = vpack.c.b16 %v3026, %v3025
        %v3030 = vpack.c.b16 %v3028, %v3027
        %v3034 = vsel %vm663, %v3020, 0
        %3036 = vmatprep.subr.bf16.mxu0 0
        %3037 = vmatpush1.bf16.msra.mxu0 0
        %3038 = vmatprep.subr.bf16.mxu0 0
        %3039 = vmatpush1.bf16.msra.mxu0 0
        %3040 = vmatprep.subr.bf16.mxu0 0
        %3041 = vmatpush1.bf16.msra.mxu0 0
        %3042 = vmatprep.subr.bf16.mxu0 0
        %3043 = vmatpush1.bf16.msra.mxu0 0
        %3044 = vmatprep.subr.bf16.mxu0 0
        %3045 = vmatpush1.bf16.msra.mxu0 0
        %3046 = vmatprep.subr.bf16.mxu0 0
        %3047 = vmatpush1.bf16.msra.mxu0 0
        %3048 = vmatprep.subr.bf16.mxu0 0
        %3049 = vmatpush1.bf16.msra.mxu0 %v3030
        %3050 = vmatprep.subr.bf16.mxu0 0
        %3051 = vmatpush1.bf16.msra.mxu0 %v3029
        %3052 = vmatprep.subr.bf16.mxu0 0
        %3053 = vmatpush2.bf16.msra.mxu0 0
        %3054 = vmatprep.subr.bf16.mxu0 0
        %3055 = vmatpush2.bf16.msra.mxu0 0
        %3056 = vmatprep.subr.bf16.mxu0 0
        %3057 = vmatpush2.bf16.msra.mxu0 0
        %3058 = vmatprep.subr.bf16.mxu0 0
        %3059 = vmatpush2.bf16.msra.mxu0 0
        %3060 = vmatprep.subr.bf16.mxu0 0
        %3061 = vmatpush2.bf16.msra.mxu0 0
        %3062 = vmatprep.subr.bf16.mxu0 0
        %3063 = vmatpush2.bf16.msra.mxu0 0
        %3064 = vmatprep.subr.bf16.mxu0 0
        %3065 = vmatpush2.bf16.msra.mxu0 0
        %3066 = vmatprep.subr.bf16.mxu0 0
        %3067 = vmatpush2.bf16.msra.mxu0 0
        %3068 = vmatprep.mubr.bf16.mxu0 0
        %3069 = vmatmul.mubr.bf16.gmra.mxu0 %v3034
        %v3070 = vpop.f32.mrf.mxu0
        %v3071 = vadd.f32 0.0, %v3070
        %v3072 = vpop.f32.mrf.mxu0
        %v3073 = vpop.f32.mrf.mxu0
        %v3074 = vpop.f32.mrf.mxu0
        %3075 = vdwg.mxu0
        %v3076 = vmul.f32 %v3071, %v3071
        %vm3077 = vcmask 523264
        %v3078 = vsel %vm3077, %v3076, 0.0
        %3079 = vadd.xlane.f32.xlu0 %v3078
        %v3080 = vpop.xlane.xlu0 %3079
        %v3081 = vmax.f32 %v3080, 0.0
        %v3082 = vrsqrt.pop %v3081
        %v3083 = vmul.f32 %v3081, %v3082
        %vm3084 = vcmp.eq.f32.partialorder %v3081, inf
        %v3085 = vsel %vm3084, %v3081, %v3083
        %vm3086 = vcmp.eq.f32.partialorder %v3081, 0.0
        %v3087 = vand.u32 %v3081, 2147483648
        %v3088 = vsel %vm3086, %v3087, %v3085
        %v3089 = vmax.f32 %v3088, 1e-07
        %v3090 = vrcp.pop %v2996
        %v3091 = vmul.f32 %v3089, %v3090
        %v3092 = vmul.f32 %v3091, %v3019
        %v3093 = vtanh.pop %v3092
        %v3094 = vrcp.pop %v3089
        %v3095 = vmul.f32 %v3071, %v3094
        %v3096 = vmul.f32 %v3093, %v3095
        %v3098 = vlaneseq
        %v3099 = vshrl.u32 %v3098, 7
        %v3100 = vsub.s32 0, %v3099
        %v3101 = vrot.slane %v2983, %v3100
        %v3103 = vmul.f32 %v3096, %v3101
        %v3104 = vsel %vm3077, %v3103, 0.0
        %3105 = vadd.xlane.f32.xlu0 %v3104
        %v3106 = vpop.xlane.xlu0 %3105
        %v3107 = vmul.f32 %v3096, %v3096
        %v3108 = vsel %vm3077, %v3107, 0.0
        %3109 = vadd.xlane.f32.xlu0 %v3108
        %v3110 = vpop.xlane.xlu0 %3109
        %v3111 = vmul.f32 %v2983, %v2983
        %vm3112 = vcmask 516096
        %v3113 = vsel %vm3112, %v3111, 0.0
        %3114 = vadd.xlane.f32.xlu0 %v3113
        %v3115 = vpop.xlane.xlu0 %3114
        %v3116 = vmul.f32 %v3106, 2.0
        %v3117 = vadd.f32 %v3116, 1.0
        %v3118 = vlaneseq
        %v3119 = vshrl.u32 %v3118, 7
        %v3120 = vsub.s32 0, %v3119
        %v3121 = vrot.slane %v3115, %v3120
        %v3122 = vadd.f32 %v3117, %v3121
        %v3123 = vmul.f32 %v3122, %v3096
        %v3124 = vsub.f32 1.0, %v3110
        %v3125 = vmul.f32 %v3124, %v3101
        %v3126 = vadd.f32 %v3123, %v3125
        %v3127 = vmul.f32 %v3110, %v3121
        %v3128 = vadd.f32 %v3117, %v3127
        %v3129 = vmax.f32 %v3128, 1e-07
        %v3130 = vrcp.pop %v3129
        %v3131 = vmul.f32 %v3126, %v3130
        %v3132 = vmul.f32 %v3131, %v3131
        %v3133 = vsel %vm3077, %v3132, 0.0
        %3134 = vadd.xlane.f32.xlu0 %v3133
        %v3135 = vpop.xlane.xlu0 %3134
        %v3136 = vmax.f32 %v3135, 0.0
        %v3137 = vrsqrt.pop %v3136
        %v3138 = vmul.f32 %v3136, %v3137
        %vm3139 = vcmp.eq.f32.partialorder %v3136, inf
        %v3140 = vsel %vm3139, %v3136, %v3138
        %vm3141 = vcmp.eq.f32.partialorder %v3136, 0.0
        %v3142 = vand.u32 %v3136, 2147483648
        %v3143 = vsel %vm3141, %v3142, %v3140
        %v3144 = vmax.f32 %v3143, 1e-07
        %vm3145 = vcmp.gt.f32.partialorder %v3144, 0.99999
        %v3146 = vrcp.pop %v3144
        %v3147 = vmul.f32 0.99999, %v3146
        %v3148 = vsel %vm3145, %v3147, 1.0
        %v3149 = vmul.f32 %v3131, %v3148
        %v3150 = vmul.f32 %v3149, %v3149
        %v3151 = vsel %vm3077, %v3150, 0.0
        %3152 = vadd.xlane.f32.xlu0 %v3151
        %v3153 = vpop.xlane.xlu0 %3152
        %v3154 = vmax.f32 %v3153, 0.0
        %v3155 = vrsqrt.pop %v3154
        %v3156 = vmul.f32 %v3154, %v3155
        %vm3157 = vcmp.eq.f32.partialorder %v3154, inf
        %v3158 = vsel %vm3157, %v3154, %v3156
        %vm3159 = vcmp.eq.f32.partialorder %v3154, 0.0
        %v3160 = vand.u32 %v3154, 2147483648
        %v3161 = vsel %vm3159, %v3160, %v3158
        %v3162 = vmax.f32 %v3161, 1e-07
        %v3163 = vmax.f32 %v3162, -0.999999
        %v3164 = vmin.f32 %v3163, 0.999999
        %v3165 = vadd.f32 %v3164, 1.0
        %v3166 = vlog2.pop %v3165
        %v3167 = vmul.f32 %v3166, 0.6931472
        %v3168 = vmul.f32 -0.5, %v3164
        %v3169 = vadd.f32 %v3168, 1.0
        %v3170 = vmul.f32 %v3169, %v3164
        %v3171 = vand.u32 2147483647, %v3164
        %vm3172 = vcmp.lt.f32.partialorder %v3171, 0.0004427343
        %v3173 = vsel %vm3172, %v3170, %v3167
        %v3174 = vsub.f32 0.0, %v3164
        %v3175 = vadd.f32 %v3174, 1.0
        %v3176 = vlog2.pop %v3175
        %v3177 = vmul.f32 %v3176, 0.6931472
        %v3178 = vmul.f32 -0.5, %v3174
        %v3179 = vadd.f32 %v3178, 1.0
        %v3180 = vmul.f32 %v3179, %v3174
        %v3181 = vand.u32 2147483647, %v3174
        %vm3182 = vcmp.lt.f32.partialorder %v3181, 0.0004427343
        %v3183 = vsel %vm3182, %v3180, %v3177
        %v3184 = vsub.f32 %v3173, %v3183
        %v3185 = vmul.f32 %v3184, 0.5
        %v3186 = vrcp.pop %v3162
        %v3187 = vmul.f32 %v3185, %v3186
        %v3188 = vmul.f32 %v3187, %v3149
        %v3189 = vmax.f32 %v3188, 0.0
        %v3190 = vmul.f32 %v3189, %v3189
        %v3191 = vsel %vm3077, %v3190, 0.0
        %3192 = vadd.xlane.f32.xlu0 %v3191
        %v3193 = vpop.xlane.xlu0 %3192
        %v3194 = vmax.f32 %v3193, 0.0
        %v3195 = vrsqrt.pop %v3194
        %v3196 = vmul.f32 %v3194, %v3195
        %vm3197 = vcmp.eq.f32.partialorder %v3194, inf
        %v3198 = vsel %vm3197, %v3194, %v3196
        %vm3199 = vcmp.eq.f32.partialorder %v3194, 0.0
        %v3200 = vand.u32 %v3194, 2147483648
        %v3201 = vsel %vm3199, %v3200, %v3198
        %v3202 = vmax.f32 %v3201, 1e-07
        %v3203 = vtanh.pop %v3202
        %v3204 = vrcp.pop %v3202
        %v3205 = vmul.f32 %v3203, %v3204
        %v3206 = vmul.f32 %v3205, %v3189
        %v3207 = vld [vmem:[%s9] sm:$0xf]
        %v3208 = vld [vmem:[%s9 + $0x4] sm:$0xf]
        %v3209 = vld [vmem:[%s9 + $0x8] sm:$0xf]
        %v3210 = vld [vmem:[%s9 + $0xc] sm:$0xf]
        %v3211 = vld [vmem:[%s9 + $0x10] sm:$0xf]
        %v3212 = vld [vmem:[%s9 + $0x14] sm:$0xf]
        %v3213 = vld [vmem:[%s9 + $0x18] sm:$0xf]
        %v3214 = vld [vmem:[%s9 + $0x1c] sm:$0xf]
        %v3215 = vld [vmem:[%s10] sm:$0x1]
        %v3216 = vmul.f32 %v3206, %v3206
        %v3217 = vsel %vm3077, %v3216, 0.0
        %3218 = vadd.xlane.f32.xlu0 %v3217
        %v3219 = vpop.xlane.xlu0 %3218
        %v3220 = vmax.f32 %v3219, 0.0
        %v3221 = vrsqrt.pop %v3220
        %v3222 = vmul.f32 %v3220, %v3221
        %vm3223 = vcmp.eq.f32.partialorder %v3220, inf
        %v3224 = vsel %vm3223, %v3220, %v3222
        %vm3225 = vcmp.eq.f32.partialorder %v3220, 0.0
        %v3226 = vand.u32 %v3220, 2147483648
        %v3227 = vsel %vm3225, %v3226, %v3224
        %v3228 = vmax.f32 %v3227, 1e-07
        %v3229 = vmax.f32 %v3228, -0.999999
        %v3230 = vmin.f32 %v3229, 0.999999
        %v3231 = vadd.f32 %v3230, 1.0
        %v3232 = vlog2.pop %v3231
        %v3233 = vmul.f32 %v3232, 0.6931472
        %v3234 = vmul.f32 -0.5, %v3230
        %v3235 = vadd.f32 %v3234, 1.0
        %v3236 = vmul.f32 %v3235, %v3230
        %v3237 = vand.u32 2147483647, %v3230
        %vm3238 = vcmp.lt.f32.partialorder %v3237, 0.0004427343
        %v3239 = vsel %vm3238, %v3236, %v3233
        %v3240 = vsub.f32 0.0, %v3230
        %v3241 = vadd.f32 %v3240, 1.0
        %v3242 = vlog2.pop %v3241
        %v3243 = vmul.f32 %v3242, 0.6931472
        %v3244 = vmul.f32 -0.5, %v3240
        %v3245 = vadd.f32 %v3244, 1.0
        %v3246 = vmul.f32 %v3245, %v3240
        %v3247 = vand.u32 2147483647, %v3240
        %vm3248 = vcmp.lt.f32.partialorder %v3247, 0.0004427343
        %v3249 = vsel %vm3248, %v3246, %v3243
        %v3250 = vsub.f32 %v3239, %v3249
        %v3251 = vmul.f32 %v3250, 0.5
        %v3252 = vpack.c.bf16 %v3206, %v3206
        %v3261 = vunpack.c.l.b16 %v3207
        %v3262 = vunpack.c.l.b16 %v3208
        %v3263 = vunpack.c.l.b16 %v3209
        %v3264 = vunpack.c.l.b16 %v3210
        %v3265 = vunpack.c.l.b16 %v3211
        %v3266 = vunpack.c.l.b16 %v3212
        %v3267 = vunpack.c.l.b16 %v3213
        %v3268 = vunpack.c.l.b16 %v3214
        %v3269 = vpack.c.b16 %v3262, %v3261
        %v3270 = vpack.c.b16 %v3264, %v3263
        %v3271 = vpack.c.b16 %v3266, %v3265
        %v3272 = vpack.c.b16 %v3268, %v3267
        %v3278 = vsel %vm3077, %v3252, 0
        %3280 = vmatprep.subr.bf16.mxu0 0
        %3281 = vmatpush1.bf16.msra.mxu0 0
        %3282 = vmatprep.subr.bf16.mxu0 0
        %3283 = vmatpush1.bf16.msra.mxu0 0
        %3284 = vmatprep.subr.bf16.mxu0 0
        %3285 = vmatpush1.bf16.msra.mxu0 0
        %3286 = vmatprep.subr.bf16.mxu0 0
        %3287 = vmatpush1.bf16.msra.mxu0 0
        %3288 = vmatprep.subr.bf16.mxu0 0
        %3289 = vmatpush1.bf16.msra.mxu0 %v3272
        %3290 = vmatprep.subr.bf16.mxu0 0
        %3291 = vmatpush1.bf16.msra.mxu0 %v3271
        %3292 = vmatprep.subr.bf16.mxu0 0
        %3293 = vmatpush1.bf16.msra.mxu0 %v3270
        %3294 = vmatprep.subr.bf16.mxu0 0
        %3295 = vmatpush1.bf16.msra.mxu0 %v3269
        %3296 = vmatprep.subr.bf16.mxu0 0
        %3297 = vmatpush2.bf16.msra.mxu0 0
        %3298 = vmatprep.subr.bf16.mxu0 0
        %3299 = vmatpush2.bf16.msra.mxu0 0
        %3300 = vmatprep.subr.bf16.mxu0 0
        %3301 = vmatpush2.bf16.msra.mxu0 0
        %3302 = vmatprep.subr.bf16.mxu0 0
        %3303 = vmatpush2.bf16.msra.mxu0 0
        %3304 = vmatprep.subr.bf16.mxu0 0
        %3305 = vmatpush2.bf16.msra.mxu0 0
        %3306 = vmatprep.subr.bf16.mxu0 0
        %3307 = vmatpush2.bf16.msra.mxu0 0
        %3308 = vmatprep.subr.bf16.mxu0 0
        %3309 = vmatpush2.bf16.msra.mxu0 0
        %3310 = vmatprep.subr.bf16.mxu0 0
        %3311 = vmatpush2.bf16.msra.mxu0 0
        %3312 = vmatprep.mubr.bf16.mxu0 0
        %3313 = vmatmul.mubr.bf16.gmra.mxu0 %v3278
        %v3314 = vpop.f32.mrf.mxu0
        %v3315 = vadd.f32 0.0, %v3314
        %v3316 = vpop.f32.mrf.mxu0
        %v3317 = vpop.f32.mrf.mxu0
        %v3318 = vpop.f32.mrf.mxu0
        %3319 = vdwg.mxu0
        %v3320 = vmul.f32 %v3315, %v3315
        %v3321 = vsel %vm663, %v3320, 0.0
        %3322 = vadd.xlane.f32.xlu0 %v3321
        %v3323 = vpop.xlane.xlu0 %3322
        %v3324 = vmax.f32 %v3323, 0.0
        %v3325 = vrsqrt.pop %v3324
        %v3326 = vmul.f32 %v3324, %v3325
        %vm3327 = vcmp.eq.f32.partialorder %v3324, inf
        %v3328 = vsel %vm3327, %v3324, %v3326
        %vm3329 = vcmp.eq.f32.partialorder %v3324, 0.0
        %v3330 = vand.u32 %v3324, 2147483648
        %v3331 = vsel %vm3329, %v3330, %v3328
        %v3332 = vmax.f32 %v3331, 1e-07
        %v3333 = vrcp.pop %v3228
        %v3334 = vmul.f32 %v3332, %v3333
        %v3335 = vmul.f32 %v3334, %v3251
        %v3336 = vtanh.pop %v3335
        %v3337 = vrcp.pop %v3332
        %v3338 = vmul.f32 %v3315, %v3337
        %v3339 = vmul.f32 %v3336, %v3338
        %v3341 = vlaneseq
        %v3342 = vshrl.u32 %v3341, 7
        %v3343 = vsub.s32 0, %v3342
        %v3344 = vrot.slane %v3215, %v3343
        %v3346 = vmul.f32 %v3339, %v3344
        %v3347 = vsel %vm663, %v3346, 0.0
        %3348 = vadd.xlane.f32.xlu0 %v3347
        %v3349 = vpop.xlane.xlu0 %3348
        %v3350 = vmul.f32 %v3339, %v3339
        %v3351 = vsel %vm663, %v3350, 0.0
        %3352 = vadd.xlane.f32.xlu0 %v3351
        %v3353 = vpop.xlane.xlu0 %3352
        %v3354 = vmul.f32 %v3215, %v3215
        %v3355 = vsel %vm795, %v3354, 0.0
        %3356 = vadd.xlane.f32.xlu0 %v3355
        %v3357 = vpop.xlane.xlu0 %3356
        %v3358 = vmul.f32 %v3349, 2.0
        %v3359 = vadd.f32 %v3358, 1.0
        %v3360 = vlaneseq
        %v3361 = vshrl.u32 %v3360, 7
        %v3362 = vsub.s32 0, %v3361
        %v3363 = vrot.slane %v3357, %v3362
        %v3364 = vadd.f32 %v3359, %v3363
        %v3365 = vmul.f32 %v3364, %v3339
        %v3366 = vsub.f32 1.0, %v3353
        %v3367 = vmul.f32 %v3366, %v3344
        %v3368 = vadd.f32 %v3365, %v3367
        %v3369 = vmul.f32 %v3353, %v3363
        %v3370 = vadd.f32 %v3359, %v3369
        %v3371 = vmax.f32 %v3370, 1e-07
        %v3372 = vrcp.pop %v3371
        %v3373 = vmul.f32 %v3368, %v3372
        %v3374 = vmul.f32 %v3373, %v3373
        %v3375 = vsel %vm663, %v3374, 0.0
        %3376 = vadd.xlane.f32.xlu0 %v3375
        %v3377 = vpop.xlane.xlu0 %3376
        %v3378 = vmax.f32 %v3377, 0.0
        %v3379 = vrsqrt.pop %v3378
        %v3380 = vmul.f32 %v3378, %v3379
        %vm3381 = vcmp.eq.f32.partialorder %v3378, inf
        %v3382 = vsel %vm3381, %v3378, %v3380
        %vm3383 = vcmp.eq.f32.partialorder %v3378, 0.0
        %v3384 = vand.u32 %v3378, 2147483648
        %v3385 = vsel %vm3383, %v3384, %v3382
        %v3386 = vmax.f32 %v3385, 1e-07
        %vm3387 = vcmp.gt.f32.partialorder %v3386, 0.99999
        %v3388 = vrcp.pop %v3386
        %v3389 = vmul.f32 0.99999, %v3388
        %v3390 = vsel %vm3387, %v3389, 1.0
        %v3391 = vmul.f32 %v3373, %v3390
        %v3392 = vmul.f32 %v2978, %v3391
        %v3393 = vsel %vm663, %v3392, 0.0
        %3394 = vadd.xlane.f32.xlu0 %v3393
        %v3395 = vpop.xlane.xlu0 %3394
        %v3396 = vmul.f32 %v3391, %v3391
        %v3397 = vsel %vm663, %v3396, 0.0
        %3398 = vadd.xlane.f32.xlu0 %v3397
        %v3399 = vpop.xlane.xlu0 %3398
        %v3400 = vmul.f32 %v3395, 2.0
        %v3401 = vadd.f32 %v3400, 1.0
        %v3402 = vadd.f32 %v3401, %v3399
        %v3403 = vmul.f32 %v3402, %v2978
        %v3404 = vsub.f32 1.0, %v2987
        %v3405 = vmul.f32 %v3404, %v3391
        %v3406 = vadd.f32 %v3403, %v3405
        %v3407 = vmul.f32 %v2987, %v3399
        %v3408 = vadd.f32 %v3401, %v3407
        %v3409 = vmax.f32 %v3408, 1e-07
        %v3410 = vrcp.pop %v3409
        %v3411 = vmul.f32 %v3406, %v3410
        %v3412 = vld [vmem:[%s14] sm:$0x1]
        %v3413 = vld [vmem:[%s15] sm:$0x1]
        %v3414 = vld [vmem:[%s16] sm:$0x1]
        %v3415 = vmul.f32 %v3411, %v3411
        %v3416 = vsel %vm663, %v3415, 0.0
        %3417 = vadd.xlane.f32.xlu0 %v3416
        %v3418 = vpop.xlane.xlu0 %3417
        %v3419 = vmax.f32 %v3418, 0.0
        %v3420 = vrsqrt.pop %v3419
        %v3421 = vmul.f32 %v3419, %v3420
        %vm3422 = vcmp.eq.f32.partialorder %v3419, inf
        %v3423 = vsel %vm3422, %v3419, %v3421
        %vm3424 = vcmp.eq.f32.partialorder %v3419, 0.0
        %v3425 = vand.u32 %v3419, 2147483648
        %v3426 = vsel %vm3424, %v3425, %v3423
        %v3427 = vmax.f32 %v3426, 1e-07
        %v3428 = vmax.f32 %v3427, -0.999999
        %v3429 = vmin.f32 %v3428, 0.999999
        %v3430 = vadd.f32 %v3429, 1.0
        %v3431 = vlog2.pop %v3430
        %v3432 = vmul.f32 %v3431, 0.6931472
        %v3433 = vmul.f32 -0.5, %v3429
        %v3434 = vadd.f32 %v3433, 1.0
        %v3435 = vmul.f32 %v3434, %v3429
        %v3436 = vand.u32 2147483647, %v3429
        %vm3437 = vcmp.lt.f32.partialorder %v3436, 0.0004427343
        %v3438 = vsel %vm3437, %v3435, %v3432
        %v3439 = vsub.f32 0.0, %v3429
        %v3440 = vadd.f32 %v3439, 1.0
        %v3441 = vlog2.pop %v3440
        %v3442 = vmul.f32 %v3441, 0.6931472
        %v3443 = vmul.f32 -0.5, %v3439
        %v3444 = vadd.f32 %v3443, 1.0
        %v3445 = vmul.f32 %v3444, %v3439
        %v3446 = vand.u32 2147483647, %v3439
        %vm3447 = vcmp.lt.f32.partialorder %v3446, 0.0004427343
        %v3448 = vsel %vm3447, %v3445, %v3442
        %v3449 = vsub.f32 %v3438, %v3448
        %v3450 = vmul.f32 %v3449, 0.5
        %v3451 = vrcp.pop %v3427
        %v3452 = vmul.f32 %v3450, %v3451
        %v3453 = vmul.f32 %v3452, %v3411
        %v3454 = vsel %vm663, %v3453, 0.0
        %3455 = vadd.xlane.f32.xlu0 %v3454
        %v3456 = vpop.xlane.xlu0 %3455
        %v3457 = vmul.f32 %v3456, %v2896
        %v3458 = vsub.f32 %v3453, %v3457
        %v3459 = vmul.f32 %v3458, %v3458
        %v3460 = vsel %vm663, %v3459, 0.0
        %3461 = vadd.xlane.f32.xlu0 %v3460
        %v3462 = vpop.xlane.xlu0 %3461
        %v3463 = vmul.f32 %v3462, 0.032258064
        %v3464 = vrsqrt.pop %v3463
        %v3465 = vmul.f32 %v3463, %v3464
        %vm3466 = vcmp.eq.f32.partialorder %v3463, inf
        %v3467 = vsel %vm3466, %v3463, %v3465
        %vm3468 = vcmp.eq.f32.partialorder %v3463, 0.0
        %v3469 = vand.u32 %v3463, 2147483648
        %v3470 = vsel %vm3468, %v3469, %v3467
        %v3471 = vadd.f32 %v3470, 1e-06
        %v3472 = vrcp.pop %v3471
        %v3473 = vmul.f32 %v3458, %v3472
        %v3475 = vlaneseq
        %v3476 = vshrl.u32 %v3475, 7
        %v3477 = vsub.s32 0, %v3476
        %v3478 = vrot.slane %v3412, %v3477
        %v3480 = vmul.f32 %v3478, %v3473
        %v3482 = vlaneseq
        %v3483 = vshrl.u32 %v3482, 7
        %v3484 = vsub.s32 0, %v3483
        %v3485 = vrot.slane %v3413, %v3484
        %v3487 = vadd.f32 %v3480, %v3485
        %v3488 = vmul.f32 %v3487, %v3487
        %v3489 = vsel %vm663, %v3488, 0.0
        %3490 = vadd.xlane.f32.xlu0 %v3489
        %v3491 = vpop.xlane.xlu0 %3490
        %v3492 = vmax.f32 %v3491, 0.0
        %v3493 = vrsqrt.pop %v3492
        %v3494 = vmul.f32 %v3492, %v3493
        %vm3495 = vcmp.eq.f32.partialorder %v3492, inf
        %v3496 = vsel %vm3495, %v3492, %v3494
        %vm3497 = vcmp.eq.f32.partialorder %v3492, 0.0
        %v3498 = vand.u32 %v3492, 2147483648
        %v3499 = vsel %vm3497, %v3498, %v3496
        %v3500 = vmax.f32 %v3499, 1e-07
        %v3501 = vtanh.pop %v3500
        %v3502 = vrcp.pop %v3500
        %v3503 = vmul.f32 %v3501, %v3502
        %v3504 = vmul.f32 %v3503, %v3487
        %v3506 = vlaneseq
        %v3507 = vshrl.u32 %v3506, 7
        %v3508 = vsub.s32 0, %v3507
        %v3509 = vrot.slane %v3414, %v3508
        %v3511 = vmul.f32 %v3504, %v3509
        %v3512 = vsel %vm663, %v3511, 0.0
        %3513 = vadd.xlane.f32.xlu0 %v3512
        %v3514 = vpop.xlane.xlu0 %3513
        %v3515 = vmul.f32 %v3504, %v3504
        %v3516 = vsel %vm663, %v3515, 0.0
        %3517 = vadd.xlane.f32.xlu0 %v3516
        %v3518 = vpop.xlane.xlu0 %3517
        %v3519 = vmul.f32 %v3414, %v3414
        %v3520 = vsel %vm795, %v3519, 0.0
        %3521 = vadd.xlane.f32.xlu0 %v3520
        %v3522 = vpop.xlane.xlu0 %3521
        %v3523 = vmul.f32 %v3514, 2.0
        %v3524 = vadd.f32 %v3523, 1.0
        %v3525 = vlaneseq
        %v3526 = vshrl.u32 %v3525, 7
        %v3527 = vsub.s32 0, %v3526
        %v3528 = vrot.slane %v3522, %v3527
        %v3529 = vadd.f32 %v3524, %v3528
        %v3530 = vmul.f32 %v3529, %v3504
        %v3531 = vsub.f32 1.0, %v3518
        %v3532 = vmul.f32 %v3531, %v3509
        %v3533 = vadd.f32 %v3530, %v3532
        %v3534 = vmul.f32 %v3518, %v3528
        %v3535 = vadd.f32 %v3524, %v3534
        %v3536 = vmax.f32 %v3535, 1e-07
        %v3537 = vrcp.pop %v3536
        %v3538 = vmul.f32 %v3533, %v3537
        %3539 = vst.msk [vmem:[%s648] sm:$0xff] %vm663, %v3538
        %s3540 = sand.u32 %s410, 1
        %s3541 = scalar_lea.sflag [#allocation4], %s3540
        %s3542 = sand.u32 %s410, 1
        %s3543 = smul.addr %s3542, 8
        %s3544 = scalar_lea.vmem [#allocation13], %s3543
        %s3545 = sand.u32 %s436, 1
        %s3546 = scalar_lea.sflag [#allocation15], %s3545
        %s3547 = sand.u32 %s436, 1
        %s3548 = smul.addr %s3547, 32
        %s3549 = scalar_lea.vmem [#allocation14], %s3548
        // Predicated region
        $region113: #{tpu_custom_call.1} parent=87 // pred_check
          %p3550 = pneg %p420
        $region114: #{tpu_custom_call.1} parent=87 // pred_check_branch
          %3552 = sbr.rel (%p3550) target = $region116
        $region115: #{tpu_custom_call.1} parent=87 // pred_region
          %s3554 = ssub.s32 128, 128
          %3555 = vsyncadd %s3541, %s3554
          %s3556 = smul.addr %s40, 128
          %s3557 = scalar_lea.hbm %s17, %s3556
          %s3559 = sshll.u32 %s3544, 4
          %s3560 = int_to_ptr.vmem [resolvable:$true] %s3559
          %3562 = dma.vmem_to_hbm [thread:$0]  %s3560, 128, %s3557, %s3541
        $region116: #{tpu_custom_call.1} parent=87 // pred_fallthru
          _
        // Predicated region
        $region117: #{tpu_custom_call.1} parent=87 // pred_check
          %p3563 = pneg %p446
        $region118: #{tpu_custom_call.1} parent=87 // pred_check_branch
          %3565 = sbr.rel (%p3563) target = $region120
        $region119: #{tpu_custom_call.1} parent=87 // pred_region
          %s3567 = ssub.s32 512, 512
          %3568 = vsyncadd %s3546, %s3567
          %s3569 = smul.addr %s40, 4
          %s3570 = smul.addr %s3569, 128
          %s3571 = scalar_lea.hbm %s18, %s3570
          %s3572 = sshll.u32 %s3549, 4
          %s3573 = int_to_ptr.vmem [resolvable:$true] %s3572
          %3578 = dma.vmem_to_hbm [thread:$0]  %s3573, 512, %s3571, %s3546, 128, 128, 8
        $region120: #{tpu_custom_call.1} parent=87 // pred_fallthru
          _
      $region88: #{tpu_custom_call.1} parent=5 // pred_fallthru
        _
      %p3579 = scmp.le.s32.totalorder 2, %s35
      // Predicated region
      $region121: #{tpu_custom_call.1} parent=5 // pred_check
        %p3580 = pneg %p3579
      $region122: #{tpu_custom_call.1} parent=5 // pred_check_branch
        %3582 = sbr.rel (%p3580) target = $region124
      $region123: #{tpu_custom_call.1} parent=5 // pred_region
        %s3583 = ssub.s32 %s35, 2
        // Predicated region
        $region125: #{tpu_custom_call.1} parent=123 // pred_check
          %p3584 = pneg %p426
        $region126: #{tpu_custom_call.1} parent=123 // pred_check_branch
          %3586 = sbr.rel (%p3584) target = $region128
        $region127: #{tpu_custom_call.1} parent=123 // pred_region
          %s3587 = sand.u32 %s411, 1
          %s3588 = scalar_lea.sflag [#allocation4], %s3587
          %s3589 = sand.u32 %s411, 1
          %s3590 = smul.addr %s3589, 8
          %s3591 = scalar_lea.vmem [#allocation13], %s3590
          %3592 = dma.done %s3588, 128
        $region128: #{tpu_custom_call.1} parent=123 // pred_fallthru
          _
        // Predicated region
        $region129: #{tpu_custom_call.1} parent=123 // pred_check
          %p3593 = pneg %p452
        $region130: #{tpu_custom_call.1} parent=123 // pred_check_branch
          %3595 = sbr.rel (%p3593) target = $region132
        $region131: #{tpu_custom_call.1} parent=123 // pred_region
          %s3596 = sand.u32 %s437, 1
          %s3597 = scalar_lea.sflag [#allocation15], %s3596
          %s3598 = sand.u32 %s437, 1
          %s3599 = smul.addr %s3598, 32
          %s3600 = scalar_lea.vmem [#allocation14], %s3599
          %3601 = dma.done %s3597, 512
        $region132: #{tpu_custom_call.1} parent=123 // pred_fallthru
          _
      $region124: #{tpu_custom_call.1} parent=5 // pred_fallthru
        _
    $region6: #{tpu_custom_call.1} parent=1 // loop_footer
      %s39 = sadd.s32 1, %s35
    $region7: #{tpu_custom_call.1} parent=1 // loop_footer_branch
      %34 = sbr.rel target = $region3
    $region8: #{tpu_custom_call.1} parent=1 // loop_exit
      _
    %3602 = vsyncpa [#allocation3], 1
    %s3603 = scalar_lea.sflag [#allocation3], 1
    %3604 = vsyncpa %s3603, 1
    %3605 = vsyncpa [#allocation6], 1
    %3606 = vsyncpa [#allocation9], 1
    %3607 = vsyncpa [#allocation12], 1
    %3608 = vsyncpa [#allocation4], 1
    %s3609 = scalar_lea.sflag [#allocation4], 1
    %3610 = vsyncpa %s3609, 1
    %3611 = vsyncpa [#allocation15], 1
    %s3612 = scalar_lea.sflag [#allocation15], 1
    %3613 = vsyncpa %s3612, 1

// kernel: tpu_custom_call.1
$region0: #{tpu_custom_call.1}
  #allocation0 [shape = 'u32[]', space=smem, size = 0x4, offset = 0x4, fixed_abs, tag = 'smem constant byte address 0x4 - core index']
  #allocation1 [shape = 'u32[144,128]{1,0:T(1,128)}', space=vmem, size = 0x12000, scoped, tag = 'internal scratch']
  %s0 = inlined_call_operand.vmem [shape: f32[2,8,32], index: 0, kind: input, shape index: {}]
  %s1 = inlined_call_operand.vmem [shape: bf16[32,96], index: 1, kind: input, shape index: {}]
  %s2 = inlined_call_operand.hbm [shape: f32[1,32], index: 2, kind: input, shape index: {}]
  %s3 = inlined_call_operand.hbm [shape: f32[1,32], index: 3, kind: input, shape index: {}]
  %s4 = inlined_call_operand.hbm [shape: f32[1,32], index: 4, kind: input, shape index: {}]
  %s5 = inlined_call_operand.vmem [shape: bf16[32,32], index: 5, kind: input, shape index: {}]
  %s6 = inlined_call_operand.hbm [shape: f32[1,32], index: 6, kind: input, shape index: {}]
  %s7 = inlined_call_operand.hbm [shape: bf16[32,64], index: 7, kind: input, shape index: {}]
  %s8 = inlined_call_operand.hbm [shape: f32[1,64], index: 8, kind: input, shape index: {}]
  %s9 = inlined_call_operand.vmem [shape: bf16[64,32], index: 9, kind: input, shape index: {}]
  %s10 = inlined_call_operand.vmem [shape: f32[1,32], index: 10, kind: input, shape index: {}]
  %s11 = inlined_call_operand.vmem [shape: f32[1,32], index: 11, kind: input, shape index: {}]
  %s12 = inlined_call_operand.vmem [shape: f32[1,32], index: 12, kind: input, shape index: {}]
  %s13 = inlined_call_operand.vmem [shape: f32[1,32], index: 13, kind: input, shape index: {}]
  %s14 = inlined_call_operand.vmem [shape: f32[1,32], index: 14, kind: input, shape index: {}]
  %s15 = inlined_call_operand.vmem [shape: f32[1,32], index: 15, kind: input, shape index: {}]
  %s16 = inlined_call_operand.vmem [shape: f32[1,32], index: 16, kind: input, shape index: {}]
  %s17 = inlined_call_operand.hbm [shape: f32[2,8,32], index: 17, kind: output, shape index: {0}]
  %s18 = inlined_call_operand.hbm [shape: f32[2,4,8,8], index: 18, kind: output, shape index: {1}]
  %19 = xla_tuple %s17, %s18
  %s20 = sld [smem:[#allocation0]]
  $region133: #{tpu_custom_call.1} parent=0
    _
  %s22 = ssub.s32 1, %s20
  %s23 = scalar_select 0, %s22, %s20
  $region1: #{tpu_custom_call.1} parent=0
    #allocation2 [shape = 'u8[512]{0}', space=vmem, size = 0x400, scoped, tag = 'input window, operand 2, single buffered']
    #allocation3 [shape = 's32[2]{0}', space=sflag, size = 0x8, scoped, tag = 'scoped memory for tpu_custom_call.1']
    #allocation4 [shape = 's32[2]{0}', space=sflag, size = 0x8, scoped, tag = 'scoped memory for tpu_custom_call.1']
    #allocation5 [shape = 'u8[512]{0}', space=vmem, size = 0x400, scoped, tag = 'input window, operand 3, single buffered']
    #allocation6 [shape = 's32[1]{0}', space=sflag, size = 0x4, scoped, tag = 'scoped memory for tpu_custom_call.1']
    #allocation7 [shape = 'u8[512]{0}', space=vmem, size = 0x400, scoped, tag = 'input window, operand 4, single buffered']
    #allocation8 [shape = 'u8[512]{0}', space=vmem, size = 0x400, scoped, tag = 'input window, operand 6, single buffered']
    #allocation9 [shape = 's32[1]{0}', space=sflag, size = 0x4, scoped, tag = 'scoped memory for tpu_custom_call.1']
    #allocation10 [shape = 'u8[8192]{0}', space=vmem, size = 0x2000, scoped, tag = 'input window, operand 7, single buffered']
    #allocation11 [shape = 'u8[512]{0}', space=vmem, size = 0x400, scoped, tag = 'input window, operand 8, single buffered']
    #allocation12 [shape = 's32[1]{0}', space=sflag, size = 0x4, scoped, tag = 'scoped memory for tpu_custom_call.1']
    #allocation13 [shape = 'u8[8192]{0}', space=vmem, size = 0x2000, scoped, tag = 'output window, operand 0']
    #allocation14 [shape = 'u8[32768]{0}', space=vmem, size = 0x8000, scoped, tag = 'output window, operand 1']
    #allocation15 [shape = 's32[2]{0}', space=sflag, size = 0x8, scoped, tag = 'scoped memory for tpu_custom_call.1']
    %24 = vsyncpa [#allocation3], 0
    %25 = vsyncpa [#allocation6], 0
    %26 = vsyncpa [#allocation9], 0
    %27 = vsyncpa [#allocation12], 0
    %28 = vsyncpa [#allocation4], 0
    %s29 = scalar_lea.sflag [#allocation4], 1
    %30 = vsyncpa %s29, 0
    %31 = vsyncpa [#allocation15], 0
    %s32 = scalar_lea.sflag [#allocation15], 1
    %33 = vsyncpa %s32, 0
    loop: start=0, step=1, limit=4
    $region2: #{tpu_custom_call.1} parent=1 // loop_pre_header
      _
    $region3: #{tpu_custom_call.1} parent=1 // loop_header
      %s35 = sphi 0, %s39
      %p36 = scmp.ge.s32.totalorder %s35, 4
      %s45 = sphi 0, %s47
      %s48 = sphi 0, %s45
      %s49 = sphi 0, %s48
      %s65 = sphi 0, %s49
      %s69 = sphi 0, %s69
      %s71 = sphi 0, %s69
      %s72 = sphi 0, %s71
      %s86 = sphi 0, %s72
      %s90 = sphi 0, %s90
      %s92 = sphi 0, %s90
      %s93 = sphi 0, %s92
      %s107 = sphi 0, %s93
      %s111 = sphi 0, %s111
      %s113 = sphi 0, %s111
      %s114 = sphi 0, %s113
      %s128 = sphi 0, %s114
      %s132 = sphi 0, %s132
      %s134 = sphi 0, %s132
      %s135 = sphi 0, %s134
      %s149 = sphi 0, %s135
      %s153 = sphi 0, %s153
      %s155 = sphi 0, %s153
      %s156 = sphi 0, %s155
      %s170 = sphi 0, %s156
      %s174 = sphi 0, %s174
      %s176 = sphi 0, %s174
      %s177 = sphi 0, %s176
      %s191 = sphi 0, %s177
      %s195 = sphi 0, %s195
      %s197 = sphi 0, %s195
      %s198 = sphi 0, %s197
      %s212 = sphi 0, %s198
      %s216 = sphi 0, %s216
      %s218 = sphi 0, %s216
      %s219 = sphi 0, %s218
      %s233 = sphi 0, %s219
      %s237 = sphi 0, %s237
      %s239 = sphi 0, %s237
      %s240 = sphi 0, %s239
      %s254 = sphi 0, %s240
      %s258 = sphi 0, %s258
      %s260 = sphi 0, %s258
      %s261 = sphi 0, %s260
      %s275 = sphi 0, %s261
      %s279 = sphi 0, %s279
      %s281 = sphi 0, %s279
      %s282 = sphi 0, %s281
      %s296 = sphi 0, %s282
      %s300 = sphi 0, %s300
      %s302 = sphi 0, %s300
      %s303 = sphi 0, %s302
      %s317 = sphi 0, %s303
      %s321 = sphi 0, %s321
      %s323 = sphi 0, %s321
      %s324 = sphi 0, %s323
      %s338 = sphi 0, %s324
      %s342 = sphi 0, %s342
      %s344 = sphi 0, %s342
      %s345 = sphi 0, %s344
      %s359 = sphi 0, %s345
      %s363 = sphi 0, %s363
      %s365 = sphi 0, %s363
      %s366 = sphi 0, %s365
      %s380 = sphi 0, %s366
      %s384 = sphi 0, %s384
      %s386 = sphi 0, %s384
      %s387 = sphi 0, %s386
      %s401 = sphi 0, %s387
      %s407 = sphi 0, %s409
      %s410 = sphi 0, %s407
      %s411 = sphi 0, %s410
      %s427 = sphi 0, %s411
      %s433 = sphi 0, %s435
      %s436 = sphi 0, %s433
      %s437 = sphi 0, %s436
      %s453 = sphi 0, %s437
    $region4: #{tpu_custom_call.1} parent=1 // loop_header_branch
      %38 = sbr.rel (%p36) target = $region8
    $region5: #{tpu_custom_call.1} parent=1 // loop_body
      %s40 = ssub.s32 %s35, 1
      %s41 = ssub.s32 %s35, 2
      %s42 = sadd.s32 %s35, 1
      %s43 = ssub.s32 %s35, %s42
      %p44 = scmp.eq.s32.totalorder %s43, 0
      %s46 = sadd.s32 %s45, 1
      %s47 = scalar_select %p44, %s45, %s46
      %p50 = pneg %p44
      %p51 = scmp.eq.s32.totalorder %s35, 1
      %p52 = por %p50, %p51
      %p53 = scmp.ne.s32.totalorder %s45, %s48
      %p54 = scmp.eq.s32.totalorder %s35, 0
      %p55 = por %p53, %p54
      %p56 = scmp.ne.s32.totalorder %s45, %s48
      %p57 = scmp.eq.s32.totalorder %s40, 1
      %p58 = por %p56, %p57
      %p59 = scmp.ne.s32.totalorder %s48, %s49
      %p60 = scmp.eq.s32.totalorder %s40, 0
      %p61 = por %p59, %p60
      %p62 = scmp.ne.s32.totalorder %s48, %s49
      %p63 = scmp.eq.s32.totalorder %s41, 1
      %p64 = por %p62, %p63
      %p66 = scmp.ne.s32.totalorder %s49, %s65
      %p67 = scmp.eq.s32.totalorder %s41, 0
      %p68 = por %p66, %p67
      %s70 = sadd.s32 %s69, 1
      %p73 = scmp.eq.s32.totalorder %s35, 1
      %p74 = scmp.ne.s32.totalorder %s69, %s71
      %p75 = scmp.eq.s32.totalorder %s35, 0
      %p76 = por %p74, %p75
      %p77 = scmp.ne.s32.totalorder %s69, %s71
      %p78 = scmp.eq.s32.totalorder %s40, 1
      %p79 = por %p77, %p78
      %p80 = scmp.ne.s32.totalorder %s71, %s72
      %p81 = scmp.eq.s32.totalorder %s40, 0
      %p82 = por %p80, %p81
      %p83 = scmp.ne.s32.totalorder %s71, %s72
      %p84 = scmp.eq.s32.totalorder %s41, 1
      %p85 = por %p83, %p84
      %p87 = scmp.ne.s32.totalorder %s72, %s86
      %p88 = scmp.eq.s32.totalorder %s41, 0
      %p89 = por %p87, %p88
      %s91 = sadd.s32 %s90, 1
      %p94 = scmp.eq.s32.totalorder %s35, 1
      %p95 = scmp.ne.s32.totalorder %s90, %s92
      %p96 = scmp.eq.s32.totalorder %s35, 0
      %p97 = por %p95, %p96
      %p98 = scmp.ne.s32.totalorder %s90, %s92
      %p99 = scmp.eq.s32.totalorder %s40, 1
      %p100 = por %p98, %p99
      %p101 = scmp.ne.s32.totalorder %s92, %s93
      %p102 = scmp.eq.s32.totalorder %s40, 0
      %p103 = por %p101, %p102
      %p104 = scmp.ne.s32.totalorder %s92, %s93
      %p105 = scmp.eq.s32.totalorder %s41, 1
      %p106 = por %p104, %p105
      %p108 = scmp.ne.s32.totalorder %s93, %s107
      %p109 = scmp.eq.s32.totalorder %s41, 0
      %p110 = por %p108, %p109
      %s112 = sadd.s32 %s111, 1
      %p115 = scmp.eq.s32.totalorder %s35, 1
      %p116 = scmp.ne.s32.totalorder %s111, %s113
      %p117 = scmp.eq.s32.totalorder %s35, 0
      %p118 = por %p116, %p117
      %p119 = scmp.ne.s32.totalorder %s111, %s113
      %p120 = scmp.eq.s32.totalorder %s40, 1
      %p121 = por %p119, %p120
      %p122 = scmp.ne.s32.totalorder %s113, %s114
      %p123 = scmp.eq.s32.totalorder %s40, 0
      %p124 = por %p122, %p123
      %p125 = scmp.ne.s32.totalorder %s113, %s114
      %p126 = scmp.eq.s32.totalorder %s41, 1
      %p127 = por %p125, %p126
      %p129 = scmp.ne.s32.totalorder %s114, %s128
      %p130 = scmp.eq.s32.totalorder %s41, 0
      %p131 = por %p129, %p130
      %s133 = sadd.s32 %s132, 1
      %p136 = scmp.eq.s32.totalorder %s35, 1
      %p137 = scmp.ne.s32.totalorder %s132, %s134
      %p138 = scmp.eq.s32.totalorder %s35, 0
      %p139 = por %p137, %p138
      %p140 = scmp.ne.s32.totalorder %s132, %s134
      %p141 = scmp.eq.s32.totalorder %s40, 1
      %p142 = por %p140, %p141
      %p143 = scmp.ne.s32.totalorder %s134, %s135
      %p144 = scmp.eq.s32.totalorder %s40, 0
      %p145 = por %p143, %p144
      %p146 = scmp.ne.s32.totalorder %s134, %s135
      %p147 = scmp.eq.s32.totalorder %s41, 1
      %p148 = por %p146, %p147
      %p150 = scmp.ne.s32.totalorder %s135, %s149
      %p151 = scmp.eq.s32.totalorder %s41, 0
      %p152 = por %p150, %p151
      %s154 = sadd.s32 %s153, 1
      %p157 = scmp.eq.s32.totalorder %s35, 1
      %p158 = scmp.ne.s32.totalorder %s153, %s155
      %p159 = scmp.eq.s32.totalorder %s35, 0
      %p160 = por %p158, %p159
      %p161 = scmp.ne.s32.totalorder %s153, %s155
      %p162 = scmp.eq.s32.totalorder %s40, 1
      %p163 = por %p161, %p162
      %p164 = scmp.ne.s32.totalorder %s155, %s156
      %p165 = scmp.eq.s32.totalorder %s40, 0
      %p166 = por %p164, %p165
      %p167 = scmp.ne.s32.totalorder %s155, %s156
      %p168 = scmp.eq.s32.totalorder %s41, 1
      %p169 = por %p167, %p168
      %p171 = scmp.ne.s32.totalorder %s156, %s170
      %p172 = scmp.eq.s32.totalorder %s41, 0
      %p173 = por %p171, %p172
      %s175 = sadd.s32 %s174, 1
      %p178 = scmp.eq.s32.totalorder %s35, 1
      %p179 = scmp.ne.s32.totalorder %s174, %s176
      %p180 = scmp.eq.s32.totalorder %s35, 0
      %p181 = por %p179, %p180
      %p182 = scmp.ne.s32.totalorder %s174, %s176
      %p183 = scmp.eq.s32.totalorder %s40, 1
      %p184 = por %p182, %p183
      %p185 = scmp.ne.s32.totalorder %s176, %s177
      %p186 = scmp.eq.s32.totalorder %s40, 0
      %p187 = por %p185, %p186
      %p188 = scmp.ne.s32.totalorder %s176, %s177
      %p189 = scmp.eq.s32.totalorder %s41, 1
      %p190 = por %p188, %p189
      %p192 = scmp.ne.s32.totalorder %s177, %s191
      %p193 = scmp.eq.s32.totalorder %s41, 0
      %p194 = por %p192, %p193
      %s196 = sadd.s32 %s195, 1
      %p199 = scmp.eq.s32.totalorder %s35, 1
      %p200 = scmp.ne.s32.totalorder %s195, %s197
      %p201 = scmp.eq.s32.totalorder %s35, 0
      %p202 = por %p200, %p201
      %p203 = scmp.ne.s32.totalorder %s195, %s197
      %p204 = scmp.eq.s32.totalorder %s40, 1
      %p205 = por %p203, %p204
      %p206 = scmp.ne.s32.totalorder %s197, %s198
      %p207 = scmp.eq.s32.totalorder %s40, 0
      %p208 = por %p206, %p207
      %p209 = scmp.ne.s32.totalorder %s197, %s198
      %p210 = scmp.eq.s32.totalorder %s41, 1
      %p211 = por %p209, %p210
      %p213 = scmp.ne.s32.totalorder %s198, %s212
      %p214 = scmp.eq.s32.totalorder %s41, 0
      %p215 = por %p213, %p214
      %s217 = sadd.s32 %s216, 1
      %p220 = scmp.eq.s32.totalorder %s35, 1
      %p221 = scmp.ne.s32.totalorder %s216, %s218
      %p222 = scmp.eq.s32.totalorder %s35, 0
      %p223 = por %p221, %p222
      %p224 = scmp.ne.s32.totalorder %s216, %s218
      %p225 = scmp.eq.s32.totalorder %s40, 1
      %p226 = por %p224, %p225
      %p227 = scmp.ne.s32.totalorder %s218, %s219
      %p228 = scmp.eq.s32.totalorder %s40, 0
      %p229 = por %p227, %p228
      %p230 = scmp.ne.s32.totalorder %s218, %s219
      %p231 = scmp.eq.s32.totalorder %s41, 1
      %p232 = por %p230, %p231
      %p234 = scmp.ne.s32.totalorder %s219, %s233
      %p235 = scmp.eq.s32.totalorder %s41, 0
      %p236 = por %p234, %p235
      %s238 = sadd.s32 %s237, 1
      %p241 = scmp.eq.s32.totalorder %s35, 1
      %p242 = scmp.ne.s32.totalorder %s237, %s239
      %p243 = scmp.eq.s32.totalorder %s35, 0
      %p244 = por %p242, %p243
      %p245 = scmp.ne.s32.totalorder %s237, %s239
      %p246 = scmp.eq.s32.totalorder %s40, 1
      %p247 = por %p245, %p246
      %p248 = scmp.ne.s32.totalorder %s239, %s240
      %p249 = scmp.eq.s32.totalorder %s40, 0
      %p250 = por %p248, %p249
      %p251 = scmp.ne.s32.totalorder %s239, %s240
      %p252 = scmp.eq.s32.totalorder %s41, 1
      %p253 = por %p251, %p252
      %p255 = scmp.ne.s32.totalorder %s240, %s254
      %p256 = scmp.eq.s32.totalorder %s41, 0
      %p257 = por %p255, %p256
      %s259 = sadd.s32 %s258, 1
      %p262 = scmp.eq.s32.totalorder %s35, 1
      %p263 = scmp.ne.s32.totalorder %s258, %s260
      %p264 = scmp.eq.s32.totalorder %s35, 0
      %p265 = por %p263, %p264
      %p266 = scmp.ne.s32.totalorder %s258, %s260
      %p267 = scmp.eq.s32.totalorder %s40, 1
      %p268 = por %p266, %p267
      %p269 = scmp.ne.s32.totalorder %s260, %s261
      %p270 = scmp.eq.s32.totalorder %s40, 0
      %p271 = por %p269, %p270
      %p272 = scmp.ne.s32.totalorder %s260, %s261
      %p273 = scmp.eq.s32.totalorder %s41, 1
      %p274 = por %p272, %p273
      %p276 = scmp.ne.s32.totalorder %s261, %s275
      %p277 = scmp.eq.s32.totalorder %s41, 0
      %p278 = por %p276, %p277
      %s280 = sadd.s32 %s279, 1
      %p283 = scmp.eq.s32.totalorder %s35, 1
      %p284 = scmp.ne.s32.totalorder %s279, %s281
      %p285 = scmp.eq.s32.totalorder %s35, 0
      %p286 = por %p284, %p285
      %p287 = scmp.ne.s32.totalorder %s279, %s281
      %p288 = scmp.eq.s32.totalorder %s40, 1
      %p289 = por %p287, %p288
      %p290 = scmp.ne.s32.totalorder %s281, %s282
      %p291 = scmp.eq.s32.totalorder %s40, 0
      %p292 = por %p290, %p291
      %p293 = scmp.ne.s32.totalorder %s281, %s282
      %p294 = scmp.eq.s32.totalorder %s41, 1
      %p295 = por %p293, %p294
      %p297 = scmp.ne.s32.totalorder %s282, %s296
      %p298 = scmp.eq.s32.totalorder %s41, 0
      %p299 = por %p297, %p298
      %s301 = sadd.s32 %s300, 1
      %p304 = scmp.eq.s32.totalorder %s35, 1
      %p305 = scmp.ne.s32.totalorder %s300, %s302
      %p306 = scmp.eq.s32.totalorder %s35, 0
      %p307 = por %p305, %p306
      %p308 = scmp.ne.s32.totalorder %s300, %s302
      %p309 = scmp.eq.s32.totalorder %s40, 1
      %p310 = por %p308, %p309
      %p311 = scmp.ne.s32.totalorder %s302, %s303
      %p312 = scmp.eq.s32.totalorder %s40, 0
      %p313 = por %p311, %p312
      %p314 = scmp.ne.s32.totalorder %s302, %s303
      %p315 = scmp.eq.s32.totalorder %s41, 1
      %p316 = por %p314, %p315
      %p318 = scmp.ne.s32.totalorder %s303, %s317
      %p319 = scmp.eq.s32.totalorder %s41, 0
      %p320 = por %p318, %p319
      %s322 = sadd.s32 %s321, 1
      %p325 = scmp.eq.s32.totalorder %s35, 1
      %p326 = scmp.ne.s32.totalorder %s321, %s323
      %p327 = scmp.eq.s32.totalorder %s35, 0
      %p328 = por %p326, %p327
      %p329 = scmp.ne.s32.totalorder %s321, %s323
      %p330 = scmp.eq.s32.totalorder %s40, 1
      %p331 = por %p329, %p330
      %p332 = scmp.ne.s32.totalorder %s323, %s324
      %p333 = scmp.eq.s32.totalorder %s40, 0
      %p334 = por %p332, %p333
      %p335 = scmp.ne.s32.totalorder %s323, %s324
      %p336 = scmp.eq.s32.totalorder %s41, 1
      %p337 = por %p335, %p336
      %p339 = scmp.ne.s32.totalorder %s324, %s338
      %p340 = scmp.eq.s32.totalorder %s41, 0
      %p341 = por %p339, %p340
      %s343 = sadd.s32 %s342, 1
      %p346 = scmp.eq.s32.totalorder %s35, 1
      %p347 = scmp.ne.s32.totalorder %s342, %s344
      %p348 = scmp.eq.s32.totalorder %s35, 0
      %p349 = por %p347, %p348
      %p350 = scmp.ne.s32.totalorder %s342, %s344
      %p351 = scmp.eq.s32.totalorder %s40, 1
      %p352 = por %p350, %p351
      %p353 = scmp.ne.s32.totalorder %s344, %s345
      %p354 = scmp.eq.s32.totalorder %s40, 0
      %p355 = por %p353, %p354
      %p356 = scmp.ne.s32.totalorder %s344, %s345
      %p357 = scmp.eq.s32.totalorder %s41, 1
      %p358 = por %p356, %p357
      %p360 = scmp.ne.s32.totalorder %s345, %s359
      %p361 = scmp.eq.s32.totalorder %s41, 0
      %p362 = por %p360, %p361
      %s364 = sadd.s32 %s363, 1
      %p367 = scmp.eq.s32.totalorder %s35, 1
      %p368 = scmp.ne.s32.totalorder %s363, %s365
      %p369 = scmp.eq.s32.totalorder %s35, 0
      %p370 = por %p368, %p369
      %p371 = scmp.ne.s32.totalorder %s363, %s365
      %p372 = scmp.eq.s32.totalorder %s40, 1
      %p373 = por %p371, %p372
      %p374 = scmp.ne.s32.totalorder %s365, %s366
      %p375 = scmp.eq.s32.totalorder %s40, 0
      %p376 = por %p374, %p375
      %p377 = scmp.ne.s32.totalorder %s365, %s366
      %p378 = scmp.eq.s32.totalorder %s41, 1
      %p379 = por %p377, %p378
      %p381 = scmp.ne.s32.totalorder %s366, %s380
      %p382 = scmp.eq.s32.totalorder %s41, 0
      %p383 = por %p381, %p382
      %s385 = sadd.s32 %s384, 1
      %p388 = scmp.eq.s32.totalorder %s35, 1
      %p389 = scmp.ne.s32.totalorder %s384, %s386
      %p390 = scmp.eq.s32.totalorder %s35, 0
      %p391 = por %p389, %p390
      %p392 = scmp.ne.s32.totalorder %s384, %s386
      %p393 = scmp.eq.s32.totalorder %s40, 1
      %p394 = por %p392, %p393
      %p395 = scmp.ne.s32.totalorder %s386, %s387
      %p396 = scmp.eq.s32.totalorder %s40, 0
      %p397 = por %p395, %p396
      %p398 = scmp.ne.s32.totalorder %s386, %s387
      %p399 = scmp.eq.s32.totalorder %s41, 1
      %p400 = por %p398, %p399
      %p402 = scmp.ne.s32.totalorder %s387, %s401
      %p403 = scmp.eq.s32.totalorder %s41, 0
      %p404 = por %p402, %p403
      %s405 = ssub.s32 %s35, %s42
      %p406 = scmp.eq.s32.totalorder %s405, 0
      %s408 = sadd.s32 %s407, 1
      %s409 = scalar_select %p406, %s407, %s408
      %p412 = pneg %p406
      %p413 = scmp.eq.s32.totalorder %s35, 1
      %p414 = por %p412, %p413
      %p415 = scmp.ne.s32.totalorder %s407, %s410
      %p416 = scmp.eq.s32.totalorder %s35, 0
      %p417 = por %p415, %p416
      %p418 = scmp.ne.s32.totalorder %s407, %s410
      %p419 = scmp.eq.s32.totalorder %s40, 1
      %p420 = por %p418, %p419
      %p421 = scmp.ne.s32.totalorder %s410, %s411
      %p422 = scmp.eq.s32.totalorder %s40, 0
      %p423 = por %p421, %p422
      %p424 = scmp.ne.s32.totalorder %s410, %s411
      %p425 = scmp.eq.s32.totalorder %s41, 1
      %p426 = por %p424, %p425
      %p428 = scmp.ne.s32.totalorder %s411, %s427
      %p429 = scmp.eq.s32.totalorder %s41, 0
      %p430 = por %p428, %p429
      %s431 = ssub.s32 %s35, %s42
      %p432 = scmp.eq.s32.totalorder %s431, 0
      %s434 = sadd.s32 %s433, 1
      %s435 = scalar_select %p432, %s433, %s434
      %p438 = pneg %p432
      %p439 = scmp.eq.s32.totalorder %s35, 1
      %p440 = por %p438, %p439
      %p441 = scmp.ne.s32.totalorder %s433, %s436
      %p442 = scmp.eq.s32.totalorder %s35, 0
      %p443 = por %p441, %p442
      %p444 = scmp.ne.s32.totalorder %s433, %s436
      %p445 = scmp.eq.s32.totalorder %s40, 1
      %p446 = por %p444, %p445
      %p447 = scmp.ne.s32.totalorder %s436, %s437
      %p448 = scmp.eq.s32.totalorder %s40, 0
      %p449 = por %p447, %p448
      %p450 = scmp.ne.s32.totalorder %s436, %s437
      %p451 = scmp.eq.s32.totalorder %s41, 1
      %p452 = por %p450, %p451
      %p454 = scmp.ne.s32.totalorder %s437, %s453
      %p455 = scmp.eq.s32.totalorder %s41, 0
      %p456 = por %p454, %p455
      %p457 = scmp.le.s32.totalorder 1, %s35
      %p458 = scmp.lt.s32.totalorder %s35, 3
      %p459 = pnand %p457, %p458
      %p460 = pneg %p459
      // Predicated region
      $region9: #{tpu_custom_call.1} parent=5 // pred_check
        _
      $region10: #{tpu_custom_call.1} parent=5 // pred_check_branch
        %462 = sbr.rel (%p459) target = $region12
      $region11: #{tpu_custom_call.1} parent=5 // pred_region
        %s463 = ssub.s32 %s35, 1
        // Predicated region
        $region13: #{tpu_custom_call.1} parent=11 // pred_check
          %p464 = pneg %p82
        $region14: #{tpu_custom_call.1} parent=11 // pred_check_branch
          %466 = sbr.rel (%p464) target = $region16
        $region15: #{tpu_custom_call.1} parent=11 // pred_region
          _
        $region16: #{tpu_custom_call.1} parent=11 // pred_fallthru
          _
        // Predicated region
        $region17: #{tpu_custom_call.1} parent=11 // pred_check
          %p467 = pneg %p103
        $region18: #{tpu_custom_call.1} parent=11 // pred_check_branch
          %469 = sbr.rel (%p467) target = $region20
        $region19: #{tpu_custom_call.1} parent=11 // pred_region
          %s471 = ssub.s32 16, 16
          %472 = vsyncadd [#allocation3], %s471
          %s474 = sshll.u32 [#allocation2], 4
          %s475 = int_to_ptr.vmem [resolvable:$true] %s474
          %477 = dma.hbm_to_vmem [thread:$0]  %s2, 16, %s475, [#allocation3]
        $region20: #{tpu_custom_call.1} parent=11 // pred_fallthru
          _
        // Predicated region
        $region21: #{tpu_custom_call.1} parent=11 // pred_check
          %p478 = pneg %p124
        $region22: #{tpu_custom_call.1} parent=11 // pred_check_branch
          %480 = sbr.rel (%p478) target = $region24
        $region23: #{tpu_custom_call.1} parent=11 // pred_region
          %s482 = ssub.s32 16, 16
          %483 = vsyncadd [#allocation6], %s482
          %s485 = sshll.u32 [#allocation5], 4
          %s486 = int_to_ptr.vmem [resolvable:$true] %s485
          %488 = dma.hbm_to_vmem [thread:$0]  %s3, 16, %s486, [#allocation6]
        $region24: #{tpu_custom_call.1} parent=11 // pred_fallthru
          _
        // Predicated region
        $region25: #{tpu_custom_call.1} parent=11 // pred_check
          %p489 = pneg %p145
        $region26: #{tpu_custom_call.1} parent=11 // pred_check_branch
          %491 = sbr.rel (%p489) target = $region28
        $region27: #{tpu_custom_call.1} parent=11 // pred_region
          %s493 = ssub.s32 16, 16
          %494 = vsyncadd [#allocation6], %s493
          %s496 = sshll.u32 [#allocation7], 4
          %s497 = int_to_ptr.vmem [resolvable:$true] %s496
          %499 = dma.hbm_to_vmem [thread:$0]  %s4, 16, %s497, [#allocation6]
        $region28: #{tpu_custom_call.1} parent=11 // pred_fallthru
          _
        // Predicated region
        $region29: #{tpu_custom_call.1} parent=11 // pred_check
          %p500 = pneg %p166
        $region30: #{tpu_custom_call.1} parent=11 // pred_check_branch
          %502 = sbr.rel (%p500) target = $region32
        $region31: #{tpu_custom_call.1} parent=11 // pred_region
          _
        $region32: #{tpu_custom_call.1} parent=11 // pred_fallthru
          _
        // Predicated region
        $region33: #{tpu_custom_call.1} parent=11 // pred_check
          %p503 = pneg %p187
        $region34: #{tpu_custom_call.1} parent=11 // pred_check_branch
          %505 = sbr.rel (%p503) target = $region36
        $region35: #{tpu_custom_call.1} parent=11 // pred_region
          %s507 = ssub.s32 16, 16
          %508 = vsyncadd [#allocation9], %s507
          %s510 = sshll.u32 [#allocation8], 4
          %s511 = int_to_ptr.vmem [resolvable:$true] %s510
          %513 = dma.hbm_to_vmem [thread:$0]  %s6, 16, %s511, [#allocation9]
        $region36: #{tpu_custom_call.1} parent=11 // pred_fallthru
          _
        // Predicated region
        $region37: #{tpu_custom_call.1} parent=11 // pred_check
          %p514 = pneg %p208
        $region38: #{tpu_custom_call.1} parent=11 // pred_check_branch
          %516 = sbr.rel (%p514) target = $region40
        $region39: #{tpu_custom_call.1} parent=11 // pred_region
          %s518 = ssub.s32 256, 256
          %519 = vsyncadd [#allocation9], %s518
          %s520 = sshll.u32 [#allocation10], 4
          %s521 = int_to_ptr.vmem [resolvable:$true] %s520
          %526 = dma.hbm_to_vmem [thread:$0]  %s7, 256, %s521, [#allocation9], 64, 64, 4
        $region40: #{tpu_custom_call.1} parent=11 // pred_fallthru
          _
        // Predicated region
        $region41: #{tpu_custom_call.1} parent=11 // pred_check
          %p527 = pneg %p229
        $region42: #{tpu_custom_call.1} parent=11 // pred_check_branch
          %529 = sbr.rel (%p527) target = $region44
        $region43: #{tpu_custom_call.1} parent=11 // pred_region
          %s531 = ssub.s32 16, 16
          %532 = vsyncadd [#allocation12], %s531
          %s534 = sshll.u32 [#allocation11], 4
          %s535 = int_to_ptr.vmem [resolvable:$true] %s534
          %537 = dma.hbm_to_vmem [thread:$0]  %s8, 16, %s535, [#allocation12]
        $region44: #{tpu_custom_call.1} parent=11 // pred_fallthru
          _
        // Predicated region
        $region45: #{tpu_custom_call.1} parent=11 // pred_check
          %p538 = pneg %p250
        $region46: #{tpu_custom_call.1} parent=11 // pred_check_branch
          %540 = sbr.rel (%p538) target = $region48
        $region47: #{tpu_custom_call.1} parent=11 // pred_region
          _
        $region48: #{tpu_custom_call.1} parent=11 // pred_fallthru
          _
        // Predicated region
        $region49: #{tpu_custom_call.1} parent=11 // pred_check
          %p541 = pneg %p271
        $region50: #{tpu_custom_call.1} parent=11 // pred_check_branch
          %543 = sbr.rel (%p541) target = $region52
        $region51: #{tpu_custom_call.1} parent=11 // pred_region
          _
        $region52: #{tpu_custom_call.1} parent=11 // pred_fallthru
          _
        // Predicated region
        $region53: #{tpu_custom_call.1} parent=11 // pred_check
          %p544 = pneg %p292
        $region54: #{tpu_custom_call.1} parent=11 // pred_check_branch
          %546 = sbr.rel (%p544) target = $region56
        $region55: #{tpu_custom_call.1} parent=11 // pred_region
          _
        $region56: #{tpu_custom_call.1} parent=11 // pred_fallthru
          _
        // Predicated region
        $region57: #{tpu_custom_call.1} parent=11 // pred_check
          %p547 = pneg %p313
        $region58: #{tpu_custom_call.1} parent=11 // pred_check_branch
          %549 = sbr.rel (%p547) target = $region60
        $region59: #{tpu_custom_call.1} parent=11 // pred_region
          _
        $region60: #{tpu_custom_call.1} parent=11 // pred_fallthru
          _
        // Predicated region
        $region61: #{tpu_custom_call.1} parent=11 // pred_check
          %p550 = pneg %p334
        $region62: #{tpu_custom_call.1} parent=11 // pred_check_branch
          %552 = sbr.rel (%p550) target = $region64
        $region63: #{tpu_custom_call.1} parent=11 // pred_region
          _
        $region64: #{tpu_custom_call.1} parent=11 // pred_fallthru
          _
        // Predicated region
        $region65: #{tpu_custom_call.1} parent=11 // pred_check
          %p553 = pneg %p355
        $region66: #{tpu_custom_call.1} parent=11 // pred_check_branch
          %555 = sbr.rel (%p553) target = $region68
        $region67: #{tpu_custom_call.1} parent=11 // pred_region
          _
        $region68: #{tpu_custom_call.1} parent=11 // pred_fallthru
          _
        // Predicated region
        $region69: #{tpu_custom_call.1} parent=11 // pred_check
          %p556 = pneg %p376
        $region70: #{tpu_custom_call.1} parent=11 // pred_check_branch
          %558 = sbr.rel (%p556) target = $region72
        $region71: #{tpu_custom_call.1} parent=11 // pred_region
          _
        $region72: #{tpu_custom_call.1} parent=11 // pred_fallthru
          _
        // Predicated region
        $region73: #{tpu_custom_call.1} parent=11 // pred_check
          %p559 = pneg %p397
        $region74: #{tpu_custom_call.1} parent=11 // pred_check_branch
          %561 = sbr.rel (%p559) target = $region76
        $region75: #{tpu_custom_call.1} parent=11 // pred_region
          _
        $region76: #{tpu_custom_call.1} parent=11 // pred_fallthru
          _
      $region12: #{tpu_custom_call.1} parent=5 // pred_fallthru
        _
      %p562 = scmp.lt.s32.totalorder %s35, 2
      // Predicated region
      $region77: #{tpu_custom_call.1} parent=5 // pred_check
        %p563 = pneg %p562
      $region78: #{tpu_custom_call.1} parent=5 // pred_check_branch
        %565 = sbr.rel (%p563) target = $region80
      $region79: #{tpu_custom_call.1} parent=5 // pred_region
        // Predicated region
        $region81: #{tpu_custom_call.1} parent=79 // pred_check
          %p566 = pneg %p55
        $region82: #{tpu_custom_call.1} parent=79 // pred_check_branch
          %568 = sbr.rel (%p566) target = $region84
        $region83: #{tpu_custom_call.1} parent=79 // pred_region
          %p569 = scmp.lt.s32.totalorder %s35, 1
          %s570 = scalar_select %p569, %s35, 1
          %s571 = smul.addr %s570, 8
          %s572 = scalar_lea.vmem %s0, %s571
        $region84: #{tpu_custom_call.1} parent=79 // pred_fallthru
          _
      $region80: #{tpu_custom_call.1} parent=5 // pred_fallthru
        _
      %p573 = scmp.le.s32.totalorder 1, %s35
      %p574 = scmp.lt.s32.totalorder %s35, 3
      %p575 = pnand %p573, %p574
      %p576 = pneg %p575
      // Predicated region
      $region85: #{tpu_custom_call.1} parent=5 // pred_check
        _
      $region86: #{tpu_custom_call.1} parent=5 // pred_check_branch
        %578 = sbr.rel (%p575) target = $region88
      $region87: #{tpu_custom_call.1} parent=5 // pred_region
        %s579 = ssub.s32 %s35, 1
        // Predicated region
        $region89: #{tpu_custom_call.1} parent=87 // pred_check
          %p580 = pneg %p103
        $region90: #{tpu_custom_call.1} parent=87 // pred_check_branch
          %582 = sbr.rel (%p580) target = $region92
        $region91: #{tpu_custom_call.1} parent=87 // pred_region
          %583 = dma.done [#allocation3], 16
        $region92: #{tpu_custom_call.1} parent=87 // pred_fallthru
          _
        // Predicated region
        $region93: #{tpu_custom_call.1} parent=87 // pred_check
          %p584 = pneg %p124
        $region94: #{tpu_custom_call.1} parent=87 // pred_check_branch
          %586 = sbr.rel (%p584) target = $region96
        $region95: #{tpu_custom_call.1} parent=87 // pred_region
          %587 = dma.done [#allocation6], 16
        $region96: #{tpu_custom_call.1} parent=87 // pred_fallthru
          _
        // Predicated region
        $region97: #{tpu_custom_call.1} parent=87 // pred_check
          %p588 = pneg %p145
        $region98: #{tpu_custom_call.1} parent=87 // pred_check_branch
          %590 = sbr.rel (%p588) target = $region100
        $region99: #{tpu_custom_call.1} parent=87 // pred_region
          %591 = dma.done [#allocation6], 16
        $region100: #{tpu_custom_call.1} parent=87 // pred_fallthru
          _
        // Predicated region
        $region101: #{tpu_custom_call.1} parent=87 // pred_check
          %p592 = pneg %p187
        $region102: #{tpu_custom_call.1} parent=87 // pred_check_branch
          %594 = sbr.rel (%p592) target = $region104
        $region103: #{tpu_custom_call.1} parent=87 // pred_region
          %595 = dma.done [#allocation9], 16
        $region104: #{tpu_custom_call.1} parent=87 // pred_fallthru
          _
        // Predicated region
        $region105: #{tpu_custom_call.1} parent=87 // pred_check
          %p596 = pneg %p208
        $region106: #{tpu_custom_call.1} parent=87 // pred_check_branch
          %598 = sbr.rel (%p596) target = $region108
        $region107: #{tpu_custom_call.1} parent=87 // pred_region
          %599 = dma.done [#allocation9], 256
        $region108: #{tpu_custom_call.1} parent=87 // pred_fallthru
          _
        // Predicated region
        $region109: #{tpu_custom_call.1} parent=87 // pred_check
          %p600 = pneg %p229
        $region110: #{tpu_custom_call.1} parent=87 // pred_check_branch
          %602 = sbr.rel (%p600) target = $region112
        $region111: #{tpu_custom_call.1} parent=87 // pred_region
          %603 = dma.done [#allocation12], 16
        $region112: #{tpu_custom_call.1} parent=87 // pred_fallthru
          _
        %p604 = scmp.lt.s32.totalorder %s40, 1
        %s605 = scalar_select %p604, %s40, 1
        %s606 = smul.addr %s605, 8
        %s607 = scalar_lea.vmem %s0, %s606
        %p608 = pneg %p61
        %p609 = pneg %p58
        %p610 = pneg %p82
        %p611 = pneg %p79
        %p612 = pneg %p103
        %p613 = pneg %p100
        %p614 = pneg %p124
        %p615 = pneg %p121
        %p616 = pneg %p145
        %p617 = pneg %p142
        %p618 = pneg %p166
        %p619 = pneg %p163
        %p620 = pneg %p187
        %p621 = pneg %p184
        %p622 = pneg %p208
        %p623 = pneg %p205
        %p624 = pneg %p229
        %p625 = pneg %p226
        %p626 = pneg %p250
        %p627 = pneg %p247
        %p628 = pneg %p271
        %p629 = pneg %p268
        %p630 = pneg %p292
        %p631 = pneg %p289
        %p632 = pneg %p313
        %p633 = pneg %p310
        %p634 = pneg %p334
        %p635 = pneg %p331
        %p636 = pneg %p355
        %p637 = pneg %p352
        %p638 = pneg %p376
        %p639 = pneg %p373
        %p640 = pneg %p397
        %p641 = pneg %p394
        %p642 = pneg %p423
        %p643 = pneg %p420
        %s644 = sand.u32 %s410, 1
        %s645 = scalar_lea.sflag [#allocation4], %s644
        %s646 = sand.u32 %s410, 1
        %s647 = smul.addr %s646, 8
        %s648 = scalar_lea.vmem [#allocation13], %s647
        %p649 = pneg %p449
        %p650 = pneg %p446
        %s651 = sand.u32 %s436, 1
        %s652 = scalar_lea.sflag [#allocation15], %s651
        %s653 = sand.u32 %s436, 1
        %s654 = smul.addr %s653, 32
        %s655 = scalar_lea.vmem [#allocation14], %s654
        %p656 = scmp.lt.s32.totalorder %s40, 1
        %s657 = scalar_select %p656, %s40, 1
        %s658 = smul.addr %s657, 8
        %s659 = scalar_lea.vmem %s0, %s658
        %v661 = vld [vmem:[%s659] sm:$0xff]
        %v662 = vmul.f32 %v661, %v661
        %vm663 = vcmask 261120
        %v664 = vsel %vm663, %v662, 0.0
        %665 = vadd.xlane.f32.xlu0 %v664
        %v666 = vpop.xlane.xlu0 %665
        %v667 = vmax.f32 %v666, 0.0
        %v668 = vrsqrt.pop %v667
        %v669 = vmul.f32 %v667, %v668
        %vm670 = vcmp.eq.f32.partialorder %v667, inf
        %v671 = vsel %vm670, %v667, %v669
        %vm672 = vcmp.eq.f32.partialorder %v667, 0.0
        %v673 = vand.u32 %v667, 2147483648
        %v674 = vsel %vm672, %v673, %v671
        %v675 = vmax.f32 %v674, 1e-07
        %v676 = vmax.f32 %v675, -0.999999
        %v677 = vmin.f32 %v676, 0.999999
        %v678 = vadd.f32 %v677, 1.0
        %v679 = vlog2.pop %v678
        %v680 = vmul.f32 %v679, 0.6931472
        %v681 = vmul.f32 -0.5, %v677
        %v682 = vadd.f32 %v681, 1.0
        %v683 = vmul.f32 %v682, %v677
        %v684 = vand.u32 2147483647, %v677
        %vm685 = vcmp.lt.f32.partialorder %v684, 0.0004427343
        %v686 = vsel %vm685, %v683, %v680
        %v687 = vsub.f32 0.0, %v677
        %v688 = vadd.f32 %v687, 1.0
        %v689 = vlog2.pop %v688
        %v690 = vmul.f32 %v689, 0.6931472
        %v691 = vmul.f32 -0.5, %v687
        %v692 = vadd.f32 %v691, 1.0
        %v693 = vmul.f32 %v692, %v687
        %v694 = vand.u32 2147483647, %v687
        %vm695 = vcmp.lt.f32.partialorder %v694, 0.0004427343
        %v696 = vsel %vm695, %v693, %v690
        %v697 = vsub.f32 %v686, %v696
        %v698 = vmul.f32 %v697, 0.5
        %v699 = vld [vmem:[%s1] sm:$0xf]
        %v700 = vld [vmem:[%s1 + $0x4] sm:$0xf]
        %v701 = vld [vmem:[%s1 + $0x8] sm:$0xf]
        %v702 = vld [vmem:[%s1 + $0xc] sm:$0xf]
        %v703 = vpack.c.bf16 %v661, %v661
        %v708 = vunpack.c.l.b16 %v699
        %v709 = vunpack.c.l.b16 %v700
        %v710 = vunpack.c.l.b16 %v701
        %v711 = vunpack.c.l.b16 %v702
        %v712 = vpack.c.b16 %v709, %v708
        %v713 = vpack.c.b16 %v711, %v710
        %v717 = vsel %vm663, %v703, 0
        %719 = vmatprep.subr.bf16.mxu0 0
        %720 = vmatpush1.bf16.msra.mxu0 0
        %721 = vmatprep.subr.bf16.mxu0 0
        %722 = vmatpush1.bf16.msra.mxu0 0
        %723 = vmatprep.subr.bf16.mxu0 0
        %724 = vmatpush1.bf16.msra.mxu0 0
        %725 = vmatprep.subr.bf16.mxu0 0
        %726 = vmatpush1.bf16.msra.mxu0 0
        %727 = vmatprep.subr.bf16.mxu0 0
        %728 = vmatpush1.bf16.msra.mxu0 0
        %729 = vmatprep.subr.bf16.mxu0 0
        %730 = vmatpush1.bf16.msra.mxu0 0
        %731 = vmatprep.subr.bf16.mxu0 0
        %732 = vmatpush1.bf16.msra.mxu0 %v713
        %733 = vmatprep.subr.bf16.mxu0 0
        %734 = vmatpush1.bf16.msra.mxu0 %v712
        %735 = vmatprep.subr.bf16.mxu0 0
        %736 = vmatpush2.bf16.msra.mxu0 0
        %737 = vmatprep.subr.bf16.mxu0 0
        %738 = vmatpush2.bf16.msra.mxu0 0
        %739 = vmatprep.subr.bf16.mxu0 0
        %740 = vmatpush2.bf16.msra.mxu0 0
        %741 = vmatprep.subr.bf16.mxu0 0
        %742 = vmatpush2.bf16.msra.mxu0 0
        %743 = vmatprep.subr.bf16.mxu0 0
        %744 = vmatpush2.bf16.msra.mxu0 0
        %745 = vmatprep.subr.bf16.mxu0 0
        %746 = vmatpush2.bf16.msra.mxu0 0
        %747 = vmatprep.subr.bf16.mxu0 0
        %748 = vmatpush2.bf16.msra.mxu0 0
        %749 = vmatprep.subr.bf16.mxu0 0
        %750 = vmatpush2.bf16.msra.mxu0 0
        %751 = vmatprep.mubr.bf16.mxu0 0
        %752 = vmatmul.mubr.bf16.gmra.mxu0 %v717
        %v753 = vpop.f32.mrf.mxu0
        %v754 = vadd.f32 0.0, %v753
        %v755 = vpop.f32.mrf.mxu0
        %v756 = vpop.f32.mrf.mxu0
        %v757 = vpop.f32.mrf.mxu0
        %758 = vdwg.mxu0
        %v759 = vld [vmem:[#allocation2] sm:$0x1]
        %v760 = vmul.f32 %v754, %v754
        %v761 = vsel %vm663, %v760, 0.0
        %762 = vadd.xlane.f32.xlu0 %v761
        %v763 = vpop.xlane.xlu0 %762
        %v764 = vmax.f32 %v763, 0.0
        %v765 = vrsqrt.pop %v764
        %v766 = vmul.f32 %v764, %v765
        %vm767 = vcmp.eq.f32.partialorder %v764, inf
        %v768 = vsel %vm767, %v764, %v766
        %vm769 = vcmp.eq.f32.partialorder %v764, 0.0
        %v770 = vand.u32 %v764, 2147483648
        %v771 = vsel %vm769, %v770, %v768
        %v772 = vmax.f32 %v771, 1e-07
        %v773 = vrcp.pop %v675
        %v774 = vmul.f32 %v772, %v773
        %v775 = vmul.f32 %v774, %v698
        %v776 = vtanh.pop %v775
        %v777 = vrcp.pop %v772
        %v778 = vmul.f32 %v754, %v777
        %v779 = vmul.f32 %v776, %v778
        %v781 = vlaneseq
        %v782 = vshrl.u32 %v781, 7
        %v783 = vsub.s32 0, %v782
        %v784 = vrot.slane %v759, %v783
        %v786 = vmul.f32 %v779, %v784
        %v787 = vsel %vm663, %v786, 0.0
        %788 = vadd.xlane.f32.xlu0 %v787
        %v789 = vpop.xlane.xlu0 %788
        %v790 = vmul.f32 %v779, %v779
        %v791 = vsel %vm663, %v790, 0.0
        %792 = vadd.xlane.f32.xlu0 %v791
        %v793 = vpop.xlane.xlu0 %792
        %v794 = vmul.f32 %v759, %v759
        %vm795 = vcmask 253952
        %v796 = vsel %vm795, %v794, 0.0
        %797 = vadd.xlane.f32.xlu0 %v796
        %v798 = vpop.xlane.xlu0 %797
        %v799 = vmul.f32 %v789, 2.0
        %v800 = vadd.f32 %v799, 1.0
        %v801 = vlaneseq
        %v802 = vshrl.u32 %v801, 7
        %v803 = vsub.s32 0, %v802
        %v804 = vrot.slane %v798, %v803
        %v805 = vadd.f32 %v800, %v804
        %v806 = vmul.f32 %v805, %v779
        %v807 = vsub.f32 1.0, %v793
        %v808 = vmul.f32 %v807, %v784
        %v809 = vadd.f32 %v806, %v808
        %v810 = vmul.f32 %v793, %v804
        %v811 = vadd.f32 %v800, %v810
        %v812 = vmax.f32 %v811, 1e-07
        %v813 = vrcp.pop %v812
        %v814 = vmul.f32 %v809, %v813
        %v815 = vmul.f32 %v814, %v814
        %v816 = vsel %vm663, %v815, 0.0
        %817 = vadd.xlane.f32.xlu0 %v816
        %v818 = vpop.xlane.xlu0 %817
        %v819 = vmax.f32 %v818, 0.0
        %v820 = vrsqrt.pop %v819
        %v821 = vmul.f32 %v819, %v820
        %vm822 = vcmp.eq.f32.partialorder %v819, inf
        %v823 = vsel %vm822, %v819, %v821
        %vm824 = vcmp.eq.f32.partialorder %v819, 0.0
        %v825 = vand.u32 %v819, 2147483648
        %v826 = vsel %vm824, %v825, %v823
        %v827 = vmax.f32 %v826, 1e-07
        %vm828 = vcmp.gt.f32.partialorder %v827, 0.99999
        %v829 = vrcp.pop %v827
        %v830 = vmul.f32 0.99999, %v829
        %v831 = vsel %vm828, %v830, 1.0
        %v832 = vmul.f32 %v814, %v831
        %v833 = vld [vmem:[#allocation5] sm:$0x1]
        %835 = vrot.lane.b32.xlu0 %v760, 96
        %v836 = vpop.permute.xlu0 %835
        %v838 = vsel %vm663, %v836, 0.0
        %839 = vadd.xlane.f32.xlu0 %v838
        %v840 = vpop.xlane.xlu0 %839
        %v841 = vmax.f32 %v840, 0.0
        %v842 = vrsqrt.pop %v841
        %v843 = vmul.f32 %v841, %v842
        %vm844 = vcmp.eq.f32.partialorder %v841, inf
        %v845 = vsel %vm844, %v841, %v843
        %vm846 = vcmp.eq.f32.partialorder %v841, 0.0
        %v847 = vand.u32 %v841, 2147483648
        %v848 = vsel %vm846, %v847, %v845
        %v849 = vmax.f32 %v848, 1e-07
        %v850 = vmul.f32 %v849, %v773
        %v851 = vmul.f32 %v850, %v698
        %v852 = vtanh.pop %v851
        %v853 = vrcp.pop %v849
        %v854 = vmul.f32 %v754, %v853
        %v855 = vmul.f32 %v852, %v854
        %v857 = vlaneseq
        %v858 = vshrl.u32 %v857, 7
        %v859 = vsub.s32 0, %v858
        %v860 = vrot.slane %v833, %v859
        %862 = vrot.lane.b32.xlu0 %v860, 32
        %v863 = vpop.permute.xlu0 %862
        %v865 = vmul.f32 %v855, %v863
        %867 = vrot.lane.b32.xlu0 %v865, 96
        %v868 = vpop.permute.xlu0 %867
        %v870 = vsel %vm663, %v868, 0.0
        %871 = vadd.xlane.f32.xlu0 %v870
        %v872 = vpop.xlane.xlu0 %871
        %v873 = vmul.f32 %v855, %v855
        %875 = vrot.lane.b32.xlu0 %v873, 96
        %v876 = vpop.permute.xlu0 %875
        %v878 = vsel %vm663, %v876, 0.0
        %879 = vadd.xlane.f32.xlu0 %v878
        %v880 = vpop.xlane.xlu0 %879
        %v881 = vmul.f32 %v833, %v833
        %v882 = vsel %vm795, %v881, 0.0
        %883 = vadd.xlane.f32.xlu0 %v882
        %v884 = vpop.xlane.xlu0 %883
        %v885 = vmul.f32 %v872, 2.0
        %v886 = vadd.f32 %v885, 1.0
        %v887 = vlaneseq
        %v888 = vshrl.u32 %v887, 7
        %v889 = vsub.s32 0, %v888
        %v890 = vrot.slane %v884, %v889
        %v891 = vadd.f32 %v886, %v890
        %v892 = vmul.f32 %v891, %v855
        %v893 = vsub.f32 1.0, %v880
        %v894 = vmul.f32 %v893, %v860
        %896 = vrot.lane.b32.xlu0 %v894, 32
        %v897 = vpop.permute.xlu0 %896
        %v899 = vadd.f32 %v892, %v897
        %v900 = vmul.f32 %v880, %v890
        %v901 = vadd.f32 %v886, %v900
        %v902 = vmax.f32 %v901, 1e-07
        %v903 = vrcp.pop %v902
        %v904 = vmul.f32 %v899, %v903
        %v905 = vmul.f32 %v904, %v904
        %907 = vrot.lane.b32.xlu0 %v905, 96
        %v908 = vpop.permute.xlu0 %907
        %v910 = vsel %vm663, %v908, 0.0
        %911 = vadd.xlane.f32.xlu0 %v910
        %v912 = vpop.xlane.xlu0 %911
        %v913 = vmax.f32 %v912, 0.0
        %v914 = vrsqrt.pop %v913
        %v915 = vmul.f32 %v913, %v914
        %vm916 = vcmp.eq.f32.partialorder %v913, inf
        %v917 = vsel %vm916, %v913, %v915
        %vm918 = vcmp.eq.f32.partialorder %v913, 0.0
        %v919 = vand.u32 %v913, 2147483648
        %v920 = vsel %vm918, %v919, %v917
        %v921 = vmax.f32 %v920, 1e-07
        %vm922 = vcmp.gt.f32.partialorder %v921, 0.99999
        %v923 = vrcp.pop %v921
        %v924 = vmul.f32 0.99999, %v923
        %v925 = vsel %vm922, %v924, 1.0
        %v926 = vmul.f32 %v904, %v925
        %v927 = vld [vmem:[#allocation7] sm:$0x1]
        %928 = vrot.lane.b32.xlu0 %v760, 64
        %v929 = vpop.permute.xlu0 %928
        %v931 = vsel %vm663, %v929, 0.0
        %932 = vadd.xlane.f32.xlu0 %v931
        %v933 = vpop.xlane.xlu0 %932
        %v934 = vmax.f32 %v933, 0.0
        %v935 = vrsqrt.pop %v934
        %v936 = vmul.f32 %v934, %v935
        %vm937 = vcmp.eq.f32.partialorder %v934, inf
        %v938 = vsel %vm937, %v934, %v936
        %vm939 = vcmp.eq.f32.partialorder %v934, 0.0
        %v940 = vand.u32 %v934, 2147483648
        %v941 = vsel %vm939, %v940, %v938
        %v942 = vmax.f32 %v941, 1e-07
        %v943 = vmul.f32 %v942, %v773
        %v944 = vmul.f32 %v943, %v698
        %v945 = vtanh.pop %v944
        %v946 = vrcp.pop %v942
        %v947 = vmul.f32 %v754, %v946
        %v948 = vmul.f32 %v945, %v947
        %v950 = vlaneseq
        %v951 = vshrl.u32 %v950, 7
        %v952 = vsub.s32 0, %v951
        %v953 = vrot.slane %v927, %v952
        %955 = vrot.lane.b32.xlu0 %v953, 64
        %v956 = vpop.permute.xlu0 %955
        %v958 = vmul.f32 %v948, %v956
        %960 = vrot.lane.b32.xlu0 %v958, 64
        %v961 = vpop.permute.xlu0 %960
        %v963 = vsel %vm663, %v961, 0.0
        %964 = vadd.xlane.f32.xlu0 %v963
        %v965 = vpop.xlane.xlu0 %964
        %v966 = vmul.f32 %v948, %v948
        %968 = vrot.lane.b32.xlu0 %v966, 64
        %v969 = vpop.permute.xlu0 %968
        %v971 = vsel %vm663, %v969, 0.0
        %972 = vadd.xlane.f32.xlu0 %v971
        %v973 = vpop.xlane.xlu0 %972
        %v974 = vmul.f32 %v927, %v927
        %v975 = vsel %vm795, %v974, 0.0
        %976 = vadd.xlane.f32.xlu0 %v975
        %v977 = vpop.xlane.xlu0 %976
        %v978 = vmul.f32 %v965, 2.0
        %v979 = vadd.f32 %v978, 1.0
        %v980 = vlaneseq
        %v981 = vshrl.u32 %v980, 7
        %v982 = vsub.s32 0, %v981
        %v983 = vrot.slane %v977, %v982
        %v984 = vadd.f32 %v979, %v983
        %v985 = vmul.f32 %v984, %v948
        %v986 = vsub.f32 1.0, %v973
        %v987 = vmul.f32 %v986, %v953
        %989 = vrot.lane.b32.xlu0 %v987, 64
        %v990 = vpop.permute.xlu0 %989
        %v992 = vadd.f32 %v985, %v990
        %v993 = vmul.f32 %v973, %v983
        %v994 = vadd.f32 %v979, %v993
        %v995 = vmax.f32 %v994, 1e-07
        %v996 = vrcp.pop %v995
        %v997 = vmul.f32 %v992, %v996
        %v998 = vmul.f32 %v997, %v997
        %1000 = vrot.lane.b32.xlu0 %v998, 64
        %v1001 = vpop.permute.xlu0 %1000
        %v1003 = vsel %vm663, %v1001, 0.0
        %1004 = vadd.xlane.f32.xlu0 %v1003
        %v1005 = vpop.xlane.xlu0 %1004
        %v1006 = vmax.f32 %v1005, 0.0
        %v1007 = vrsqrt.pop %v1006
        %v1008 = vmul.f32 %v1006, %v1007
        %vm1009 = vcmp.eq.f32.partialorder %v1006, inf
        %v1010 = vsel %vm1009, %v1006, %v1008
        %vm1011 = vcmp.eq.f32.partialorder %v1006, 0.0
        %v1012 = vand.u32 %v1006, 2147483648
        %v1013 = vsel %vm1011, %v1012, %v1010
        %v1014 = vmax.f32 %v1013, 1e-07
        %vm1015 = vcmp.gt.f32.partialorder %v1014, 0.99999
        %v1016 = vrcp.pop %v1014
        %v1017 = vmul.f32 0.99999, %v1016
        %v1018 = vsel %vm1015, %v1017, 1.0
        %v1019 = vmul.f32 %v997, %v1018
        %1020 = vxpose.xlu0.b32.start [1/16] %v832, 128
        %1021 = vxpose.xlu0.b32.cont [2/16] 0.0, 128
        %1022 = vxpose.xlu0.b32.cont [3/16] 0.0, 128
        %1023 = vxpose.xlu0.b32.cont [4/16] 0.0, 128
        %1024 = vxpose.xlu0.b32.cont [5/16] 0.0, 128
        %1025 = vxpose.xlu0.b32.cont [6/16] 0.0, 128
        %1026 = vxpose.xlu0.b32.cont [7/16] 0.0, 128
        %1027 = vxpose.xlu0.b32.cont [8/16] 0.0, 128
        %1028 = vxpose.xlu0.b32.cont [9/16] 0.0, 128
        %1029 = vxpose.xlu0.b32.cont [10/16] 0.0, 128
        %1030 = vxpose.xlu0.b32.cont [11/16] 0.0, 128
        %1031 = vxpose.xlu0.b32.cont [12/16] 0.0, 128
        %1032 = vxpose.xlu0.b32.cont [13/16] 0.0, 128
        %1033 = vxpose.xlu0.b32.cont [14/16] 0.0, 128
        %1034 = vxpose.xlu0.b32.cont [15/16] 0.0, 128
        %1035 = vxpose.xlu0.b32.end [16/16] 0.0, 128
        %v1036 = vpop.trf.xlu0
        %v1037 = vpop.trf.xlu0
        %v1038 = vpop.trf.xlu0
        %v1039 = vpop.trf.xlu0
        %v1040 = vpop.trf.xlu0
        %v1041 = vpop.trf.xlu0
        %v1042 = vpop.trf.xlu0
        %v1043 = vpop.trf.xlu0
        %v1044 = vpop.trf.xlu0
        %v1045 = vpop.trf.xlu0
        %v1046 = vpop.trf.xlu0
        %v1047 = vpop.trf.xlu0
        %v1048 = vpop.trf.xlu0
        %v1049 = vpop.trf.xlu0
        %v1050 = vpop.trf.xlu0
        %v1051 = vpop.trf.xlu0
        %1052 = vxpose.xlu0.b32.start [1/16] %v1036, 128
        %1053 = vxpose.xlu0.b32.cont [2/16] 0.0, 128
        %1054 = vxpose.xlu0.b32.cont [3/16] 0.0, 128
        %1055 = vxpose.xlu0.b32.cont [4/16] 0.0, 128
        %1056 = vxpose.xlu0.b32.cont [5/16] 0.0, 128
        %1057 = vxpose.xlu0.b32.cont [6/16] 0.0, 128
        %1058 = vxpose.xlu0.b32.cont [7/16] 0.0, 128
        %1059 = vxpose.xlu0.b32.cont [8/16] 0.0, 128
        %1060 = vxpose.xlu0.b32.cont [9/16] 0.0, 128
        %1061 = vxpose.xlu0.b32.cont [10/16] 0.0, 128
        %1062 = vxpose.xlu0.b32.cont [11/16] 0.0, 128
        %1063 = vxpose.xlu0.b32.cont [12/16] 0.0, 128
        %1064 = vxpose.xlu0.b32.cont [13/16] 0.0, 128
        %1065 = vxpose.xlu0.b32.cont [14/16] 0.0, 128
        %1066 = vxpose.xlu0.b32.cont [15/16] 0.0, 128
        %1067 = vxpose.xlu0.b32.end [16/16] 0.0, 128
        %v1068 = vpop.trf.xlu0
        %v1069 = vpop.trf.xlu0
        %v1070 = vpop.trf.xlu0
        %v1071 = vpop.trf.xlu0
        %v1072 = vpop.trf.xlu0
        %v1073 = vpop.trf.xlu0
        %v1074 = vpop.trf.xlu0
        %v1075 = vpop.trf.xlu0
        %v1076 = vpop.trf.xlu0
        %v1077 = vpop.trf.xlu0
        %v1078 = vpop.trf.xlu0
        %v1079 = vpop.trf.xlu0
        %v1080 = vpop.trf.xlu0
        %v1081 = vpop.trf.xlu0
        %v1082 = vpop.trf.xlu0
        %v1083 = vpop.trf.xlu0
        %1084 = vxpose.xlu0.b32.start [1/16] %v1037, 128
        %1085 = vxpose.xlu0.b32.cont [2/16] 0.0, 128
        %1086 = vxpose.xlu0.b32.cont [3/16] 0.0, 128
        %1087 = vxpose.xlu0.b32.cont [4/16] 0.0, 128
        %1088 = vxpose.xlu0.b32.cont [5/16] 0.0, 128
        %1089 = vxpose.xlu0.b32.cont [6/16] 0.0, 128
        %1090 = vxpose.xlu0.b32.cont [7/16] 0.0, 128
        %1091 = vxpose.xlu0.b32.cont [8/16] 0.0, 128
        %1092 = vxpose.xlu0.b32.cont [9/16] 0.0, 128
        %1093 = vxpose.xlu0.b32.cont [10/16] 0.0, 128
        %1094 = vxpose.xlu0.b32.cont [11/16] 0.0, 128
        %1095 = vxpose.xlu0.b32.cont [12/16] 0.0, 128
        %1096 = vxpose.xlu0.b32.cont [13/16] 0.0, 128
        %1097 = vxpose.xlu0.b32.cont [14/16] 0.0, 128
        %1098 = vxpose.xlu0.b32.cont [15/16] 0.0, 128
        %1099 = vxpose.xlu0.b32.end [16/16] 0.0, 128
        %v1100 = vpop.trf.xlu0
        %v1101 = vpop.trf.xlu0
        %v1102 = vpop.trf.xlu0
        %v1103 = vpop.trf.xlu0
        %v1104 = vpop.trf.xlu0
        %v1105 = vpop.trf.xlu0
        %v1106 = vpop.trf.xlu0
        %v1107 = vpop.trf.xlu0
        %v1108 = vpop.trf.xlu0
        %v1109 = vpop.trf.xlu0
        %v1110 = vpop.trf.xlu0
        %v1111 = vpop.trf.xlu0
        %v1112 = vpop.trf.xlu0
        %v1113 = vpop.trf.xlu0
        %v1114 = vpop.trf.xlu0
        %v1115 = vpop.trf.xlu0
        %1116 = vxpose.xlu0.b32.start [1/16] %v1038, 128
        %1117 = vxpose.xlu0.b32.cont [2/16] 0.0, 128
        %1118 = vxpose.xlu0.b32.cont [3/16] 0.0, 128
        %1119 = vxpose.xlu0.b32.cont [4/16] 0.0, 128
        %1120 = vxpose.xlu0.b32.cont [5/16] 0.0, 128
        %1121 = vxpose.xlu0.b32.cont [6/16] 0.0, 128
        %1122 = vxpose.xlu0.b32.cont [7/16] 0.0, 128
        %1123 = vxpose.xlu0.b32.cont [8/16] 0.0, 128
        %1124 = vxpose.xlu0.b32.cont [9/16] 0.0, 128
        %1125 = vxpose.xlu0.b32.cont [10/16] 0.0, 128
        %1126 = vxpose.xlu0.b32.cont [11/16] 0.0, 128
        %1127 = vxpose.xlu0.b32.cont [12/16] 0.0, 128
        %1128 = vxpose.xlu0.b32.cont [13/16] 0.0, 128
        %1129 = vxpose.xlu0.b32.cont [14/16] 0.0, 128
        %1130 = vxpose.xlu0.b32.cont [15/16] 0.0, 128
        %1131 = vxpose.xlu0.b32.end [16/16] 0.0, 128
        %v1132 = vpop.trf.xlu0
        %v1133 = vpop.trf.xlu0
        %v1134 = vpop.trf.xlu0
        %v1135 = vpop.trf.xlu0
        %v1136 = vpop.trf.xlu0
        %v1137 = vpop.trf.xlu0
        %v1138 = vpop.trf.xlu0
        %v1139 = vpop.trf.xlu0
        %v1140 = vpop.trf.xlu0
        %v1141 = vpop.trf.xlu0
        %v1142 = vpop.trf.xlu0
        %v1143 = vpop.trf.xlu0
        %v1144 = vpop.trf.xlu0
        %v1145 = vpop.trf.xlu0
        %v1146 = vpop.trf.xlu0
        %v1147 = vpop.trf.xlu0
        %1148 = vxpose.xlu0.b32.start [1/16] %v1039, 128
        %1149 = vxpose.xlu0.b32.cont [2/16] 0.0, 128
        %1150 = vxpose.xlu0.b32.cont [3/16] 0.0, 128
        %1151 = vxpose.xlu0.b32.cont [4/16] 0.0, 128
        %1152 = vxpose.xlu0.b32.cont [5/16] 0.0, 128
        %1153 = vxpose.xlu0.b32.cont [6/16] 0.0, 128
        %1154 = vxpose.xlu0.b32.cont [7/16] 0.0, 128
        %1155 = vxpose.xlu0.b32.cont [8/16] 0.0, 128
        %1156 = vxpose.xlu0.b32.cont [9/16] 0.0, 128
        %1157 = vxpose.xlu0.b32.cont [10/16] 0.0, 128
        %1158 = vxpose.xlu0.b32.cont [11/16] 0.0, 128
        %1159 = vxpose.xlu0.b32.cont [12/16] 0.0, 128
        %1160 = vxpose.xlu0.b32.cont [13/16] 0.0, 128
        %1161 = vxpose.xlu0.b32.cont [14/16] 0.0, 128
        %1162 = vxpose.xlu0.b32.cont [15/16] 0.0, 128
        %1163 = vxpose.xlu0.b32.end [16/16] 0.0, 128
        %v1164 = vpop.trf.xlu0
        %v1165 = vpop.trf.xlu0
        %v1166 = vpop.trf.xlu0
        %v1167 = vpop.trf.xlu0
        %v1168 = vpop.trf.xlu0
        %v1169 = vpop.trf.xlu0
        %v1170 = vpop.trf.xlu0
        %v1171 = vpop.trf.xlu0
        %v1172 = vpop.trf.xlu0
        %v1173 = vpop.trf.xlu0
        %v1174 = vpop.trf.xlu0
        %v1175 = vpop.trf.xlu0
        %v1176 = vpop.trf.xlu0
        %v1177 = vpop.trf.xlu0
        %v1178 = vpop.trf.xlu0
        %v1179 = vpop.trf.xlu0
        %1181 = vrot.lane.b32.xlu0 %v926, 96
        %v1182 = vpop.permute.xlu0 %1181
        %1184 = vxpose.xlu0.b32.start [1/16] %v1182, 128
        %1185 = vxpose.xlu0.b32.cont [2/16] 0.0, 128
        %1186 = vxpose.xlu0.b32.cont [3/16] 0.0, 128
        %1187 = vxpose.xlu0.b32.cont [4/16] 0.0, 128
        %1188 = vxpose.xlu0.b32.cont [5/16] 0.0, 128
        %1189 = vxpose.xlu0.b32.cont [6/16] 0.0, 128
        %1190 = vxpose.xlu0.b32.cont [7/16] 0.0, 128
        %1191 = vxpose.xlu0.b32.cont [8/16] 0.0, 128
        %1192 = vxpose.xlu0.b32.cont [9/16] 0.0, 128
        %1193 = vxpose.xlu0.b32.cont [10/16] 0.0, 128
        %1194 = vxpose.xlu0.b32.cont [11/16] 0.0, 128
        %1195 = vxpose.xlu0.b32.cont [12/16] 0.0, 128
        %1196 = vxpose.xlu0.b32.cont [13/16] 0.0, 128
        %1197 = vxpose.xlu0.b32.cont [14/16] 0.0, 128
        %1198 = vxpose.xlu0.b32.cont [15/16] 0.0, 128
        %1199 = vxpose.xlu0.b32.end [16/16] 0.0, 128
        %v1200 = vpop.trf.xlu0
        %v1201 = vpop.trf.xlu0
        %v1202 = vpop.trf.xlu0
        %v1203 = vpop.trf.xlu0
        %v1204 = vpop.trf.xlu0
        %v1205 = vpop.trf.xlu0
        %v1206 = vpop.trf.xlu0
        %v1207 = vpop.trf.xlu0
        %v1208 = vpop.trf.xlu0
        %v1209 = vpop.trf.xlu0
        %v1210 = vpop.trf.xlu0
        %v1211 = vpop.trf.xlu0
        %v1212 = vpop.trf.xlu0
        %v1213 = vpop.trf.xlu0
        %v1214 = vpop.trf.xlu0
        %v1215 = vpop.trf.xlu0
        %1216 = vxpose.xlu0.b32.start [1/16] %v1200, 128
        %1217 = vxpose.xlu0.b32.cont [2/16] 0.0, 128
        %1218 = vxpose.xlu0.b32.cont [3/16] 0.0, 128
        %1219 = vxpose.xlu0.b32.cont [4/16] 0.0, 128
        %1220 = vxpose.xlu0.b32.cont [5/16] 0.0, 128
        %1221 = vxpose.xlu0.b32.cont [6/16] 0.0, 128
        %1222 = vxpose.xlu0.b32.cont [7/16] 0.0, 128
        %1223 = vxpose.xlu0.b32.cont [8/16] 0.0, 128
        %1224 = vxpose.xlu0.b32.cont [9/16] 0.0, 128
        %1225 = vxpose.xlu0.b32.cont [10/16] 0.0, 128
        %1226 = vxpose.xlu0.b32.cont [11/16] 0.0, 128
        %1227 = vxpose.xlu0.b32.cont [12/16] 0.0, 128
        %1228 = vxpose.xlu0.b32.cont [13/16] 0.0, 128
        %1229 = vxpose.xlu0.b32.cont [14/16] 0.0, 128
        %1230 = vxpose.xlu0.b32.cont [15/16] 0.0, 128
        %1231 = vxpose.xlu0.b32.end [16/16] 0.0, 128
        %v1232 = vpop.trf.xlu0
        %v1233 = vpop.trf.xlu0
        %v1234 = vpop.trf.xlu0
        %v1235 = vpop.trf.xlu0
        %v1236 = vpop.trf.xlu0
        %v1237 = vpop.trf.xlu0
        %v1238 = vpop.trf.xlu0
        %v1239 = vpop.trf.xlu0
        %v1240 = vpop.trf.xlu0
        %v1241 = vpop.trf.xlu0
        %v1242 = vpop.trf.xlu0
        %v1243 = vpop.trf.xlu0
        %v1244 = vpop.trf.xlu0
        %v1245 = vpop.trf.xlu0
        %v1246 = vpop.trf.xlu0
        %v1247 = vpop.trf.xlu0
        %1248 = vxpose.xlu0.b32.start [1/16] %v1201, 128
        %1249 = vxpose.xlu0.b32.cont [2/16] 0.0, 128
        %1250 = vxpose.xlu0.b32.cont [3/16] 0.0, 128
        %1251 = vxpose.xlu0.b32.cont [4/16] 0.0, 128
        %1252 = vxpose.xlu0.b32.cont [5/16] 0.0, 128
        %1253 = vxpose.xlu0.b32.cont [6/16] 0.0, 128
        %1254 = vxpose.xlu0.b32.cont [7/16] 0.0, 128
        %1255 = vxpose.xlu0.b32.cont [8/16] 0.0, 128
        %1256 = vxpose.xlu0.b32.cont [9/16] 0.0, 128
        %1257 = vxpose.xlu0.b32.cont [10/16] 0.0, 128
        %1258 = vxpose.xlu0.b32.cont [11/16] 0.0, 128
        %1259 = vxpose.xlu0.b32.cont [12/16] 0.0, 128
        %1260 = vxpose.xlu0.b32.cont [13/16] 0.0, 128
        %1261 = vxpose.xlu0.b32.cont [14/16] 0.0, 128
        %1262 = vxpose.xlu0.b32.cont [15/16] 0.0, 128
        %1263 = vxpose.xlu0.b32.end [16/16] 0.0, 128
        %v1264 = vpop.trf.xlu0
        %v1265 = vpop.trf.xlu0
        %v1266 = vpop.trf.xlu0
        %v1267 = vpop.trf.xlu0
        %v1268 = vpop.trf.xlu0
        %v1269 = vpop.trf.xlu0
        %v1270 = vpop.trf.xlu0
        %v1271 = vpop.trf.xlu0
        %v1272 = vpop.trf.xlu0
        %v1273 = vpop.trf.xlu0
        %v1274 = vpop.trf.xlu0
        %v1275 = vpop.trf.xlu0
        %v1276 = vpop.trf.xlu0
        %v1277 = vpop.trf.xlu0
        %v1278 = vpop.trf.xlu0
        %v1279 = vpop.trf.xlu0
        %1280 = vxpose.xlu0.b32.start [1/16] %v1202, 128
        %1281 = vxpose.xlu0.b32.cont [2/16] 0.0, 128
        %1282 = vxpose.xlu0.b32.cont [3/16] 0.0, 128
        %1283 = vxpose.xlu0.b32.cont [4/16] 0.0, 128
        %1284 = vxpose.xlu0.b32.cont [5/16] 0.0, 128
        %1285 = vxpose.xlu0.b32.cont [6/16] 0.0, 128
        %1286 = vxpose.xlu0.b32.cont [7/16] 0.0, 128
        %1287 = vxpose.xlu0.b32.cont [8/16] 0.0, 128
        %1288 = vxpose.xlu0.b32.cont [9/16] 0.0, 128
        %1289 = vxpose.xlu0.b32.cont [10/16] 0.0, 128
        %1290 = vxpose.xlu0.b32.cont [11/16] 0.0, 128
        %1291 = vxpose.xlu0.b32.cont [12/16] 0.0, 128
        %1292 = vxpose.xlu0.b32.cont [13/16] 0.0, 128
        %1293 = vxpose.xlu0.b32.cont [14/16] 0.0, 128
        %1294 = vxpose.xlu0.b32.cont [15/16] 0.0, 128
        %1295 = vxpose.xlu0.b32.end [16/16] 0.0, 128
        %v1296 = vpop.trf.xlu0
        %v1297 = vpop.trf.xlu0
        %v1298 = vpop.trf.xlu0
        %v1299 = vpop.trf.xlu0
        %v1300 = vpop.trf.xlu0
        %v1301 = vpop.trf.xlu0
        %v1302 = vpop.trf.xlu0
        %v1303 = vpop.trf.xlu0
        %v1304 = vpop.trf.xlu0
        %v1305 = vpop.trf.xlu0
        %v1306 = vpop.trf.xlu0
        %v1307 = vpop.trf.xlu0
        %v1308 = vpop.trf.xlu0
        %v1309 = vpop.trf.xlu0
        %v1310 = vpop.trf.xlu0
        %v1311 = vpop.trf.xlu0
        %1312 = vxpose.xlu0.b32.start [1/16] %v1203, 128
        %1313 = vxpose.xlu0.b32.cont [2/16] 0.0, 128
        %1314 = vxpose.xlu0.b32.cont [3/16] 0.0, 128
        %1315 = vxpose.xlu0.b32.cont [4/16] 0.0, 128
        %1316 = vxpose.xlu0.b32.cont [5/16] 0.0, 128
        %1317 = vxpose.xlu0.b32.cont [6/16] 0.0, 128
        %1318 = vxpose.xlu0.b32.cont [7/16] 0.0, 128
        %1319 = vxpose.xlu0.b32.cont [8/16] 0.0, 128
        %1320 = vxpose.xlu0.b32.cont [9/16] 0.0, 128
        %1321 = vxpose.xlu0.b32.cont [10/16] 0.0, 128
        %1322 = vxpose.xlu0.b32.cont [11/16] 0.0, 128
        %1323 = vxpose.xlu0.b32.cont [12/16] 0.0, 128
        %1324 = vxpose.xlu0.b32.cont [13/16] 0.0, 128
        %1325 = vxpose.xlu0.b32.cont [14/16] 0.0, 128
        %1326 = vxpose.xlu0.b32.cont [15/16] 0.0, 128
        %1327 = vxpose.xlu0.b32.end [16/16] 0.0, 128
        %v1328 = vpop.trf.xlu0
        %v1329 = vpop.trf.xlu0
        %v1330 = vpop.trf.xlu0
        %v1331 = vpop.trf.xlu0
        %v1332 = vpop.trf.xlu0
        %v1333 = vpop.trf.xlu0
        %v1334 = vpop.trf.xlu0
        %v1335 = vpop.trf.xlu0
        %v1336 = vpop.trf.xlu0
        %v1337 = vpop.trf.xlu0
        %v1338 = vpop.trf.xlu0
        %v1339 = vpop.trf.xlu0
        %v1340 = vpop.trf.xlu0
        %v1341 = vpop.trf.xlu0
        %v1342 = vpop.trf.xlu0
        %v1343 = vpop.trf.xlu0
        %1345 = vrot.lane.b32.xlu0 %v1019, 64
        %v1346 = vpop.permute.xlu0 %1345
        %1348 = vxpose.xlu0.b32.start [1/16] %v1346, 128
        %1349 = vxpose.xlu0.b32.cont [2/16] 0.0, 128
        %1350 = vxpose.xlu0.b32.cont [3/16] 0.0, 128
        %1351 = vxpose.xlu0.b32.cont [4/16] 0.0, 128
        %1352 = vxpose.xlu0.b32.cont [5/16] 0.0, 128
        %1353 = vxpose.xlu0.b32.cont [6/16] 0.0, 128
        %1354 = vxpose.xlu0.b32.cont [7/16] 0.0, 128
        %1355 = vxpose.xlu0.b32.cont [8/16] 0.0, 128
        %1356 = vxpose.xlu0.b32.cont [9/16] 0.0, 128
        %1357 = vxpose.xlu0.b32.cont [10/16] 0.0, 128
        %1358 = vxpose.xlu0.b32.cont [11/16] 0.0, 128
        %1359 = vxpose.xlu0.b32.cont [12/16] 0.0, 128
        %1360 = vxpose.xlu0.b32.cont [13/16] 0.0, 128
        %1361 = vxpose.xlu0.b32.cont [14/16] 0.0, 128
        %1362 = vxpose.xlu0.b32.cont [15/16] 0.0, 128
        %1363 = vxpose.xlu0.b32.end [16/16] 0.0, 128
        %v1364 = vpop.trf.xlu0
        %v1365 = vpop.trf.xlu0
        %v1366 = vpop.trf.xlu0
        %v1367 = vpop.trf.xlu0
        %v1368 = vpop.trf.xlu0
        %v1369 = vpop.trf.xlu0
        %v1370 = vpop.trf.xlu0
        %v1371 = vpop.trf.xlu0
        %v1372 = vpop.trf.xlu0
        %v1373 = vpop.trf.xlu0
        %v1374 = vpop.trf.xlu0
        %v1375 = vpop.trf.xlu0
        %v1376 = vpop.trf.xlu0
        %v1377 = vpop.trf.xlu0
        %v1378 = vpop.trf.xlu0
        %v1379 = vpop.trf.xlu0
        %1380 = vxpose.xlu0.b32.start [1/16] %v1364, 128
        %1381 = vxpose.xlu0.b32.cont [2/16] 0.0, 128
        %1382 = vxpose.xlu0.b32.cont [3/16] 0.0, 128
        %1383 = vxpose.xlu0.b32.cont [4/16] 0.0, 128
        %1384 = vxpose.xlu0.b32.cont [5/16] 0.0, 128
        %1385 = vxpose.xlu0.b32.cont [6/16] 0.0, 128
        %1386 = vxpose.xlu0.b32.cont [7/16] 0.0, 128
        %1387 = vxpose.xlu0.b32.cont [8/16] 0.0, 128
        %1388 = vxpose.xlu0.b32.cont [9/16] 0.0, 128
        %1389 = vxpose.xlu0.b32.cont [10/16] 0.0, 128
        %1390 = vxpose.xlu0.b32.cont [11/16] 0.0, 128
        %1391 = vxpose.xlu0.b32.cont [12/16] 0.0, 128
        %1392 = vxpose.xlu0.b32.cont [13/16] 0.0, 128
        %1393 = vxpose.xlu0.b32.cont [14/16] 0.0, 128
        %1394 = vxpose.xlu0.b32.cont [15/16] 0.0, 128
        %1395 = vxpose.xlu0.b32.end [16/16] 0.0, 128
        %v1396 = vpop.trf.xlu0
        %v1397 = vpop.trf.xlu0
        %v1398 = vpop.trf.xlu0
        %v1399 = vpop.trf.xlu0
        %v1400 = vpop.trf.xlu0
        %v1401 = vpop.trf.xlu0
        %v1402 = vpop.trf.xlu0
        %v1403 = vpop.trf.xlu0
        %v1404 = vpop.trf.xlu0
        %v1405 = vpop.trf.xlu0
        %v1406 = vpop.trf.xlu0
        %v1407 = vpop.trf.xlu0
        %v1408 = vpop.trf.xlu0
        %v1409 = vpop.trf.xlu0
        %v1410 = vpop.trf.xlu0
        %v1411 = vpop.trf.xlu0
        %1412 = vxpose.xlu0.b32.start [1/16] %v1365, 128
        %1413 = vxpose.xlu0.b32.cont [2/16] 0.0, 128
        %1414 = vxpose.xlu0.b32.cont [3/16] 0.0, 128
        %1415 = vxpose.xlu0.b32.cont [4/16] 0.0, 128
        %1416 = vxpose.xlu0.b32.cont [5/16] 0.0, 128
        %1417 = vxpose.xlu0.b32.cont [6/16] 0.0, 128
        %1418 = vxpose.xlu0.b32.cont [7/16] 0.0, 128
        %1419 = vxpose.xlu0.b32.cont [8/16] 0.0, 128
        %1420 = vxpose.xlu0.b32.cont [9/16] 0.0, 128
        %1421 = vxpose.xlu0.b32.cont [10/16] 0.0, 128
        %1422 = vxpose.xlu0.b32.cont [11/16] 0.0, 128
        %1423 = vxpose.xlu0.b32.cont [12/16] 0.0, 128
        %1424 = vxpose.xlu0.b32.cont [13/16] 0.0, 128
        %1425 = vxpose.xlu0.b32.cont [14/16] 0.0, 128
        %1426 = vxpose.xlu0.b32.cont [15/16] 0.0, 128
        %1427 = vxpose.xlu0.b32.end [16/16] 0.0, 128
        %v1428 = vpop.trf.xlu0
        %v1429 = vpop.trf.xlu0
        %v1430 = vpop.trf.xlu0
        %v1431 = vpop.trf.xlu0
        %v1432 = vpop.trf.xlu0
        %v1433 = vpop.trf.xlu0
        %v1434 = vpop.trf.xlu0
        %v1435 = vpop.trf.xlu0
        %v1436 = vpop.trf.xlu0
        %v1437 = vpop.trf.xlu0
        %v1438 = vpop.trf.xlu0
        %v1439 = vpop.trf.xlu0
        %v1440 = vpop.trf.xlu0
        %v1441 = vpop.trf.xlu0
        %v1442 = vpop.trf.xlu0
        %v1443 = vpop.trf.xlu0
        %1444 = vxpose.xlu0.b32.start [1/16] %v1366, 128
        %1445 = vxpose.xlu0.b32.cont [2/16] 0.0, 128
        %1446 = vxpose.xlu0.b32.cont [3/16] 0.0, 128
        %1447 = vxpose.xlu0.b32.cont [4/16] 0.0, 128
        %1448 = vxpose.xlu0.b32.cont [5/16] 0.0, 128
        %1449 = vxpose.xlu0.b32.cont [6/16] 0.0, 128
        %1450 = vxpose.xlu0.b32.cont [7/16] 0.0, 128
        %1451 = vxpose.xlu0.b32.cont [8/16] 0.0, 128
        %1452 = vxpose.xlu0.b32.cont [9/16] 0.0, 128
        %1453 = vxpose.xlu0.b32.cont [10/16] 0.0, 128
        %1454 = vxpose.xlu0.b32.cont [11/16] 0.0, 128
        %1455 = vxpose.xlu0.b32.cont [12/16] 0.0, 128
        %1456 = vxpose.xlu0.b32.cont [13/16] 0.0, 128
        %1457 = vxpose.xlu0.b32.cont [14/16] 0.0, 128
        %1458 = vxpose.xlu0.b32.cont [15/16] 0.0, 128
        %1459 = vxpose.xlu0.b32.end [16/16] 0.0, 128
        %v1460 = vpop.trf.xlu0
        %v1461 = vpop.trf.xlu0
        %v1462 = vpop.trf.xlu0
        %v1463 = vpop.trf.xlu0
        %v1464 = vpop.trf.xlu0
        %v1465 = vpop.trf.xlu0
        %v1466 = vpop.trf.xlu0
        %v1467 = vpop.trf.xlu0
        %v1468 = vpop.trf.xlu0
        %v1469 = vpop.trf.xlu0
        %v1470 = vpop.trf.xlu0
        %v1471 = vpop.trf.xlu0
        %v1472 = vpop.trf.xlu0
        %v1473 = vpop.trf.xlu0
        %v1474 = vpop.trf.xlu0
        %v1475 = vpop.trf.xlu0
        %1476 = vxpose.xlu0.b32.start [1/16] %v1367, 128
        %1477 = vxpose.xlu0.b32.cont [2/16] 0.0, 128
        %1478 = vxpose.xlu0.b32.cont [3/16] 0.0, 128
        %1479 = vxpose.xlu0.b32.cont [4/16] 0.0, 128
        %1480 = vxpose.xlu0.b32.cont [5/16] 0.0, 128
        %1481 = vxpose.xlu0.b32.cont [6/16] 0.0, 128
        %1482 = vxpose.xlu0.b32.cont [7/16] 0.0, 128
        %1483 = vxpose.xlu0.b32.cont [8/16] 0.0, 128
        %1484 = vxpose.xlu0.b32.cont [9/16] 0.0, 128
        %1485 = vxpose.xlu0.b32.cont [10/16] 0.0, 128
        %1486 = vxpose.xlu0.b32.cont [11/16] 0.0, 128
        %1487 = vxpose.xlu0.b32.cont [12/16] 0.0, 128
        %1488 = vxpose.xlu0.b32.cont [13/16] 0.0, 128
        %1489 = vxpose.xlu0.b32.cont [14/16] 0.0, 128
        %1490 = vxpose.xlu0.b32.cont [15/16] 0.0, 128
        %1491 = vxpose.xlu0.b32.end [16/16] 0.0, 128
        %v1492 = vpop.trf.xlu0
        %v1493 = vpop.trf.xlu0
        %v1494 = vpop.trf.xlu0
        %v1495 = vpop.trf.xlu0
        %v1496 = vpop.trf.xlu0
        %v1497 = vpop.trf.xlu0
        %v1498 = vpop.trf.xlu0
        %v1499 = vpop.trf.xlu0
        %v1500 = vpop.trf.xlu0
        %v1501 = vpop.trf.xlu0
        %v1502 = vpop.trf.xlu0
        %v1503 = vpop.trf.xlu0
        %v1504 = vpop.trf.xlu0
        %v1505 = vpop.trf.xlu0
        %v1506 = vpop.trf.xlu0
        %v1507 = vpop.trf.xlu0
        %v1508 = vmul.f32 %v1068, %v1068
        %v1509 = vmul.f32 %v1100, %v1100
        %v1510 = vmul.f32 %v1132, %v1132
        %v1511 = vmul.f32 %v1164, %v1164
        %vm1512 = vcmask 64512
        %v1513 = vsel %vm1512, %v1508, 0.0
        %1514 = vadd.xlane.f32.xlu0 %v1513
        %v1515 = vpop.xlane.xlu0 %1514
        %v1516 = vsel %vm1512, %v1509, 0.0
        %1517 = vadd.xlane.f32.xlu0 %v1516
        %v1518 = vpop.xlane.xlu0 %1517
        %v1519 = vsel %vm1512, %v1510, 0.0
        %1520 = vadd.xlane.f32.xlu0 %v1519
        %v1521 = vpop.xlane.xlu0 %1520
        %v1522 = vsel %vm1512, %v1511, 0.0
        %1523 = vadd.xlane.f32.xlu0 %v1522
        %v1524 = vpop.xlane.xlu0 %1523
        %v1525 = vmul.f32 %v1232, %v1232
        %v1526 = vmul.f32 %v1264, %v1264
        %v1527 = vmul.f32 %v1296, %v1296
        %v1528 = vmul.f32 %v1328, %v1328
        %v1529 = vsel %vm1512, %v1525, 0.0
        %1530 = vadd.xlane.f32.xlu0 %v1529
        %v1531 = vpop.xlane.xlu0 %1530
        %v1532 = vsel %vm1512, %v1526, 0.0
        %1533 = vadd.xlane.f32.xlu0 %v1532
        %v1534 = vpop.xlane.xlu0 %1533
        %v1535 = vsel %vm1512, %v1527, 0.0
        %1536 = vadd.xlane.f32.xlu0 %v1535
        %v1537 = vpop.xlane.xlu0 %1536
        %v1538 = vsel %vm1512, %v1528, 0.0
        %1539 = vadd.xlane.f32.xlu0 %v1538
        %v1540 = vpop.xlane.xlu0 %1539
        %v1541 = vmul.f32 %v1396, %v1396
        %v1542 = vmul.f32 %v1428, %v1428
        %v1543 = vmul.f32 %v1460, %v1460
        %v1544 = vmul.f32 %v1492, %v1492
        %v1545 = vsel %vm1512, %v1541, 0.0
        %1546 = vadd.xlane.f32.xlu0 %v1545
        %v1547 = vpop.xlane.xlu0 %1546
        %v1548 = vsel %vm1512, %v1542, 0.0
        %1549 = vadd.xlane.f32.xlu0 %v1548
        %v1550 = vpop.xlane.xlu0 %1549
        %v1551 = vsel %vm1512, %v1543, 0.0
        %1552 = vadd.xlane.f32.xlu0 %v1551
        %v1553 = vpop.xlane.xlu0 %1552
        %v1554 = vsel %vm1512, %v1544, 0.0
        %1555 = vadd.xlane.f32.xlu0 %v1554
        %v1556 = vpop.xlane.xlu0 %1555
        %v1557 = vmax.f32 %v1547, 0.0
        %v1558 = vmax.f32 %v1550, 0.0
        %v1559 = vmax.f32 %v1553, 0.0
        %v1560 = vmax.f32 %v1556, 0.0
        %v1561 = vrsqrt.pop %v1557
        %v1562 = vmul.f32 %v1557, %v1561
        %vm1563 = vcmp.eq.f32.partialorder %v1557, inf
        %v1564 = vsel %vm1563, %v1557, %v1562
        %vm1565 = vcmp.eq.f32.partialorder %v1557, 0.0
        %v1566 = vand.u32 %v1557, 2147483648
        %v1567 = vsel %vm1565, %v1566, %v1564
        %v1568 = vrsqrt.pop %v1558
        %v1569 = vmul.f32 %v1558, %v1568
        %vm1570 = vcmp.eq.f32.partialorder %v1558, inf
        %v1571 = vsel %vm1570, %v1558, %v1569
        %vm1572 = vcmp.eq.f32.partialorder %v1558, 0.0
        %v1573 = vand.u32 %v1558, 2147483648
        %v1574 = vsel %vm1572, %v1573, %v1571
        %v1575 = vrsqrt.pop %v1559
        %v1576 = vmul.f32 %v1559, %v1575
        %vm1577 = vcmp.eq.f32.partialorder %v1559, inf
        %v1578 = vsel %vm1577, %v1559, %v1576
        %vm1579 = vcmp.eq.f32.partialorder %v1559, 0.0
        %v1580 = vand.u32 %v1559, 2147483648
        %v1581 = vsel %vm1579, %v1580, %v1578
        %v1582 = vrsqrt.pop %v1560
        %v1583 = vmul.f32 %v1560, %v1582
        %vm1584 = vcmp.eq.f32.partialorder %v1560, inf
        %v1585 = vsel %vm1584, %v1560, %v1583
        %vm1586 = vcmp.eq.f32.partialorder %v1560, 0.0
        %v1587 = vand.u32 %v1560, 2147483648
        %v1588 = vsel %vm1586, %v1587, %v1585
        %v1589 = vmax.f32 %v1567, 1e-07
        %v1590 = vmax.f32 %v1574, 1e-07
        %v1591 = vmax.f32 %v1581, 1e-07
        %v1592 = vmax.f32 %v1588, 1e-07
        %v1593 = vmax.f32 %v1589, -0.999999
        %v1594 = vmax.f32 %v1590, -0.999999
        %v1595 = vmax.f32 %v1591, -0.999999
        %v1596 = vmax.f32 %v1592, -0.999999
        %v1597 = vmin.f32 %v1593, 0.999999
        %v1598 = vmin.f32 %v1594, 0.999999
        %v1599 = vmin.f32 %v1595, 0.999999
        %v1600 = vmin.f32 %v1596, 0.999999
        %v1601 = vadd.f32 %v1597, 1.0
        %v1602 = vlog2.pop %v1601
        %v1603 = vmul.f32 %v1602, 0.6931472
        %v1604 = vmul.f32 -0.5, %v1597
        %v1605 = vadd.f32 %v1604, 1.0
        %v1606 = vmul.f32 %v1605, %v1597
        %v1607 = vand.u32 2147483647, %v1597
        %vm1608 = vcmp.lt.f32.partialorder %v1607, 0.0004427343
        %v1609 = vsel %vm1608, %v1606, %v1603
        %v1610 = vadd.f32 %v1598, 1.0
        %v1611 = vlog2.pop %v1610
        %v1612 = vmul.f32 %v1611, 0.6931472
        %v1613 = vmul.f32 -0.5, %v1598
        %v1614 = vadd.f32 %v1613, 1.0
        %v1615 = vmul.f32 %v1614, %v1598
        %v1616 = vand.u32 2147483647, %v1598
        %vm1617 = vcmp.lt.f32.partialorder %v1616, 0.0004427343
        %v1618 = vsel %vm1617, %v1615, %v1612
        %v1619 = vadd.f32 %v1599, 1.0
        %v1620 = vlog2.pop %v1619
        %v1621 = vmul.f32 %v1620, 0.6931472
        %v1622 = vmul.f32 -0.5, %v1599
        %v1623 = vadd.f32 %v1622, 1.0
        %v1624 = vmul.f32 %v1623, %v1599
        %v1625 = vand.u32 2147483647, %v1599
        %vm1626 = vcmp.lt.f32.partialorder %v1625, 0.0004427343
        %v1627 = vsel %vm1626, %v1624, %v1621
        %v1628 = vadd.f32 %v1600, 1.0
        %v1629 = vlog2.pop %v1628
        %v1630 = vmul.f32 %v1629, 0.6931472
        %v1631 = vmul.f32 -0.5, %v1600
        %v1632 = vadd.f32 %v1631, 1.0
        %v1633 = vmul.f32 %v1632, %v1600
        %v1634 = vand.u32 2147483647, %v1600
        %vm1635 = vcmp.lt.f32.partialorder %v1634, 0.0004427343
        %v1636 = vsel %vm1635, %v1633, %v1630
        %v1637 = vsub.f32 0.0, %v1597
        %v1638 = vsub.f32 0.0, %v1598
        %v1639 = vsub.f32 0.0, %v1599
        %v1640 = vsub.f32 0.0, %v1600
        %v1641 = vadd.f32 %v1637, 1.0
        %v1642 = vlog2.pop %v1641
        %v1643 = vmul.f32 %v1642, 0.6931472
        %v1644 = vmul.f32 -0.5, %v1637
        %v1645 = vadd.f32 %v1644, 1.0
        %v1646 = vmul.f32 %v1645, %v1637
        %v1647 = vand.u32 2147483647, %v1637
        %vm1648 = vcmp.lt.f32.partialorder %v1647, 0.0004427343
        %v1649 = vsel %vm1648, %v1646, %v1643
        %v1650 = vadd.f32 %v1638, 1.0
        %v1651 = vlog2.pop %v1650
        %v1652 = vmul.f32 %v1651, 0.6931472
        %v1653 = vmul.f32 -0.5, %v1638
        %v1654 = vadd.f32 %v1653, 1.0
        %v1655 = vmul.f32 %v1654, %v1638
        %v1656 = vand.u32 2147483647, %v1638
        %vm1657 = vcmp.lt.f32.partialorder %v1656, 0.0004427343
        %v1658 = vsel %vm1657, %v1655, %v1652
        %v1659 = vadd.f32 %v1639, 1.0
        %v1660 = vlog2.pop %v1659
        %v1661 = vmul.f32 %v1660, 0.6931472
        %v1662 = vmul.f32 -0.5, %v1639
        %v1663 = vadd.f32 %v1662, 1.0
        %v1664 = vmul.f32 %v1663, %v1639
        %v1665 = vand.u32 2147483647, %v1639
        %vm1666 = vcmp.lt.f32.partialorder %v1665, 0.0004427343
        %v1667 = vsel %vm1666, %v1664, %v1661
        %v1668 = vadd.f32 %v1640, 1.0
        %v1669 = vlog2.pop %v1668
        %v1670 = vmul.f32 %v1669, 0.6931472
        %v1671 = vmul.f32 -0.5, %v1640
        %v1672 = vadd.f32 %v1671, 1.0
        %v1673 = vmul.f32 %v1672, %v1640
        %v1674 = vand.u32 2147483647, %v1640
        %vm1675 = vcmp.lt.f32.partialorder %v1674, 0.0004427343
        %v1676 = vsel %vm1675, %v1673, %v1670
        %v1677 = vsub.f32 %v1609, %v1649
        %v1678 = vsub.f32 %v1618, %v1658
        %v1679 = vsub.f32 %v1627, %v1667
        %v1680 = vsub.f32 %v1636, %v1676
        %v1681 = vmul.f32 %v1677, 0.5
        %v1682 = vmul.f32 %v1678, 0.5
        %v1683 = vmul.f32 %v1679, 0.5
        %v1684 = vmul.f32 %v1680, 0.5
        %v1685 = vrcp.pop %v1589
        %v1686 = vmul.f32 %v1681, %v1685
        %v1687 = vrcp.pop %v1590
        %v1688 = vmul.f32 %v1682, %v1687
        %v1689 = vrcp.pop %v1591
        %v1690 = vmul.f32 %v1683, %v1689
        %v1691 = vrcp.pop %v1592
        %v1692 = vmul.f32 %v1684, %v1691
        %v1693 = vmul.f32 %v1686, %v1396
        %v1694 = vmul.f32 %v1688, %v1428
        %v1695 = vmul.f32 %v1690, %v1460
        %v1696 = vmul.f32 %v1692, %v1492
        %v1698 = vsel %vm1512, %v1068, 0
        %v1701 = vsel %vm1512, %v1232, 0
        %1703 = vmatprep.subr.mxu0 0.0
        %1704 = vmatpush1.xpose.msra.mxu0 0.0
        %1705 = vmatprep.subr.mxu0 0.0
        %1706 = vmatpush1.xpose.msra.mxu0 0.0
        %1707 = vmatprep.subr.mxu0 0.0
        %1708 = vmatpush1.xpose.msra.mxu0 0.0
        %1709 = vmatprep.subr.mxu0 0.0
        %1710 = vmatpush1.xpose.msra.mxu0 0.0
        %1711 = vmatprep.subr.mxu0 0.0
        %1712 = vmatpush1.xpose.msra.mxu0 0.0
        %1713 = vmatprep.subr.mxu0 0.0
        %1714 = vmatpush1.xpose.msra.mxu0 0.0
        %1715 = vmatprep.subr.mxu0 0.0
        %1716 = vmatpush1.xpose.msra.mxu0 0.0
        %1717 = vmatprep.subr.mxu0 0.0
        %1718 = vmatpush1.xpose.msra.mxu0 0.0
        %1719 = vmatprep.subr.mxu0 0.0
        %1720 = vmatpush1.xpose.msra.mxu0 0.0
        %1721 = vmatprep.subr.mxu0 0.0
        %1722 = vmatpush1.xpose.msra.mxu0 0.0
        %1723 = vmatprep.subr.mxu0 0.0
        %1724 = vmatpush1.xpose.msra.mxu0 0.0
        %1725 = vmatprep.subr.mxu0 0.0
        %1726 = vmatpush1.xpose.msra.mxu0 0.0
        %1727 = vmatprep.subr.mxu0 0.0
        %1728 = vmatpush1.xpose.msra.mxu0 0.0
        %1729 = vmatprep.subr.mxu0 0.0
        %1730 = vmatpush1.xpose.msra.mxu0 0.0
        %1731 = vmatprep.subr.mxu0 0.0
        %1732 = vmatpush1.xpose.msra.mxu0 0.0
        %1733 = vmatprep.subr.mxu0 0.0
        %1734 = vmatpush1.xpose.msra.mxu0 %v1701
        %1735 = vmatprep.subr.mxu0 0.0
        %1736 = vmatpush2.xpose.msra.mxu0 0.0
        %1737 = vmatprep.subr.mxu0 0.0
        %1738 = vmatpush2.xpose.msra.mxu0 0.0
        %1739 = vmatprep.subr.mxu0 0.0
        %1740 = vmatpush2.xpose.msra.mxu0 0.0
        %1741 = vmatprep.subr.mxu0 0.0
        %1742 = vmatpush2.xpose.msra.mxu0 0.0
        %1743 = vmatprep.subr.mxu0 0.0
        %1744 = vmatpush2.xpose.msra.mxu0 0.0
        %1745 = vmatprep.subr.mxu0 0.0
        %1746 = vmatpush2.xpose.msra.mxu0 0.0
        %1747 = vmatprep.subr.mxu0 0.0
        %1748 = vmatpush2.xpose.msra.mxu0 0.0
        %1749 = vmatprep.subr.mxu0 0.0
        %1750 = vmatpush2.xpose.msra.mxu0 0.0
        %1751 = vmatprep.subr.mxu0 0.0
        %1752 = vmatpush2.xpose.msra.mxu0 0.0
        %1753 = vmatprep.subr.mxu0 0.0
        %1754 = vmatpush2.xpose.msra.mxu0 0.0
        %1755 = vmatprep.subr.mxu0 0.0
        %1756 = vmatpush2.xpose.msra.mxu0 0.0
        %1757 = vmatprep.subr.mxu0 0.0
        %1758 = vmatpush2.xpose.msra.mxu0 0.0
        %1759 = vmatprep.subr.mxu0 0.0
        %1760 = vmatpush2.xpose.msra.mxu0 0.0
        %1761 = vmatprep.subr.mxu0 0.0
        %1762 = vmatpush2.xpose.msra.mxu0 0.0
        %1763 = vmatprep.subr.mxu0 0.0
        %1764 = vmatpush2.xpose.msra.mxu0 0.0
        %1765 = vmatprep.subr.mxu0 0.0
        %1766 = vmatpush2.xpose.msra.mxu0 0.0
        %1767 = vmatprep.mubr.f32.mxu0 0.0
        %1768 = vmatmul.mubr.f32.gmra.mxu0 %v1698
        %v1769 = vpop.f32.mrf.mxu0
        %v1770 = vadd.f32 0.0, %v1769
        %v1771 = vpop.f32.mrf.mxu0
        %1772 = vdwg.mxu0
        %v1774 = vsel %vm1512, %v1100, 0
        %v1777 = vsel %vm1512, %v1264, 0
        %1779 = vmatprep.subr.mxu0 0.0
        %1780 = vmatpush1.xpose.msra.mxu0 0.0
        %1781 = vmatprep.subr.mxu0 0.0
        %1782 = vmatpush1.xpose.msra.mxu0 0.0
        %1783 = vmatprep.subr.mxu0 0.0
        %1784 = vmatpush1.xpose.msra.mxu0 0.0
        %1785 = vmatprep.subr.mxu0 0.0
        %1786 = vmatpush1.xpose.msra.mxu0 0.0
        %1787 = vmatprep.subr.mxu0 0.0
        %1788 = vmatpush1.xpose.msra.mxu0 0.0
        %1789 = vmatprep.subr.mxu0 0.0
        %1790 = vmatpush1.xpose.msra.mxu0 0.0
        %1791 = vmatprep.subr.mxu0 0.0
        %1792 = vmatpush1.xpose.msra.mxu0 0.0
        %1793 = vmatprep.subr.mxu0 0.0
        %1794 = vmatpush1.xpose.msra.mxu0 0.0
        %1795 = vmatprep.subr.mxu0 0.0
        %1796 = vmatpush1.xpose.msra.mxu0 0.0
        %1797 = vmatprep.subr.mxu0 0.0
        %1798 = vmatpush1.xpose.msra.mxu0 0.0
        %1799 = vmatprep.subr.mxu0 0.0
        %1800 = vmatpush1.xpose.msra.mxu0 0.0
        %1801 = vmatprep.subr.mxu0 0.0
        %1802 = vmatpush1.xpose.msra.mxu0 0.0
        %1803 = vmatprep.subr.mxu0 0.0
        %1804 = vmatpush1.xpose.msra.mxu0 0.0
        %1805 = vmatprep.subr.mxu0 0.0
        %1806 = vmatpush1.xpose.msra.mxu0 0.0
        %1807 = vmatprep.subr.mxu0 0.0
        %1808 = vmatpush1.xpose.msra.mxu0 0.0
        %1809 = vmatprep.subr.mxu0 0.0
        %1810 = vmatpush1.xpose.msra.mxu0 %v1777
        %1811 = vmatprep.subr.mxu0 0.0
        %1812 = vmatpush2.xpose.msra.mxu0 0.0
        %1813 = vmatprep.subr.mxu0 0.0
        %1814 = vmatpush2.xpose.msra.mxu0 0.0
        %1815 = vmatprep.subr.mxu0 0.0
        %1816 = vmatpush2.xpose.msra.mxu0 0.0
        %1817 = vmatprep.subr.mxu0 0.0
        %1818 = vmatpush2.xpose.msra.mxu0 0.0
        %1819 = vmatprep.subr.mxu0 0.0
        %1820 = vmatpush2.xpose.msra.mxu0 0.0
        %1821 = vmatprep.subr.mxu0 0.0
        %1822 = vmatpush2.xpose.msra.mxu0 0.0
        %1823 = vmatprep.subr.mxu0 0.0
        %1824 = vmatpush2.xpose.msra.mxu0 0.0
        %1825 = vmatprep.subr.mxu0 0.0
        %1826 = vmatpush2.xpose.msra.mxu0 0.0
        %1827 = vmatprep.subr.mxu0 0.0
        %1828 = vmatpush2.xpose.msra.mxu0 0.0
        %1829 = vmatprep.subr.mxu0 0.0
        %1830 = vmatpush2.xpose.msra.mxu0 0.0
        %1831 = vmatprep.subr.mxu0 0.0
        %1832 = vmatpush2.xpose.msra.mxu0 0.0
        %1833 = vmatprep.subr.mxu0 0.0
        %1834 = vmatpush2.xpose.msra.mxu0 0.0
        %1835 = vmatprep.subr.mxu0 0.0
        %1836 = vmatpush2.xpose.msra.mxu0 0.0
        %1837 = vmatprep.subr.mxu0 0.0
        %1838 = vmatpush2.xpose.msra.mxu0 0.0
        %1839 = vmatprep.subr.mxu0 0.0
        %1840 = vmatpush2.xpose.msra.mxu0 0.0
        %1841 = vmatprep.subr.mxu0 0.0
        %1842 = vmatpush2.xpose.msra.mxu0 0.0
        %1843 = vmatprep.mubr.f32.mxu0 0.0
        %1844 = vmatmul.mubr.f32.gmra.mxu0 %v1774
        %v1845 = vpop.f32.mrf.mxu0
        %v1846 = vadd.f32 0.0, %v1845
        %v1847 = vpop.f32.mrf.mxu0
        %1848 = vdwg.mxu0
        %v1850 = vsel %vm1512, %v1132, 0
        %v1853 = vsel %vm1512, %v1296, 0
        %1855 = vmatprep.subr.mxu0 0.0
        %1856 = vmatpush1.xpose.msra.mxu0 0.0
        %1857 = vmatprep.subr.mxu0 0.0
        %1858 = vmatpush1.xpose.msra.mxu0 0.0
        %1859 = vmatprep.subr.mxu0 0.0
        %1860 = vmatpush1.xpose.msra.mxu0 0.0
        %1861 = vmatprep.subr.mxu0 0.0
        %1862 = vmatpush1.xpose.msra.mxu0 0.0
        %1863 = vmatprep.subr.mxu0 0.0
        %1864 = vmatpush1.xpose.msra.mxu0 0.0
        %1865 = vmatprep.subr.mxu0 0.0
        %1866 = vmatpush1.xpose.msra.mxu0 0.0
        %1867 = vmatprep.subr.mxu0 0.0
        %1868 = vmatpush1.xpose.msra.mxu0 0.0
        %1869 = vmatprep.subr.mxu0 0.0
        %1870 = vmatpush1.xpose.msra.mxu0 0.0
        %1871 = vmatprep.subr.mxu0 0.0
        %1872 = vmatpush1.xpose.msra.mxu0 0.0
        %1873 = vmatprep.subr.mxu0 0.0
        %1874 = vmatpush1.xpose.msra.mxu0 0.0
        %1875 = vmatprep.subr.mxu0 0.0
        %1876 = vmatpush1.xpose.msra.mxu0 0.0
        %1877 = vmatprep.subr.mxu0 0.0
        %1878 = vmatpush1.xpose.msra.mxu0 0.0
        %1879 = vmatprep.subr.mxu0 0.0
        %1880 = vmatpush1.xpose.msra.mxu0 0.0
        %1881 = vmatprep.subr.mxu0 0.0
        %1882 = vmatpush1.xpose.msra.mxu0 0.0
        %1883 = vmatprep.subr.mxu0 0.0
        %1884 = vmatpush1.xpose.msra.mxu0 0.0
        %1885 = vmatprep.subr.mxu0 0.0
        %1886 = vmatpush1.xpose.msra.mxu0 %v1853
        %1887 = vmatprep.subr.mxu0 0.0
        %1888 = vmatpush2.xpose.msra.mxu0 0.0
        %1889 = vmatprep.subr.mxu0 0.0
        %1890 = vmatpush2.xpose.msra.mxu0 0.0
        %1891 = vmatprep.subr.mxu0 0.0
        %1892 = vmatpush2.xpose.msra.mxu0 0.0
        %1893 = vmatprep.subr.mxu0 0.0
        %1894 = vmatpush2.xpose.msra.mxu0 0.0
        %1895 = vmatprep.subr.mxu0 0.0
        %1896 = vmatpush2.xpose.msra.mxu0 0.0
        %1897 = vmatprep.subr.mxu0 0.0
        %1898 = vmatpush2.xpose.msra.mxu0 0.0
        %1899 = vmatprep.subr.mxu0 0.0
        %1900 = vmatpush2.xpose.msra.mxu0 0.0
        %1901 = vmatprep.subr.mxu0 0.0
        %1902 = vmatpush2.xpose.msra.mxu0 0.0
        %1903 = vmatprep.subr.mxu0 0.0
        %1904 = vmatpush2.xpose.msra.mxu0 0.0
        %1905 = vmatprep.subr.mxu0 0.0
        %1906 = vmatpush2.xpose.msra.mxu0 0.0
        %1907 = vmatprep.subr.mxu0 0.0
        %1908 = vmatpush2.xpose.msra.mxu0 0.0
        %1909 = vmatprep.subr.mxu0 0.0
        %1910 = vmatpush2.xpose.msra.mxu0 0.0
        %1911 = vmatprep.subr.mxu0 0.0
        %1912 = vmatpush2.xpose.msra.mxu0 0.0
        %1913 = vmatprep.subr.mxu0 0.0
        %1914 = vmatpush2.xpose.msra.mxu0 0.0
        %1915 = vmatprep.subr.mxu0 0.0
        %1916 = vmatpush2.xpose.msra.mxu0 0.0
        %1917 = vmatprep.subr.mxu0 0.0
        %1918 = vmatpush2.xpose.msra.mxu0 0.0
        %1919 = vmatprep.mubr.f32.mxu0 0.0
        %1920 = vmatmul.mubr.f32.gmra.mxu0 %v1850
        %v1921 = vpop.f32.mrf.mxu0
        %v1922 = vadd.f32 0.0, %v1921
        %v1923 = vpop.f32.mrf.mxu0
        %1924 = vdwg.mxu0
        %v1926 = vsel %vm1512, %v1164, 0
        %v1929 = vsel %vm1512, %v1328, 0
        %1931 = vmatprep.subr.mxu0 0.0
        %1932 = vmatpush1.xpose.msra.mxu0 0.0
        %1933 = vmatprep.subr.mxu0 0.0
        %1934 = vmatpush1.xpose.msra.mxu0 0.0
        %1935 = vmatprep.subr.mxu0 0.0
        %1936 = vmatpush1.xpose.msra.mxu0 0.0
        %1937 = vmatprep.subr.mxu0 0.0
        %1938 = vmatpush1.xpose.msra.mxu0 0.0
        %1939 = vmatprep.subr.mxu0 0.0
        %1940 = vmatpush1.xpose.msra.mxu0 0.0
        %1941 = vmatprep.subr.mxu0 0.0
        %1942 = vmatpush1.xpose.msra.mxu0 0.0
        %1943 = vmatprep.subr.mxu0 0.0
        %1944 = vmatpush1.xpose.msra.mxu0 0.0
        %1945 = vmatprep.subr.mxu0 0.0
        %1946 = vmatpush1.xpose.msra.mxu0 0.0
        %1947 = vmatprep.subr.mxu0 0.0
        %1948 = vmatpush1.xpose.msra.mxu0 0.0
        %1949 = vmatprep.subr.mxu0 0.0
        %1950 = vmatpush1.xpose.msra.mxu0 0.0
        %1951 = vmatprep.subr.mxu0 0.0
        %1952 = vmatpush1.xpose.msra.mxu0 0.0
        %1953 = vmatprep.subr.mxu0 0.0
        %1954 = vmatpush1.xpose.msra.mxu0 0.0
        %1955 = vmatprep.subr.mxu0 0.0
        %1956 = vmatpush1.xpose.msra.mxu0 0.0
        %1957 = vmatprep.subr.mxu0 0.0
        %1958 = vmatpush1.xpose.msra.mxu0 0.0
        %1959 = vmatprep.subr.mxu0 0.0
        %1960 = vmatpush1.xpose.msra.mxu0 0.0
        %1961 = vmatprep.subr.mxu0 0.0
        %1962 = vmatpush1.xpose.msra.mxu0 %v1929
        %1963 = vmatprep.subr.mxu0 0.0
        %1964 = vmatpush2.xpose.msra.mxu0 0.0
        %1965 = vmatprep.subr.mxu0 0.0
        %1966 = vmatpush2.xpose.msra.mxu0 0.0
        %1967 = vmatprep.subr.mxu0 0.0
        %1968 = vmatpush2.xpose.msra.mxu0 0.0
        %1969 = vmatprep.subr.mxu0 0.0
        %1970 = vmatpush2.xpose.msra.mxu0 0.0
        %1971 = vmatprep.subr.mxu0 0.0
        %1972 = vmatpush2.xpose.msra.mxu0 0.0
        %1973 = vmatprep.subr.mxu0 0.0
        %1974 = vmatpush2.xpose.msra.mxu0 0.0
        %1975 = vmatprep.subr.mxu0 0.0
        %1976 = vmatpush2.xpose.msra.mxu0 0.0
        %1977 = vmatprep.subr.mxu0 0.0
        %1978 = vmatpush2.xpose.msra.mxu0 0.0
        %1979 = vmatprep.subr.mxu0 0.0
        %1980 = vmatpush2.xpose.msra.mxu0 0.0
        %1981 = vmatprep.subr.mxu0 0.0
        %1982 = vmatpush2.xpose.msra.mxu0 0.0
        %1983 = vmatprep.subr.mxu0 0.0
        %1984 = vmatpush2.xpose.msra.mxu0 0.0
        %1985 = vmatprep.subr.mxu0 0.0
        %1986 = vmatpush2.xpose.msra.mxu0 0.0
        %1987 = vmatprep.subr.mxu0 0.0
        %1988 = vmatpush2.xpose.msra.mxu0 0.0
        %1989 = vmatprep.subr.mxu0 0.0
        %1990 = vmatpush2.xpose.msra.mxu0 0.0
        %1991 = vmatprep.subr.mxu0 0.0
        %1992 = vmatpush2.xpose.msra.mxu0 0.0
        %1993 = vmatprep.subr.mxu0 0.0
        %1994 = vmatpush2.xpose.msra.mxu0 0.0
        %1995 = vmatprep.mubr.f32.mxu0 0.0
        %1996 = vmatmul.mubr.f32.gmra.mxu0 %v1926
        %v1997 = vpop.f32.mrf.mxu0
        %v1998 = vadd.f32 0.0, %v1997
        %v1999 = vpop.f32.mrf.mxu0
        %2000 = vdwg.mxu0
        %v2001 = vmul.f32 %v1770, 2.0
        %v2002 = vmul.f32 %v1846, 2.0
        %v2003 = vmul.f32 %v1922, 2.0
        %v2004 = vmul.f32 %v1998, 2.0
        %v2005 = vsub.f32 1.0, %v2001
        %v2006 = vsub.f32 1.0, %v2002
        %v2007 = vsub.f32 1.0, %v2003
        %v2008 = vsub.f32 1.0, %v2004
        %v2013 = vlaneseq
        %v2014 = vand.u32 %v2013, 127
        %v2015 = vlaneseq
        %v2016 = vshrl.u32 %v2015, 7
        %v2017 = vsub.s32 %v2014, %v2016
        %v2018 = vrot.slane %v1531, %v2017
        %v2019 = vlaneseq
        %v2020 = vshrl.u32 %v2019, 7
        %v2021 = vsub.s32 %v2014, %v2020
        %v2022 = vrot.slane %v1534, %v2021
        %v2023 = vlaneseq
        %v2024 = vshrl.u32 %v2023, 7
        %v2025 = vsub.s32 %v2014, %v2024
        %v2026 = vrot.slane %v1537, %v2025
        %v2027 = vlaneseq
        %v2028 = vshrl.u32 %v2027, 7
        %v2029 = vsub.s32 %v2014, %v2028
        %v2030 = vrot.slane %v1540, %v2029
        %vm2031 = vcmask 1042434
        %v2032 = vsel %vm2031, %v2018, %v2018
        %vm2033 = vcmask 1043459
        %v2034 = vsel %vm2033, %v2018, %v2032
        %vm2035 = vcmask 1044484
        %v2036 = vsel %vm2035, %v2018, %v2034
        %vm2037 = vcmask 1045509
        %v2038 = vsel %vm2037, %v2018, %v2036
        %vm2039 = vcmask 1046534
        %v2040 = vsel %vm2039, %v2018, %v2038
        %vm2041 = vcmask 1047559
        %v2042 = vsel %vm2041, %v2018, %v2040
        %v2043 = vsel %vm2031, %v2022, %v2022
        %v2044 = vsel %vm2033, %v2022, %v2043
        %v2045 = vsel %vm2035, %v2022, %v2044
        %v2046 = vsel %vm2037, %v2022, %v2045
        %v2047 = vsel %vm2039, %v2022, %v2046
        %v2048 = vsel %vm2041, %v2022, %v2047
        %v2049 = vsel %vm2031, %v2026, %v2026
        %v2050 = vsel %vm2033, %v2026, %v2049
        %v2051 = vsel %vm2035, %v2026, %v2050
        %v2052 = vsel %vm2037, %v2026, %v2051
        %v2053 = vsel %vm2039, %v2026, %v2052
        %v2054 = vsel %vm2041, %v2026, %v2053
        %v2055 = vsel %vm2031, %v2030, %v2030
        %v2056 = vsel %vm2033, %v2030, %v2055
        %v2057 = vsel %vm2035, %v2030, %v2056
        %v2058 = vsel %vm2037, %v2030, %v2057
        %v2059 = vsel %vm2039, %v2030, %v2058
        %v2060 = vsel %vm2041, %v2030, %v2059
        %v2065 = vadd.f32 %v2005, %v2042
        %v2066 = vadd.f32 %v2006, %v2048
        %v2067 = vadd.f32 %v2007, %v2054
        %v2068 = vadd.f32 %v2008, %v2060
        %v2069 = vsub.f32 1.0, %v1515
        %v2070 = vsub.f32 1.0, %v1518
        %v2071 = vsub.f32 1.0, %v1521
        %v2072 = vsub.f32 1.0, %v1524
        %v2073 = vmul.f32 %v2065, %v2065
        %v2074 = vmul.f32 %v2066, %v2066
        %v2075 = vmul.f32 %v2067, %v2067
        %v2076 = vmul.f32 %v2068, %v2068
        %v2077 = vmul.f32 %v2073, %v1515
        %v2078 = vmul.f32 %v2074, %v1518
        %v2079 = vmul.f32 %v2075, %v1521
        %v2080 = vmul.f32 %v2076, %v1524
        %v2081 = vmul.f32 %v2065, 2.0
        %v2082 = vmul.f32 %v2066, 2.0
        %v2083 = vmul.f32 %v2067, 2.0
        %v2084 = vmul.f32 %v2068, 2.0
        %v2085 = vmul.f32 %v2081, %v2069
        %v2086 = vmul.f32 %v2082, %v2070
        %v2087 = vmul.f32 %v2083, %v2071
        %v2088 = vmul.f32 %v2084, %v2072
        %v2089 = vmul.f32 %v2085, %v1770
        %v2090 = vmul.f32 %v2086, %v1846
        %v2091 = vmul.f32 %v2087, %v1922
        %v2092 = vmul.f32 %v2088, %v1998
        %v2093 = vsub.f32 %v2077, %v2089
        %v2094 = vsub.f32 %v2078, %v2090
        %v2095 = vsub.f32 %v2079, %v2091
        %v2096 = vsub.f32 %v2080, %v2092
        %v2097 = vmul.f32 %v2069, %v2069
        %v2098 = vmul.f32 %v2070, %v2070
        %v2099 = vmul.f32 %v2071, %v2071
        %v2100 = vmul.f32 %v2072, %v2072
        %v2101 = vmul.f32 %v2097, %v2042
        %v2102 = vmul.f32 %v2098, %v2048
        %v2103 = vmul.f32 %v2099, %v2054
        %v2104 = vmul.f32 %v2100, %v2060
        %v2105 = vadd.f32 %v2093, %v2101
        %v2106 = vadd.f32 %v2094, %v2102
        %v2107 = vadd.f32 %v2095, %v2103
        %v2108 = vadd.f32 %v2096, %v2104
        %v2109 = vmul.f32 %v1515, %v2042
        %v2110 = vmul.f32 %v1518, %v2048
        %v2111 = vmul.f32 %v1521, %v2054
        %v2112 = vmul.f32 %v1524, %v2060
        %v2113 = vadd.f32 %v2005, %v2109
        %v2114 = vadd.f32 %v2006, %v2110
        %v2115 = vadd.f32 %v2007, %v2111
        %v2116 = vadd.f32 %v2008, %v2112
        %v2117 = vmax.f32 %v2113, 1e-07
        %v2118 = vmax.f32 %v2114, 1e-07
        %v2119 = vmax.f32 %v2115, 1e-07
        %v2120 = vmax.f32 %v2116, 1e-07
        %v2121 = vmax.f32 %v2105, 0.0
        %v2122 = vmax.f32 %v2106, 0.0
        %v2123 = vmax.f32 %v2107, 0.0
        %v2124 = vmax.f32 %v2108, 0.0
        %v2125 = vrsqrt.pop %v2121
        %v2126 = vmul.f32 %v2121, %v2125
        %vm2127 = vcmp.eq.f32.partialorder %v2121, inf
        %v2128 = vsel %vm2127, %v2121, %v2126
        %vm2129 = vcmp.eq.f32.partialorder %v2121, 0.0
        %v2130 = vand.u32 %v2121, 2147483648
        %v2131 = vsel %vm2129, %v2130, %v2128
        %v2132 = vrsqrt.pop %v2122
        %v2133 = vmul.f32 %v2122, %v2132
        %vm2134 = vcmp.eq.f32.partialorder %v2122, inf
        %v2135 = vsel %vm2134, %v2122, %v2133
        %vm2136 = vcmp.eq.f32.partialorder %v2122, 0.0
        %v2137 = vand.u32 %v2122, 2147483648
        %v2138 = vsel %vm2136, %v2137, %v2135
        %v2139 = vrsqrt.pop %v2123
        %v2140 = vmul.f32 %v2123, %v2139
        %vm2141 = vcmp.eq.f32.partialorder %v2123, inf
        %v2142 = vsel %vm2141, %v2123, %v2140
        %vm2143 = vcmp.eq.f32.partialorder %v2123, 0.0
        %v2144 = vand.u32 %v2123, 2147483648
        %v2145 = vsel %vm2143, %v2144, %v2142
        %v2146 = vrsqrt.pop %v2124
        %v2147 = vmul.f32 %v2124, %v2146
        %vm2148 = vcmp.eq.f32.partialorder %v2124, inf
        %v2149 = vsel %vm2148, %v2124, %v2147
        %vm2150 = vcmp.eq.f32.partialorder %v2124, 0.0
        %v2151 = vand.u32 %v2124, 2147483648
        %v2152 = vsel %vm2150, %v2151, %v2149
        %v2153 = vadd.f32 %v2117, %v2131
        %v2154 = vadd.f32 %v2118, %v2138
        %v2155 = vadd.f32 %v2119, %v2145
        %v2156 = vadd.f32 %v2120, %v2152
        %v2157 = vlog2.pop %v2153
        %v2158 = vmul.f32 %v2157, 0.6931472
        %v2159 = vlog2.pop %v2154
        %v2160 = vmul.f32 %v2159, 0.6931472
        %v2161 = vlog2.pop %v2155
        %v2162 = vmul.f32 %v2161, 0.6931472
        %v2163 = vlog2.pop %v2156
        %v2164 = vmul.f32 %v2163, 0.6931472
        %v2165 = vsub.f32 %v2117, %v2131
        %v2166 = vsub.f32 %v2118, %v2138
        %v2167 = vsub.f32 %v2119, %v2145
        %v2168 = vsub.f32 %v2120, %v2152
        %v2169 = vmax.f32 %v2165, 1e-07
        %v2170 = vmax.f32 %v2166, 1e-07
        %v2171 = vmax.f32 %v2167, 1e-07
        %v2172 = vmax.f32 %v2168, 1e-07
        %v2173 = vlog2.pop %v2169
        %v2174 = vmul.f32 %v2173, 0.6931472
        %v2175 = vlog2.pop %v2170
        %v2176 = vmul.f32 %v2175, 0.6931472
        %v2177 = vlog2.pop %v2171
        %v2178 = vmul.f32 %v2177, 0.6931472
        %v2179 = vlog2.pop %v2172
        %v2180 = vmul.f32 %v2179, 0.6931472
        %v2181 = vsub.f32 %v2158, %v2174
        %v2182 = vsub.f32 %v2160, %v2176
        %v2183 = vsub.f32 %v2162, %v2178
        %v2184 = vsub.f32 %v2164, %v2180
        %v2185 = vsub.f32 0.0, %v2181
        %v2186 = vsub.f32 0.0, %v2182
        %v2187 = vsub.f32 0.0, %v2183
        %v2188 = vsub.f32 0.0, %v2184
        %v2189 = vmul.f32 %v2185, 0.35355338
        %v2190 = vmul.f32 %v2186, 0.35355338
        %v2191 = vmul.f32 %v2187, 0.35355338
        %v2192 = vmul.f32 %v2188, 0.35355338
        %v2193 = vsel %vm1512, %v2189, -inf
        %2194 = vmax.xlane.f32.xlu0 %v2193
        %v2195 = vpop.xlane.xlu0 %2194
        %v2196 = vsel %vm1512, %v2190, -inf
        %2197 = vmax.xlane.f32.xlu0 %v2196
        %v2198 = vpop.xlane.xlu0 %2197
        %v2199 = vsel %vm1512, %v2191, -inf
        %2200 = vmax.xlane.f32.xlu0 %v2199
        %v2201 = vpop.xlane.xlu0 %2200
        %v2202 = vsel %vm1512, %v2192, -inf
        %2203 = vmax.xlane.f32.xlu0 %v2202
        %v2204 = vpop.xlane.xlu0 %2203
        %v2205 = vsub.f32 %v2189, %v2195
        %v2206 = vsub.f32 %v2190, %v2198
        %v2207 = vsub.f32 %v2191, %v2201
        %v2208 = vsub.f32 %v2192, %v2204
        %v2209 = vmul.f32 %v2205, 1.442695
        %v2210 = vpow.pop %v2209
        %v2211 = vmul.f32 %v2206, 1.442695
        %v2212 = vpow.pop %v2211
        %v2213 = vmul.f32 %v2207, 1.442695
        %v2214 = vpow.pop %v2213
        %v2215 = vmul.f32 %v2208, 1.442695
        %v2216 = vpow.pop %v2215
        %v2217 = vsel %vm1512, %v2210, 0.0
        %2218 = vadd.xlane.f32.xlu0 %v2217
        %v2219 = vpop.xlane.xlu0 %2218
        %v2220 = vsel %vm1512, %v2212, 0.0
        %2221 = vadd.xlane.f32.xlu0 %v2220
        %v2222 = vpop.xlane.xlu0 %2221
        %v2223 = vsel %vm1512, %v2214, 0.0
        %2224 = vadd.xlane.f32.xlu0 %v2223
        %v2225 = vpop.xlane.xlu0 %2224
        %v2226 = vsel %vm1512, %v2216, 0.0
        %2227 = vadd.xlane.f32.xlu0 %v2226
        %v2228 = vpop.xlane.xlu0 %2227
        %v2229 = vrcp.pop %v2219
        %v2230 = vmul.f32 %v2210, %v2229
        %v2231 = vrcp.pop %v2222
        %v2232 = vmul.f32 %v2212, %v2231
        %v2233 = vrcp.pop %v2225
        %v2234 = vmul.f32 %v2214, %v2233
        %v2235 = vrcp.pop %v2228
        %v2236 = vmul.f32 %v2216, %v2235
        %2237 = vst.msk [vmem:[%s655] sm:$0xff] %vm1512, %v2230
        %2238 = vst.msk [vmem:[%s655 + $0x8] sm:$0xff] %vm1512, %v2232
        %2239 = vst.msk [vmem:[%s655 + $0x10] sm:$0xff] %vm1512, %v2234
        %2240 = vst.msk [vmem:[%s655 + $0x18] sm:$0xff] %vm1512, %v2236
        %v2241 = vpack.c.bf16 %v2230, %v2230
        %v2242 = vpack.c.bf16 %v2232, %v2232
        %v2243 = vpack.c.bf16 %v2234, %v2234
        %v2244 = vpack.c.bf16 %v2236, %v2236
        %v2245 = vpack.c.bf16 %v1693, %v1693
        %v2246 = vpack.c.bf16 %v1694, %v1694
        %v2247 = vpack.c.bf16 %v1695, %v1695
        %v2248 = vpack.c.bf16 %v1696, %v1696
        %v2250 = vsel %vm1512, %v2241, 0
        %vm2252 = vcmask 1043456
        %v2254 = vsel %vm2252, %v2245, 0
        %2256 = vmatprep.subr.bf16.mxu0 0
        %2257 = vmatpush1.bf16.msra.mxu0 0
        %2258 = vmatprep.subr.bf16.mxu0 0
        %2259 = vmatpush1.bf16.msra.mxu0 0
        %2260 = vmatprep.subr.bf16.mxu0 0
        %2261 = vmatpush1.bf16.msra.mxu0 0
        %2262 = vmatprep.subr.bf16.mxu0 0
        %2263 = vmatpush1.bf16.msra.mxu0 0
        %2264 = vmatprep.subr.bf16.mxu0 0
        %2265 = vmatpush1.bf16.msra.mxu0 0
        %2266 = vmatprep.subr.bf16.mxu0 0
        %2267 = vmatpush1.bf16.msra.mxu0 0
        %2268 = vmatprep.subr.bf16.mxu0 0
        %2269 = vmatpush1.bf16.msra.mxu0 0
        %2270 = vmatprep.subr.bf16.mxu0 0
        %2271 = vmatpush1.bf16.msra.mxu0 %v2254
        %2272 = vmatprep.subr.bf16.mxu0 0
        %2273 = vmatpush2.bf16.msra.mxu0 0
        %2274 = vmatprep.subr.bf16.mxu0 0
        %2275 = vmatpush2.bf16.msra.mxu0 0
        %2276 = vmatprep.subr.bf16.mxu0 0
        %2277 = vmatpush2.bf16.msra.mxu0 0
        %2278 = vmatprep.subr.bf16.mxu0 0
        %2279 = vmatpush2.bf16.msra.mxu0 0
        %2280 = vmatprep.subr.bf16.mxu0 0
        %2281 = vmatpush2.bf16.msra.mxu0 0
        %2282 = vmatprep.subr.bf16.mxu0 0
        %2283 = vmatpush2.bf16.msra.mxu0 0
        %2284 = vmatprep.subr.bf16.mxu0 0
        %2285 = vmatpush2.bf16.msra.mxu0 0
        %2286 = vmatprep.subr.bf16.mxu0 0
        %2287 = vmatpush2.bf16.msra.mxu0 0
        %2288 = vmatprep.mubr.bf16.mxu0 0
        %2289 = vmatmul.mubr.bf16.gmra.mxu0 %v2250
        %v2290 = vpop.f32.mrf.mxu0
        %v2291 = vadd.f32 0.0, %v2290
        %v2292 = vpop.f32.mrf.mxu0
        %v2293 = vpop.f32.mrf.mxu0
        %v2294 = vpop.f32.mrf.mxu0
        %2295 = vdwg.mxu0
        %v2297 = vsel %vm1512, %v2242, 0
        %v2300 = vsel %vm2252, %v2246, 0
        %2302 = vmatprep.subr.bf16.mxu0 0
        %2303 = vmatpush1.bf16.msra.mxu0 0
        %2304 = vmatprep.subr.bf16.mxu0 0
        %2305 = vmatpush1.bf16.msra.mxu0 0
        %2306 = vmatprep.subr.bf16.mxu0 0
        %2307 = vmatpush1.bf16.msra.mxu0 0
        %2308 = vmatprep.subr.bf16.mxu0 0
        %2309 = vmatpush1.bf16.msra.mxu0 0
        %2310 = vmatprep.subr.bf16.mxu0 0
        %2311 = vmatpush1.bf16.msra.mxu0 0
        %2312 = vmatprep.subr.bf16.mxu0 0
        %2313 = vmatpush1.bf16.msra.mxu0 0
        %2314 = vmatprep.subr.bf16.mxu0 0
        %2315 = vmatpush1.bf16.msra.mxu0 0
        %2316 = vmatprep.subr.bf16.mxu0 0
        %2317 = vmatpush1.bf16.msra.mxu0 %v2300
        %2318 = vmatprep.subr.bf16.mxu0 0
        %2319 = vmatpush2.bf16.msra.mxu0 0
        %2320 = vmatprep.subr.bf16.mxu0 0
        %2321 = vmatpush2.bf16.msra.mxu0 0
        %2322 = vmatprep.subr.bf16.mxu0 0
        %2323 = vmatpush2.bf16.msra.mxu0 0
        %2324 = vmatprep.subr.bf16.mxu0 0
        %2325 = vmatpush2.bf16.msra.mxu0 0
        %2326 = vmatprep.subr.bf16.mxu0 0
        %2327 = vmatpush2.bf16.msra.mxu0 0
        %2328 = vmatprep.subr.bf16.mxu0 0
        %2329 = vmatpush2.bf16.msra.mxu0 0
        %2330 = vmatprep.subr.bf16.mxu0 0
        %2331 = vmatpush2.bf16.msra.mxu0 0
        %2332 = vmatprep.subr.bf16.mxu0 0
        %2333 = vmatpush2.bf16.msra.mxu0 0
        %2334 = vmatprep.mubr.bf16.mxu0 0
        %2335 = vmatmul.mubr.bf16.gmra.mxu0 %v2297
        %v2336 = vpop.f32.mrf.mxu0
        %v2337 = vadd.f32 0.0, %v2336
        %v2338 = vpop.f32.mrf.mxu0
        %v2339 = vpop.f32.mrf.mxu0
        %v2340 = vpop.f32.mrf.mxu0
        %2341 = vdwg.mxu0
        %v2343 = vsel %vm1512, %v2243, 0
        %v2346 = vsel %vm2252, %v2247, 0
        %2348 = vmatprep.subr.bf16.mxu0 0
        %2349 = vmatpush1.bf16.msra.mxu0 0
        %2350 = vmatprep.subr.bf16.mxu0 0
        %2351 = vmatpush1.bf16.msra.mxu0 0
        %2352 = vmatprep.subr.bf16.mxu0 0
        %2353 = vmatpush1.bf16.msra.mxu0 0
        %2354 = vmatprep.subr.bf16.mxu0 0
        %2355 = vmatpush1.bf16.msra.mxu0 0
        %2356 = vmatprep.subr.bf16.mxu0 0
        %2357 = vmatpush1.bf16.msra.mxu0 0
        %2358 = vmatprep.subr.bf16.mxu0 0
        %2359 = vmatpush1.bf16.msra.mxu0 0
        %2360 = vmatprep.subr.bf16.mxu0 0
        %2361 = vmatpush1.bf16.msra.mxu0 0
        %2362 = vmatprep.subr.bf16.mxu0 0
        %2363 = vmatpush1.bf16.msra.mxu0 %v2346
        %2364 = vmatprep.subr.bf16.mxu0 0
        %2365 = vmatpush2.bf16.msra.mxu0 0
        %2366 = vmatprep.subr.bf16.mxu0 0
        %2367 = vmatpush2.bf16.msra.mxu0 0
        %2368 = vmatprep.subr.bf16.mxu0 0
        %2369 = vmatpush2.bf16.msra.mxu0 0
        %2370 = vmatprep.subr.bf16.mxu0 0
        %2371 = vmatpush2.bf16.msra.mxu0 0
        %2372 = vmatprep.subr.bf16.mxu0 0
        %2373 = vmatpush2.bf16.msra.mxu0 0
        %2374 = vmatprep.subr.bf16.mxu0 0
        %2375 = vmatpush2.bf16.msra.mxu0 0
        %2376 = vmatprep.subr.bf16.mxu0 0
        %2377 = vmatpush2.bf16.msra.mxu0 0
        %2378 = vmatprep.subr.bf16.mxu0 0
        %2379 = vmatpush2.bf16.msra.mxu0 0
        %2380 = vmatprep.mubr.bf16.mxu0 0
        %2381 = vmatmul.mubr.bf16.gmra.mxu0 %v2343
        %v2382 = vpop.f32.mrf.mxu0
        %v2383 = vadd.f32 0.0, %v2382
        %v2384 = vpop.f32.mrf.mxu0
        %v2385 = vpop.f32.mrf.mxu0
        %v2386 = vpop.f32.mrf.mxu0
        %2387 = vdwg.mxu0
        %v2389 = vsel %vm1512, %v2244, 0
        %v2392 = vsel %vm2252, %v2248, 0
        %2394 = vmatprep.subr.bf16.mxu0 0
        %2395 = vmatpush1.bf16.msra.mxu0 0
        %2396 = vmatprep.subr.bf16.mxu0 0
        %2397 = vmatpush1.bf16.msra.mxu0 0
        %2398 = vmatprep.subr.bf16.mxu0 0
        %2399 = vmatpush1.bf16.msra.mxu0 0
        %2400 = vmatprep.subr.bf16.mxu0 0
        %2401 = vmatpush1.bf16.msra.mxu0 0
        %2402 = vmatprep.subr.bf16.mxu0 0
        %2403 = vmatpush1.bf16.msra.mxu0 0
        %2404 = vmatprep.subr.bf16.mxu0 0
        %2405 = vmatpush1.bf16.msra.mxu0 0
        %2406 = vmatprep.subr.bf16.mxu0 0
        %2407 = vmatpush1.bf16.msra.mxu0 0
        %2408 = vmatprep.subr.bf16.mxu0 0
        %2409 = vmatpush1.bf16.msra.mxu0 %v2392
        %2410 = vmatprep.subr.bf16.mxu0 0
        %2411 = vmatpush2.bf16.msra.mxu0 0
        %2412 = vmatprep.subr.bf16.mxu0 0
        %2413 = vmatpush2.bf16.msra.mxu0 0
        %2414 = vmatprep.subr.bf16.mxu0 0
        %2415 = vmatpush2.bf16.msra.mxu0 0
        %2416 = vmatprep.subr.bf16.mxu0 0
        %2417 = vmatpush2.bf16.msra.mxu0 0
        %2418 = vmatprep.subr.bf16.mxu0 0
        %2419 = vmatpush2.bf16.msra.mxu0 0
        %2420 = vmatprep.subr.bf16.mxu0 0
        %2421 = vmatpush2.bf16.msra.mxu0 0
        %2422 = vmatprep.subr.bf16.mxu0 0
        %2423 = vmatpush2.bf16.msra.mxu0 0
        %2424 = vmatprep.subr.bf16.mxu0 0
        %2425 = vmatpush2.bf16.msra.mxu0 0
        %2426 = vmatprep.mubr.bf16.mxu0 0
        %2427 = vmatmul.mubr.bf16.gmra.mxu0 %v2389
        %v2428 = vpop.f32.mrf.mxu0
        %v2429 = vadd.f32 0.0, %v2428
        %v2430 = vpop.f32.mrf.mxu0
        %v2431 = vpop.f32.mrf.mxu0
        %v2432 = vpop.f32.mrf.mxu0
        %2433 = vdwg.mxu0
        %v2434 = vmul.f32 %v2291, %v2291
        %v2435 = vmul.f32 %v2337, %v2337
        %v2436 = vmul.f32 %v2383, %v2383
        %v2437 = vmul.f32 %v2429, %v2429
        %v2438 = vsel %vm1512, %v2434, 0.0
        %2439 = vadd.xlane.f32.xlu0 %v2438
        %v2440 = vpop.xlane.xlu0 %2439
        %v2441 = vsel %vm1512, %v2435, 0.0
        %2442 = vadd.xlane.f32.xlu0 %v2441
        %v2443 = vpop.xlane.xlu0 %2442
        %v2444 = vsel %vm1512, %v2436, 0.0
        %2445 = vadd.xlane.f32.xlu0 %v2444
        %v2446 = vpop.xlane.xlu0 %2445
        %v2447 = vsel %vm1512, %v2437, 0.0
        %2448 = vadd.xlane.f32.xlu0 %v2447
        %v2449 = vpop.xlane.xlu0 %2448
        %v2450 = vmax.f32 %v2440, 0.0
        %v2451 = vmax.f32 %v2443, 0.0
        %v2452 = vmax.f32 %v2446, 0.0
        %v2453 = vmax.f32 %v2449, 0.0
        %v2454 = vrsqrt.pop %v2450
        %v2455 = vmul.f32 %v2450, %v2454
        %vm2456 = vcmp.eq.f32.partialorder %v2450, inf
        %v2457 = vsel %vm2456, %v2450, %v2455
        %vm2458 = vcmp.eq.f32.partialorder %v2450, 0.0
        %v2459 = vand.u32 %v2450, 2147483648
        %v2460 = vsel %vm2458, %v2459, %v2457
        %v2461 = vrsqrt.pop %v2451
        %v2462 = vmul.f32 %v2451, %v2461
        %vm2463 = vcmp.eq.f32.partialorder %v2451, inf
        %v2464 = vsel %vm2463, %v2451, %v2462
        %vm2465 = vcmp.eq.f32.partialorder %v2451, 0.0
        %v2466 = vand.u32 %v2451, 2147483648
        %v2467 = vsel %vm2465, %v2466, %v2464
        %v2468 = vrsqrt.pop %v2452
        %v2469 = vmul.f32 %v2452, %v2468
        %vm2470 = vcmp.eq.f32.partialorder %v2452, inf
        %v2471 = vsel %vm2470, %v2452, %v2469
        %vm2472 = vcmp.eq.f32.partialorder %v2452, 0.0
        %v2473 = vand.u32 %v2452, 2147483648
        %v2474 = vsel %vm2472, %v2473, %v2471
        %v2475 = vrsqrt.pop %v2453
        %v2476 = vmul.f32 %v2453, %v2475
        %vm2477 = vcmp.eq.f32.partialorder %v2453, inf
        %v2478 = vsel %vm2477, %v2453, %v2476
        %vm2479 = vcmp.eq.f32.partialorder %v2453, 0.0
        %v2480 = vand.u32 %v2453, 2147483648
        %v2481 = vsel %vm2479, %v2480, %v2478
        %v2482 = vmax.f32 %v2460, 1e-07
        %v2483 = vmax.f32 %v2467, 1e-07
        %v2484 = vmax.f32 %v2474, 1e-07
        %v2485 = vmax.f32 %v2481, 1e-07
        %v2486 = vtanh.pop %v2482
        %v2487 = vtanh.pop %v2483
        %v2488 = vtanh.pop %v2484
        %v2489 = vtanh.pop %v2485
        %v2490 = vrcp.pop %v2482
        %v2491 = vmul.f32 %v2486, %v2490
        %v2492 = vrcp.pop %v2483
        %v2493 = vmul.f32 %v2487, %v2492
        %v2494 = vrcp.pop %v2484
        %v2495 = vmul.f32 %v2488, %v2494
        %v2496 = vrcp.pop %v2485
        %v2497 = vmul.f32 %v2489, %v2496
        %v2498 = vmul.f32 %v2491, %v2291
        %v2499 = vmul.f32 %v2493, %v2337
        %v2500 = vmul.f32 %v2495, %v2383
        %v2501 = vmul.f32 %v2497, %v2429
        %2502 = vxpose.xlu0.b32.start [1/16] %v2498, 128
        %2503 = vxpose.xlu0.b32.cont [2/16] 0.0, 128
        %2504 = vxpose.xlu0.b32.cont [3/16] 0.0, 128
        %2505 = vxpose.xlu0.b32.cont [4/16] 0.0, 128
        %2506 = vxpose.xlu0.b32.cont [5/16] 0.0, 128
        %2507 = vxpose.xlu0.b32.cont [6/16] 0.0, 128
        %2508 = vxpose.xlu0.b32.cont [7/16] 0.0, 128
        %2509 = vxpose.xlu0.b32.cont [8/16] 0.0, 128
        %2510 = vxpose.xlu0.b32.cont [9/16] 0.0, 128
        %2511 = vxpose.xlu0.b32.cont [10/16] 0.0, 128
        %2512 = vxpose.xlu0.b32.cont [11/16] 0.0, 128
        %2513 = vxpose.xlu0.b32.cont [12/16] 0.0, 128
        %2514 = vxpose.xlu0.b32.cont [13/16] 0.0, 128
        %2515 = vxpose.xlu0.b32.cont [14/16] 0.0, 128
        %2516 = vxpose.xlu0.b32.cont [15/16] 0.0, 128
        %2517 = vxpose.xlu0.b32.end [16/16] 0.0, 128
        %v2518 = vpop.trf.xlu0
        %v2519 = vpop.trf.xlu0
        %v2520 = vpop.trf.xlu0
        %v2521 = vpop.trf.xlu0
        %v2522 = vpop.trf.xlu0
        %v2523 = vpop.trf.xlu0
        %v2524 = vpop.trf.xlu0
        %v2525 = vpop.trf.xlu0
        %v2526 = vpop.trf.xlu0
        %v2527 = vpop.trf.xlu0
        %v2528 = vpop.trf.xlu0
        %v2529 = vpop.trf.xlu0
        %v2530 = vpop.trf.xlu0
        %v2531 = vpop.trf.xlu0
        %v2532 = vpop.trf.xlu0
        %v2533 = vpop.trf.xlu0
        %2534 = vxpose.xlu0.b32.start [1/16] %v2499, 128
        %2535 = vxpose.xlu0.b32.cont [2/16] 0.0, 128
        %2536 = vxpose.xlu0.b32.cont [3/16] 0.0, 128
        %2537 = vxpose.xlu0.b32.cont [4/16] 0.0, 128
        %2538 = vxpose.xlu0.b32.cont [5/16] 0.0, 128
        %2539 = vxpose.xlu0.b32.cont [6/16] 0.0, 128
        %2540 = vxpose.xlu0.b32.cont [7/16] 0.0, 128
        %2541 = vxpose.xlu0.b32.cont [8/16] 0.0, 128
        %2542 = vxpose.xlu0.b32.cont [9/16] 0.0, 128
        %2543 = vxpose.xlu0.b32.cont [10/16] 0.0, 128
        %2544 = vxpose.xlu0.b32.cont [11/16] 0.0, 128
        %2545 = vxpose.xlu0.b32.cont [12/16] 0.0, 128
        %2546 = vxpose.xlu0.b32.cont [13/16] 0.0, 128
        %2547 = vxpose.xlu0.b32.cont [14/16] 0.0, 128
        %2548 = vxpose.xlu0.b32.cont [15/16] 0.0, 128
        %2549 = vxpose.xlu0.b32.end [16/16] 0.0, 128
        %v2550 = vpop.trf.xlu0
        %v2551 = vpop.trf.xlu0
        %v2552 = vpop.trf.xlu0
        %v2553 = vpop.trf.xlu0
        %v2554 = vpop.trf.xlu0
        %v2555 = vpop.trf.xlu0
        %v2556 = vpop.trf.xlu0
        %v2557 = vpop.trf.xlu0
        %v2558 = vpop.trf.xlu0
        %v2559 = vpop.trf.xlu0
        %v2560 = vpop.trf.xlu0
        %v2561 = vpop.trf.xlu0
        %v2562 = vpop.trf.xlu0
        %v2563 = vpop.trf.xlu0
        %v2564 = vpop.trf.xlu0
        %v2565 = vpop.trf.xlu0
        %2566 = vxpose.xlu0.b32.start [1/16] %v2500, 128
        %2567 = vxpose.xlu0.b32.cont [2/16] 0.0, 128
        %2568 = vxpose.xlu0.b32.cont [3/16] 0.0, 128
        %2569 = vxpose.xlu0.b32.cont [4/16] 0.0, 128
        %2570 = vxpose.xlu0.b32.cont [5/16] 0.0, 128
        %2571 = vxpose.xlu0.b32.cont [6/16] 0.0, 128
        %2572 = vxpose.xlu0.b32.cont [7/16] 0.0, 128
        %2573 = vxpose.xlu0.b32.cont [8/16] 0.0, 128
        %2574 = vxpose.xlu0.b32.cont [9/16] 0.0, 128
        %2575 = vxpose.xlu0.b32.cont [10/16] 0.0, 128
        %2576 = vxpose.xlu0.b32.cont [11/16] 0.0, 128
        %2577 = vxpose.xlu0.b32.cont [12/16] 0.0, 128
        %2578 = vxpose.xlu0.b32.cont [13/16] 0.0, 128
        %2579 = vxpose.xlu0.b32.cont [14/16] 0.0, 128
        %2580 = vxpose.xlu0.b32.cont [15/16] 0.0, 128
        %2581 = vxpose.xlu0.b32.end [16/16] 0.0, 128
        %v2582 = vpop.trf.xlu0
        %v2583 = vpop.trf.xlu0
        %v2584 = vpop.trf.xlu0
        %v2585 = vpop.trf.xlu0
        %v2586 = vpop.trf.xlu0
        %v2587 = vpop.trf.xlu0
        %v2588 = vpop.trf.xlu0
        %v2589 = vpop.trf.xlu0
        %v2590 = vpop.trf.xlu0
        %v2591 = vpop.trf.xlu0
        %v2592 = vpop.trf.xlu0
        %v2593 = vpop.trf.xlu0
        %v2594 = vpop.trf.xlu0
        %v2595 = vpop.trf.xlu0
        %v2596 = vpop.trf.xlu0
        %v2597 = vpop.trf.xlu0
        %2598 = vxpose.xlu0.b32.start [1/16] %v2501, 128
        %2599 = vxpose.xlu0.b32.cont [2/16] 0.0, 128
        %2600 = vxpose.xlu0.b32.cont [3/16] 0.0, 128
        %2601 = vxpose.xlu0.b32.cont [4/16] 0.0, 128
        %2602 = vxpose.xlu0.b32.cont [5/16] 0.0, 128
        %2603 = vxpose.xlu0.b32.cont [6/16] 0.0, 128
        %2604 = vxpose.xlu0.b32.cont [7/16] 0.0, 128
        %2605 = vxpose.xlu0.b32.cont [8/16] 0.0, 128
        %2606 = vxpose.xlu0.b32.cont [9/16] 0.0, 128
        %2607 = vxpose.xlu0.b32.cont [10/16] 0.0, 128
        %2608 = vxpose.xlu0.b32.cont [11/16] 0.0, 128
        %2609 = vxpose.xlu0.b32.cont [12/16] 0.0, 128
        %2610 = vxpose.xlu0.b32.cont [13/16] 0.0, 128
        %2611 = vxpose.xlu0.b32.cont [14/16] 0.0, 128
        %2612 = vxpose.xlu0.b32.cont [15/16] 0.0, 128
        %2613 = vxpose.xlu0.b32.end [16/16] 0.0, 128
        %v2614 = vpop.trf.xlu0
        %v2615 = vpop.trf.xlu0
        %v2616 = vpop.trf.xlu0
        %v2617 = vpop.trf.xlu0
        %v2618 = vpop.trf.xlu0
        %v2619 = vpop.trf.xlu0
        %v2620 = vpop.trf.xlu0
        %v2621 = vpop.trf.xlu0
        %v2622 = vpop.trf.xlu0
        %v2623 = vpop.trf.xlu0
        %v2624 = vpop.trf.xlu0
        %v2625 = vpop.trf.xlu0
        %v2626 = vpop.trf.xlu0
        %v2627 = vpop.trf.xlu0
        %v2628 = vpop.trf.xlu0
        %v2629 = vpop.trf.xlu0
        %2630 = vxpose.xlu0.b32.start [1/16] %v2518, 128
        %2631 = vxpose.xlu0.b32.cont [2/16] %v2550, 128
        %2632 = vxpose.xlu0.b32.cont [3/16] %v2582, 128
        %2633 = vxpose.xlu0.b32.cont [4/16] %v2614, 128
        %2634 = vxpose.xlu0.b32.cont [5/16] 0.0, 128
        %2635 = vxpose.xlu0.b32.cont [6/16] 0.0, 128
        %2636 = vxpose.xlu0.b32.cont [7/16] 0.0, 128
        %2637 = vxpose.xlu0.b32.cont [8/16] 0.0, 128
        %2638 = vxpose.xlu0.b32.cont [9/16] 0.0, 128
        %2639 = vxpose.xlu0.b32.cont [10/16] 0.0, 128
        %2640 = vxpose.xlu0.b32.cont [11/16] 0.0, 128
        %2641 = vxpose.xlu0.b32.cont [12/16] 0.0, 128
        %2642 = vxpose.xlu0.b32.cont [13/16] 0.0, 128
        %2643 = vxpose.xlu0.b32.cont [14/16] 0.0, 128
        %2644 = vxpose.xlu0.b32.cont [15/16] 0.0, 128
        %2645 = vxpose.xlu0.b32.end [16/16] 0.0, 128
        %v2646 = vpop.trf.xlu0
        %v2647 = vpop.trf.xlu0
        %v2648 = vpop.trf.xlu0
        %v2649 = vpop.trf.xlu0
        %v2650 = vpop.trf.xlu0
        %v2651 = vpop.trf.xlu0
        %v2652 = vpop.trf.xlu0
        %v2653 = vpop.trf.xlu0
        %v2654 = vpop.trf.xlu0
        %v2655 = vpop.trf.xlu0
        %v2656 = vpop.trf.xlu0
        %v2657 = vpop.trf.xlu0
        %v2658 = vpop.trf.xlu0
        %v2659 = vpop.trf.xlu0
        %v2660 = vpop.trf.xlu0
        %v2661 = vpop.trf.xlu0
        %v2662 = vld [vmem:[%s5] sm:$0xf]
        %v2663 = vld [vmem:[%s5 + $0x4] sm:$0xf]
        %v2664 = vld [vmem:[%s5 + $0x8] sm:$0xf]
        %v2665 = vld [vmem:[%s5 + $0xc] sm:$0xf]
        %v2666 = vld [vmem:[#allocation8] sm:$0x1]
        %v2667 = vmul.f32 %v2646, %v2646
        %v2668 = vsel %vm663, %v2667, 0.0
        %2669 = vadd.xlane.f32.xlu0 %v2668
        %v2670 = vpop.xlane.xlu0 %2669
        %v2671 = vmax.f32 %v2670, 0.0
        %v2672 = vrsqrt.pop %v2671
        %v2673 = vmul.f32 %v2671, %v2672
        %vm2674 = vcmp.eq.f32.partialorder %v2671, inf
        %v2675 = vsel %vm2674, %v2671, %v2673
        %vm2676 = vcmp.eq.f32.partialorder %v2671, 0.0
        %v2677 = vand.u32 %v2671, 2147483648
        %v2678 = vsel %vm2676, %v2677, %v2675
        %v2679 = vmax.f32 %v2678, 1e-07
        %v2680 = vmax.f32 %v2679, -0.999999
        %v2681 = vmin.f32 %v2680, 0.999999
        %v2682 = vadd.f32 %v2681, 1.0
        %v2683 = vlog2.pop %v2682
        %v2684 = vmul.f32 %v2683, 0.6931472
        %v2685 = vmul.f32 -0.5, %v2681
        %v2686 = vadd.f32 %v2685, 1.0
        %v2687 = vmul.f32 %v2686, %v2681
        %v2688 = vand.u32 2147483647, %v2681
        %vm2689 = vcmp.lt.f32.partialorder %v2688, 0.0004427343
        %v2690 = vsel %vm2689, %v2687, %v2684
        %v2691 = vsub.f32 0.0, %v2681
        %v2692 = vadd.f32 %v2691, 1.0
        %v2693 = vlog2.pop %v2692
        %v2694 = vmul.f32 %v2693, 0.6931472
        %v2695 = vmul.f32 -0.5, %v2691
        %v2696 = vadd.f32 %v2695, 1.0
        %v2697 = vmul.f32 %v2696, %v2691
        %v2698 = vand.u32 2147483647, %v2691
        %vm2699 = vcmp.lt.f32.partialorder %v2698, 0.0004427343
        %v2700 = vsel %vm2699, %v2697, %v2694
        %v2701 = vsub.f32 %v2690, %v2700
        %v2702 = vmul.f32 %v2701, 0.5
        %v2703 = vpack.c.bf16 %v2646, %v2646
        %v2708 = vunpack.c.l.b16 %v2662
        %v2709 = vunpack.c.l.b16 %v2663
        %v2710 = vunpack.c.l.b16 %v2664
        %v2711 = vunpack.c.l.b16 %v2665
        %v2712 = vpack.c.b16 %v2709, %v2708
        %v2713 = vpack.c.b16 %v2711, %v2710
        %v2717 = vsel %vm663, %v2703, 0
        %2719 = vmatprep.subr.bf16.mxu0 0
        %2720 = vmatpush1.bf16.msra.mxu0 0
        %2721 = vmatprep.subr.bf16.mxu0 0
        %2722 = vmatpush1.bf16.msra.mxu0 0
        %2723 = vmatprep.subr.bf16.mxu0 0
        %2724 = vmatpush1.bf16.msra.mxu0 0
        %2725 = vmatprep.subr.bf16.mxu0 0
        %2726 = vmatpush1.bf16.msra.mxu0 0
        %2727 = vmatprep.subr.bf16.mxu0 0
        %2728 = vmatpush1.bf16.msra.mxu0 0
        %2729 = vmatprep.subr.bf16.mxu0 0
        %2730 = vmatpush1.bf16.msra.mxu0 0
        %2731 = vmatprep.subr.bf16.mxu0 0
        %2732 = vmatpush1.bf16.msra.mxu0 %v2713
        %2733 = vmatprep.subr.bf16.mxu0 0
        %2734 = vmatpush1.bf16.msra.mxu0 %v2712
        %2735 = vmatprep.subr.bf16.mxu0 0
        %2736 = vmatpush2.bf16.msra.mxu0 0
        %2737 = vmatprep.subr.bf16.mxu0 0
        %2738 = vmatpush2.bf16.msra.mxu0 0
        %2739 = vmatprep.subr.bf16.mxu0 0
        %2740 = vmatpush2.bf16.msra.mxu0 0
        %2741 = vmatprep.subr.bf16.mxu0 0
        %2742 = vmatpush2.bf16.msra.mxu0 0
        %2743 = vmatprep.subr.bf16.mxu0 0
        %2744 = vmatpush2.bf16.msra.mxu0 0
        %2745 = vmatprep.subr.bf16.mxu0 0
        %2746 = vmatpush2.bf16.msra.mxu0 0
        %2747 = vmatprep.subr.bf16.mxu0 0
        %2748 = vmatpush2.bf16.msra.mxu0 0
        %2749 = vmatprep.subr.bf16.mxu0 0
        %2750 = vmatpush2.bf16.msra.mxu0 0
        %2751 = vmatprep.mubr.bf16.mxu0 0
        %2752 = vmatmul.mubr.bf16.gmra.mxu0 %v2717
        %v2753 = vpop.f32.mrf.mxu0
        %v2754 = vadd.f32 0.0, %v2753
        %v2755 = vpop.f32.mrf.mxu0
        %v2756 = vpop.f32.mrf.mxu0
        %v2757 = vpop.f32.mrf.mxu0
        %2758 = vdwg.mxu0
        %v2759 = vmul.f32 %v2754, %v2754
        %v2760 = vsel %vm663, %v2759, 0.0
        %2761 = vadd.xlane.f32.xlu0 %v2760
        %v2762 = vpop.xlane.xlu0 %2761
        %v2763 = vmax.f32 %v2762, 0.0
        %v2764 = vrsqrt.pop %v2763
        %v2765 = vmul.f32 %v2763, %v2764
        %vm2766 = vcmp.eq.f32.partialorder %v2763, inf
        %v2767 = vsel %vm2766, %v2763, %v2765
        %vm2768 = vcmp.eq.f32.partialorder %v2763, 0.0
        %v2769 = vand.u32 %v2763, 2147483648
        %v2770 = vsel %vm2768, %v2769, %v2767
        %v2771 = vmax.f32 %v2770, 1e-07
        %v2772 = vrcp.pop %v2679
        %v2773 = vmul.f32 %v2771, %v2772
        %v2774 = vmul.f32 %v2773, %v2702
        %v2775 = vtanh.pop %v2774
        %v2776 = vrcp.pop %v2771
        %v2777 = vmul.f32 %v2754, %v2776
        %v2778 = vmul.f32 %v2775, %v2777
        %v2780 = vlaneseq
        %v2781 = vshrl.u32 %v2780, 7
        %v2782 = vsub.s32 0, %v2781
        %v2783 = vrot.slane %v2666, %v2782
        %v2785 = vmul.f32 %v2778, %v2783
        %v2786 = vsel %vm663, %v2785, 0.0
        %2787 = vadd.xlane.f32.xlu0 %v2786
        %v2788 = vpop.xlane.xlu0 %2787
        %v2789 = vmul.f32 %v2778, %v2778
        %v2790 = vsel %vm663, %v2789, 0.0
        %2791 = vadd.xlane.f32.xlu0 %v2790
        %v2792 = vpop.xlane.xlu0 %2791
        %v2793 = vmul.f32 %v2666, %v2666
        %v2794 = vsel %vm795, %v2793, 0.0
        %2795 = vadd.xlane.f32.xlu0 %v2794
        %v2796 = vpop.xlane.xlu0 %2795
        %v2797 = vmul.f32 %v2788, 2.0
        %v2798 = vadd.f32 %v2797, 1.0
        %v2799 = vlaneseq
        %v2800 = vshrl.u32 %v2799, 7
        %v2801 = vsub.s32 0, %v2800
        %v2802 = vrot.slane %v2796, %v2801
        %v2803 = vadd.f32 %v2798, %v2802
        %v2804 = vmul.f32 %v2803, %v2778
        %v2805 = vsub.f32 1.0, %v2792
        %v2806 = vmul.f32 %v2805, %v2783
        %v2807 = vadd.f32 %v2804, %v2806
        %v2808 = vmul.f32 %v2792, %v2802
        %v2809 = vadd.f32 %v2798, %v2808
        %v2810 = vmax.f32 %v2809, 1e-07
        %v2811 = vrcp.pop %v2810
        %v2812 = vmul.f32 %v2807, %v2811
        %v2813 = vmul.f32 %v2812, %v2812
        %v2814 = vsel %vm663, %v2813, 0.0
        %2815 = vadd.xlane.f32.xlu0 %v2814
        %v2816 = vpop.xlane.xlu0 %2815
        %v2817 = vmax.f32 %v2816, 0.0
        %v2818 = vrsqrt.pop %v2817
        %v2819 = vmul.f32 %v2817, %v2818
        %vm2820 = vcmp.eq.f32.partialorder %v2817, inf
        %v2821 = vsel %vm2820, %v2817, %v2819
        %vm2822 = vcmp.eq.f32.partialorder %v2817, 0.0
        %v2823 = vand.u32 %v2817, 2147483648
        %v2824 = vsel %vm2822, %v2823, %v2821
        %v2825 = vmax.f32 %v2824, 1e-07
        %vm2826 = vcmp.gt.f32.partialorder %v2825, 0.99999
        %v2827 = vrcp.pop %v2825
        %v2828 = vmul.f32 0.99999, %v2827
        %v2829 = vsel %vm2826, %v2828, 1.0
        %v2830 = vmul.f32 %v2812, %v2829
        %v2831 = vmul.f32 %v661, %v2830
        %v2832 = vsel %vm663, %v2831, 0.0
        %2833 = vadd.xlane.f32.xlu0 %v2832
        %v2834 = vpop.xlane.xlu0 %2833
        %v2835 = vmul.f32 %v2830, %v2830
        %v2836 = vsel %vm663, %v2835, 0.0
        %2837 = vadd.xlane.f32.xlu0 %v2836
        %v2838 = vpop.xlane.xlu0 %2837
        %v2839 = vmul.f32 %v2834, 2.0
        %v2840 = vadd.f32 %v2839, 1.0
        %v2841 = vadd.f32 %v2840, %v2838
        %v2842 = vmul.f32 %v2841, %v661
        %v2843 = vsub.f32 1.0, %v666
        %v2844 = vmul.f32 %v2843, %v2830
        %v2845 = vadd.f32 %v2842, %v2844
        %v2846 = vmul.f32 %v666, %v2838
        %v2847 = vadd.f32 %v2840, %v2846
        %v2848 = vmax.f32 %v2847, 1e-07
        %v2849 = vrcp.pop %v2848
        %v2850 = vmul.f32 %v2845, %v2849
        %v2851 = vld [vmem:[%s11] sm:$0x1]
        %v2852 = vld [vmem:[%s12] sm:$0x1]
        %v2853 = vld [vmem:[%s13] sm:$0x1]
        %v2854 = vmul.f32 %v2850, %v2850
        %v2855 = vsel %vm663, %v2854, 0.0
        %2856 = vadd.xlane.f32.xlu0 %v2855
        %v2857 = vpop.xlane.xlu0 %2856
        %v2858 = vmax.f32 %v2857, 0.0
        %v2859 = vrsqrt.pop %v2858
        %v2860 = vmul.f32 %v2858, %v2859
        %vm2861 = vcmp.eq.f32.partialorder %v2858, inf
        %v2862 = vsel %vm2861, %v2858, %v2860
        %vm2863 = vcmp.eq.f32.partialorder %v2858, 0.0
        %v2864 = vand.u32 %v2858, 2147483648
        %v2865 = vsel %vm2863, %v2864, %v2862
        %v2866 = vmax.f32 %v2865, 1e-07
        %v2867 = vmax.f32 %v2866, -0.999999
        %v2868 = vmin.f32 %v2867, 0.999999
        %v2869 = vadd.f32 %v2868, 1.0
        %v2870 = vlog2.pop %v2869
        %v2871 = vmul.f32 %v2870, 0.6931472
        %v2872 = vmul.f32 -0.5, %v2868
        %v2873 = vadd.f32 %v2872, 1.0
        %v2874 = vmul.f32 %v2873, %v2868
        %v2875 = vand.u32 2147483647, %v2868
        %vm2876 = vcmp.lt.f32.partialorder %v2875, 0.0004427343
        %v2877 = vsel %vm2876, %v2874, %v2871
        %v2878 = vsub.f32 0.0, %v2868
        %v2879 = vadd.f32 %v2878, 1.0
        %v2880 = vlog2.pop %v2879
        %v2881 = vmul.f32 %v2880, 0.6931472
        %v2882 = vmul.f32 -0.5, %v2878
        %v2883 = vadd.f32 %v2882, 1.0
        %v2884 = vmul.f32 %v2883, %v2878
        %v2885 = vand.u32 2147483647, %v2878
        %vm2886 = vcmp.lt.f32.partialorder %v2885, 0.0004427343
        %v2887 = vsel %vm2886, %v2884, %v2881
        %v2888 = vsub.f32 %v2877, %v2887
        %v2889 = vmul.f32 %v2888, 0.5
        %v2890 = vrcp.pop %v2866
        %v2891 = vmul.f32 %v2889, %v2890
        %v2892 = vmul.f32 %v2891, %v2850
        %v2893 = vsel %vm663, %v2892, 0.0
        %2894 = vadd.xlane.f32.xlu0 %v2893
        %v2895 = vpop.xlane.xlu0 %2894
        %v2896 = vrcp.pop 32.0
        %v2897 = vmul.f32 %v2895, %v2896
        %v2898 = vsub.f32 %v2892, %v2897
        %v2899 = vmul.f32 %v2898, %v2898
        %v2900 = vsel %vm663, %v2899, 0.0
        %2901 = vadd.xlane.f32.xlu0 %v2900
        %v2902 = vpop.xlane.xlu0 %2901
        %v2903 = vmul.f32 %v2902, 0.032258064
        %v2904 = vrsqrt.pop %v2903
        %v2905 = vmul.f32 %v2903, %v2904
        %vm2906 = vcmp.eq.f32.partialorder %v2903, inf
        %v2907 = vsel %vm2906, %v2903, %v2905
        %vm2908 = vcmp.eq.f32.partialorder %v2903, 0.0
        %v2909 = vand.u32 %v2903, 2147483648
        %v2910 = vsel %vm2908, %v2909, %v2907
        %v2911 = vadd.f32 %v2910, 1e-06
        %v2912 = vrcp.pop %v2911
        %v2913 = vmul.f32 %v2898, %v2912
        %v2915 = vlaneseq
        %v2916 = vshrl.u32 %v2915, 7
        %v2917 = vsub.s32 0, %v2916
        %v2918 = vrot.slane %v2851, %v2917
        %v2920 = vmul.f32 %v2918, %v2913
        %v2922 = vlaneseq
        %v2923 = vshrl.u32 %v2922, 7
        %v2924 = vsub.s32 0, %v2923
        %v2925 = vrot.slane %v2852, %v2924
        %v2927 = vadd.f32 %v2920, %v2925
        %v2928 = vmul.f32 %v2927, %v2927
        %v2929 = vsel %vm663, %v2928, 0.0
        %2930 = vadd.xlane.f32.xlu0 %v2929
        %v2931 = vpop.xlane.xlu0 %2930
        %v2932 = vmax.f32 %v2931, 0.0
        %v2933 = vrsqrt.pop %v2932
        %v2934 = vmul.f32 %v2932, %v2933
        %vm2935 = vcmp.eq.f32.partialorder %v2932, inf
        %v2936 = vsel %vm2935, %v2932, %v2934
        %vm2937 = vcmp.eq.f32.partialorder %v2932, 0.0
        %v2938 = vand.u32 %v2932, 2147483648
        %v2939 = vsel %vm2937, %v2938, %v2936
        %v2940 = vmax.f32 %v2939, 1e-07
        %v2941 = vtanh.pop %v2940
        %v2942 = vrcp.pop %v2940
        %v2943 = vmul.f32 %v2941, %v2942
        %v2944 = vmul.f32 %v2943, %v2927
        %v2946 = vlaneseq
        %v2947 = vshrl.u32 %v2946, 7
        %v2948 = vsub.s32 0, %v2947
        %v2949 = vrot.slane %v2853, %v2948
        %v2951 = vmul.f32 %v2944, %v2949
        %v2952 = vsel %vm663, %v2951, 0.0
        %2953 = vadd.xlane.f32.xlu0 %v2952
        %v2954 = vpop.xlane.xlu0 %2953
        %v2955 = vmul.f32 %v2944, %v2944
        %v2956 = vsel %vm663, %v2955, 0.0
        %2957 = vadd.xlane.f32.xlu0 %v2956
        %v2958 = vpop.xlane.xlu0 %2957
        %v2959 = vmul.f32 %v2853, %v2853
        %v2960 = vsel %vm795, %v2959, 0.0
        %2961 = vadd.xlane.f32.xlu0 %v2960
        %v2962 = vpop.xlane.xlu0 %2961
        %v2963 = vmul.f32 %v2954, 2.0
        %v2964 = vadd.f32 %v2963, 1.0
        %v2965 = vlaneseq
        %v2966 = vshrl.u32 %v2965, 7
        %v2967 = vsub.s32 0, %v2966
        %v2968 = vrot.slane %v2962, %v2967
        %v2969 = vadd.f32 %v2964, %v2968
        %v2970 = vmul.f32 %v2969, %v2944
        %v2971 = vsub.f32 1.0, %v2958
        %v2972 = vmul.f32 %v2971, %v2949
        %v2973 = vadd.f32 %v2970, %v2972
        %v2974 = vmul.f32 %v2958, %v2968
        %v2975 = vadd.f32 %v2964, %v2974
        %v2976 = vmax.f32 %v2975, 1e-07
        %v2977 = vrcp.pop %v2976
        %v2978 = vmul.f32 %v2973, %v2977
        %v2979 = vld [vmem:[#allocation10] sm:$0xf]
        %v2980 = vld [vmem:[#allocation10 + $0x4] sm:$0xf]
        %v2981 = vld [vmem:[#allocation10 + $0x8] sm:$0xf]
        %v2982 = vld [vmem:[#allocation10 + $0xc] sm:$0xf]
        %v2983 = vld [vmem:[#allocation11] sm:$0x1]
        %v2984 = vmul.f32 %v2978, %v2978
        %v2985 = vsel %vm663, %v2984, 0.0
        %2986 = vadd.xlane.f32.xlu0 %v2985
        %v2987 = vpop.xlane.xlu0 %2986
        %v2988 = vmax.f32 %v2987, 0.0
        %v2989 = vrsqrt.pop %v2988
        %v2990 = vmul.f32 %v2988, %v2989
        %vm2991 = vcmp.eq.f32.partialorder %v2988, inf
        %v2992 = vsel %vm2991, %v2988, %v2990
        %vm2993 = vcmp.eq.f32.partialorder %v2988, 0.0
        %v2994 = vand.u32 %v2988, 2147483648
        %v2995 = vsel %vm2993, %v2994, %v2992
        %v2996 = vmax.f32 %v2995, 1e-07
        %v2997 = vmax.f32 %v2996, -0.999999
        %v2998 = vmin.f32 %v2997, 0.999999
        %v2999 = vadd.f32 %v2998, 1.0
        %v3000 = vlog2.pop %v2999
        %v3001 = vmul.f32 %v3000, 0.6931472
        %v3002 = vmul.f32 -0.5, %v2998
        %v3003 = vadd.f32 %v3002, 1.0
        %v3004 = vmul.f32 %v3003, %v2998
        %v3005 = vand.u32 2147483647, %v2998
        %vm3006 = vcmp.lt.f32.partialorder %v3005, 0.0004427343
        %v3007 = vsel %vm3006, %v3004, %v3001
        %v3008 = vsub.f32 0.0, %v2998
        %v3009 = vadd.f32 %v3008, 1.0
        %v3010 = vlog2.pop %v3009
        %v3011 = vmul.f32 %v3010, 0.6931472
        %v3012 = vmul.f32 -0.5, %v3008
        %v3013 = vadd.f32 %v3012, 1.0
        %v3014 = vmul.f32 %v3013, %v3008
        %v3015 = vand.u32 2147483647, %v3008
        %vm3016 = vcmp.lt.f32.partialorder %v3015, 0.0004427343
        %v3017 = vsel %vm3016, %v3014, %v3011
        %v3018 = vsub.f32 %v3007, %v3017
        %v3019 = vmul.f32 %v3018, 0.5
        %v3020 = vpack.c.bf16 %v2978, %v2978
        %v3025 = vunpack.c.l.b16 %v2979
        %v3026 = vunpack.c.l.b16 %v2980
        %v3027 = vunpack.c.l.b16 %v2981
        %v3028 = vunpack.c.l.b16 %v2982
        %v3029 = vpack.c.b16 %v3026, %v3025
        %v3030 = vpack.c.b16 %v3028, %v3027
        %v3034 = vsel %vm663, %v3020, 0
        %3036 = vmatprep.subr.bf16.mxu0 0
        %3037 = vmatpush1.bf16.msra.mxu0 0
        %3038 = vmatprep.subr.bf16.mxu0 0
        %3039 = vmatpush1.bf16.msra.mxu0 0
        %3040 = vmatprep.subr.bf16.mxu0 0
        %3041 = vmatpush1.bf16.msra.mxu0 0
        %3042 = vmatprep.subr.bf16.mxu0 0
        %3043 = vmatpush1.bf16.msra.mxu0 0
        %3044 = vmatprep.subr.bf16.mxu0 0
        %3045 = vmatpush1.bf16.msra.mxu0 0
        %3046 = vmatprep.subr.bf16.mxu0 0
        %3047 = vmatpush1.bf16.msra.mxu0 0
        %3048 = vmatprep.subr.bf16.mxu0 0
        %3049 = vmatpush1.bf16.msra.mxu0 %v3030
        %3050 = vmatprep.subr.bf16.mxu0 0
        %3051 = vmatpush1.bf16.msra.mxu0 %v3029
        %3052 = vmatprep.subr.bf16.mxu0 0
        %3053 = vmatpush2.bf16.msra.mxu0 0
        %3054 = vmatprep.subr.bf16.mxu0 0
        %3055 = vmatpush2.bf16.msra.mxu0 0
        %3056 = vmatprep.subr.bf16.mxu0 0
        %3057 = vmatpush2.bf16.msra.mxu0 0
        %3058 = vmatprep.subr.bf16.mxu0 0
        %3059 = vmatpush2.bf16.msra.mxu0 0
        %3060 = vmatprep.subr.bf16.mxu0 0
        %3061 = vmatpush2.bf16.msra.mxu0 0
        %3062 = vmatprep.subr.bf16.mxu0 0
        %3063 = vmatpush2.bf16.msra.mxu0 0
        %3064 = vmatprep.subr.bf16.mxu0 0
        %3065 = vmatpush2.bf16.msra.mxu0 0
        %3066 = vmatprep.subr.bf16.mxu0 0
        %3067 = vmatpush2.bf16.msra.mxu0 0
        %3068 = vmatprep.mubr.bf16.mxu0 0
        %3069 = vmatmul.mubr.bf16.gmra.mxu0 %v3034
        %v3070 = vpop.f32.mrf.mxu0
        %v3071 = vadd.f32 0.0, %v3070
        %v3072 = vpop.f32.mrf.mxu0
        %v3073 = vpop.f32.mrf.mxu0
        %v3074 = vpop.f32.mrf.mxu0
        %3075 = vdwg.mxu0
        %v3076 = vmul.f32 %v3071, %v3071
        %vm3077 = vcmask 523264
        %v3078 = vsel %vm3077, %v3076, 0.0
        %3079 = vadd.xlane.f32.xlu0 %v3078
        %v3080 = vpop.xlane.xlu0 %3079
        %v3081 = vmax.f32 %v3080, 0.0
        %v3082 = vrsqrt.pop %v3081
        %v3083 = vmul.f32 %v3081, %v3082
        %vm3084 = vcmp.eq.f32.partialorder %v3081, inf
        %v3085 = vsel %vm3084, %v3081, %v3083
        %vm3086 = vcmp.eq.f32.partialorder %v3081, 0.0
        %v3087 = vand.u32 %v3081, 2147483648
        %v3088 = vsel %vm3086, %v3087, %v3085
        %v3089 = vmax.f32 %v3088, 1e-07
        %v3090 = vrcp.pop %v2996
        %v3091 = vmul.f32 %v3089, %v3090
        %v3092 = vmul.f32 %v3091, %v3019
        %v3093 = vtanh.pop %v3092
        %v3094 = vrcp.pop %v3089
        %v3095 = vmul.f32 %v3071, %v3094
        %v3096 = vmul.f32 %v3093, %v3095
        %v3098 = vlaneseq
        %v3099 = vshrl.u32 %v3098, 7
        %v3100 = vsub.s32 0, %v3099
        %v3101 = vrot.slane %v2983, %v3100
        %v3103 = vmul.f32 %v3096, %v3101
        %v3104 = vsel %vm3077, %v3103, 0.0
        %3105 = vadd.xlane.f32.xlu0 %v3104
        %v3106 = vpop.xlane.xlu0 %3105
        %v3107 = vmul.f32 %v3096, %v3096
        %v3108 = vsel %vm3077, %v3107, 0.0
        %3109 = vadd.xlane.f32.xlu0 %v3108
        %v3110 = vpop.xlane.xlu0 %3109
        %v3111 = vmul.f32 %v2983, %v2983
        %vm3112 = vcmask 516096
        %v3113 = vsel %vm3112, %v3111, 0.0
        %3114 = vadd.xlane.f32.xlu0 %v3113
        %v3115 = vpop.xlane.xlu0 %3114
        %v3116 = vmul.f32 %v3106, 2.0
        %v3117 = vadd.f32 %v3116, 1.0
        %v3118 = vlaneseq
        %v3119 = vshrl.u32 %v3118, 7
        %v3120 = vsub.s32 0, %v3119
        %v3121 = vrot.slane %v3115, %v3120
        %v3122 = vadd.f32 %v3117, %v3121
        %v3123 = vmul.f32 %v3122, %v3096
        %v3124 = vsub.f32 1.0, %v3110
        %v3125 = vmul.f32 %v3124, %v3101
        %v3126 = vadd.f32 %v3123, %v3125
        %v3127 = vmul.f32 %v3110, %v3121
        %v3128 = vadd.f32 %v3117, %v3127
        %v3129 = vmax.f32 %v3128, 1e-07
        %v3130 = vrcp.pop %v3129
        %v3131 = vmul.f32 %v3126, %v3130
        %v3132 = vmul.f32 %v3131, %v3131
        %v3133 = vsel %vm3077, %v3132, 0.0
        %3134 = vadd.xlane.f32.xlu0 %v3133
        %v3135 = vpop.xlane.xlu0 %3134
        %v3136 = vmax.f32 %v3135, 0.0
        %v3137 = vrsqrt.pop %v3136
        %v3138 = vmul.f32 %v3136, %v3137
        %vm3139 = vcmp.eq.f32.partialorder %v3136, inf
        %v3140 = vsel %vm3139, %v3136, %v3138
        %vm3141 = vcmp.eq.f32.partialorder %v3136, 0.0
        %v3142 = vand.u32 %v3136, 2147483648
        %v3143 = vsel %vm3141, %v3142, %v3140
        %v3144 = vmax.f32 %v3143, 1e-07
        %vm3145 = vcmp.gt.f32.partialorder %v3144, 0.99999
        %v3146 = vrcp.pop %v3144
        %v3147 = vmul.f32 0.99999, %v3146
        %v3148 = vsel %vm3145, %v3147, 1.0
        %v3149 = vmul.f32 %v3131, %v3148
        %v3150 = vmul.f32 %v3149, %v3149
        %v3151 = vsel %vm3077, %v3150, 0.0
        %3152 = vadd.xlane.f32.xlu0 %v3151
        %v3153 = vpop.xlane.xlu0 %3152
        %v3154 = vmax.f32 %v3153, 0.0
        %v3155 = vrsqrt.pop %v3154
        %v3156 = vmul.f32 %v3154, %v3155
        %vm3157 = vcmp.eq.f32.partialorder %v3154, inf
        %v3158 = vsel %vm3157, %v3154, %v3156
        %vm3159 = vcmp.eq.f32.partialorder %v3154, 0.0
        %v3160 = vand.u32 %v3154, 2147483648
        %v3161 = vsel %vm3159, %v3160, %v3158
        %v3162 = vmax.f32 %v3161, 1e-07
        %v3163 = vmax.f32 %v3162, -0.999999
        %v3164 = vmin.f32 %v3163, 0.999999
        %v3165 = vadd.f32 %v3164, 1.0
        %v3166 = vlog2.pop %v3165
        %v3167 = vmul.f32 %v3166, 0.6931472
        %v3168 = vmul.f32 -0.5, %v3164
        %v3169 = vadd.f32 %v3168, 1.0
        %v3170 = vmul.f32 %v3169, %v3164
        %v3171 = vand.u32 2147483647, %v3164
        %vm3172 = vcmp.lt.f32.partialorder %v3171, 0.0004427343
        %v3173 = vsel %vm3172, %v3170, %v3167
        %v3174 = vsub.f32 0.0, %v3164
        %v3175 = vadd.f32 %v3174, 1.0
        %v3176 = vlog2.pop %v3175
        %v3177 = vmul.f32 %v3176, 0.6931472
        %v3178 = vmul.f32 -0.5, %v3174
        %v3179 = vadd.f32 %v3178, 1.0
        %v3180 = vmul.f32 %v3179, %v3174
        %v3181 = vand.u32 2147483647, %v3174
        %vm3182 = vcmp.lt.f32.partialorder %v3181, 0.0004427343
        %v3183 = vsel %vm3182, %v3180, %v3177
        %v3184 = vsub.f32 %v3173, %v3183
        %v3185 = vmul.f32 %v3184, 0.5
        %v3186 = vrcp.pop %v3162
        %v3187 = vmul.f32 %v3185, %v3186
        %v3188 = vmul.f32 %v3187, %v3149
        %v3189 = vmax.f32 %v3188, 0.0
        %v3190 = vmul.f32 %v3189, %v3189
        %v3191 = vsel %vm3077, %v3190, 0.0
        %3192 = vadd.xlane.f32.xlu0 %v3191
        %v3193 = vpop.xlane.xlu0 %3192
        %v3194 = vmax.f32 %v3193, 0.0
        %v3195 = vrsqrt.pop %v3194
        %v3196 = vmul.f32 %v3194, %v3195
        %vm3197 = vcmp.eq.f32.partialorder %v3194, inf
        %v3198 = vsel %vm3197, %v3194, %v3196
        %vm3199 = vcmp.eq.f32.partialorder %v3194, 0.0
        %v3200 = vand.u32 %v3194, 2147483648
        %v3201 = vsel %vm3199, %v3200, %v3198
        %v3202 = vmax.f32 %v3201, 1e-07
        %v3203 = vtanh.pop %v3202
        %v3204 = vrcp.pop %v3202
        %v3205 = vmul.f32 %v3203, %v3204
        %v3206 = vmul.f32 %v3205, %v3189
        %v3207 = vld [vmem:[%s9] sm:$0xf]
        %v3208 = vld [vmem:[%s9 + $0x4] sm:$0xf]
        %v3209 = vld [vmem:[%s9 + $0x8] sm:$0xf]
        %v3210 = vld [vmem:[%s9 + $0xc] sm:$0xf]
        %v3211 = vld [vmem:[%s9 + $0x10] sm:$0xf]
        %v3212 = vld [vmem:[%s9 + $0x14] sm:$0xf]
        %v3213 = vld [vmem:[%s9 + $0x18] sm:$0xf]
        %v3214 = vld [vmem:[%s9 + $0x1c] sm:$0xf]
        %v3215 = vld [vmem:[%s10] sm:$0x1]
        %v3216 = vmul.f32 %v3206, %v3206
        %v3217 = vsel %vm3077, %v3216, 0.0
        %3218 = vadd.xlane.f32.xlu0 %v3217
        %v3219 = vpop.xlane.xlu0 %3218
        %v3220 = vmax.f32 %v3219, 0.0
        %v3221 = vrsqrt.pop %v3220
        %v3222 = vmul.f32 %v3220, %v3221
        %vm3223 = vcmp.eq.f32.partialorder %v3220, inf
        %v3224 = vsel %vm3223, %v3220, %v3222
        %vm3225 = vcmp.eq.f32.partialorder %v3220, 0.0
        %v3226 = vand.u32 %v3220, 2147483648
        %v3227 = vsel %vm3225, %v3226, %v3224
        %v3228 = vmax.f32 %v3227, 1e-07
        %v3229 = vmax.f32 %v3228, -0.999999
        %v3230 = vmin.f32 %v3229, 0.999999
        %v3231 = vadd.f32 %v3230, 1.0
        %v3232 = vlog2.pop %v3231
        %v3233 = vmul.f32 %v3232, 0.6931472
        %v3234 = vmul.f32 -0.5, %v3230
        %v3235 = vadd.f32 %v3234, 1.0
        %v3236 = vmul.f32 %v3235, %v3230
        %v3237 = vand.u32 2147483647, %v3230
        %vm3238 = vcmp.lt.f32.partialorder %v3237, 0.0004427343
        %v3239 = vsel %vm3238, %v3236, %v3233
        %v3240 = vsub.f32 0.0, %v3230
        %v3241 = vadd.f32 %v3240, 1.0
        %v3242 = vlog2.pop %v3241
        %v3243 = vmul.f32 %v3242, 0.6931472
        %v3244 = vmul.f32 -0.5, %v3240
        %v3245 = vadd.f32 %v3244, 1.0
        %v3246 = vmul.f32 %v3245, %v3240
        %v3247 = vand.u32 2147483647, %v3240
        %vm3248 = vcmp.lt.f32.partialorder %v3247, 0.0004427343
        %v3249 = vsel %vm3248, %v3246, %v3243
        %v3250 = vsub.f32 %v3239, %v3249
        %v3251 = vmul.f32 %v3250, 0.5
        %v3252 = vpack.c.bf16 %v3206, %v3206
        %v3261 = vunpack.c.l.b16 %v3207
        %v3262 = vunpack.c.l.b16 %v3208
        %v3263 = vunpack.c.l.b16 %v3209
        %v3264 = vunpack.c.l.b16 %v3210
        %v3265 = vunpack.c.l.b16 %v3211
        %v3266 = vunpack.c.l.b16 %v3212
        %v3267 = vunpack.c.l.b16 %v3213
        %v3268 = vunpack.c.l.b16 %v3214
        %v3269 = vpack.c.b16 %v3262, %v3261
        %v3270 = vpack.c.b16 %v3264, %v3263
        %v3271 = vpack.c.b16 %v3266, %v3265
        %v3272 = vpack.c.b16 %v3268, %v3267
        %v3278 = vsel %vm3077, %v3252, 0
        %3280 = vmatprep.subr.bf16.mxu0 0
        %3281 = vmatpush1.bf16.msra.mxu0 0
        %3282 = vmatprep.subr.bf16.mxu0 0
        %3283 = vmatpush1.bf16.msra.mxu0 0
        %3284 = vmatprep.subr.bf16.mxu0 0
        %3285 = vmatpush1.bf16.msra.mxu0 0
        %3286 = vmatprep.subr.bf16.mxu0 0
        %3287 = vmatpush1.bf16.msra.mxu0 0
        %3288 = vmatprep.subr.bf16.mxu0 0
        %3289 = vmatpush1.bf16.msra.mxu0 %v3272
        %3290 = vmatprep.subr.bf16.mxu0 0
        %3291 = vmatpush1.bf16.msra.mxu0 %v3271
        %3292 = vmatprep.subr.bf16.mxu0 0
        %3293 = vmatpush1.bf16.msra.mxu0 %v3270
        %3294 = vmatprep.subr.bf16.mxu0 0
        %3295 = vmatpush1.bf16.msra.mxu0 %v3269
        %3296 = vmatprep.subr.bf16.mxu0 0
        %3297 = vmatpush2.bf16.msra.mxu0 0
        %3298 = vmatprep.subr.bf16.mxu0 0
        %3299 = vmatpush2.bf16.msra.mxu0 0
        %3300 = vmatprep.subr.bf16.mxu0 0
        %3301 = vmatpush2.bf16.msra.mxu0 0
        %3302 = vmatprep.subr.bf16.mxu0 0
        %3303 = vmatpush2.bf16.msra.mxu0 0
        %3304 = vmatprep.subr.bf16.mxu0 0
        %3305 = vmatpush2.bf16.msra.mxu0 0
        %3306 = vmatprep.subr.bf16.mxu0 0
        %3307 = vmatpush2.bf16.msra.mxu0 0
        %3308 = vmatprep.subr.bf16.mxu0 0
        %3309 = vmatpush2.bf16.msra.mxu0 0
        %3310 = vmatprep.subr.bf16.mxu0 0
        %3311 = vmatpush2.bf16.msra.mxu0 0
        %3312 = vmatprep.mubr.bf16.mxu0 0
        %3313 = vmatmul.mubr.bf16.gmra.mxu0 %v3278
        %v3314 = vpop.f32.mrf.mxu0
        %v3315 = vadd.f32 0.0, %v3314
        %v3316 = vpop.f32.mrf.mxu0
        %v3317 = vpop.f32.mrf.mxu0
        %v3318 = vpop.f32.mrf.mxu0
        %3319 = vdwg.mxu0
        %v3320 = vmul.f32 %v3315, %v3315
        %v3321 = vsel %vm663, %v3320, 0.0
        %3322 = vadd.xlane.f32.xlu0 %v3321
        %v3323 = vpop.xlane.xlu0 %3322
        %v3324 = vmax.f32 %v3323, 0.0
        %v3325 = vrsqrt.pop %v3324
        %v3326 = vmul.f32 %v3324, %v3325
        %vm3327 = vcmp.eq.f32.partialorder %v3324, inf
        %v3328 = vsel %vm3327, %v3324, %v3326
        %vm3329 = vcmp.eq.f32.partialorder %v3324, 0.0
        %v3330 = vand.u32 %v3324, 2147483648
        %v3331 = vsel %vm3329, %v3330, %v3328
        %v3332 = vmax.f32 %v3331, 1e-07
        %v3333 = vrcp.pop %v3228
        %v3334 = vmul.f32 %v3332, %v3333
        %v3335 = vmul.f32 %v3334, %v3251
        %v3336 = vtanh.pop %v3335
        %v3337 = vrcp.pop %v3332
        %v3338 = vmul.f32 %v3315, %v3337
        %v3339 = vmul.f32 %v3336, %v3338
        %v3341 = vlaneseq
        %v3342 = vshrl.u32 %v3341, 7
        %v3343 = vsub.s32 0, %v3342
        %v3344 = vrot.slane %v3215, %v3343
        %v3346 = vmul.f32 %v3339, %v3344
        %v3347 = vsel %vm663, %v3346, 0.0
        %3348 = vadd.xlane.f32.xlu0 %v3347
        %v3349 = vpop.xlane.xlu0 %3348
        %v3350 = vmul.f32 %v3339, %v3339
        %v3351 = vsel %vm663, %v3350, 0.0
        %3352 = vadd.xlane.f32.xlu0 %v3351
        %v3353 = vpop.xlane.xlu0 %3352
        %v3354 = vmul.f32 %v3215, %v3215
        %v3355 = vsel %vm795, %v3354, 0.0
        %3356 = vadd.xlane.f32.xlu0 %v3355
        %v3357 = vpop.xlane.xlu0 %3356
        %v3358 = vmul.f32 %v3349, 2.0
        %v3359 = vadd.f32 %v3358, 1.0
        %v3360 = vlaneseq
        %v3361 = vshrl.u32 %v3360, 7
        %v3362 = vsub.s32 0, %v3361
        %v3363 = vrot.slane %v3357, %v3362
        %v3364 = vadd.f32 %v3359, %v3363
        %v3365 = vmul.f32 %v3364, %v3339
        %v3366 = vsub.f32 1.0, %v3353
        %v3367 = vmul.f32 %v3366, %v3344
        %v3368 = vadd.f32 %v3365, %v3367
        %v3369 = vmul.f32 %v3353, %v3363
        %v3370 = vadd.f32 %v3359, %v3369
        %v3371 = vmax.f32 %v3370, 1e-07
        %v3372 = vrcp.pop %v3371
        %v3373 = vmul.f32 %v3368, %v3372
        %v3374 = vmul.f32 %v3373, %v3373
        %v3375 = vsel %vm663, %v3374, 0.0
        %3376 = vadd.xlane.f32.xlu0 %v3375
        %v3377 = vpop.xlane.xlu0 %3376
        %v3378 = vmax.f32 %v3377, 0.0
        %v3379 = vrsqrt.pop %v3378
        %v3380 = vmul.f32 %v3378, %v3379
        %vm3381 = vcmp.eq.f32.partialorder %v3378, inf
        %v3382 = vsel %vm3381, %v3378, %v3380
        %vm3383 = vcmp.eq.f32.partialorder %v3378, 0.0
        %v3384 = vand.u32 %v3378, 2147483648
        %v3385 = vsel %vm3383, %v3384, %v3382
        %v3386 = vmax.f32 %v3385, 1e-07
        %vm3387 = vcmp.gt.f32.partialorder %v3386, 0.99999
        %v3388 = vrcp.pop %v3386
        %v3389 = vmul.f32 0.99999, %v3388
        %v3390 = vsel %vm3387, %v3389, 1.0
        %v3391 = vmul.f32 %v3373, %v3390
        %v3392 = vmul.f32 %v2978, %v3391
        %v3393 = vsel %vm663, %v3392, 0.0
        %3394 = vadd.xlane.f32.xlu0 %v3393
        %v3395 = vpop.xlane.xlu0 %3394
        %v3396 = vmul.f32 %v3391, %v3391
        %v3397 = vsel %vm663, %v3396, 0.0
        %3398 = vadd.xlane.f32.xlu0 %v3397
        %v3399 = vpop.xlane.xlu0 %3398
        %v3400 = vmul.f32 %v3395, 2.0
        %v3401 = vadd.f32 %v3400, 1.0
        %v3402 = vadd.f32 %v3401, %v3399
        %v3403 = vmul.f32 %v3402, %v2978
        %v3404 = vsub.f32 1.0, %v2987
        %v3405 = vmul.f32 %v3404, %v3391
        %v3406 = vadd.f32 %v3403, %v3405
        %v3407 = vmul.f32 %v2987, %v3399
        %v3408 = vadd.f32 %v3401, %v3407
        %v3409 = vmax.f32 %v3408, 1e-07
        %v3410 = vrcp.pop %v3409
        %v3411 = vmul.f32 %v3406, %v3410
        %v3412 = vld [vmem:[%s14] sm:$0x1]
        %v3413 = vld [vmem:[%s15] sm:$0x1]
        %v3414 = vld [vmem:[%s16] sm:$0x1]
        %v3415 = vmul.f32 %v3411, %v3411
        %v3416 = vsel %vm663, %v3415, 0.0
        %3417 = vadd.xlane.f32.xlu0 %v3416
        %v3418 = vpop.xlane.xlu0 %3417
        %v3419 = vmax.f32 %v3418, 0.0
        %v3420 = vrsqrt.pop %v3419
        %v3421 = vmul.f32 %v3419, %v3420
        %vm3422 = vcmp.eq.f32.partialorder %v3419, inf
        %v3423 = vsel %vm3422, %v3419, %v3421
        %vm3424 = vcmp.eq.f32.partialorder %v3419, 0.0
        %v3425 = vand.u32 %v3419, 2147483648
        %v3426 = vsel %vm3424, %v3425, %v3423
        %v3427 = vmax.f32 %v3426, 1e-07
        %v3428 = vmax.f32 %v3427, -0.999999
        %v3429 = vmin.f32 %v3428, 0.999999
        %v3430 = vadd.f32 %v3429, 1.0
        %v3431 = vlog2.pop %v3430
        %v3432 = vmul.f32 %v3431, 0.6931472
        %v3433 = vmul.f32 -0.5, %v3429
        %v3434 = vadd.f32 %v3433, 1.0
        %v3435 = vmul.f32 %v3434, %v3429
        %v3436 = vand.u32 2147483647, %v3429
        %vm3437 = vcmp.lt.f32.partialorder %v3436, 0.0004427343
        %v3438 = vsel %vm3437, %v3435, %v3432
        %v3439 = vsub.f32 0.0, %v3429
        %v3440 = vadd.f32 %v3439, 1.0
        %v3441 = vlog2.pop %v3440
        %v3442 = vmul.f32 %v3441, 0.6931472
        %v3443 = vmul.f32 -0.5, %v3439
        %v3444 = vadd.f32 %v3443, 1.0
        %v3445 = vmul.f32 %v3444, %v3439
        %v3446 = vand.u32 2147483647, %v3439
        %vm3447 = vcmp.lt.f32.partialorder %v3446, 0.0004427343
        %v3448 = vsel %vm3447, %v3445, %v3442
        %v3449 = vsub.f32 %v3438, %v3448
        %v3450 = vmul.f32 %v3449, 0.5
        %v3451 = vrcp.pop %v3427
        %v3452 = vmul.f32 %v3450, %v3451
        %v3453 = vmul.f32 %v3452, %v3411
        %v3454 = vsel %vm663, %v3453, 0.0
        %3455 = vadd.xlane.f32.xlu0 %v3454
        %v3456 = vpop.xlane.xlu0 %3455
        %v3457 = vmul.f32 %v3456, %v2896
        %v3458 = vsub.f32 %v3453, %v3457
        %v3459 = vmul.f32 %v3458, %v3458
        %v3460 = vsel %vm663, %v3459, 0.0
        %3461 = vadd.xlane.f32.xlu0 %v3460
        %v3462 = vpop.xlane.xlu0 %3461
        %v3463 = vmul.f32 %v3462, 0.032258064
        %v3464 = vrsqrt.pop %v3463
        %v3465 = vmul.f32 %v3463, %v3464
        %vm3466 = vcmp.eq.f32.partialorder %v3463, inf
        %v3467 = vsel %vm3466, %v3463, %v3465
        %vm3468 = vcmp.eq.f32.partialorder %v3463, 0.0
        %v3469 = vand.u32 %v3463, 2147483648
        %v3470 = vsel %vm3468, %v3469, %v3467
        %v3471 = vadd.f32 %v3470, 1e-06
        %v3472 = vrcp.pop %v3471
        %v3473 = vmul.f32 %v3458, %v3472
        %v3475 = vlaneseq
        %v3476 = vshrl.u32 %v3475, 7
        %v3477 = vsub.s32 0, %v3476
        %v3478 = vrot.slane %v3412, %v3477
        %v3480 = vmul.f32 %v3478, %v3473
        %v3482 = vlaneseq
        %v3483 = vshrl.u32 %v3482, 7
        %v3484 = vsub.s32 0, %v3483
        %v3485 = vrot.slane %v3413, %v3484
        %v3487 = vadd.f32 %v3480, %v3485
        %v3488 = vmul.f32 %v3487, %v3487
        %v3489 = vsel %vm663, %v3488, 0.0
        %3490 = vadd.xlane.f32.xlu0 %v3489
        %v3491 = vpop.xlane.xlu0 %3490
        %v3492 = vmax.f32 %v3491, 0.0
        %v3493 = vrsqrt.pop %v3492
        %v3494 = vmul.f32 %v3492, %v3493
        %vm3495 = vcmp.eq.f32.partialorder %v3492, inf
        %v3496 = vsel %vm3495, %v3492, %v3494
        %vm3497 = vcmp.eq.f32.partialorder %v3492, 0.0
        %v3498 = vand.u32 %v3492, 2147483648
        %v3499 = vsel %vm3497, %v3498, %v3496
        %v3500 = vmax.f32 %v3499, 1e-07
        %v3501 = vtanh.pop %v3500
        %v3502 = vrcp.pop %v3500
        %v3503 = vmul.f32 %v3501, %v3502
        %v3504 = vmul.f32 %v3503, %v3487
        %v3506 = vlaneseq
        %v3507 = vshrl.u32 %v3506, 7
        %v3508 = vsub.s32 0, %v3507
        %v3509 = vrot.slane %v3414, %v3508
        %v3511 = vmul.f32 %v3504, %v3509
        %v3512 = vsel %vm663, %v3511, 0.0
        %3513 = vadd.xlane.f32.xlu0 %v3512
        %v3514 = vpop.xlane.xlu0 %3513
        %v3515 = vmul.f32 %v3504, %v3504
        %v3516 = vsel %vm663, %v3515, 0.0
        %3517 = vadd.xlane.f32.xlu0 %v3516
        %v3518 = vpop.xlane.xlu0 %3517
        %v3519 = vmul.f32 %v3414, %v3414
        %v3520 = vsel %vm795, %v3519, 0.0
        %3521 = vadd.xlane.f32.xlu0 %v3520
        %v3522 = vpop.xlane.xlu0 %3521
        %v3523 = vmul.f32 %v3514, 2.0
        %v3524 = vadd.f32 %v3523, 1.0
        %v3525 = vlaneseq
        %v3526 = vshrl.u32 %v3525, 7
        %v3527 = vsub.s32 0, %v3526
        %v3528 = vrot.slane %v3522, %v3527
        %v3529 = vadd.f32 %v3524, %v3528
        %v3530 = vmul.f32 %v3529, %v3504
        %v3531 = vsub.f32 1.0, %v3518
        %v3532 = vmul.f32 %v3531, %v3509
        %v3533 = vadd.f32 %v3530, %v3532
        %v3534 = vmul.f32 %v3518, %v3528
        %v3535 = vadd.f32 %v3524, %v3534
        %v3536 = vmax.f32 %v3535, 1e-07
        %v3537 = vrcp.pop %v3536
        %v3538 = vmul.f32 %v3533, %v3537
        %3539 = vst.msk [vmem:[%s648] sm:$0xff] %vm663, %v3538
        %s3540 = sand.u32 %s410, 1
        %s3541 = scalar_lea.sflag [#allocation4], %s3540
        %s3542 = sand.u32 %s410, 1
        %s3543 = smul.addr %s3542, 8
        %s3544 = scalar_lea.vmem [#allocation13], %s3543
        %s3545 = sand.u32 %s436, 1
        %s3546 = scalar_lea.sflag [#allocation15], %s3545
        %s3547 = sand.u32 %s436, 1
        %s3548 = smul.addr %s3547, 32
        %s3549 = scalar_lea.vmem [#allocation14], %s3548
        // Predicated region
        $region113: #{tpu_custom_call.1} parent=87 // pred_check
          %p3550 = pneg %p420
        $region114: #{tpu_custom_call.1} parent=87 // pred_check_branch
          %3552 = sbr.rel (%p3550) target = $region116
        $region115: #{tpu_custom_call.1} parent=87 // pred_region
          %s3554 = ssub.s32 128, 128
          %3555 = vsyncadd %s3541, %s3554
          %s3556 = smul.addr %s40, 128
          %s3557 = scalar_lea.hbm %s17, %s3556
          %s3559 = sshll.u32 %s3544, 4
          %s3560 = int_to_ptr.vmem [resolvable:$true] %s3559
          %3562 = dma.vmem_to_hbm [thread:$0]  %s3560, 128, %s3557, %s3541
        $region116: #{tpu_custom_call.1} parent=87 // pred_fallthru
          _
        // Predicated region
        $region117: #{tpu_custom_call.1} parent=87 // pred_check
          %p3563 = pneg %p446
        $region118: #{tpu_custom_call.1} parent=87 // pred_check_branch
          %3565 = sbr.rel (%p3563) target = $region120
        $region119: #{tpu_custom_call.1} parent=87 // pred_region
          %s3567 = ssub.s32 512, 512
          %3568 = vsyncadd %s3546, %s3567
          %s3569 = smul.addr %s40, 4
          %s3570 = smul.addr %s3569, 128
          %s3571 = scalar_lea.hbm %s18, %s3570
          %s3572 = sshll.u32 %s3549, 4
          %s3573 = int_to_ptr.vmem [resolvable:$true] %s3572
          %3578 = dma.vmem_to_hbm [thread:$0]  %s3573, 512, %s3571, %s3546, 128, 128, 8
        $region120: #{tpu_custom_call.1} parent=87 // pred_fallthru
          _
      $region88: #{tpu_custom_call.1} parent=5 // pred_fallthru
        _
      %p3579 = scmp.le.s32.totalorder 2, %s35
      // Predicated region
      $region121: #{tpu_custom_call.1} parent=5 // pred_check
        %p3580 = pneg %p3579
      $region122: #{tpu_custom_call.1} parent=5 // pred_check_branch
        %3582 = sbr.rel (%p3580) target = $region124
      $region123: #{tpu_custom_call.1} parent=5 // pred_region
        %s3583 = ssub.s32 %s35, 2
        // Predicated region
        $region125: #{tpu_custom_call.1} parent=123 // pred_check
          %p3584 = pneg %p426
        $region126: #{tpu_custom_call.1} parent=123 // pred_check_branch
          %3586 = sbr.rel (%p3584) target = $region128
        $region127: #{tpu_custom_call.1} parent=123 // pred_region
          %s3587 = sand.u32 %s411, 1
          %s3588 = scalar_lea.sflag [#allocation4], %s3587
          %s3589 = sand.u32 %s411, 1
          %s3590 = smul.addr %s3589, 8
          %s3591 = scalar_lea.vmem [#allocation13], %s3590
          %3592 = dma.done %s3588, 128
        $region128: #{tpu_custom_call.1} parent=123 // pred_fallthru
          _
        // Predicated region
        $region129: #{tpu_custom_call.1} parent=123 // pred_check
          %p3593 = pneg %p452
        $region130: #{tpu_custom_call.1} parent=123 // pred_check_branch
          %3595 = sbr.rel (%p3593) target = $region132
        $region131: #{tpu_custom_call.1} parent=123 // pred_region
          %s3596 = sand.u32 %s437, 1
          %s3597 = scalar_lea.sflag [#allocation15], %s3596
          %s3598 = sand.u32 %s437, 1
          %s3599 = smul.addr %s3598, 32
          %s3600 = scalar_lea.vmem [#allocation14], %s3599
          %3601 = dma.done %s3597, 512
        $region132: #{tpu_custom_call.1} parent=123 // pred_fallthru
          _
      $region124: #{tpu_custom_call.1} parent=5 // pred_fallthru
        _
    $region6: #{tpu_custom_call.1} parent=1 // loop_footer
      %s39 = sadd.s32 1, %s35
    $region7: #{tpu_custom_call.1} parent=1 // loop_footer_branch
      %34 = sbr.rel target = $region3
    $region8: #{tpu_custom_call.1} parent=1 // loop_exit
      _
    %3602 = vsyncpa [#allocation3], 1
    %s3603 = scalar_lea.sflag [#allocation3], 1
    %3604 = vsyncpa %s3603, 1
    %3605 = vsyncpa [#allocation6], 1
    %3606 = vsyncpa [#allocation9], 1
    %3607 = vsyncpa [#allocation12], 1
    %3608 = vsyncpa [#allocation4], 1
    %s3609 = scalar_lea.sflag [#allocation4], 1
    %3610 = vsyncpa %s3609, 1
    %3611 = vsyncpa [#allocation15], 1
    %s3612 = scalar_lea.sflag [#allocation15], 1
    %3613 = vsyncpa %s3612, 1

</llo_original>
